<compile_context>
chip_gen: v5e
topology: v5e:2x2
jax: 0.10.0
libtpu: 0.0.40
codegen_flags: <defaults>
</compile_context>

<pallas_src>
import math
import jax
import jax.numpy as jnp
from jax.experimental import pallas as pl
from jax.experimental.pallas import tpu as pltpu

# ---- BertConfig hyper-parameters from the module's __init__ ----------------
VOCAB    = 21128
LAYERS   = 4
HEADS    = 4
HIDDEN   = 256
HEAD_DIM = HIDDEN // HEADS        # 64
INTER    = 4 * HIDDEN             # 1024
MAX_POS  = 512
LN_EPS   = 1e-12


# ---------------------------------------------------------------------------
# In-kernel helpers (f32 math)
# ---------------------------------------------------------------------------
def _layernorm(x, gamma, beta):
    mu  = jnp.mean(x, axis=-1, keepdims=True)
    var = jnp.mean((x - mu) * (x - mu), axis=-1, keepdims=True)
    return (x - mu) * jax.lax.rsqrt(var + LN_EPS) * gamma + beta


def _gelu(x):
    # TODO(synk): HF BERT 'gelu' is erf-based; tanh approximation used for Mosaic portability.
    c = math.sqrt(2.0 / math.pi)
    return 0.5 * x * (1.0 + jnp.tanh(c * (x + 0.044715 * x * x * x)))


# ---------------------------------------------------------------------------
# Fused kernel: embedding LayerNorm -> 4 encoder layers -> 'last-avg' pooling
# grid = (B, LAYERS); activation lives in a persistent VMEM scratch; all layer
# weights are VMEM-resident (constant index maps) and indexed by `layer`.
# ---------------------------------------------------------------------------
def fused_encoder_kernel(emb_ref, mask_ref, eg_ref, eb_ref,
                         wqkv_ref, bqkv_ref, wo_ref, bo_ref,
                         ln1g_ref, ln1b_ref,
                         w1_ref, b1_ref, w2_ref, b2_ref,
                         ln2g_ref, ln2b_ref,
                         out_ref,
                         x_vmem, qkv_vmem, ctx_vmem):
    layer = pl.program_id(1)
    S, H = x_vmem.shape

    # ---- embedding LayerNorm -> persistent activation (once per batch elem) ----
    @pl.when(layer == 0)
    def _init():
        x_vmem[...] = _layernorm(emb_ref[0], eg_ref[...], eb_ref[...])

    x  = x_vmem[...]                                   # (S, H) f32
    xb = x.astype(jnp.bfloat16)

    mask_row = mask_ref[0]                             # (1, S) f32 additive mask

    # ---- fused QKV projection: one (S,H) @ (H,3H) MXU matmul -------------------
    # (Q columns of wqkv are pre-scaled by 1/sqrt(HEAD_DIM) at init time.)
    qkv = jnp.dot(xb, wqkv_ref[layer], preferred_element_type=jnp.float32)
    qkv_vmem[...] = (qkv + bqkv_ref[layer]).astype(jnp.bfloat16)   # (S, 3H) bf16 scratch

    # ---- multi-head self-attention: per-head softmax(QK^T)V into ctx scratch ---
    for h in range(HEADS):                             # static unroll (4 heads)
        qh = qkv_vmem[:, h * HEAD_DIM:(h + 1) * HEAD_DIM]
        kh = qkv_vmem[:, H     + h * HEAD_DIM:H     + (h + 1) * HEAD_DIM]
        vh = qkv_vmem[:, 2 * H + h * HEAD_DIM:2 * H + (h + 1) * HEAD_DIM]
        s = jax.lax.dot_general(qh, kh, (((1,), (1,)), ((), ())),   # qh @ kh.T
                                preferred_element_type=jnp.float32)
        s = s + mask_row                               # broadcast (1,S) at the add
        s = s - jnp.max(s, axis=-1, keepdims=True)
        p = jnp.exp(s)
        inv = pl.reciprocal(jnp.sum(p, axis=-1, keepdims=True), approx=True)
        ctx = jnp.dot(p.astype(jnp.bfloat16), vh,
                      preferred_element_type=jnp.float32) * inv     # (S, D) f32
        ctx_vmem[:, h * HEAD_DIM:(h + 1) * HEAD_DIM] = ctx.astype(jnp.bfloat16)

    # ---- single output projection: (S,H) @ (H,H) at full MXU depth --------------
    attn = jnp.dot(ctx_vmem[...], wo_ref[layer],
                   preferred_element_type=jnp.float32) + bo_ref[layer]

    h1 = _layernorm(x + attn, ln1g_ref[layer], ln1b_ref[layer])

    # ---- feed-forward -----------------------------------------------------------
    ff = jnp.dot(h1.astype(jnp.bfloat16), w1_ref[layer],
                 preferred_element_type=jnp.float32) + b1_ref[layer]
    ff = _gelu(ff)
    ff = jnp.dot(ff.astype(jnp.bfloat16), w2_ref[layer],
                 preferred_element_type=jnp.float32) + b2_ref[layer]

    y = _layernorm(h1 + ff, ln2g_ref[layer], ln2b_ref[layer])
    x_vmem[...] = y

    # ---- 'last-avg' pooling (== avg_pool1d over sequence) after final layer ----
    @pl.when(layer == LAYERS - 1)
    def _pool():
        out_ref[0] = jnp.mean(y, axis=0, keepdims=True)   # (1, H)


def fused_encoder(emb, mask_add, p):
    B, S, H = emb.shape

    rep2     = lambda b, l: (0, 0)
    rep3     = lambda b, l: (0, 0, 0)          # full stacked block, never re-fetched
    bybatch3 = lambda b, l: (b, 0, 0)

    in_specs = [
        pl.BlockSpec((1, S, H), bybatch3),                   # embeddings (pre-LN)
        pl.BlockSpec((1, 1, S), bybatch3),                   # additive attention mask
        pl.BlockSpec((1, H), rep2),                          # emb LN gamma
        pl.BlockSpec((1, H), rep2),                          # emb LN beta
        pl.BlockSpec((LAYERS, H, 3 * H), rep3),              # wqkv (bf16, resident)
        pl.BlockSpec((LAYERS, 1, 3 * H), rep3),              # bqkv
        pl.BlockSpec((LAYERS, H, H), rep3),                  # wo   (bf16, resident)
        pl.BlockSpec((LAYERS, 1, H), rep3),                  # bo
        pl.BlockSpec((LAYERS, 1, H), rep3),                  # ln1 gamma
        pl.BlockSpec((LAYERS, 1, H), rep3),                  # ln1 beta
        pl.BlockSpec((LAYERS, H, INTER), rep3),              # w1   (bf16, resident)
        pl.BlockSpec((LAYERS, 1, INTER), rep3),              # b1
        pl.BlockSpec((LAYERS, INTER, H), rep3),              # w2   (bf16, resident)
        pl.BlockSpec((LAYERS, 1, H), rep3),                  # b2
        pl.BlockSpec((LAYERS, 1, H), rep3),                  # ln2 gamma
        pl.BlockSpec((LAYERS, 1, H), rep3),                  # ln2 beta
    ]

    out = pl.pallas_call(
        fused_encoder_kernel,
        out_shape=jax.ShapeDtypeStruct((B, 1, H), jnp.float32),
        grid_spec=pltpu.PrefetchScalarGridSpec(
            num_scalar_prefetch=0,
            grid=(B, LAYERS),
            in_specs=in_specs,
            out_specs=pl.BlockSpec((1, 1, H), bybatch3),     # same block across layer axis
            scratch_shapes=[pltpu.VMEM((S, H), jnp.float32),        # persistent activation
                            pltpu.VMEM((S, 3 * H), jnp.bfloat16),   # fused QKV
                            pltpu.VMEM((S, H), jnp.bfloat16)]),     # concatenated heads
        compiler_params=pltpu.CompilerParams(
            dimension_semantics=("parallel", "arbitrary"),
            vmem_limit_bytes=32 * 1024 * 1024),
    )(emb, mask_add,
      p["emb_ln_g"], p["emb_ln_b"],
      p["wqkv"], p["bqkv"], p["wo"], p["bo"], p["ln1_g"], p["ln1_b"],
      p["w1"], p["b1"], p["w2"], p["b2"], p["ln2_g"], p["ln2_b"])
    return out[:, 0, :]


# ---------------------------------------------------------------------------
# Parameter construction (deterministic, synthetic) & full forward
# ---------------------------------------------------------------------------
def init_params(key):
    std = 0.02
    ks = jax.random.split(key, 9)
    nrm = lambda k, shape: std * jax.random.normal(k, shape, dtype=jnp.float32)

    wq = nrm(ks[3], (LAYERS, HIDDEN, HIDDEN))
    wk = nrm(ks[4], (LAYERS, HIDDEN, HIDDEN))
    wv = nrm(ks[5], (LAYERS, HIDDEN, HIDDEN))
    wo = nrm(ks[6], (LAYERS, HIDDEN, HIDDEN))
    w1 = nrm(ks[7], (LAYERS, HIDDEN, INTER))
    w2 = nrm(ks[8], (LAYERS, INTER, HIDDEN))

    # Fold the 1/sqrt(head_dim) attention scale into the Q projection weights
    # (and, were it nonzero, the Q bias slice of bqkv would need the same scale).
    wq = wq * (1.0 / math.sqrt(HEAD_DIM))

    ones_h  = jnp.ones((LAYERS, 1, HIDDEN), jnp.float32)
    zeros_h = jnp.zeros((LAYERS, 1, HIDDEN), jnp.float32)

    return {
        "word_emb": nrm(ks[0], (VOCAB, HIDDEN)),
        "pos_emb":  nrm(ks[1], (MAX_POS, HIDDEN)),
        "type_emb": nrm(ks[2], (16, HIDDEN)),
        "emb_ln_g": jnp.ones((1, HIDDEN), jnp.float32),
        "emb_ln_b": jnp.zeros((1, HIDDEN), jnp.float32),
        # stacked per-layer weights; matmul operands stored in bf16
        "wqkv": jnp.concatenate([wq, wk, wv], axis=-1).astype(jnp.bfloat16),   # (L,H,3H)
        "bqkv": jnp.zeros((LAYERS, 1, 3 * HIDDEN), jnp.float32),
        "wo":   wo.astype(jnp.bfloat16),                                       # (L,H,H)
        "bo":   zeros_h,
        "ln1_g": ones_h, "ln1_b": zeros_h,
        "w1": w1.astype(jnp.bfloat16),
        "b1": jnp.zeros((LAYERS, 1, INTER), jnp.float32),
        "w2": w2.astype(jnp.bfloat16),
        "b2": zeros_h,
        "ln2_g": ones_h, "ln2_b": zeros_h,
    }


@jax.jit
def geographical_attention_network(params, input_ids, attention_mask, token_type_ids):
    """Forward with defaults: with_entity_type=False, output_pooling='last-avg'."""
    del token_type_ids  # with_entity_type=False -> BERT called with token_type_ids=None
    B, S = input_ids.shape

    # --- embeddings (gather glue in plain JAX) ---
    emb = (jnp.take(params["word_emb"], input_ids, axis=0)
           + params["pos_emb"][:S][None, :, :]
           + params["type_emb"][0][None, None, :]).astype(jnp.float32)

    # --- extended attention mask: (1 - mask) * -10000, shape (B, 1, S) ---
    mask_add = ((1.0 - attention_mask.astype(jnp.float32)) * -10000.0)[:, None, :]

    # --- fused: emb LayerNorm + 4 encoder layers + 'last-avg' pooling ---
    return fused_encoder(emb, mask_add, params)   # (B, HIDDEN)


if __name__ == "__main__":
    B, S = 2, 128

    key = jax.random.PRNGKey(0)
    k_param, k_ids = jax.random.split(key)
    params = init_params(k_param)

    input_ids = jax.random.randint(k_ids, (B, S), 0, VOCAB, dtype=jnp.int32)
    attention_mask = jnp.ones((B, S), jnp.int32)
    token_type_ids = jnp.zeros((B, S), jnp.int32)

    out = geographical_attention_network(params, input_ids, attention_mask, token_type_ids)
    out = jax.block_until_ready(out)
    assert out.shape == (B, HIDDEN) and out.dtype == jnp.float32
    assert bool(jnp.all(jnp.isfinite(out)))
    print("KERNEL_OK")
</pallas_src>

<mosaic_0001>
module attributes {stable_mosaic.version = 11 : i64} {
  func.func @fused_encoder_kernel(%arg0: i32, %arg1: i32, %arg2: memref<1x128x256xf32, #tpu.memory_space<vmem>>, %arg3: memref<1x1x128xf32, #tpu.memory_space<vmem>>, %arg4: memref<1x256xf32, #tpu.memory_space<vmem>>, %arg5: memref<1x256xf32, #tpu.memory_space<vmem>>, %arg6: memref<4x256x768xbf16, #tpu.memory_space<vmem>>, %arg7: memref<4x1x768xf32, #tpu.memory_space<vmem>>, %arg8: memref<4x256x256xbf16, #tpu.memory_space<vmem>>, %arg9: memref<4x1x256xf32, #tpu.memory_space<vmem>>, %arg10: memref<4x1x256xf32, #tpu.memory_space<vmem>>, %arg11: memref<4x1x256xf32, #tpu.memory_space<vmem>>, %arg12: memref<4x256x1024xbf16, #tpu.memory_space<vmem>>, %arg13: memref<4x1x1024xf32, #tpu.memory_space<vmem>>, %arg14: memref<4x1024x256xbf16, #tpu.memory_space<vmem>>, %arg15: memref<4x1x256xf32, #tpu.memory_space<vmem>>, %arg16: memref<4x1x256xf32, #tpu.memory_space<vmem>>, %arg17: memref<4x1x256xf32, #tpu.memory_space<vmem>>, %arg18: memref<1x1x256xf32, #tpu.memory_space<vmem>>, %arg19: memref<128x256xf32, #tpu.memory_space<vmem>>, %arg20: memref<128x768xbf16, #tpu.memory_space<vmem>>, %arg21: memref<128x256xbf16, #tpu.memory_space<vmem>>) attributes {dimension_semantics = [#tpu.dimension_semantics<parallel>, #tpu.dimension_semantics<arbitrary>], iteration_bounds = array<i64: 2, 4>, scalar_prefetch = 0 : i64, scratch_operands = 3 : i64, tpu.core_type = #tpu.core_type<tc>, window_params = [{transform_indices = @transform_0, window_bounds = array<i64: 1, 128, 256>}, {transform_indices = @transform_1, window_bounds = array<i64: 1, 1, 128>}, {pipeline_mode = #tpu.pipeline_mode<synchronous>, transform_indices = @transform_2, window_bounds = array<i64: 1, 256>}, {pipeline_mode = #tpu.pipeline_mode<synchronous>, transform_indices = @transform_3, window_bounds = array<i64: 1, 256>}, {pipeline_mode = #tpu.pipeline_mode<synchronous>, transform_indices = @transform_4, window_bounds = array<i64: 4, 256, 768>}, {pipeline_mode = #tpu.pipeline_mode<synchronous>, transform_indices = @transform_5, window_bounds = array<i64: 4, 1, 768>}, {pipeline_mode = #tpu.pipeline_mode<synchronous>, transform_indices = @transform_6, window_bounds = array<i64: 4, 256, 256>}, {pipeline_mode = #tpu.pipeline_mode<synchronous>, transform_indices = @transform_7, window_bounds = array<i64: 4, 1, 256>}, {pipeline_mode = #tpu.pipeline_mode<synchronous>, transform_indices = @transform_8, window_bounds = array<i64: 4, 1, 256>}, {pipeline_mode = #tpu.pipeline_mode<synchronous>, transform_indices = @transform_9, window_bounds = array<i64: 4, 1, 256>}, {pipeline_mode = #tpu.pipeline_mode<synchronous>, transform_indices = @transform_10, window_bounds = array<i64: 4, 256, 1024>}, {pipeline_mode = #tpu.pipeline_mode<synchronous>, transform_indices = @transform_11, window_bounds = array<i64: 4, 1, 1024>}, {pipeline_mode = #tpu.pipeline_mode<synchronous>, transform_indices = @transform_12, window_bounds = array<i64: 4, 1024, 256>}, {pipeline_mode = #tpu.pipeline_mode<synchronous>, transform_indices = @transform_13, window_bounds = array<i64: 4, 1, 256>}, {pipeline_mode = #tpu.pipeline_mode<synchronous>, transform_indices = @transform_14, window_bounds = array<i64: 4, 1, 256>}, {pipeline_mode = #tpu.pipeline_mode<synchronous>, transform_indices = @transform_15, window_bounds = array<i64: 4, 1, 256>}, {transform_indices = @transform_16, window_bounds = array<i64: 1, 1, 256>}]} {
    %c0_i32 = arith.constant 0 : i32
    %0 = arith.cmpi eq, %arg1, %c0_i32 : i32
    %1 = arith.extui %0 : i1 to i32
    %c0_i32_0 = arith.constant 0 : i32
    %2 = arith.cmpi ne, %1, %c0_i32_0 : i32
    scf.if %2 {
      %c0_90 = arith.constant 0 : index
      %c0_91 = arith.constant 0 : index
      %c0_92 = arith.constant 0 : index
      %207 = vector.load %arg2[%c0_90, %c0_91, %c0_92] : memref<1x128x256xf32, #tpu.memory_space<vmem>>, vector<1x128x256xf32>
      %208 = vector.shape_cast %207 : vector<1x128x256xf32> to vector<128x256xf32>
      %c0_93 = arith.constant 0 : index
      %c0_94 = arith.constant 0 : index
      %209 = vector.load %arg4[%c0_93, %c0_94] : memref<1x256xf32, #tpu.memory_space<vmem>>, vector<1x256xf32>
      %c0_95 = arith.constant 0 : index
      %c0_96 = arith.constant 0 : index
      %210 = vector.load %arg5[%c0_95, %c0_96] : memref<1x256xf32, #tpu.memory_space<vmem>>, vector<1x256xf32>
      %cst_97 = arith.constant dense<0.000000e+00> : vector<128xf32>
      %211 = vector.multi_reduction <add>, %208, %cst_97 [1] : vector<128x256xf32> to vector<128xf32>
      %212 = vector.shape_cast %211 : vector<128xf32> to vector<128x1xf32>
      %cst_98 = arith.constant 2.560000e+02 : f32
      %213 = vector.broadcast %cst_98 : f32 to vector<128x1xf32>
      %214 = arith.divf %212, %213 : vector<128x1xf32>
      %215 = vector.broadcast %214 : vector<128x1xf32> to vector<128x256xf32>
      %216 = arith.subf %208, %215 : vector<128x256xf32>
      %217 = vector.broadcast %214 : vector<128x1xf32> to vector<128x256xf32>
      %218 = arith.subf %208, %217 : vector<128x256xf32>
      %219 = arith.mulf %216, %218 : vector<128x256xf32>
      %cst_99 = arith.constant dense<0.000000e+00> : vector<128xf32>
      %220 = vector.multi_reduction <add>, %219, %cst_99 [1] : vector<128x256xf32> to vector<128xf32>
      %221 = vector.shape_cast %220 : vector<128xf32> to vector<128x1xf32>
      %cst_100 = arith.constant 2.560000e+02 : f32
      %222 = vector.broadcast %cst_100 : f32 to vector<128x1xf32>
      %223 = arith.divf %221, %222 : vector<128x1xf32>
      %224 = vector.broadcast %214 : vector<128x1xf32> to vector<128x256xf32>
      %225 = arith.subf %208, %224 : vector<128x256xf32>
      %cst_101 = arith.constant 9.99999996E-13 : f32
      %226 = vector.broadcast %cst_101 : f32 to vector<128x1xf32>
      %227 = arith.addf %223, %226 : vector<128x1xf32>
      %228 = math.rsqrt %227 : vector<128x1xf32>
      %229 = vector.broadcast %228 : vector<128x1xf32> to vector<128x256xf32>
      %230 = arith.mulf %225, %229 : vector<128x256xf32>
      %231 = vector.broadcast %209 : vector<1x256xf32> to vector<128x256xf32>
      %232 = arith.mulf %230, %231 : vector<128x256xf32>
      %233 = vector.broadcast %210 : vector<1x256xf32> to vector<128x256xf32>
      %234 = arith.addf %232, %233 : vector<128x256xf32>
      %c0_102 = arith.constant 0 : index
      %c0_103 = arith.constant 0 : index
      %235 = vector.load %arg19[%c0_102, %c0_103] : memref<128x256xf32, #tpu.memory_space<vmem>>, vector<128x256xf32>
      tpu.vector_store %arg19[%c0_102, %c0_103], %234 {strides = array<i32>} : memref<128x256xf32, #tpu.memory_space<vmem>>, vector<128x256xf32>,
    } else {
    }
    %c0 = arith.constant 0 : index
    %c0_1 = arith.constant 0 : index
    %3 = vector.load %arg19[%c0, %c0_1] : memref<128x256xf32, #tpu.memory_space<vmem>>, vector<128x256xf32>
    %4 = arith.truncf %3 : vector<128x256xf32> to vector<128x256xbf16>
    %c0_2 = arith.constant 0 : index
    %c0_3 = arith.constant 0 : index
    %c0_4 = arith.constant 0 : index
    %5 = vector.load %arg3[%c0_2, %c0_3, %c0_4] : memref<1x1x128xf32, #tpu.memory_space<vmem>>, vector<1x1x128xf32>
    %6 = vector.shape_cast %5 : vector<1x1x128xf32> to vector<1x128xf32>
    %7 = arith.index_cast %arg1 : i32 to index
    %c0_5 = arith.constant 0 : index
    %c0_6 = arith.constant 0 : index
    %8 = vector.load %arg6[%7, %c0_5, %c0_6] : memref<4x256x768xbf16, #tpu.memory_space<vmem>>, vector<1x256x768xbf16>
    %9 = vector.shape_cast %8 : vector<1x256x768xbf16> to vector<256x768xbf16>
    %cst = arith.constant dense<0.000000e+00> : vector<128x768xf32>
    %10 = tpu.matmul %4, %9, %cst {dimension_numbers = #tpu.dot_dimension_numbers<[1], [0], [0], [1], [0, 0, 1, 1], [], []>} : vector<128x256xbf16>, vector<256x768xbf16>, vector<128x768xf32> -> vector<128x768xf32>
    %11 = arith.index_cast %arg1 : i32 to index
    %c0_7 = arith.constant 0 : index
    %c0_8 = arith.constant 0 : index
    %12 = vector.load %arg7[%11, %c0_7, %c0_8] : memref<4x1x768xf32, #tpu.memory_space<vmem>>, vector<1x1x768xf32>
    %13 = vector.shape_cast %12 : vector<1x1x768xf32> to vector<1x768xf32>
    %14 = vector.broadcast %13 : vector<1x768xf32> to vector<128x768xf32>
    %15 = arith.addf %10, %14 : vector<128x768xf32>
    %16 = arith.truncf %15 : vector<128x768xf32> to vector<128x768xbf16>
    %c0_9 = arith.constant 0 : index
    %c0_10 = arith.constant 0 : index
    %17 = vector.load %arg20[%c0_9, %c0_10] : memref<128x768xbf16, #tpu.memory_space<vmem>>, vector<128x768xbf16>
    tpu.vector_store %arg20[%c0_9, %c0_10], %16 {strides = array<i32>} : memref<128x768xbf16, #tpu.memory_space<vmem>>, vector<128x768xbf16>,
    %c0_11 = arith.constant 0 : index
    %c0_12 = arith.constant 0 : index
    %18 = vector.load %arg20[%c0_11, %c0_12] : memref<128x768xbf16, #tpu.memory_space<vmem>>, vector<128x64xbf16>
    %c0_13 = arith.constant 0 : index
    %c256 = arith.constant 256 : index
    %19 = vector.load %arg20[%c0_13, %c256] : memref<128x768xbf16, #tpu.memory_space<vmem>>, vector<128x64xbf16>
    %c0_14 = arith.constant 0 : index
    %c512 = arith.constant 512 : index
    %20 = vector.load %arg20[%c0_14, %c512] : memref<128x768xbf16, #tpu.memory_space<vmem>>, vector<128x64xbf16>
    %cst_15 = arith.constant dense<0.000000e+00> : vector<128x128xf32>
    %21 = tpu.matmul %18, %19, %cst_15 {dimension_numbers = #tpu.dot_dimension_numbers<[1], [1], [0], [0], [0, 0, 1, 0], [], []>} : vector<128x64xbf16>, vector<128x64xbf16>, vector<128x128xf32> -> vector<128x128xf32>
    %22 = vector.broadcast %6 : vector<1x128xf32> to vector<128x128xf32>
    %23 = arith.addf %21, %22 : vector<128x128xf32>
    %cst_16 = arith.constant dense<0xFF800000> : vector<128xf32>
    %24 = vector.multi_reduction <maximumf>, %23, %cst_16 [1] : vector<128x128xf32> to vector<128xf32>
    %25 = vector.shape_cast %24 : vector<128xf32> to vector<128x1xf32>
    %26 = vector.broadcast %25 : vector<128x1xf32> to vector<128x128xf32>
    %27 = arith.subf %23, %26 : vector<128x128xf32>
    %28 = math.exp %27 : vector<128x128xf32>
    %cst_17 = arith.constant dense<0.000000e+00> : vector<128xf32>
    %29 = vector.multi_reduction <add>, %28, %cst_17 [1] : vector<128x128xf32> to vector<128xf32>
    %30 = vector.shape_cast %29 : vector<128xf32> to vector<128x1xf32>
    %31 = tpu.reciprocal %30 {approx = true} : vector<128x1xf32> -> vector<128x1xf32>
    %32 = arith.truncf %28 : vector<128x128xf32> to vector<128x128xbf16>
    %cst_18 = arith.constant dense<0.000000e+00> : vector<128x64xf32>
    %33 = tpu.matmul %32, %20, %cst_18 {dimension_numbers = #tpu.dot_dimension_numbers<[1], [0], [0], [1], [0, 0, 1, 1], [], []>} : vector<128x128xbf16>, vector<128x64xbf16>, vector<128x64xf32> -> vector<128x64xf32>
    %34 = vector.broadcast %31 : vector<128x1xf32> to vector<128x64xf32>
    %35 = arith.mulf %33, %34 : vector<128x64xf32>
    %36 = arith.truncf %35 : vector<128x64xf32> to vector<128x64xbf16>
    %c0_19 = arith.constant 0 : index
    %c0_20 = arith.constant 0 : index
    %37 = vector.load %arg21[%c0_19, %c0_20] : memref<128x256xbf16, #tpu.memory_space<vmem>>, vector<128x64xbf16>
    tpu.vector_store %arg21[%c0_19, %c0_20], %36 {strides = array<i32>} : memref<128x256xbf16, #tpu.memory_space<vmem>>, vector<128x64xbf16>,
    %c0_21 = arith.constant 0 : index
    %c64 = arith.constant 64 : index
    %38 = vector.load %arg20[%c0_21, %c64] : memref<128x768xbf16, #tpu.memory_space<vmem>>, vector<128x64xbf16>
    %c0_22 = arith.constant 0 : index
    %c320 = arith.constant 320 : index
    %39 = vector.load %arg20[%c0_22, %c320] : memref<128x768xbf16, #tpu.memory_space<vmem>>, vector<128x64xbf16>
    %c0_23 = arith.constant 0 : index
    %c576 = arith.constant 576 : index
    %40 = vector.load %arg20[%c0_23, %c576] : memref<128x768xbf16, #tpu.memory_space<vmem>>, vector<128x64xbf16>
    %cst_24 = arith.constant dense<0.000000e+00> : vector<128x128xf32>
    %41 = tpu.matmul %38, %39, %cst_24 {dimension_numbers = #tpu.dot_dimension_numbers<[1], [1], [0], [0], [0, 0, 1, 0], [], []>} : vector<128x64xbf16>, vector<128x64xbf16>, vector<128x128xf32> -> vector<128x128xf32>
    %42 = vector.broadcast %6 : vector<1x128xf32> to vector<128x128xf32>
    %43 = arith.addf %41, %42 : vector<128x128xf32>
    %cst_25 = arith.constant dense<0xFF800000> : vector<128xf32>
    %44 = vector.multi_reduction <maximumf>, %43, %cst_25 [1] : vector<128x128xf32> to vector<128xf32>
    %45 = vector.shape_cast %44 : vector<128xf32> to vector<128x1xf32>
    %46 = vector.broadcast %45 : vector<128x1xf32> to vector<128x128xf32>
    %47 = arith.subf %43, %46 : vector<128x128xf32>
    %48 = math.exp %47 : vector<128x128xf32>
    %cst_26 = arith.constant dense<0.000000e+00> : vector<128xf32>
    %49 = vector.multi_reduction <add>, %48, %cst_26 [1] : vector<128x128xf32> to vector<128xf32>
    %50 = vector.shape_cast %49 : vector<128xf32> to vector<128x1xf32>
    %51 = tpu.reciprocal %50 {approx = true} : vector<128x1xf32> -> vector<128x1xf32>
    %52 = arith.truncf %48 : vector<128x128xf32> to vector<128x128xbf16>
    %cst_27 = arith.constant dense<0.000000e+00> : vector<128x64xf32>
    %53 = tpu.matmul %52, %40, %cst_27 {dimension_numbers = #tpu.dot_dimension_numbers<[1], [0], [0], [1], [0, 0, 1, 1], [], []>} : vector<128x128xbf16>, vector<128x64xbf16>, vector<128x64xf32> -> vector<128x64xf32>
    %54 = vector.broadcast %51 : vector<128x1xf32> to vector<128x64xf32>
    %55 = arith.mulf %53, %54 : vector<128x64xf32>
    %56 = arith.truncf %55 : vector<128x64xf32> to vector<128x64xbf16>
    %c0_28 = arith.constant 0 : index
    %c64_29 = arith.constant 64 : index
    %57 = vector.load %arg21[%c0_28, %c64_29] : memref<128x256xbf16, #tpu.memory_space<vmem>>, vector<128x64xbf16>
    tpu.vector_store %arg21[%c0_28, %c64_29], %56 {strides = array<i32>} : memref<128x256xbf16, #tpu.memory_space<vmem>>, vector<128x64xbf16>,
    %c0_30 = arith.constant 0 : index
    %c128 = arith.constant 128 : index
    %58 = vector.load %arg20[%c0_30, %c128] : memref<128x768xbf16, #tpu.memory_space<vmem>>, vector<128x64xbf16>
    %c0_31 = arith.constant 0 : index
    %c384 = arith.constant 384 : index
    %59 = vector.load %arg20[%c0_31, %c384] : memref<128x768xbf16, #tpu.memory_space<vmem>>, vector<128x64xbf16>
    %c0_32 = arith.constant 0 : index
    %c640 = arith.constant 640 : index
    %60 = vector.load %arg20[%c0_32, %c640] : memref<128x768xbf16, #tpu.memory_space<vmem>>, vector<128x64xbf16>
    %cst_33 = arith.constant dense<0.000000e+00> : vector<128x128xf32>
    %61 = tpu.matmul %58, %59, %cst_33 {dimension_numbers = #tpu.dot_dimension_numbers<[1], [1], [0], [0], [0, 0, 1, 0], [], []>} : vector<128x64xbf16>, vector<128x64xbf16>, vector<128x128xf32> -> vector<128x128xf32>
    %62 = vector.broadcast %6 : vector<1x128xf32> to vector<128x128xf32>
    %63 = arith.addf %61, %62 : vector<128x128xf32>
    %cst_34 = arith.constant dense<0xFF800000> : vector<128xf32>
    %64 = vector.multi_reduction <maximumf>, %63, %cst_34 [1] : vector<128x128xf32> to vector<128xf32>
    %65 = vector.shape_cast %64 : vector<128xf32> to vector<128x1xf32>
    %66 = vector.broadcast %65 : vector<128x1xf32> to vector<128x128xf32>
    %67 = arith.subf %63, %66 : vector<128x128xf32>
    %68 = math.exp %67 : vector<128x128xf32>
    %cst_35 = arith.constant dense<0.000000e+00> : vector<128xf32>
    %69 = vector.multi_reduction <add>, %68, %cst_35 [1] : vector<128x128xf32> to vector<128xf32>
    %70 = vector.shape_cast %69 : vector<128xf32> to vector<128x1xf32>
    %71 = tpu.reciprocal %70 {approx = true} : vector<128x1xf32> -> vector<128x1xf32>
    %72 = arith.truncf %68 : vector<128x128xf32> to vector<128x128xbf16>
    %cst_36 = arith.constant dense<0.000000e+00> : vector<128x64xf32>
    %73 = tpu.matmul %72, %60, %cst_36 {dimension_numbers = #tpu.dot_dimension_numbers<[1], [0], [0], [1], [0, 0, 1, 1], [], []>} : vector<128x128xbf16>, vector<128x64xbf16>, vector<128x64xf32> -> vector<128x64xf32>
    %74 = vector.broadcast %71 : vector<128x1xf32> to vector<128x64xf32>
    %75 = arith.mulf %73, %74 : vector<128x64xf32>
    %76 = arith.truncf %75 : vector<128x64xf32> to vector<128x64xbf16>
    %c0_37 = arith.constant 0 : index
    %c128_38 = arith.constant 128 : index
    %77 = vector.load %arg21[%c0_37, %c128_38] : memref<128x256xbf16, #tpu.memory_space<vmem>>, vector<128x64xbf16>
    tpu.vector_store %arg21[%c0_37, %c128_38], %76 {strides = array<i32>} : memref<128x256xbf16, #tpu.memory_space<vmem>>, vector<128x64xbf16>,
    %c0_39 = arith.constant 0 : index
    %c192 = arith.constant 192 : index
    %78 = vector.load %arg20[%c0_39, %c192] : memref<128x768xbf16, #tpu.memory_space<vmem>>, vector<128x64xbf16>
    %c0_40 = arith.constant 0 : index
    %c448 = arith.constant 448 : index
    %79 = vector.load %arg20[%c0_40, %c448] : memref<128x768xbf16, #tpu.memory_space<vmem>>, vector<128x64xbf16>
    %c0_41 = arith.constant 0 : index
    %c704 = arith.constant 704 : index
    %80 = vector.load %arg20[%c0_41, %c704] : memref<128x768xbf16, #tpu.memory_space<vmem>>, vector<128x64xbf16>
    %cst_42 = arith.constant dense<0.000000e+00> : vector<128x128xf32>
    %81 = tpu.matmul %78, %79, %cst_42 {dimension_numbers = #tpu.dot_dimension_numbers<[1], [1], [0], [0], [0, 0, 1, 0], [], []>} : vector<128x64xbf16>, vector<128x64xbf16>, vector<128x128xf32> -> vector<128x128xf32>
    %82 = vector.broadcast %6 : vector<1x128xf32> to vector<128x128xf32>
    %83 = arith.addf %81, %82 : vector<128x128xf32>
    %cst_43 = arith.constant dense<0xFF800000> : vector<128xf32>
    %84 = vector.multi_reduction <maximumf>, %83, %cst_43 [1] : vector<128x128xf32> to vector<128xf32>
    %85 = vector.shape_cast %84 : vector<128xf32> to vector<128x1xf32>
    %86 = vector.broadcast %85 : vector<128x1xf32> to vector<128x128xf32>
    %87 = arith.subf %83, %86 : vector<128x128xf32>
    %88 = math.exp %87 : vector<128x128xf32>
    %cst_44 = arith.constant dense<0.000000e+00> : vector<128xf32>
    %89 = vector.multi_reduction <add>, %88, %cst_44 [1] : vector<128x128xf32> to vector<128xf32>
    %90 = vector.shape_cast %89 : vector<128xf32> to vector<128x1xf32>
    %91 = tpu.reciprocal %90 {approx = true} : vector<128x1xf32> -> vector<128x1xf32>
    %92 = arith.truncf %88 : vector<128x128xf32> to vector<128x128xbf16>
    %cst_45 = arith.constant dense<0.000000e+00> : vector<128x64xf32>
    %93 = tpu.matmul %92, %80, %cst_45 {dimension_numbers = #tpu.dot_dimension_numbers<[1], [0], [0], [1], [0, 0, 1, 1], [], []>} : vector<128x128xbf16>, vector<128x64xbf16>, vector<128x64xf32> -> vector<128x64xf32>
    %94 = vector.broadcast %91 : vector<128x1xf32> to vector<128x64xf32>
    %95 = arith.mulf %93, %94 : vector<128x64xf32>
    %96 = arith.truncf %95 : vector<128x64xf32> to vector<128x64xbf16>
    %c0_46 = arith.constant 0 : index
    %c192_47 = arith.constant 192 : index
    %97 = vector.load %arg21[%c0_46, %c192_47] : memref<128x256xbf16, #tpu.memory_space<vmem>>, vector<128x64xbf16>
    tpu.vector_store %arg21[%c0_46, %c192_47], %96 {strides = array<i32>} : memref<128x256xbf16, #tpu.memory_space<vmem>>, vector<128x64xbf16>,
    %c0_48 = arith.constant 0 : index
    %c0_49 = arith.constant 0 : index
    %98 = vector.load %arg21[%c0_48, %c0_49] : memref<128x256xbf16, #tpu.memory_space<vmem>>, vector<128x256xbf16>
    %99 = arith.index_cast %arg1 : i32 to index
    %c0_50 = arith.constant 0 : index
    %c0_51 = arith.constant 0 : index
    %100 = vector.load %arg8[%99, %c0_50, %c0_51] : memref<4x256x256xbf16, #tpu.memory_space<vmem>>, vector<1x256x256xbf16>
    %101 = vector.shape_cast %100 : vector<1x256x256xbf16> to vector<256x256xbf16>
    %cst_52 = arith.constant dense<0.000000e+00> : vector<128x256xf32>
    %102 = tpu.matmul %98, %101, %cst_52 {dimension_numbers = #tpu.dot_dimension_numbers<[1], [0], [0], [1], [0, 0, 1, 1], [], []>} : vector<128x256xbf16>, vector<256x256xbf16>, vector<128x256xf32> -> vector<128x256xf32>
    %103 = arith.index_cast %arg1 : i32 to index
    %c0_53 = arith.constant 0 : index
    %c0_54 = arith.constant 0 : index
    %104 = vector.load %arg9[%103, %c0_53, %c0_54] : memref<4x1x256xf32, #tpu.memory_space<vmem>>, vector<1x1x256xf32>
    %105 = vector.shape_cast %104 : vector<1x1x256xf32> to vector<1x256xf32>
    %106 = vector.broadcast %105 : vector<1x256xf32> to vector<128x256xf32>
    %107 = arith.addf %102, %106 : vector<128x256xf32>
    %108 = arith.addf %3, %107 : vector<128x256xf32>
    %109 = arith.index_cast %arg1 : i32 to index
    %c0_55 = arith.constant 0 : index
    %c0_56 = arith.constant 0 : index
    %110 = vector.load %arg10[%109, %c0_55, %c0_56] : memref<4x1x256xf32, #tpu.memory_space<vmem>>, vector<1x1x256xf32>
    %111 = vector.shape_cast %110 : vector<1x1x256xf32> to vector<1x256xf32>
    %112 = arith.index_cast %arg1 : i32 to index
    %c0_57 = arith.constant 0 : index
    %c0_58 = arith.constant 0 : index
    %113 = vector.load %arg11[%112, %c0_57, %c0_58] : memref<4x1x256xf32, #tpu.memory_space<vmem>>, vector<1x1x256xf32>
    %114 = vector.shape_cast %113 : vector<1x1x256xf32> to vector<1x256xf32>
    %cst_59 = arith.constant dense<0.000000e+00> : vector<128xf32>
    %115 = vector.multi_reduction <add>, %108, %cst_59 [1] : vector<128x256xf32> to vector<128xf32>
    %116 = vector.shape_cast %115 : vector<128xf32> to vector<128x1xf32>
    %cst_60 = arith.constant 2.560000e+02 : f32
    %117 = vector.broadcast %cst_60 : f32 to vector<128x1xf32>
    %118 = arith.divf %116, %117 : vector<128x1xf32>
    %119 = vector.broadcast %118 : vector<128x1xf32> to vector<128x256xf32>
    %120 = arith.subf %108, %119 : vector<128x256xf32>
    %121 = vector.broadcast %118 : vector<128x1xf32> to vector<128x256xf32>
    %122 = arith.subf %108, %121 : vector<128x256xf32>
    %123 = arith.mulf %120, %122 : vector<128x256xf32>
    %cst_61 = arith.constant dense<0.000000e+00> : vector<128xf32>
    %124 = vector.multi_reduction <add>, %123, %cst_61 [1] : vector<128x256xf32> to vector<128xf32>
    %125 = vector.shape_cast %124 : vector<128xf32> to vector<128x1xf32>
    %cst_62 = arith.constant 2.560000e+02 : f32
    %126 = vector.broadcast %cst_62 : f32 to vector<128x1xf32>
    %127 = arith.divf %125, %126 : vector<128x1xf32>
    %128 = vector.broadcast %118 : vector<128x1xf32> to vector<128x256xf32>
    %129 = arith.subf %108, %128 : vector<128x256xf32>
    %cst_63 = arith.constant 9.99999996E-13 : f32
    %130 = vector.broadcast %cst_63 : f32 to vector<128x1xf32>
    %131 = arith.addf %127, %130 : vector<128x1xf32>
    %132 = math.rsqrt %131 : vector<128x1xf32>
    %133 = vector.broadcast %132 : vector<128x1xf32> to vector<128x256xf32>
    %134 = arith.mulf %129, %133 : vector<128x256xf32>
    %135 = vector.broadcast %111 : vector<1x256xf32> to vector<128x256xf32>
    %136 = arith.mulf %134, %135 : vector<128x256xf32>
    %137 = vector.broadcast %114 : vector<1x256xf32> to vector<128x256xf32>
    %138 = arith.addf %136, %137 : vector<128x256xf32>
    %139 = arith.truncf %138 : vector<128x256xf32> to vector<128x256xbf16>
    %140 = arith.index_cast %arg1 : i32 to index
    %c0_64 = arith.constant 0 : index
    %c0_65 = arith.constant 0 : index
    %141 = vector.load %arg12[%140, %c0_64, %c0_65] : memref<4x256x1024xbf16, #tpu.memory_space<vmem>>, vector<1x256x1024xbf16>
    %142 = vector.shape_cast %141 : vector<1x256x1024xbf16> to vector<256x1024xbf16>
    %cst_66 = arith.constant dense<0.000000e+00> : vector<128x1024xf32>
    %143 = tpu.matmul %139, %142, %cst_66 {dimension_numbers = #tpu.dot_dimension_numbers<[1], [0], [0], [1], [0, 0, 1, 1], [], []>} : vector<128x256xbf16>, vector<256x1024xbf16>, vector<128x1024xf32> -> vector<128x1024xf32>
    %144 = arith.index_cast %arg1 : i32 to index
    %c0_67 = arith.constant 0 : index
    %c0_68 = arith.constant 0 : index
    %145 = vector.load %arg13[%144, %c0_67, %c0_68] : memref<4x1x1024xf32, #tpu.memory_space<vmem>>, vector<1x1x1024xf32>
    %146 = vector.shape_cast %145 : vector<1x1x1024xf32> to vector<1x1024xf32>
    %147 = vector.broadcast %146 : vector<1x1024xf32> to vector<128x1024xf32>
    %148 = arith.addf %143, %147 : vector<128x1024xf32>
    %cst_69 = arith.constant 5.000000e-01 : f32
    %149 = vector.broadcast %cst_69 : f32 to vector<128x1024xf32>
    %150 = arith.mulf %149, %148 : vector<128x1024xf32>
    %cst_70 = arith.constant 4.471500e-02 : f32
    %151 = vector.broadcast %cst_70 : f32 to vector<128x1024xf32>
    %152 = arith.mulf %151, %148 : vector<128x1024xf32>
    %153 = arith.mulf %152, %148 : vector<128x1024xf32>
    %154 = arith.mulf %153, %148 : vector<128x1024xf32>
    %155 = arith.addf %148, %154 : vector<128x1024xf32>
    %cst_71 = arith.constant 0.797884583 : f32
    %156 = vector.broadcast %cst_71 : f32 to vector<128x1024xf32>
    %157 = arith.mulf %156, %155 : vector<128x1024xf32>
    %158 = math.tanh %157 : vector<128x1024xf32>
    %cst_72 = arith.constant 1.000000e+00 : f32
    %159 = vector.broadcast %cst_72 : f32 to vector<128x1024xf32>
    %160 = arith.addf %159, %158 : vector<128x1024xf32>
    %161 = arith.mulf %150, %160 : vector<128x1024xf32>
    %162 = arith.truncf %161 : vector<128x1024xf32> to vector<128x1024xbf16>
    %163 = arith.index_cast %arg1 : i32 to index
    %c0_73 = arith.constant 0 : index
    %c0_74 = arith.constant 0 : index
    %164 = vector.load %arg14[%163, %c0_73, %c0_74] : memref<4x1024x256xbf16, #tpu.memory_space<vmem>>, vector<1x1024x256xbf16>
    %165 = vector.shape_cast %164 : vector<1x1024x256xbf16> to vector<1024x256xbf16>
    %cst_75 = arith.constant dense<0.000000e+00> : vector<128x256xf32>
    %166 = tpu.matmul %162, %165, %cst_75 {dimension_numbers = #tpu.dot_dimension_numbers<[1], [0], [0], [1], [0, 0, 1, 1], [], []>} : vector<128x1024xbf16>, vector<1024x256xbf16>, vector<128x256xf32> -> vector<128x256xf32>
    %167 = arith.index_cast %arg1 : i32 to index
    %c0_76 = arith.constant 0 : index
    %c0_77 = arith.constant 0 : index
    %168 = vector.load %arg15[%167, %c0_76, %c0_77] : memref<4x1x256xf32, #tpu.memory_space<vmem>>, vector<1x1x256xf32>
    %169 = vector.shape_cast %168 : vector<1x1x256xf32> to vector<1x256xf32>
    %170 = vector.broadcast %169 : vector<1x256xf32> to vector<128x256xf32>
    %171 = arith.addf %166, %170 : vector<128x256xf32>
    %172 = arith.addf %138, %171 : vector<128x256xf32>
    %173 = arith.index_cast %arg1 : i32 to index
    %c0_78 = arith.constant 0 : index
    %c0_79 = arith.constant 0 : index
    %174 = vector.load %arg16[%173, %c0_78, %c0_79] : memref<4x1x256xf32, #tpu.memory_space<vmem>>, vector<1x1x256xf32>
    %175 = vector.shape_cast %174 : vector<1x1x256xf32> to vector<1x256xf32>
    %176 = arith.index_cast %arg1 : i32 to index
    %c0_80 = arith.constant 0 : index
    %c0_81 = arith.constant 0 : index
    %177 = vector.load %arg17[%176, %c0_80, %c0_81] : memref<4x1x256xf32, #tpu.memory_space<vmem>>, vector<1x1x256xf32>
    %178 = vector.shape_cast %177 : vector<1x1x256xf32> to vector<1x256xf32>
    %cst_82 = arith.constant dense<0.000000e+00> : vector<128xf32>
    %179 = vector.multi_reduction <add>, %172, %cst_82 [1] : vector<128x256xf32> to vector<128xf32>
    %180 = vector.shape_cast %179 : vector<128xf32> to vector<128x1xf32>
    %cst_83 = arith.constant 2.560000e+02 : f32
    %181 = vector.broadcast %cst_83 : f32 to vector<128x1xf32>
    %182 = arith.divf %180, %181 : vector<128x1xf32>
    %183 = vector.broadcast %182 : vector<128x1xf32> to vector<128x256xf32>
    %184 = arith.subf %172, %183 : vector<128x256xf32>
    %185 = vector.broadcast %182 : vector<128x1xf32> to vector<128x256xf32>
    %186 = arith.subf %172, %185 : vector<128x256xf32>
    %187 = arith.mulf %184, %186 : vector<128x256xf32>
    %cst_84 = arith.constant dense<0.000000e+00> : vector<128xf32>
    %188 = vector.multi_reduction <add>, %187, %cst_84 [1] : vector<128x256xf32> to vector<128xf32>
    %189 = vector.shape_cast %188 : vector<128xf32> to vector<128x1xf32>
    %cst_85 = arith.constant 2.560000e+02 : f32
    %190 = vector.broadcast %cst_85 : f32 to vector<128x1xf32>
    %191 = arith.divf %189, %190 : vector<128x1xf32>
    %192 = vector.broadcast %182 : vector<128x1xf32> to vector<128x256xf32>
    %193 = arith.subf %172, %192 : vector<128x256xf32>
    %cst_86 = arith.constant 9.99999996E-13 : f32
    %194 = vector.broadcast %cst_86 : f32 to vector<128x1xf32>
    %195 = arith.addf %191, %194 : vector<128x1xf32>
    %196 = math.rsqrt %195 : vector<128x1xf32>
    %197 = vector.broadcast %196 : vector<128x1xf32> to vector<128x256xf32>
    %198 = arith.mulf %193, %197 : vector<128x256xf32>
    %199 = vector.broadcast %175 : vector<1x256xf32> to vector<128x256xf32>
    %200 = arith.mulf %198, %199 : vector<128x256xf32>
    %201 = vector.broadcast %178 : vector<1x256xf32> to vector<128x256xf32>
    %202 = arith.addf %200, %201 : vector<128x256xf32>
    %c0_87 = arith.constant 0 : index
    %c0_88 = arith.constant 0 : index
    %203 = vector.load %arg19[%c0_87, %c0_88] : memref<128x256xf32, #tpu.memory_space<vmem>>, vector<128x256xf32>
    tpu.vector_store %arg19[%c0_87, %c0_88], %202 {strides = array<i32>} : memref<128x256xf32, #tpu.memory_space<vmem>>, vector<128x256xf32>,
    %c3_i32 = arith.constant 3 : i32
    %204 = arith.cmpi eq, %arg1, %c3_i32 : i32
    %205 = arith.extui %204 : i1 to i32
    %c0_i32_89 = arith.constant 0 : i32
    %206 = arith.cmpi ne, %205, %c0_i32_89 : i32
    scf.if %206 {
      %cst_90 = arith.constant dense<0.000000e+00> : vector<256xf32>
      %207 = vector.multi_reduction <add>, %202, %cst_90 [0] : vector<128x256xf32> to vector<256xf32>
      %208 = vector.shape_cast %207 : vector<256xf32> to vector<1x256xf32>
      %cst_91 = arith.constant 1.280000e+02 : f32
      %209 = vector.broadcast %cst_91 : f32 to vector<1x256xf32>
      %210 = arith.divf %208, %209 : vector<1x256xf32>
      %c0_92 = arith.constant 0 : index
      %c0_93 = arith.constant 0 : index
      %c0_94 = arith.constant 0 : index
      %211 = vector.load %arg18[%c0_92, %c0_93, %c0_94] : memref<1x1x256xf32, #tpu.memory_space<vmem>>, vector<1x1x256xf32>
      %212 = vector.shape_cast %211 : vector<1x1x256xf32> to vector<1x256xf32>
      %213 = vector.shape_cast %210 : vector<1x256xf32> to vector<1x1x256xf32>
      tpu.vector_store %arg18[%c0_92, %c0_93, %c0_94], %213 {strides = array<i32>} : memref<1x1x256xf32, #tpu.memory_space<vmem>>, vector<1x1x256xf32>,
    } else {
    }
    return
  }
  func.func @transform_0(%arg0: i32, %arg1: i32) -> (i32, i32, i32) {
    %c0_i32 = arith.constant 0 : i32
    %c0_i32_0 = arith.constant 0 : i32
    %c0_i32_1 = arith.constant 0 : i32
    return %arg0, %c0_i32, %c0_i32_0 : i32, i32, i32
  }
  func.func @transform_1(%arg0: i32, %arg1: i32) -> (i32, i32, i32) {
    %c0_i32 = arith.constant 0 : i32
    %c0_i32_0 = arith.constant 0 : i32
    %c0_i32_1 = arith.constant 0 : i32
    return %arg0, %c0_i32, %c0_i32_0 : i32, i32, i32
  }
  func.func @transform_2(%arg0: i32, %arg1: i32) -> (i32, i32) {
    %c0_i32 = arith.constant 0 : i32
    %c0_i32_0 = arith.constant 0 : i32
    %c0_i32_1 = arith.constant 0 : i32
    return %c0_i32, %c0_i32_0 : i32, i32
  }
  func.func @transform_3(%arg0: i32, %arg1: i32) -> (i32, i32) {
    %c0_i32 = arith.constant 0 : i32
    %c0_i32_0 = arith.constant 0 : i32
    %c0_i32_1 = arith.constant 0 : i32
    return %c0_i32, %c0_i32_0 : i32, i32
  }
  func.func @transform_4(%arg0: i32, %arg1: i32) -> (i32, i32, i32) {
    %c0_i32 = arith.constant 0 : i32
    %c0_i32_0 = arith.constant 0 : i32
    %c0_i32_1 = arith.constant 0 : i32
    %c0_i32_2 = arith.constant 0 : i32
    return %c0_i32, %c0_i32_0, %c0_i32_1 : i32, i32, i32
  }
  func.func @transform_5(%arg0: i32, %arg1: i32) -> (i32, i32, i32) {
    %c0_i32 = arith.constant 0 : i32
    %c0_i32_0 = arith.constant 0 : i32
    %c0_i32_1 = arith.constant 0 : i32
    %c0_i32_2 = arith.constant 0 : i32
    return %c0_i32, %c0_i32_0, %c0_i32_1 : i32, i32, i32
  }
  func.func @transform_6(%arg0: i32, %arg1: i32) -> (i32, i32, i32) {
    %c0_i32 = arith.constant 0 : i32
    %c0_i32_0 = arith.constant 0 : i32
    %c0_i32_1 = arith.constant 0 : i32
    %c0_i32_2 = arith.constant 0 : i32
    return %c0_i32, %c0_i32_0, %c0_i32_1 : i32, i32, i32
  }
  func.func @transform_7(%arg0: i32, %arg1: i32) -> (i32, i32, i32) {
    %c0_i32 = arith.constant 0 : i32
    %c0_i32_0 = arith.constant 0 : i32
    %c0_i32_1 = arith.constant 0 : i32
    %c0_i32_2 = arith.constant 0 : i32
    return %c0_i32, %c0_i32_0, %c0_i32_1 : i32, i32, i32
  }
  func.func @transform_8(%arg0: i32, %arg1: i32) -> (i32, i32, i32) {
    %c0_i32 = arith.constant 0 : i32
    %c0_i32_0 = arith.constant 0 : i32
    %c0_i32_1 = arith.constant 0 : i32
    %c0_i32_2 = arith.constant 0 : i32
    return %c0_i32, %c0_i32_0, %c0_i32_1 : i32, i32, i32
  }
  func.func @transform_9(%arg0: i32, %arg1: i32) -> (i32, i32, i32) {
    %c0_i32 = arith.constant 0 : i32
    %c0_i32_0 = arith.constant 0 : i32
    %c0_i32_1 = arith.constant 0 : i32
    %c0_i32_2 = arith.constant 0 : i32
    return %c0_i32, %c0_i32_0, %c0_i32_1 : i32, i32, i32
  }
  func.func @transform_10(%arg0: i32, %arg1: i32) -> (i32, i32, i32) {
    %c0_i32 = arith.constant 0 : i32
    %c0_i32_0 = arith.constant 0 : i32
    %c0_i32_1 = arith.constant 0 : i32
    %c0_i32_2 = arith.constant 0 : i32
    return %c0_i32, %c0_i32_0, %c0_i32_1 : i32, i32, i32
  }
  func.func @transform_11(%arg0: i32, %arg1: i32) -> (i32, i32, i32) {
    %c0_i32 = arith.constant 0 : i32
    %c0_i32_0 = arith.constant 0 : i32
    %c0_i32_1 = arith.constant 0 : i32
    %c0_i32_2 = arith.constant 0 : i32
    return %c0_i32, %c0_i32_0, %c0_i32_1 : i32, i32, i32
  }
  func.func @transform_12(%arg0: i32, %arg1: i32) -> (i32, i32, i32) {
    %c0_i32 = arith.constant 0 : i32
    %c0_i32_0 = arith.constant 0 : i32
    %c0_i32_1 = arith.constant 0 : i32
    %c0_i32_2 = arith.constant 0 : i32
    return %c0_i32, %c0_i32_0, %c0_i32_1 : i32, i32, i32
  }
  func.func @transform_13(%arg0: i32, %arg1: i32) -> (i32, i32, i32) {
    %c0_i32 = arith.constant 0 : i32
    %c0_i32_0 = arith.constant 0 : i32
    %c0_i32_1 = arith.constant 0 : i32
    %c0_i32_2 = arith.constant 0 : i32
    return %c0_i32, %c0_i32_0, %c0_i32_1 : i32, i32, i32
  }
  func.func @transform_14(%arg0: i32, %arg1: i32) -> (i32, i32, i32) {
    %c0_i32 = arith.constant 0 : i32
    %c0_i32_0 = arith.constant 0 : i32
    %c0_i32_1 = arith.constant 0 : i32
    %c0_i32_2 = arith.constant 0 : i32
    return %c0_i32, %c0_i32_0, %c0_i32_1 : i32, i32, i32
  }
  func.func @transform_15(%arg0: i32, %arg1: i32) -> (i32, i32, i32) {
    %c0_i32 = arith.constant 0 : i32
    %c0_i32_0 = arith.constant 0 : i32
    %c0_i32_1 = arith.constant 0 : i32
    %c0_i32_2 = arith.constant 0 : i32
    return %c0_i32, %c0_i32_0, %c0_i32_1 : i32, i32, i32
  }
  func.func @transform_16(%arg0: i32, %arg1: i32) -> (i32, i32, i32) {
    %c0_i32 = arith.constant 0 : i32
    %c0_i32_0 = arith.constant 0 : i32
    %c0_i32_1 = arith.constant 0 : i32
    return %arg0, %c0_i32, %c0_i32_0 : i32, i32, i32
  }
}

</mosaic_0001>

<llo_original>
// kernel: geographical_attention_network.1
$region0: #{geographical_attention_network.1}
  #allocation0 [shape = 'u32[]', space=smem, size = 0x4, offset = 0x4, fixed_abs, tag = 'smem constant byte address 0x4 - core index']
  #allocation1 [shape = 'u32[72,128]{1,0:T(1,128)}', space=vmem, size = 0x9000, scoped, tag = 'internal scratch']
  #allocation2 [shape = 'f32[128,256]{1,0:T(8,128)}', space=vmem, size = 0x20000, scoped, tag = 'scratch operand']
  #allocation3 [shape = 'bf16[128,768]{1,0:T(8,128)(2,1)}', space=vmem, size = 0x30000, scoped, tag = 'scratch operand']
  #allocation4 [shape = 'bf16[128,256]{1,0:T(8,128)(2,1)}', space=vmem, size = 0x10000, scoped, tag = 'scratch operand']
  %s0 = inlined_call_operand.vmem [shape: f32[2,128,256], index: 0, kind: input, shape index: {}]
  %s1 = inlined_call_operand.vmem [shape: f32[2,1,128], index: 1, kind: input, shape index: {}]
  %s2 = inlined_call_operand.vmem [shape: f32[1,256], index: 2, kind: input, shape index: {}]
  %s3 = inlined_call_operand.vmem [shape: f32[1,256], index: 3, kind: input, shape index: {}]
  %s4 = inlined_call_operand.hbm [shape: bf16[4,256,768], index: 4, kind: input, shape index: {}]
  %s5 = inlined_call_operand.vmem [shape: f32[4,1,768], index: 5, kind: input, shape index: {}]
  %s6 = inlined_call_operand.vmem [shape: bf16[4,256,256], index: 6, kind: input, shape index: {}]
  %s7 = inlined_call_operand.vmem [shape: f32[4,1,256], index: 7, kind: input, shape index: {}]
  %s8 = inlined_call_operand.vmem [shape: f32[4,1,256], index: 8, kind: input, shape index: {}]
  %s9 = inlined_call_operand.vmem [shape: f32[4,1,256], index: 9, kind: input, shape index: {}]
  %s10 = inlined_call_operand.vmem [shape: bf16[4,256,1024], index: 10, kind: input, shape index: {}]
  %s11 = inlined_call_operand.vmem [shape: f32[4,1,1024], index: 11, kind: input, shape index: {}]
  %s12 = inlined_call_operand.hbm [shape: bf16[4,1024,256], index: 12, kind: input, shape index: {}]
  %s13 = inlined_call_operand.vmem [shape: f32[4,1,256], index: 13, kind: input, shape index: {}]
  %s14 = inlined_call_operand.vmem [shape: f32[4,1,256], index: 14, kind: input, shape index: {}]
  %s15 = inlined_call_operand.vmem [shape: f32[4,1,256], index: 15, kind: input, shape index: {}]
  %s16 = inlined_call_operand.vmem [shape: f32[2,1,256], index: 16, kind: output, shape index: {}]
  %s17 = sld [smem:[#allocation0]]
  $region113: #{geographical_attention_network.1} parent=0
    _
  %s19 = ssub.s32 1, %s17
  %s20 = scalar_select 0, %s19, %s17
  $region1: #{geographical_attention_network.1} parent=0
    #allocation5 [shape = 'u8[1572864]{0}', space=vmem, size = 0x180000, scoped, tag = 'input window, operand 4, single buffered']
    #allocation6 [shape = 's32[2]{0}', space=sflag, size = 0x8, scoped, tag = 'scoped memory for geographical_attention_network.1']
    #allocation7 [shape = 'u8[2097152]{0}', space=vmem, size = 0x200000, scoped, tag = 'input window, operand 12, single buffered']
    #allocation8 [shape = 's32[1]{0}', space=sflag, size = 0x4, scoped, tag = 'scoped memory for geographical_attention_network.1']
    %21 = vsyncpa [#allocation6], 0
    %22 = vsyncpa [#allocation8], 0
    loop: start=0, step=1, limit=10
    $region2: #{geographical_attention_network.1} parent=1 // loop_pre_header
      _
    $region3: #{geographical_attention_network.1} parent=1 // loop_header
      %s24 = sphi 0, %s28
      %p25 = scmp.ge.s32.totalorder %s24, 10
      %s31 = sphi 0, %s43
      %s32 = sphi 0, %s39
      %s33 = sphi 0, %s31
      %s34 = sphi 0, %s32
      %s35 = sphi 0, %s33
      %s36 = sphi 0, %s34
      %s46 = sphi 0, %s48
      %s49 = sphi 0, %s46
      %s50 = sphi 0, %s49
      %s66 = sphi 0, %s50
      %s72 = sphi 0, %s74
      %s75 = sphi 0, %s72
      %s76 = sphi 0, %s75
      %s92 = sphi 0, %s76
      %s96 = sphi 0, %s96
      %s98 = sphi 0, %s96
      %s99 = sphi 0, %s98
      %s113 = sphi 0, %s99
      %s117 = sphi 0, %s117
      %s119 = sphi 0, %s117
      %s120 = sphi 0, %s119
      %s134 = sphi 0, %s120
      %s138 = sphi 0, %s138
      %s140 = sphi 0, %s138
      %s141 = sphi 0, %s140
      %s155 = sphi 0, %s141
      %s159 = sphi 0, %s159
      %s161 = sphi 0, %s159
      %s162 = sphi 0, %s161
      %s176 = sphi 0, %s162
      %s180 = sphi 0, %s180
      %s182 = sphi 0, %s180
      %s183 = sphi 0, %s182
      %s197 = sphi 0, %s183
      %s201 = sphi 0, %s201
      %s203 = sphi 0, %s201
      %s204 = sphi 0, %s203
      %s218 = sphi 0, %s204
      %s222 = sphi 0, %s222
      %s224 = sphi 0, %s222
      %s225 = sphi 0, %s224
      %s239 = sphi 0, %s225
      %s243 = sphi 0, %s243
      %s245 = sphi 0, %s243
      %s246 = sphi 0, %s245
      %s260 = sphi 0, %s246
      %s264 = sphi 0, %s264
      %s266 = sphi 0, %s264
      %s267 = sphi 0, %s266
      %s281 = sphi 0, %s267
      %s285 = sphi 0, %s285
      %s287 = sphi 0, %s285
      %s288 = sphi 0, %s287
      %s302 = sphi 0, %s288
      %s306 = sphi 0, %s306
      %s308 = sphi 0, %s306
      %s309 = sphi 0, %s308
      %s323 = sphi 0, %s309
      %s327 = sphi 0, %s327
      %s329 = sphi 0, %s327
      %s330 = sphi 0, %s329
      %s344 = sphi 0, %s330
      %s348 = sphi 0, %s348
      %s350 = sphi 0, %s348
      %s351 = sphi 0, %s350
      %s365 = sphi 0, %s351
      %s369 = sphi 0, %s369
      %s371 = sphi 0, %s369
      %s372 = sphi 0, %s371
      %s386 = sphi 0, %s372
      %s392 = sphi 0, %s394
      %s395 = sphi 0, %s392
      %s396 = sphi 0, %s395
      %s412 = sphi 0, %s396
    $region4: #{geographical_attention_network.1} parent=1 // loop_header_branch
      %27 = sbr.rel (%p25) target = $region8
    $region5: #{geographical_attention_network.1} parent=1 // loop_body
      %s29 = ssub.s32 %s24, 1
      %s30 = ssub.s32 %s24, 2
      %s37 = sadd.s32 1, %s32
      %p38 = scmp.ge.s32.totalorder %s37, 4
      %s39 = scalar_select %p38, 0, %s37
      %s40 = sadd.s32 1, %s31
      %s41 = scalar_select %p38, %s40, %s31
      %p42 = scmp.ge.s32.totalorder %s41, 2
      %s43 = scalar_select %p42, 0, %s41
      %s44 = ssub.s32 %s31, %s43
      %p45 = scmp.eq.s32.totalorder %s44, 0
      %s47 = sadd.s32 %s46, 1
      %s48 = scalar_select %p45, %s46, %s47
      %p51 = pneg %p45
      %p52 = scmp.eq.s32.totalorder %s24, 7
      %p53 = por %p51, %p52
      %p54 = scmp.ne.s32.totalorder %s46, %s49
      %p55 = scmp.eq.s32.totalorder %s24, 0
      %p56 = por %p54, %p55
      %p57 = scmp.ne.s32.totalorder %s46, %s49
      %p58 = scmp.eq.s32.totalorder %s29, 7
      %p59 = por %p57, %p58
      %p60 = scmp.ne.s32.totalorder %s49, %s50
      %p61 = scmp.eq.s32.totalorder %s29, 0
      %p62 = por %p60, %p61
      %p63 = scmp.ne.s32.totalorder %s49, %s50
      %p64 = scmp.eq.s32.totalorder %s30, 7
      %p65 = por %p63, %p64
      %p67 = scmp.ne.s32.totalorder %s50, %s66
      %p68 = scmp.eq.s32.totalorder %s30, 0
      %p69 = por %p67, %p68
      %s70 = ssub.s32 %s31, %s43
      %p71 = scmp.eq.s32.totalorder %s70, 0
      %s73 = sadd.s32 %s72, 1
      %s74 = scalar_select %p71, %s72, %s73
      %p77 = pneg %p71
      %p78 = scmp.eq.s32.totalorder %s24, 7
      %p79 = por %p77, %p78
      %p80 = scmp.ne.s32.totalorder %s72, %s75
      %p81 = scmp.eq.s32.totalorder %s24, 0
      %p82 = por %p80, %p81
      %p83 = scmp.ne.s32.totalorder %s72, %s75
      %p84 = scmp.eq.s32.totalorder %s29, 7
      %p85 = por %p83, %p84
      %p86 = scmp.ne.s32.totalorder %s75, %s76
      %p87 = scmp.eq.s32.totalorder %s29, 0
      %p88 = por %p86, %p87
      %p89 = scmp.ne.s32.totalorder %s75, %s76
      %p90 = scmp.eq.s32.totalorder %s30, 7
      %p91 = por %p89, %p90
      %p93 = scmp.ne.s32.totalorder %s76, %s92
      %p94 = scmp.eq.s32.totalorder %s30, 0
      %p95 = por %p93, %p94
      %s97 = sadd.s32 %s96, 1
      %p100 = scmp.eq.s32.totalorder %s24, 7
      %p101 = scmp.ne.s32.totalorder %s96, %s98
      %p102 = scmp.eq.s32.totalorder %s24, 0
      %p103 = por %p101, %p102
      %p104 = scmp.ne.s32.totalorder %s96, %s98
      %p105 = scmp.eq.s32.totalorder %s29, 7
      %p106 = por %p104, %p105
      %p107 = scmp.ne.s32.totalorder %s98, %s99
      %p108 = scmp.eq.s32.totalorder %s29, 0
      %p109 = por %p107, %p108
      %p110 = scmp.ne.s32.totalorder %s98, %s99
      %p111 = scmp.eq.s32.totalorder %s30, 7
      %p112 = por %p110, %p111
      %p114 = scmp.ne.s32.totalorder %s99, %s113
      %p115 = scmp.eq.s32.totalorder %s30, 0
      %p116 = por %p114, %p115
      %s118 = sadd.s32 %s117, 1
      %p121 = scmp.eq.s32.totalorder %s24, 7
      %p122 = scmp.ne.s32.totalorder %s117, %s119
      %p123 = scmp.eq.s32.totalorder %s24, 0
      %p124 = por %p122, %p123
      %p125 = scmp.ne.s32.totalorder %s117, %s119
      %p126 = scmp.eq.s32.totalorder %s29, 7
      %p127 = por %p125, %p126
      %p128 = scmp.ne.s32.totalorder %s119, %s120
      %p129 = scmp.eq.s32.totalorder %s29, 0
      %p130 = por %p128, %p129
      %p131 = scmp.ne.s32.totalorder %s119, %s120
      %p132 = scmp.eq.s32.totalorder %s30, 7
      %p133 = por %p131, %p132
      %p135 = scmp.ne.s32.totalorder %s120, %s134
      %p136 = scmp.eq.s32.totalorder %s30, 0
      %p137 = por %p135, %p136
      %s139 = sadd.s32 %s138, 1
      %p142 = scmp.eq.s32.totalorder %s24, 7
      %p143 = scmp.ne.s32.totalorder %s138, %s140
      %p144 = scmp.eq.s32.totalorder %s24, 0
      %p145 = por %p143, %p144
      %p146 = scmp.ne.s32.totalorder %s138, %s140
      %p147 = scmp.eq.s32.totalorder %s29, 7
      %p148 = por %p146, %p147
      %p149 = scmp.ne.s32.totalorder %s140, %s141
      %p150 = scmp.eq.s32.totalorder %s29, 0
      %p151 = por %p149, %p150
      %p152 = scmp.ne.s32.totalorder %s140, %s141
      %p153 = scmp.eq.s32.totalorder %s30, 7
      %p154 = por %p152, %p153
      %p156 = scmp.ne.s32.totalorder %s141, %s155
      %p157 = scmp.eq.s32.totalorder %s30, 0
      %p158 = por %p156, %p157
      %s160 = sadd.s32 %s159, 1
      %p163 = scmp.eq.s32.totalorder %s24, 7
      %p164 = scmp.ne.s32.totalorder %s159, %s161
      %p165 = scmp.eq.s32.totalorder %s24, 0
      %p166 = por %p164, %p165
      %p167 = scmp.ne.s32.totalorder %s159, %s161
      %p168 = scmp.eq.s32.totalorder %s29, 7
      %p169 = por %p167, %p168
      %p170 = scmp.ne.s32.totalorder %s161, %s162
      %p171 = scmp.eq.s32.totalorder %s29, 0
      %p172 = por %p170, %p171
      %p173 = scmp.ne.s32.totalorder %s161, %s162
      %p174 = scmp.eq.s32.totalorder %s30, 7
      %p175 = por %p173, %p174
      %p177 = scmp.ne.s32.totalorder %s162, %s176
      %p178 = scmp.eq.s32.totalorder %s30, 0
      %p179 = por %p177, %p178
      %s181 = sadd.s32 %s180, 1
      %p184 = scmp.eq.s32.totalorder %s24, 7
      %p185 = scmp.ne.s32.totalorder %s180, %s182
      %p186 = scmp.eq.s32.totalorder %s24, 0
      %p187 = por %p185, %p186
      %p188 = scmp.ne.s32.totalorder %s180, %s182
      %p189 = scmp.eq.s32.totalorder %s29, 7
      %p190 = por %p188, %p189
      %p191 = scmp.ne.s32.totalorder %s182, %s183
      %p192 = scmp.eq.s32.totalorder %s29, 0
      %p193 = por %p191, %p192
      %p194 = scmp.ne.s32.totalorder %s182, %s183
      %p195 = scmp.eq.s32.totalorder %s30, 7
      %p196 = por %p194, %p195
      %p198 = scmp.ne.s32.totalorder %s183, %s197
      %p199 = scmp.eq.s32.totalorder %s30, 0
      %p200 = por %p198, %p199
      %s202 = sadd.s32 %s201, 1
      %p205 = scmp.eq.s32.totalorder %s24, 7
      %p206 = scmp.ne.s32.totalorder %s201, %s203
      %p207 = scmp.eq.s32.totalorder %s24, 0
      %p208 = por %p206, %p207
      %p209 = scmp.ne.s32.totalorder %s201, %s203
      %p210 = scmp.eq.s32.totalorder %s29, 7
      %p211 = por %p209, %p210
      %p212 = scmp.ne.s32.totalorder %s203, %s204
      %p213 = scmp.eq.s32.totalorder %s29, 0
      %p214 = por %p212, %p213
      %p215 = scmp.ne.s32.totalorder %s203, %s204
      %p216 = scmp.eq.s32.totalorder %s30, 7
      %p217 = por %p215, %p216
      %p219 = scmp.ne.s32.totalorder %s204, %s218
      %p220 = scmp.eq.s32.totalorder %s30, 0
      %p221 = por %p219, %p220
      %s223 = sadd.s32 %s222, 1
      %p226 = scmp.eq.s32.totalorder %s24, 7
      %p227 = scmp.ne.s32.totalorder %s222, %s224
      %p228 = scmp.eq.s32.totalorder %s24, 0
      %p229 = por %p227, %p228
      %p230 = scmp.ne.s32.totalorder %s222, %s224
      %p231 = scmp.eq.s32.totalorder %s29, 7
      %p232 = por %p230, %p231
      %p233 = scmp.ne.s32.totalorder %s224, %s225
      %p234 = scmp.eq.s32.totalorder %s29, 0
      %p235 = por %p233, %p234
      %p236 = scmp.ne.s32.totalorder %s224, %s225
      %p237 = scmp.eq.s32.totalorder %s30, 7
      %p238 = por %p236, %p237
      %p240 = scmp.ne.s32.totalorder %s225, %s239
      %p241 = scmp.eq.s32.totalorder %s30, 0
      %p242 = por %p240, %p241
      %s244 = sadd.s32 %s243, 1
      %p247 = scmp.eq.s32.totalorder %s24, 7
      %p248 = scmp.ne.s32.totalorder %s243, %s245
      %p249 = scmp.eq.s32.totalorder %s24, 0
      %p250 = por %p248, %p249
      %p251 = scmp.ne.s32.totalorder %s243, %s245
      %p252 = scmp.eq.s32.totalorder %s29, 7
      %p253 = por %p251, %p252
      %p254 = scmp.ne.s32.totalorder %s245, %s246
      %p255 = scmp.eq.s32.totalorder %s29, 0
      %p256 = por %p254, %p255
      %p257 = scmp.ne.s32.totalorder %s245, %s246
      %p258 = scmp.eq.s32.totalorder %s30, 7
      %p259 = por %p257, %p258
      %p261 = scmp.ne.s32.totalorder %s246, %s260
      %p262 = scmp.eq.s32.totalorder %s30, 0
      %p263 = por %p261, %p262
      %s265 = sadd.s32 %s264, 1
      %p268 = scmp.eq.s32.totalorder %s24, 7
      %p269 = scmp.ne.s32.totalorder %s264, %s266
      %p270 = scmp.eq.s32.totalorder %s24, 0
      %p271 = por %p269, %p270
      %p272 = scmp.ne.s32.totalorder %s264, %s266
      %p273 = scmp.eq.s32.totalorder %s29, 7
      %p274 = por %p272, %p273
      %p275 = scmp.ne.s32.totalorder %s266, %s267
      %p276 = scmp.eq.s32.totalorder %s29, 0
      %p277 = por %p275, %p276
      %p278 = scmp.ne.s32.totalorder %s266, %s267
      %p279 = scmp.eq.s32.totalorder %s30, 7
      %p280 = por %p278, %p279
      %p282 = scmp.ne.s32.totalorder %s267, %s281
      %p283 = scmp.eq.s32.totalorder %s30, 0
      %p284 = por %p282, %p283
      %s286 = sadd.s32 %s285, 1
      %p289 = scmp.eq.s32.totalorder %s24, 7
      %p290 = scmp.ne.s32.totalorder %s285, %s287
      %p291 = scmp.eq.s32.totalorder %s24, 0
      %p292 = por %p290, %p291
      %p293 = scmp.ne.s32.totalorder %s285, %s287
      %p294 = scmp.eq.s32.totalorder %s29, 7
      %p295 = por %p293, %p294
      %p296 = scmp.ne.s32.totalorder %s287, %s288
      %p297 = scmp.eq.s32.totalorder %s29, 0
      %p298 = por %p296, %p297
      %p299 = scmp.ne.s32.totalorder %s287, %s288
      %p300 = scmp.eq.s32.totalorder %s30, 7
      %p301 = por %p299, %p300
      %p303 = scmp.ne.s32.totalorder %s288, %s302
      %p304 = scmp.eq.s32.totalorder %s30, 0
      %p305 = por %p303, %p304
      %s307 = sadd.s32 %s306, 1
      %p310 = scmp.eq.s32.totalorder %s24, 7
      %p311 = scmp.ne.s32.totalorder %s306, %s308
      %p312 = scmp.eq.s32.totalorder %s24, 0
      %p313 = por %p311, %p312
      %p314 = scmp.ne.s32.totalorder %s306, %s308
      %p315 = scmp.eq.s32.totalorder %s29, 7
      %p316 = por %p314, %p315
      %p317 = scmp.ne.s32.totalorder %s308, %s309
      %p318 = scmp.eq.s32.totalorder %s29, 0
      %p319 = por %p317, %p318
      %p320 = scmp.ne.s32.totalorder %s308, %s309
      %p321 = scmp.eq.s32.totalorder %s30, 7
      %p322 = por %p320, %p321
      %p324 = scmp.ne.s32.totalorder %s309, %s323
      %p325 = scmp.eq.s32.totalorder %s30, 0
      %p326 = por %p324, %p325
      %s328 = sadd.s32 %s327, 1
      %p331 = scmp.eq.s32.totalorder %s24, 7
      %p332 = scmp.ne.s32.totalorder %s327, %s329
      %p333 = scmp.eq.s32.totalorder %s24, 0
      %p334 = por %p332, %p333
      %p335 = scmp.ne.s32.totalorder %s327, %s329
      %p336 = scmp.eq.s32.totalorder %s29, 7
      %p337 = por %p335, %p336
      %p338 = scmp.ne.s32.totalorder %s329, %s330
      %p339 = scmp.eq.s32.totalorder %s29, 0
      %p340 = por %p338, %p339
      %p341 = scmp.ne.s32.totalorder %s329, %s330
      %p342 = scmp.eq.s32.totalorder %s30, 7
      %p343 = por %p341, %p342
      %p345 = scmp.ne.s32.totalorder %s330, %s344
      %p346 = scmp.eq.s32.totalorder %s30, 0
      %p347 = por %p345, %p346
      %s349 = sadd.s32 %s348, 1
      %p352 = scmp.eq.s32.totalorder %s24, 7
      %p353 = scmp.ne.s32.totalorder %s348, %s350
      %p354 = scmp.eq.s32.totalorder %s24, 0
      %p355 = por %p353, %p354
      %p356 = scmp.ne.s32.totalorder %s348, %s350
      %p357 = scmp.eq.s32.totalorder %s29, 7
      %p358 = por %p356, %p357
      %p359 = scmp.ne.s32.totalorder %s350, %s351
      %p360 = scmp.eq.s32.totalorder %s29, 0
      %p361 = por %p359, %p360
      %p362 = scmp.ne.s32.totalorder %s350, %s351
      %p363 = scmp.eq.s32.totalorder %s30, 7
      %p364 = por %p362, %p363
      %p366 = scmp.ne.s32.totalorder %s351, %s365
      %p367 = scmp.eq.s32.totalorder %s30, 0
      %p368 = por %p366, %p367
      %s370 = sadd.s32 %s369, 1
      %p373 = scmp.eq.s32.totalorder %s24, 7
      %p374 = scmp.ne.s32.totalorder %s369, %s371
      %p375 = scmp.eq.s32.totalorder %s24, 0
      %p376 = por %p374, %p375
      %p377 = scmp.ne.s32.totalorder %s369, %s371
      %p378 = scmp.eq.s32.totalorder %s29, 7
      %p379 = por %p377, %p378
      %p380 = scmp.ne.s32.totalorder %s371, %s372
      %p381 = scmp.eq.s32.totalorder %s29, 0
      %p382 = por %p380, %p381
      %p383 = scmp.ne.s32.totalorder %s371, %s372
      %p384 = scmp.eq.s32.totalorder %s30, 7
      %p385 = por %p383, %p384
      %p387 = scmp.ne.s32.totalorder %s372, %s386
      %p388 = scmp.eq.s32.totalorder %s30, 0
      %p389 = por %p387, %p388
      %s390 = ssub.s32 %s31, %s43
      %p391 = scmp.eq.s32.totalorder %s390, 0
      %s393 = sadd.s32 %s392, 1
      %s394 = scalar_select %p391, %s392, %s393
      %p397 = pneg %p391
      %p398 = scmp.eq.s32.totalorder %s24, 7
      %p399 = por %p397, %p398
      %p400 = scmp.ne.s32.totalorder %s392, %s395
      %p401 = scmp.eq.s32.totalorder %s24, 0
      %p402 = por %p400, %p401
      %p403 = scmp.ne.s32.totalorder %s392, %s395
      %p404 = scmp.eq.s32.totalorder %s29, 7
      %p405 = por %p403, %p404
      %p406 = scmp.ne.s32.totalorder %s395, %s396
      %p407 = scmp.eq.s32.totalorder %s29, 0
      %p408 = por %p406, %p407
      %p409 = scmp.ne.s32.totalorder %s395, %s396
      %p410 = scmp.eq.s32.totalorder %s30, 7
      %p411 = por %p409, %p410
      %p413 = scmp.ne.s32.totalorder %s396, %s412
      %p414 = scmp.eq.s32.totalorder %s30, 0
      %p415 = por %p413, %p414
      %p416 = scmp.le.s32.totalorder 1, %s24
      %p417 = scmp.lt.s32.totalorder %s24, 9
      %p418 = pnand %p416, %p417
      %p419 = pneg %p418
      // Predicated region
      $region9: #{geographical_attention_network.1} parent=5 // pred_check
        _
      $region10: #{geographical_attention_network.1} parent=5 // pred_check_branch
        %421 = sbr.rel (%p418) target = $region12
      $region11: #{geographical_attention_network.1} parent=5 // pred_region
        %s422 = ssub.s32 %s24, 1
        // Predicated region
        $region13: #{geographical_attention_network.1} parent=11 // pred_check
          %p423 = pneg %p109
        $region14: #{geographical_attention_network.1} parent=11 // pred_check_branch
          %425 = sbr.rel (%p423) target = $region16
        $region15: #{geographical_attention_network.1} parent=11 // pred_region
          _
        $region16: #{geographical_attention_network.1} parent=11 // pred_fallthru
          _
        // Predicated region
        $region17: #{geographical_attention_network.1} parent=11 // pred_check
          %p426 = pneg %p130
        $region18: #{geographical_attention_network.1} parent=11 // pred_check_branch
          %428 = sbr.rel (%p426) target = $region20
        $region19: #{geographical_attention_network.1} parent=11 // pred_region
          _
        $region20: #{geographical_attention_network.1} parent=11 // pred_fallthru
          _
        // Predicated region
        $region21: #{geographical_attention_network.1} parent=11 // pred_check
          %p429 = pneg %p151
        $region22: #{geographical_attention_network.1} parent=11 // pred_check_branch
          %431 = sbr.rel (%p429) target = $region24
        $region23: #{geographical_attention_network.1} parent=11 // pred_region
          %433 = vsyncadd [#allocation6], 0
          %s434 = sshll.u32 %s4, 4
          %s435 = int_to_ptr.hbm [resolvable:$true] %s434
          %s436 = sshll.u32 [#allocation5], 4
          %s437 = int_to_ptr.vmem [resolvable:$true] %s436
          %442 = dma.hbm_to_vmem [thread:$0]  %s435, 49152, %s437, [#allocation6], 384, 384, 24
        $region24: #{geographical_attention_network.1} parent=11 // pred_fallthru
          _
        // Predicated region
        $region25: #{geographical_attention_network.1} parent=11 // pred_check
          %p443 = pneg %p172
        $region26: #{geographical_attention_network.1} parent=11 // pred_check_branch
          %445 = sbr.rel (%p443) target = $region28
        $region27: #{geographical_attention_network.1} parent=11 // pred_region
          _
        $region28: #{geographical_attention_network.1} parent=11 // pred_fallthru
          _
        // Predicated region
        $region29: #{geographical_attention_network.1} parent=11 // pred_check
          %p446 = pneg %p193
        $region30: #{geographical_attention_network.1} parent=11 // pred_check_branch
          %448 = sbr.rel (%p446) target = $region32
        $region31: #{geographical_attention_network.1} parent=11 // pred_region
          _
        $region32: #{geographical_attention_network.1} parent=11 // pred_fallthru
          _
        // Predicated region
        $region33: #{geographical_attention_network.1} parent=11 // pred_check
          %p449 = pneg %p214
        $region34: #{geographical_attention_network.1} parent=11 // pred_check_branch
          %451 = sbr.rel (%p449) target = $region36
        $region35: #{geographical_attention_network.1} parent=11 // pred_region
          _
        $region36: #{geographical_attention_network.1} parent=11 // pred_fallthru
          _
        // Predicated region
        $region37: #{geographical_attention_network.1} parent=11 // pred_check
          %p452 = pneg %p235
        $region38: #{geographical_attention_network.1} parent=11 // pred_check_branch
          %454 = sbr.rel (%p452) target = $region40
        $region39: #{geographical_attention_network.1} parent=11 // pred_region
          _
        $region40: #{geographical_attention_network.1} parent=11 // pred_fallthru
          _
        // Predicated region
        $region41: #{geographical_attention_network.1} parent=11 // pred_check
          %p455 = pneg %p256
        $region42: #{geographical_attention_network.1} parent=11 // pred_check_branch
          %457 = sbr.rel (%p455) target = $region44
        $region43: #{geographical_attention_network.1} parent=11 // pred_region
          _
        $region44: #{geographical_attention_network.1} parent=11 // pred_fallthru
          _
        // Predicated region
        $region45: #{geographical_attention_network.1} parent=11 // pred_check
          %p458 = pneg %p277
        $region46: #{geographical_attention_network.1} parent=11 // pred_check_branch
          %460 = sbr.rel (%p458) target = $region48
        $region47: #{geographical_attention_network.1} parent=11 // pred_region
          _
        $region48: #{geographical_attention_network.1} parent=11 // pred_fallthru
          _
        // Predicated region
        $region49: #{geographical_attention_network.1} parent=11 // pred_check
          %p461 = pneg %p298
        $region50: #{geographical_attention_network.1} parent=11 // pred_check_branch
          %463 = sbr.rel (%p461) target = $region52
        $region51: #{geographical_attention_network.1} parent=11 // pred_region
          _
        $region52: #{geographical_attention_network.1} parent=11 // pred_fallthru
          _
        // Predicated region
        $region53: #{geographical_attention_network.1} parent=11 // pred_check
          %p464 = pneg %p319
        $region54: #{geographical_attention_network.1} parent=11 // pred_check_branch
          %466 = sbr.rel (%p464) target = $region56
        $region55: #{geographical_attention_network.1} parent=11 // pred_region
          %468 = vsyncadd [#allocation8], 0
          %s469 = sshll.u32 %s12, 4
          %s470 = int_to_ptr.hbm [resolvable:$true] %s469
          %s471 = sshll.u32 [#allocation7], 4
          %s472 = int_to_ptr.vmem [resolvable:$true] %s471
          %477 = dma.hbm_to_vmem [thread:$0]  %s470, 65536, %s472, [#allocation8], 128, 128, 8
        $region56: #{geographical_attention_network.1} parent=11 // pred_fallthru
          _
        // Predicated region
        $region57: #{geographical_attention_network.1} parent=11 // pred_check
          %p478 = pneg %p340
        $region58: #{geographical_attention_network.1} parent=11 // pred_check_branch
          %480 = sbr.rel (%p478) target = $region60
        $region59: #{geographical_attention_network.1} parent=11 // pred_region
          _
        $region60: #{geographical_attention_network.1} parent=11 // pred_fallthru
          _
        // Predicated region
        $region61: #{geographical_attention_network.1} parent=11 // pred_check
          %p481 = pneg %p361
        $region62: #{geographical_attention_network.1} parent=11 // pred_check_branch
          %483 = sbr.rel (%p481) target = $region64
        $region63: #{geographical_attention_network.1} parent=11 // pred_region
          _
        $region64: #{geographical_attention_network.1} parent=11 // pred_fallthru
          _
        // Predicated region
        $region65: #{geographical_attention_network.1} parent=11 // pred_check
          %p484 = pneg %p382
        $region66: #{geographical_attention_network.1} parent=11 // pred_check_branch
          %486 = sbr.rel (%p484) target = $region68
        $region67: #{geographical_attention_network.1} parent=11 // pred_region
          _
        $region68: #{geographical_attention_network.1} parent=11 // pred_fallthru
          _
      $region12: #{geographical_attention_network.1} parent=5 // pred_fallthru
        _
      %p487 = scmp.lt.s32.totalorder %s24, 8
      // Predicated region
      $region69: #{geographical_attention_network.1} parent=5 // pred_check
        %p488 = pneg %p487
      $region70: #{geographical_attention_network.1} parent=5 // pred_check_branch
        %490 = sbr.rel (%p488) target = $region72
      $region71: #{geographical_attention_network.1} parent=5 // pred_region
        // Predicated region
        $region73: #{geographical_attention_network.1} parent=71 // pred_check
          %p491 = pneg %p56
        $region74: #{geographical_attention_network.1} parent=71 // pred_check_branch
          %493 = sbr.rel (%p491) target = $region76
        $region75: #{geographical_attention_network.1} parent=71 // pred_region
          %p494 = scmp.lt.s32.totalorder %s31, 1
          %s495 = scalar_select %p494, %s31, 1
          %s496 = smul.addr %s495, 32
          %s497 = smul.addr %s496, 8
          %s498 = scalar_lea.vmem %s0, %s497
        $region76: #{geographical_attention_network.1} parent=71 // pred_fallthru
          _
        // Predicated region
        $region77: #{geographical_attention_network.1} parent=71 // pred_check
          %p499 = pneg %p82
        $region78: #{geographical_attention_network.1} parent=71 // pred_check_branch
          %501 = sbr.rel (%p499) target = $region80
        $region79: #{geographical_attention_network.1} parent=71 // pred_region
          %p502 = scmp.lt.s32.totalorder %s31, 1
          %s503 = scalar_select %p502, %s31, 1
          %s504 = scalar_lea.vmem %s1, %s503
        $region80: #{geographical_attention_network.1} parent=71 // pred_fallthru
          _
      $region72: #{geographical_attention_network.1} parent=5 // pred_fallthru
        _
      %p505 = scmp.le.s32.totalorder 1, %s24
      %p506 = scmp.lt.s32.totalorder %s24, 9
      %p507 = pnand %p505, %p506
      %p508 = pneg %p507
      // Predicated region
      $region81: #{geographical_attention_network.1} parent=5 // pred_check
        _
      $region82: #{geographical_attention_network.1} parent=5 // pred_check_branch
        %510 = sbr.rel (%p507) target = $region84
      $region83: #{geographical_attention_network.1} parent=5 // pred_region
        %s511 = ssub.s32 %s24, 1
        // Predicated region
        $region85: #{geographical_attention_network.1} parent=83 // pred_check
          %p512 = pneg %p151
        $region86: #{geographical_attention_network.1} parent=83 // pred_check_branch
          %514 = sbr.rel (%p512) target = $region88
        $region87: #{geographical_attention_network.1} parent=83 // pred_region
          %516 = dma.done [#allocation6], 49152
        $region88: #{geographical_attention_network.1} parent=83 // pred_fallthru
          _
        // Predicated region
        $region89: #{geographical_attention_network.1} parent=83 // pred_check
          %p517 = pneg %p319
        $region90: #{geographical_attention_network.1} parent=83 // pred_check_branch
          %519 = sbr.rel (%p517) target = $region92
        $region91: #{geographical_attention_network.1} parent=83 // pred_region
          %521 = dma.done [#allocation8], 65536
        $region92: #{geographical_attention_network.1} parent=83 // pred_fallthru
          _
        %p522 = scmp.lt.s32.totalorder %s33, 1
        %s523 = scalar_select %p522, %s33, 1
        %s524 = smul.addr %s523, 32
        %s525 = smul.addr %s524, 8
        %s526 = scalar_lea.vmem %s0, %s525
        %p527 = pneg %p62
        %p528 = pneg %p59
        %p529 = scmp.lt.s32.totalorder %s33, 1
        %s530 = scalar_select %p529, %s33, 1
        %s531 = scalar_lea.vmem %s1, %s530
        %p532 = pneg %p88
        %p533 = pneg %p85
        %p534 = pneg %p109
        %p535 = pneg %p106
        %p536 = pneg %p130
        %p537 = pneg %p127
        %p538 = pneg %p151
        %p539 = pneg %p148
        %p540 = pneg %p172
        %p541 = pneg %p169
        %p542 = pneg %p193
        %p543 = pneg %p190
        %p544 = pneg %p214
        %p545 = pneg %p211
        %p546 = pneg %p235
        %p547 = pneg %p232
        %p548 = pneg %p256
        %p549 = pneg %p253
        %p550 = pneg %p277
        %p551 = pneg %p274
        %p552 = pneg %p298
        %p553 = pneg %p295
        %p554 = pneg %p319
        %p555 = pneg %p316
        %p556 = pneg %p340
        %p557 = pneg %p337
        %p558 = pneg %p361
        %p559 = pneg %p358
        %p560 = pneg %p382
        %p561 = pneg %p379
        %p562 = pneg %p408
        %p563 = pneg %p405
        %p564 = scmp.lt.s32.totalorder %s33, 1
        %s565 = scalar_select %p564, %s33, 1
        %s566 = smul.addr %s565, 2
        %s567 = scalar_lea.vmem %s16, %s566
        %p568 = scmp.lt.s32.totalorder %s33, 1
        %s569 = scalar_select %p568, %s33, 1
        %s570 = smul.addr %s569, 32
        %s571 = smul.addr %s570, 8
        %s572 = scalar_lea.vmem %s0, %s571
        %p573 = scmp.lt.s32.totalorder %s33, 1
        %s574 = scalar_select %p573, %s33, 1
        %s575 = scalar_lea.vmem %s1, %s574
        %p576 = scmp.lt.s32.totalorder %s33, 1
        %s577 = scalar_select %p576, %s33, 1
        %s578 = smul.addr %s577, 2
        %s579 = scalar_lea.vmem %s16, %s578
        %p580 = scmp.eq.s32.totalorder %s34, 0
        // Predicated region
        $region93: #{geographical_attention_network.1} parent=83 // pred_check
          %p581 = pneg %p580
        $region94: #{geographical_attention_network.1} parent=83 // pred_check_branch
          %583 = sbr.rel (%p581) target = $region96
        $region95: #{geographical_attention_network.1} parent=83 // pred_region
          %v584 = vld [vmem:[%s572] sm:$0xff]
          %v585 = vld [vmem:[%s572 + $0x8] sm:$0xff]
          %v586 = vld [vmem:[%s572 + $0x10] sm:$0xff]
          %v587 = vld [vmem:[%s572 + $0x18] sm:$0xff]
          %v588 = vld [vmem:[%s572 + $0x20] sm:$0xff]
          %v589 = vld [vmem:[%s572 + $0x28] sm:$0xff]
          %v590 = vld [vmem:[%s572 + $0x30] sm:$0xff]
          %v591 = vld [vmem:[%s572 + $0x38] sm:$0xff]
          %v592 = vld [vmem:[%s572 + $0x40] sm:$0xff]
          %v593 = vld [vmem:[%s572 + $0x48] sm:$0xff]
          %v594 = vld [vmem:[%s572 + $0x50] sm:$0xff]
          %v595 = vld [vmem:[%s572 + $0x58] sm:$0xff]
          %v596 = vld [vmem:[%s572 + $0x60] sm:$0xff]
          %v597 = vld [vmem:[%s572 + $0x68] sm:$0xff]
          %v598 = vld [vmem:[%s572 + $0x70] sm:$0xff]
          %v599 = vld [vmem:[%s572 + $0x78] sm:$0xff]
          %v600 = vld [vmem:[%s572 + $0x80] sm:$0xff]
          %v601 = vld [vmem:[%s572 + $0x88] sm:$0xff]
          %v602 = vld [vmem:[%s572 + $0x90] sm:$0xff]
          %v603 = vld [vmem:[%s572 + $0x98] sm:$0xff]
          %v604 = vld [vmem:[%s572 + $0xa0] sm:$0xff]
          %v605 = vld [vmem:[%s572 + $0xa8] sm:$0xff]
          %v606 = vld [vmem:[%s572 + $0xb0] sm:$0xff]
          %v607 = vld [vmem:[%s572 + $0xb8] sm:$0xff]
          %v608 = vld [vmem:[%s572 + $0xc0] sm:$0xff]
          %v609 = vld [vmem:[%s572 + $0xc8] sm:$0xff]
          %v610 = vld [vmem:[%s572 + $0xd0] sm:$0xff]
          %v611 = vld [vmem:[%s572 + $0xd8] sm:$0xff]
          %v612 = vld [vmem:[%s572 + $0xe0] sm:$0xff]
          %v613 = vld [vmem:[%s572 + $0xe8] sm:$0xff]
          %v614 = vld [vmem:[%s572 + $0xf0] sm:$0xff]
          %v615 = vld [vmem:[%s572 + $0xf8] sm:$0xff]
          %v616 = vld [vmem:[%s2] sm:$0x3]
          %v617 = vld [vmem:[%s3] sm:$0x3]
          %v618 = vadd.f32 %v584, %v585
          %619 = vadd.xlane.f32.xlu0 %v618
          %v620 = vpop.xlane.xlu0 %619
          %v621 = vadd.f32 %v586, %v587
          %622 = vadd.xlane.f32.xlu0 %v621
          %v623 = vpop.xlane.xlu0 %622
          %v624 = vadd.f32 %v588, %v589
          %625 = vadd.xlane.f32.xlu0 %v624
          %v626 = vpop.xlane.xlu0 %625
          %v627 = vadd.f32 %v590, %v591
          %628 = vadd.xlane.f32.xlu0 %v627
          %v629 = vpop.xlane.xlu0 %628
          %v630 = vadd.f32 %v592, %v593
          %631 = vadd.xlane.f32.xlu0 %v630
          %v632 = vpop.xlane.xlu0 %631
          %v633 = vadd.f32 %v594, %v595
          %634 = vadd.xlane.f32.xlu0 %v633
          %v635 = vpop.xlane.xlu0 %634
          %v636 = vadd.f32 %v596, %v597
          %637 = vadd.xlane.f32.xlu0 %v636
          %v638 = vpop.xlane.xlu0 %637
          %v639 = vadd.f32 %v598, %v599
          %640 = vadd.xlane.f32.xlu0 %v639
          %v641 = vpop.xlane.xlu0 %640
          %v642 = vadd.f32 %v600, %v601
          %643 = vadd.xlane.f32.xlu0 %v642
          %v644 = vpop.xlane.xlu0 %643
          %v645 = vadd.f32 %v602, %v603
          %646 = vadd.xlane.f32.xlu0 %v645
          %v647 = vpop.xlane.xlu0 %646
          %v648 = vadd.f32 %v604, %v605
          %649 = vadd.xlane.f32.xlu0 %v648
          %v650 = vpop.xlane.xlu0 %649
          %v651 = vadd.f32 %v606, %v607
          %652 = vadd.xlane.f32.xlu0 %v651
          %v653 = vpop.xlane.xlu0 %652
          %v654 = vadd.f32 %v608, %v609
          %655 = vadd.xlane.f32.xlu0 %v654
          %v656 = vpop.xlane.xlu0 %655
          %v657 = vadd.f32 %v610, %v611
          %658 = vadd.xlane.f32.xlu0 %v657
          %v659 = vpop.xlane.xlu0 %658
          %v660 = vadd.f32 %v612, %v613
          %661 = vadd.xlane.f32.xlu0 %v660
          %v662 = vpop.xlane.xlu0 %661
          %v663 = vadd.f32 %v614, %v615
          %664 = vadd.xlane.f32.xlu0 %v663
          %v665 = vpop.xlane.xlu0 %664
          %v666 = vrcp.pop 256.0
          %v667 = vmul.f32 256.0, %v666
          %v668 = vsub.f32 1.0, %v667
          %v669 = vmul.f32 %v666, %v668
          %v670 = vadd.f32 %v666, %v669
          %vm671 = vweird.f32 %v666
          %v672 = vsel %vm671, %v666, %v670
          %v673 = vmul.f32 %v620, %v672
          %v674 = vmul.f32 %v623, %v672
          %v675 = vmul.f32 %v626, %v672
          %v676 = vmul.f32 %v629, %v672
          %v677 = vmul.f32 %v632, %v672
          %v678 = vmul.f32 %v635, %v672
          %v679 = vmul.f32 %v638, %v672
          %v680 = vmul.f32 %v641, %v672
          %v681 = vmul.f32 %v644, %v672
          %v682 = vmul.f32 %v647, %v672
          %v683 = vmul.f32 %v650, %v672
          %v684 = vmul.f32 %v653, %v672
          %v685 = vmul.f32 %v656, %v672
          %v686 = vmul.f32 %v659, %v672
          %v687 = vmul.f32 %v662, %v672
          %v688 = vmul.f32 %v665, %v672
          %v689 = vsub.f32 %v584, %v673
          %v690 = vsub.f32 %v585, %v673
          %v691 = vsub.f32 %v586, %v674
          %v692 = vsub.f32 %v587, %v674
          %v693 = vsub.f32 %v588, %v675
          %v694 = vsub.f32 %v589, %v675
          %v695 = vsub.f32 %v590, %v676
          %v696 = vsub.f32 %v591, %v676
          %v697 = vsub.f32 %v592, %v677
          %v698 = vsub.f32 %v593, %v677
          %v699 = vsub.f32 %v594, %v678
          %v700 = vsub.f32 %v595, %v678
          %v701 = vsub.f32 %v596, %v679
          %v702 = vsub.f32 %v597, %v679
          %v703 = vsub.f32 %v598, %v680
          %v704 = vsub.f32 %v599, %v680
          %v705 = vsub.f32 %v600, %v681
          %v706 = vsub.f32 %v601, %v681
          %v707 = vsub.f32 %v602, %v682
          %v708 = vsub.f32 %v603, %v682
          %v709 = vsub.f32 %v604, %v683
          %v710 = vsub.f32 %v605, %v683
          %v711 = vsub.f32 %v606, %v684
          %v712 = vsub.f32 %v607, %v684
          %v713 = vsub.f32 %v608, %v685
          %v714 = vsub.f32 %v609, %v685
          %v715 = vsub.f32 %v610, %v686
          %v716 = vsub.f32 %v611, %v686
          %v717 = vsub.f32 %v612, %v687
          %v718 = vsub.f32 %v613, %v687
          %v719 = vsub.f32 %v614, %v688
          %v720 = vsub.f32 %v615, %v688
          %v721 = vmul.f32 %v689, %v689
          %v722 = vmul.f32 %v690, %v690
          %v723 = vmul.f32 %v691, %v691
          %v724 = vmul.f32 %v692, %v692
          %v725 = vmul.f32 %v693, %v693
          %v726 = vmul.f32 %v694, %v694
          %v727 = vmul.f32 %v695, %v695
          %v728 = vmul.f32 %v696, %v696
          %v729 = vmul.f32 %v697, %v697
          %v730 = vmul.f32 %v698, %v698
          %v731 = vmul.f32 %v699, %v699
          %v732 = vmul.f32 %v700, %v700
          %v733 = vmul.f32 %v701, %v701
          %v734 = vmul.f32 %v702, %v702
          %v735 = vmul.f32 %v703, %v703
          %v736 = vmul.f32 %v704, %v704
          %v737 = vmul.f32 %v705, %v705
          %v738 = vmul.f32 %v706, %v706
          %v739 = vmul.f32 %v707, %v707
          %v740 = vmul.f32 %v708, %v708
          %v741 = vmul.f32 %v709, %v709
          %v742 = vmul.f32 %v710, %v710
          %v743 = vmul.f32 %v711, %v711
          %v744 = vmul.f32 %v712, %v712
          %v745 = vmul.f32 %v713, %v713
          %v746 = vmul.f32 %v714, %v714
          %v747 = vmul.f32 %v715, %v715
          %v748 = vmul.f32 %v716, %v716
          %v749 = vmul.f32 %v717, %v717
          %v750 = vmul.f32 %v718, %v718
          %v751 = vmul.f32 %v719, %v719
          %v752 = vmul.f32 %v720, %v720
          %v753 = vadd.f32 %v721, %v722
          %754 = vadd.xlane.f32.xlu0 %v753
          %v755 = vpop.xlane.xlu0 %754
          %v756 = vadd.f32 %v723, %v724
          %757 = vadd.xlane.f32.xlu0 %v756
          %v758 = vpop.xlane.xlu0 %757
          %v759 = vadd.f32 %v725, %v726
          %760 = vadd.xlane.f32.xlu0 %v759
          %v761 = vpop.xlane.xlu0 %760
          %v762 = vadd.f32 %v727, %v728
          %763 = vadd.xlane.f32.xlu0 %v762
          %v764 = vpop.xlane.xlu0 %763
          %v765 = vadd.f32 %v729, %v730
          %766 = vadd.xlane.f32.xlu0 %v765
          %v767 = vpop.xlane.xlu0 %766
          %v768 = vadd.f32 %v731, %v732
          %769 = vadd.xlane.f32.xlu0 %v768
          %v770 = vpop.xlane.xlu0 %769
          %v771 = vadd.f32 %v733, %v734
          %772 = vadd.xlane.f32.xlu0 %v771
          %v773 = vpop.xlane.xlu0 %772
          %v774 = vadd.f32 %v735, %v736
          %775 = vadd.xlane.f32.xlu0 %v774
          %v776 = vpop.xlane.xlu0 %775
          %v777 = vadd.f32 %v737, %v738
          %778 = vadd.xlane.f32.xlu0 %v777
          %v779 = vpop.xlane.xlu0 %778
          %v780 = vadd.f32 %v739, %v740
          %781 = vadd.xlane.f32.xlu0 %v780
          %v782 = vpop.xlane.xlu0 %781
          %v783 = vadd.f32 %v741, %v742
          %784 = vadd.xlane.f32.xlu0 %v783
          %v785 = vpop.xlane.xlu0 %784
          %v786 = vadd.f32 %v743, %v744
          %787 = vadd.xlane.f32.xlu0 %v786
          %v788 = vpop.xlane.xlu0 %787
          %v789 = vadd.f32 %v745, %v746
          %790 = vadd.xlane.f32.xlu0 %v789
          %v791 = vpop.xlane.xlu0 %790
          %v792 = vadd.f32 %v747, %v748
          %793 = vadd.xlane.f32.xlu0 %v792
          %v794 = vpop.xlane.xlu0 %793
          %v795 = vadd.f32 %v749, %v750
          %796 = vadd.xlane.f32.xlu0 %v795
          %v797 = vpop.xlane.xlu0 %796
          %v798 = vadd.f32 %v751, %v752
          %799 = vadd.xlane.f32.xlu0 %v798
          %v800 = vpop.xlane.xlu0 %799
          %v801 = vmul.f32 %v755, %v672
          %v802 = vmul.f32 %v758, %v672
          %v803 = vmul.f32 %v761, %v672
          %v804 = vmul.f32 %v764, %v672
          %v805 = vmul.f32 %v767, %v672
          %v806 = vmul.f32 %v770, %v672
          %v807 = vmul.f32 %v773, %v672
          %v808 = vmul.f32 %v776, %v672
          %v809 = vmul.f32 %v779, %v672
          %v810 = vmul.f32 %v782, %v672
          %v811 = vmul.f32 %v785, %v672
          %v812 = vmul.f32 %v788, %v672
          %v813 = vmul.f32 %v791, %v672
          %v814 = vmul.f32 %v794, %v672
          %v815 = vmul.f32 %v797, %v672
          %v816 = vmul.f32 %v800, %v672
          %v817 = vadd.f32 %v801, 1e-12
          %v818 = vadd.f32 %v802, 1e-12
          %v819 = vadd.f32 %v803, 1e-12
          %v820 = vadd.f32 %v804, 1e-12
          %v821 = vadd.f32 %v805, 1e-12
          %v822 = vadd.f32 %v806, 1e-12
          %v823 = vadd.f32 %v807, 1e-12
          %v824 = vadd.f32 %v808, 1e-12
          %v825 = vadd.f32 %v809, 1e-12
          %v826 = vadd.f32 %v810, 1e-12
          %v827 = vadd.f32 %v811, 1e-12
          %v828 = vadd.f32 %v812, 1e-12
          %v829 = vadd.f32 %v813, 1e-12
          %v830 = vadd.f32 %v814, 1e-12
          %v831 = vadd.f32 %v815, 1e-12
          %v832 = vadd.f32 %v816, 1e-12
          %v833 = vrsqrt.pop %v817
          %v834 = vmul.f32 %v833, %v817
          %v835 = vmul.f32 %v834, %v833
          %v836 = vmul.f32 0.5, %v835
          %v837 = vsub.f32 1.5, %v836
          %v838 = vmul.f32 %v833, %v837
          %vm839 = vweird.f32 %v817
          %vm840 = vweird.f32 %v833
          %vm841 = vmor %vm839, %vm840
          %v842 = vsel %vm841, %v833, %v838
          %v843 = vrsqrt.pop %v818
          %v844 = vmul.f32 %v843, %v818
          %v845 = vmul.f32 %v844, %v843
          %v846 = vmul.f32 0.5, %v845
          %v847 = vsub.f32 1.5, %v846
          %v848 = vmul.f32 %v843, %v847
          %vm849 = vweird.f32 %v818
          %vm850 = vweird.f32 %v843
          %vm851 = vmor %vm849, %vm850
          %v852 = vsel %vm851, %v843, %v848
          %v853 = vrsqrt.pop %v819
          %v854 = vmul.f32 %v853, %v819
          %v855 = vmul.f32 %v854, %v853
          %v856 = vmul.f32 0.5, %v855
          %v857 = vsub.f32 1.5, %v856
          %v858 = vmul.f32 %v853, %v857
          %vm859 = vweird.f32 %v819
          %vm860 = vweird.f32 %v853
          %vm861 = vmor %vm859, %vm860
          %v862 = vsel %vm861, %v853, %v858
          %v863 = vrsqrt.pop %v820
          %v864 = vmul.f32 %v863, %v820
          %v865 = vmul.f32 %v864, %v863
          %v866 = vmul.f32 0.5, %v865
          %v867 = vsub.f32 1.5, %v866
          %v868 = vmul.f32 %v863, %v867
          %vm869 = vweird.f32 %v820
          %vm870 = vweird.f32 %v863
          %vm871 = vmor %vm869, %vm870
          %v872 = vsel %vm871, %v863, %v868
          %v873 = vrsqrt.pop %v821
          %v874 = vmul.f32 %v873, %v821
          %v875 = vmul.f32 %v874, %v873
          %v876 = vmul.f32 0.5, %v875
          %v877 = vsub.f32 1.5, %v876
          %v878 = vmul.f32 %v873, %v877
          %vm879 = vweird.f32 %v821
          %vm880 = vweird.f32 %v873
          %vm881 = vmor %vm879, %vm880
          %v882 = vsel %vm881, %v873, %v878
          %v883 = vrsqrt.pop %v822
          %v884 = vmul.f32 %v883, %v822
          %v885 = vmul.f32 %v884, %v883
          %v886 = vmul.f32 0.5, %v885
          %v887 = vsub.f32 1.5, %v886
          %v888 = vmul.f32 %v883, %v887
          %vm889 = vweird.f32 %v822
          %vm890 = vweird.f32 %v883
          %vm891 = vmor %vm889, %vm890
          %v892 = vsel %vm891, %v883, %v888
          %v893 = vrsqrt.pop %v823
          %v894 = vmul.f32 %v893, %v823
          %v895 = vmul.f32 %v894, %v893
          %v896 = vmul.f32 0.5, %v895
          %v897 = vsub.f32 1.5, %v896
          %v898 = vmul.f32 %v893, %v897
          %vm899 = vweird.f32 %v823
          %vm900 = vweird.f32 %v893
          %vm901 = vmor %vm899, %vm900
          %v902 = vsel %vm901, %v893, %v898
          %v903 = vrsqrt.pop %v824
          %v904 = vmul.f32 %v903, %v824
          %v905 = vmul.f32 %v904, %v903
          %v906 = vmul.f32 0.5, %v905
          %v907 = vsub.f32 1.5, %v906
          %v908 = vmul.f32 %v903, %v907
          %vm909 = vweird.f32 %v824
          %vm910 = vweird.f32 %v903
          %vm911 = vmor %vm909, %vm910
          %v912 = vsel %vm911, %v903, %v908
          %v913 = vrsqrt.pop %v825
          %v914 = vmul.f32 %v913, %v825
          %v915 = vmul.f32 %v914, %v913
          %v916 = vmul.f32 0.5, %v915
          %v917 = vsub.f32 1.5, %v916
          %v918 = vmul.f32 %v913, %v917
          %vm919 = vweird.f32 %v825
          %vm920 = vweird.f32 %v913
          %vm921 = vmor %vm919, %vm920
          %v922 = vsel %vm921, %v913, %v918
          %v923 = vrsqrt.pop %v826
          %v924 = vmul.f32 %v923, %v826
          %v925 = vmul.f32 %v924, %v923
          %v926 = vmul.f32 0.5, %v925
          %v927 = vsub.f32 1.5, %v926
          %v928 = vmul.f32 %v923, %v927
          %vm929 = vweird.f32 %v826
          %vm930 = vweird.f32 %v923
          %vm931 = vmor %vm929, %vm930
          %v932 = vsel %vm931, %v923, %v928
          %v933 = vrsqrt.pop %v827
          %v934 = vmul.f32 %v933, %v827
          %v935 = vmul.f32 %v934, %v933
          %v936 = vmul.f32 0.5, %v935
          %v937 = vsub.f32 1.5, %v936
          %v938 = vmul.f32 %v933, %v937
          %vm939 = vweird.f32 %v827
          %vm940 = vweird.f32 %v933
          %vm941 = vmor %vm939, %vm940
          %v942 = vsel %vm941, %v933, %v938
          %v943 = vrsqrt.pop %v828
          %v944 = vmul.f32 %v943, %v828
          %v945 = vmul.f32 %v944, %v943
          %v946 = vmul.f32 0.5, %v945
          %v947 = vsub.f32 1.5, %v946
          %v948 = vmul.f32 %v943, %v947
          %vm949 = vweird.f32 %v828
          %vm950 = vweird.f32 %v943
          %vm951 = vmor %vm949, %vm950
          %v952 = vsel %vm951, %v943, %v948
          %v953 = vrsqrt.pop %v829
          %v954 = vmul.f32 %v953, %v829
          %v955 = vmul.f32 %v954, %v953
          %v956 = vmul.f32 0.5, %v955
          %v957 = vsub.f32 1.5, %v956
          %v958 = vmul.f32 %v953, %v957
          %vm959 = vweird.f32 %v829
          %vm960 = vweird.f32 %v953
          %vm961 = vmor %vm959, %vm960
          %v962 = vsel %vm961, %v953, %v958
          %v963 = vrsqrt.pop %v830
          %v964 = vmul.f32 %v963, %v830
          %v965 = vmul.f32 %v964, %v963
          %v966 = vmul.f32 0.5, %v965
          %v967 = vsub.f32 1.5, %v966
          %v968 = vmul.f32 %v963, %v967
          %vm969 = vweird.f32 %v830
          %vm970 = vweird.f32 %v963
          %vm971 = vmor %vm969, %vm970
          %v972 = vsel %vm971, %v963, %v968
          %v973 = vrsqrt.pop %v831
          %v974 = vmul.f32 %v973, %v831
          %v975 = vmul.f32 %v974, %v973
          %v976 = vmul.f32 0.5, %v975
          %v977 = vsub.f32 1.5, %v976
          %v978 = vmul.f32 %v973, %v977
          %vm979 = vweird.f32 %v831
          %vm980 = vweird.f32 %v973
          %vm981 = vmor %vm979, %vm980
          %v982 = vsel %vm981, %v973, %v978
          %v983 = vrsqrt.pop %v832
          %v984 = vmul.f32 %v983, %v832
          %v985 = vmul.f32 %v984, %v983
          %v986 = vmul.f32 0.5, %v985
          %v987 = vsub.f32 1.5, %v986
          %v988 = vmul.f32 %v983, %v987
          %vm989 = vweird.f32 %v832
          %vm990 = vweird.f32 %v983
          %vm991 = vmor %vm989, %vm990
          %v992 = vsel %vm991, %v983, %v988
          %v993 = vmul.f32 %v689, %v842
          %v994 = vmul.f32 %v690, %v842
          %v995 = vmul.f32 %v691, %v852
          %v996 = vmul.f32 %v692, %v852
          %v997 = vmul.f32 %v693, %v862
          %v998 = vmul.f32 %v694, %v862
          %v999 = vmul.f32 %v695, %v872
          %v1000 = vmul.f32 %v696, %v872
          %v1001 = vmul.f32 %v697, %v882
          %v1002 = vmul.f32 %v698, %v882
          %v1003 = vmul.f32 %v699, %v892
          %v1004 = vmul.f32 %v700, %v892
          %v1005 = vmul.f32 %v701, %v902
          %v1006 = vmul.f32 %v702, %v902
          %v1007 = vmul.f32 %v703, %v912
          %v1008 = vmul.f32 %v704, %v912
          %v1009 = vmul.f32 %v705, %v922
          %v1010 = vmul.f32 %v706, %v922
          %v1011 = vmul.f32 %v707, %v932
          %v1012 = vmul.f32 %v708, %v932
          %v1013 = vmul.f32 %v709, %v942
          %v1014 = vmul.f32 %v710, %v942
          %v1015 = vmul.f32 %v711, %v952
          %v1016 = vmul.f32 %v712, %v952
          %v1017 = vmul.f32 %v713, %v962
          %v1018 = vmul.f32 %v714, %v962
          %v1019 = vmul.f32 %v715, %v972
          %v1020 = vmul.f32 %v716, %v972
          %v1021 = vmul.f32 %v717, %v982
          %v1022 = vmul.f32 %v718, %v982
          %v1023 = vmul.f32 %v719, %v992
          %v1024 = vmul.f32 %v720, %v992
          %v1026 = vperm.slane %v616, 0
          %v1027 = vperm.slane %v616, 1
          %v1030 = vmul.f32 %v993, %v1026
          %v1031 = vmul.f32 %v994, %v1027
          %v1032 = vmul.f32 %v995, %v1026
          %v1033 = vmul.f32 %v996, %v1027
          %v1034 = vmul.f32 %v997, %v1026
          %v1035 = vmul.f32 %v998, %v1027
          %v1036 = vmul.f32 %v999, %v1026
          %v1037 = vmul.f32 %v1000, %v1027
          %v1038 = vmul.f32 %v1001, %v1026
          %v1039 = vmul.f32 %v1002, %v1027
          %v1040 = vmul.f32 %v1003, %v1026
          %v1041 = vmul.f32 %v1004, %v1027
          %v1042 = vmul.f32 %v1005, %v1026
          %v1043 = vmul.f32 %v1006, %v1027
          %v1044 = vmul.f32 %v1007, %v1026
          %v1045 = vmul.f32 %v1008, %v1027
          %v1046 = vmul.f32 %v1009, %v1026
          %v1047 = vmul.f32 %v1010, %v1027
          %v1048 = vmul.f32 %v1011, %v1026
          %v1049 = vmul.f32 %v1012, %v1027
          %v1050 = vmul.f32 %v1013, %v1026
          %v1051 = vmul.f32 %v1014, %v1027
          %v1052 = vmul.f32 %v1015, %v1026
          %v1053 = vmul.f32 %v1016, %v1027
          %v1054 = vmul.f32 %v1017, %v1026
          %v1055 = vmul.f32 %v1018, %v1027
          %v1056 = vmul.f32 %v1019, %v1026
          %v1057 = vmul.f32 %v1020, %v1027
          %v1058 = vmul.f32 %v1021, %v1026
          %v1059 = vmul.f32 %v1022, %v1027
          %v1060 = vmul.f32 %v1023, %v1026
          %v1061 = vmul.f32 %v1024, %v1027
          %v1063 = vperm.slane %v617, 0
          %v1064 = vperm.slane %v617, 1
          %v1067 = vadd.f32 %v1030, %v1063
          %v1068 = vadd.f32 %v1031, %v1064
          %v1069 = vadd.f32 %v1032, %v1063
          %v1070 = vadd.f32 %v1033, %v1064
          %v1071 = vadd.f32 %v1034, %v1063
          %v1072 = vadd.f32 %v1035, %v1064
          %v1073 = vadd.f32 %v1036, %v1063
          %v1074 = vadd.f32 %v1037, %v1064
          %v1075 = vadd.f32 %v1038, %v1063
          %v1076 = vadd.f32 %v1039, %v1064
          %v1077 = vadd.f32 %v1040, %v1063
          %v1078 = vadd.f32 %v1041, %v1064
          %v1079 = vadd.f32 %v1042, %v1063
          %v1080 = vadd.f32 %v1043, %v1064
          %v1081 = vadd.f32 %v1044, %v1063
          %v1082 = vadd.f32 %v1045, %v1064
          %v1083 = vadd.f32 %v1046, %v1063
          %v1084 = vadd.f32 %v1047, %v1064
          %v1085 = vadd.f32 %v1048, %v1063
          %v1086 = vadd.f32 %v1049, %v1064
          %v1087 = vadd.f32 %v1050, %v1063
          %v1088 = vadd.f32 %v1051, %v1064
          %v1089 = vadd.f32 %v1052, %v1063
          %v1090 = vadd.f32 %v1053, %v1064
          %v1091 = vadd.f32 %v1054, %v1063
          %v1092 = vadd.f32 %v1055, %v1064
          %v1093 = vadd.f32 %v1056, %v1063
          %v1094 = vadd.f32 %v1057, %v1064
          %v1095 = vadd.f32 %v1058, %v1063
          %v1096 = vadd.f32 %v1059, %v1064
          %v1097 = vadd.f32 %v1060, %v1063
          %v1098 = vadd.f32 %v1061, %v1064
          %1099 = vst [vmem:[#allocation2] sm:$0xff] %v1067
          %1100 = vst [vmem:[#allocation2 + $0x8] sm:$0xff] %v1068
          %1101 = vst [vmem:[#allocation2 + $0x10] sm:$0xff] %v1069
          %1102 = vst [vmem:[#allocation2 + $0x18] sm:$0xff] %v1070
          %1103 = vst [vmem:[#allocation2 + $0x20] sm:$0xff] %v1071
          %1104 = vst [vmem:[#allocation2 + $0x28] sm:$0xff] %v1072
          %1105 = vst [vmem:[#allocation2 + $0x30] sm:$0xff] %v1073
          %1106 = vst [vmem:[#allocation2 + $0x38] sm:$0xff] %v1074
          %1107 = vst [vmem:[#allocation2 + $0x40] sm:$0xff] %v1075
          %1108 = vst [vmem:[#allocation2 + $0x48] sm:$0xff] %v1076
          %1109 = vst [vmem:[#allocation2 + $0x50] sm:$0xff] %v1077
          %1110 = vst [vmem:[#allocation2 + $0x58] sm:$0xff] %v1078
          %1111 = vst [vmem:[#allocation2 + $0x60] sm:$0xff] %v1079
          %1112 = vst [vmem:[#allocation2 + $0x68] sm:$0xff] %v1080
          %1113 = vst [vmem:[#allocation2 + $0x70] sm:$0xff] %v1081
          %1114 = vst [vmem:[#allocation2 + $0x78] sm:$0xff] %v1082
          %1115 = vst [vmem:[#allocation2 + $0x80] sm:$0xff] %v1083
          %1116 = vst [vmem:[#allocation2 + $0x88] sm:$0xff] %v1084
          %1117 = vst [vmem:[#allocation2 + $0x90] sm:$0xff] %v1085
          %1118 = vst [vmem:[#allocation2 + $0x98] sm:$0xff] %v1086
          %1119 = vst [vmem:[#allocation2 + $0xa0] sm:$0xff] %v1087
          %1120 = vst [vmem:[#allocation2 + $0xa8] sm:$0xff] %v1088
          %1121 = vst [vmem:[#allocation2 + $0xb0] sm:$0xff] %v1089
          %1122 = vst [vmem:[#allocation2 + $0xb8] sm:$0xff] %v1090
          %1123 = vst [vmem:[#allocation2 + $0xc0] sm:$0xff] %v1091
          %1124 = vst [vmem:[#allocation2 + $0xc8] sm:$0xff] %v1092
          %1125 = vst [vmem:[#allocation2 + $0xd0] sm:$0xff] %v1093
          %1126 = vst [vmem:[#allocation2 + $0xd8] sm:$0xff] %v1094
          %1127 = vst [vmem:[#allocation2 + $0xe0] sm:$0xff] %v1095
          %1128 = vst [vmem:[#allocation2 + $0xe8] sm:$0xff] %v1096
          %1129 = vst [vmem:[#allocation2 + $0xf0] sm:$0xff] %v1097
          %1130 = vst [vmem:[#allocation2 + $0xf8] sm:$0xff] %v1098
        $region96: #{geographical_attention_network.1} parent=83 // pred_fallthru
          _
        %v1131 = vld [vmem:[#allocation2] sm:$0xff]
        %v1132 = vld [vmem:[#allocation2 + $0x8] sm:$0xff]
        %v1133 = vld [vmem:[#allocation2 + $0x10] sm:$0xff]
        %v1134 = vld [vmem:[#allocation2 + $0x18] sm:$0xff]
        %v1135 = vld [vmem:[#allocation2 + $0x20] sm:$0xff]
        %v1136 = vld [vmem:[#allocation2 + $0x28] sm:$0xff]
        %v1137 = vld [vmem:[#allocation2 + $0x30] sm:$0xff]
        %v1138 = vld [vmem:[#allocation2 + $0x38] sm:$0xff]
        %v1139 = vld [vmem:[#allocation2 + $0x40] sm:$0xff]
        %v1140 = vld [vmem:[#allocation2 + $0x48] sm:$0xff]
        %v1141 = vld [vmem:[#allocation2 + $0x50] sm:$0xff]
        %v1142 = vld [vmem:[#allocation2 + $0x58] sm:$0xff]
        %v1143 = vld [vmem:[#allocation2 + $0x60] sm:$0xff]
        %v1144 = vld [vmem:[#allocation2 + $0x68] sm:$0xff]
        %v1145 = vld [vmem:[#allocation2 + $0x70] sm:$0xff]
        %v1146 = vld [vmem:[#allocation2 + $0x78] sm:$0xff]
        %v1147 = vld [vmem:[#allocation2 + $0x80] sm:$0xff]
        %v1148 = vld [vmem:[#allocation2 + $0x88] sm:$0xff]
        %v1149 = vld [vmem:[#allocation2 + $0x90] sm:$0xff]
        %v1150 = vld [vmem:[#allocation2 + $0x98] sm:$0xff]
        %v1151 = vld [vmem:[#allocation2 + $0xa0] sm:$0xff]
        %v1152 = vld [vmem:[#allocation2 + $0xa8] sm:$0xff]
        %v1153 = vld [vmem:[#allocation2 + $0xb0] sm:$0xff]
        %v1154 = vld [vmem:[#allocation2 + $0xb8] sm:$0xff]
        %v1155 = vld [vmem:[#allocation2 + $0xc0] sm:$0xff]
        %v1156 = vld [vmem:[#allocation2 + $0xc8] sm:$0xff]
        %v1157 = vld [vmem:[#allocation2 + $0xd0] sm:$0xff]
        %v1158 = vld [vmem:[#allocation2 + $0xd8] sm:$0xff]
        %v1159 = vld [vmem:[#allocation2 + $0xe0] sm:$0xff]
        %v1160 = vld [vmem:[#allocation2 + $0xe8] sm:$0xff]
        %v1161 = vld [vmem:[#allocation2 + $0xf0] sm:$0xff]
        %v1162 = vld [vmem:[#allocation2 + $0xf8] sm:$0xff]
        %v1163 = vpack.c.bf16 %v1133, %v1131
        %v1164 = vpack.c.bf16 %v1134, %v1132
        %v1165 = vpack.c.bf16 %v1137, %v1135
        %v1166 = vpack.c.bf16 %v1138, %v1136
        %v1167 = vpack.c.bf16 %v1141, %v1139
        %v1168 = vpack.c.bf16 %v1142, %v1140
        %v1169 = vpack.c.bf16 %v1145, %v1143
        %v1170 = vpack.c.bf16 %v1146, %v1144
        %v1171 = vpack.c.bf16 %v1149, %v1147
        %v1172 = vpack.c.bf16 %v1150, %v1148
        %v1173 = vpack.c.bf16 %v1153, %v1151
        %v1174 = vpack.c.bf16 %v1154, %v1152
        %v1175 = vpack.c.bf16 %v1157, %v1155
        %v1176 = vpack.c.bf16 %v1158, %v1156
        %v1177 = vpack.c.bf16 %v1161, %v1159
        %v1178 = vpack.c.bf16 %v1162, %v1160
        %v1179 = vld [vmem:[%s575] sm:$0x1]
        %s1180 = smul.u32 %s34, 192
        %s1181 = smul.addr %s1180, 4
        %s1182 = scalar_lea.vmem [#allocation5], %s1181
        %v1183 = vld [vmem:[%s1182] sm:$0xff]
        %v1184 = vld [vmem:[%s1182 + $0x8] sm:$0xff]
        %v1185 = vld [vmem:[%s1182 + $0x10] sm:$0xff]
        %v1186 = vld [vmem:[%s1182 + $0x18] sm:$0xff]
        %v1187 = vld [vmem:[%s1182 + $0x20] sm:$0xff]
        %v1188 = vld [vmem:[%s1182 + $0x28] sm:$0xff]
        %v1189 = vld [vmem:[%s1182 + $0x30] sm:$0xff]
        %v1190 = vld [vmem:[%s1182 + $0x38] sm:$0xff]
        %v1191 = vld [vmem:[%s1182 + $0x40] sm:$0xff]
        %v1192 = vld [vmem:[%s1182 + $0x48] sm:$0xff]
        %v1193 = vld [vmem:[%s1182 + $0x50] sm:$0xff]
        %v1194 = vld [vmem:[%s1182 + $0x58] sm:$0xff]
        %v1195 = vld [vmem:[%s1182 + $0x60] sm:$0xff]
        %v1196 = vld [vmem:[%s1182 + $0x68] sm:$0xff]
        %v1197 = vld [vmem:[%s1182 + $0x70] sm:$0xff]
        %v1198 = vld [vmem:[%s1182 + $0x78] sm:$0xff]
        %v1199 = vld [vmem:[%s1182 + $0x80] sm:$0xff]
        %v1200 = vld [vmem:[%s1182 + $0x88] sm:$0xff]
        %v1201 = vld [vmem:[%s1182 + $0x90] sm:$0xff]
        %v1202 = vld [vmem:[%s1182 + $0x98] sm:$0xff]
        %v1203 = vld [vmem:[%s1182 + $0xa0] sm:$0xff]
        %v1204 = vld [vmem:[%s1182 + $0xa8] sm:$0xff]
        %v1205 = vld [vmem:[%s1182 + $0xb0] sm:$0xff]
        %v1206 = vld [vmem:[%s1182 + $0xb8] sm:$0xff]
        %v1207 = vld [vmem:[%s1182 + $0xc0] sm:$0xff]
        %v1208 = vld [vmem:[%s1182 + $0xc8] sm:$0xff]
        %v1209 = vld [vmem:[%s1182 + $0xd0] sm:$0xff]
        %v1210 = vld [vmem:[%s1182 + $0xd8] sm:$0xff]
        %v1211 = vld [vmem:[%s1182 + $0xe0] sm:$0xff]
        %v1212 = vld [vmem:[%s1182 + $0xe8] sm:$0xff]
        %v1213 = vld [vmem:[%s1182 + $0xf0] sm:$0xff]
        %v1214 = vld [vmem:[%s1182 + $0xf8] sm:$0xff]
        %v1215 = vld [vmem:[%s1182 + $0x100] sm:$0xff]
        %v1216 = vld [vmem:[%s1182 + $0x108] sm:$0xff]
        %v1217 = vld [vmem:[%s1182 + $0x110] sm:$0xff]
        %v1218 = vld [vmem:[%s1182 + $0x118] sm:$0xff]
        %v1219 = vld [vmem:[%s1182 + $0x120] sm:$0xff]
        %v1220 = vld [vmem:[%s1182 + $0x128] sm:$0xff]
        %v1221 = vld [vmem:[%s1182 + $0x130] sm:$0xff]
        %v1222 = vld [vmem:[%s1182 + $0x138] sm:$0xff]
        %v1223 = vld [vmem:[%s1182 + $0x140] sm:$0xff]
        %v1224 = vld [vmem:[%s1182 + $0x148] sm:$0xff]
        %v1225 = vld [vmem:[%s1182 + $0x150] sm:$0xff]
        %v1226 = vld [vmem:[%s1182 + $0x158] sm:$0xff]
        %v1227 = vld [vmem:[%s1182 + $0x160] sm:$0xff]
        %v1228 = vld [vmem:[%s1182 + $0x168] sm:$0xff]
        %v1229 = vld [vmem:[%s1182 + $0x170] sm:$0xff]
        %v1230 = vld [vmem:[%s1182 + $0x178] sm:$0xff]
        %v1231 = vld [vmem:[%s1182 + $0x180] sm:$0xff]
        %v1232 = vld [vmem:[%s1182 + $0x188] sm:$0xff]
        %v1233 = vld [vmem:[%s1182 + $0x190] sm:$0xff]
        %v1234 = vld [vmem:[%s1182 + $0x198] sm:$0xff]
        %v1235 = vld [vmem:[%s1182 + $0x1a0] sm:$0xff]
        %v1236 = vld [vmem:[%s1182 + $0x1a8] sm:$0xff]
        %v1237 = vld [vmem:[%s1182 + $0x1b0] sm:$0xff]
        %v1238 = vld [vmem:[%s1182 + $0x1b8] sm:$0xff]
        %v1239 = vld [vmem:[%s1182 + $0x1c0] sm:$0xff]
        %v1240 = vld [vmem:[%s1182 + $0x1c8] sm:$0xff]
        %v1241 = vld [vmem:[%s1182 + $0x1d0] sm:$0xff]
        %v1242 = vld [vmem:[%s1182 + $0x1d8] sm:$0xff]
        %v1243 = vld [vmem:[%s1182 + $0x1e0] sm:$0xff]
        %v1244 = vld [vmem:[%s1182 + $0x1e8] sm:$0xff]
        %v1245 = vld [vmem:[%s1182 + $0x1f0] sm:$0xff]
        %v1246 = vld [vmem:[%s1182 + $0x1f8] sm:$0xff]
        %v1247 = vld [vmem:[%s1182 + $0x200] sm:$0xff]
        %v1248 = vld [vmem:[%s1182 + $0x208] sm:$0xff]
        %v1249 = vld [vmem:[%s1182 + $0x210] sm:$0xff]
        %v1250 = vld [vmem:[%s1182 + $0x218] sm:$0xff]
        %v1251 = vld [vmem:[%s1182 + $0x220] sm:$0xff]
        %v1252 = vld [vmem:[%s1182 + $0x228] sm:$0xff]
        %v1253 = vld [vmem:[%s1182 + $0x230] sm:$0xff]
        %v1254 = vld [vmem:[%s1182 + $0x238] sm:$0xff]
        %v1255 = vld [vmem:[%s1182 + $0x240] sm:$0xff]
        %v1256 = vld [vmem:[%s1182 + $0x248] sm:$0xff]
        %v1257 = vld [vmem:[%s1182 + $0x250] sm:$0xff]
        %v1258 = vld [vmem:[%s1182 + $0x258] sm:$0xff]
        %v1259 = vld [vmem:[%s1182 + $0x260] sm:$0xff]
        %v1260 = vld [vmem:[%s1182 + $0x268] sm:$0xff]
        %v1261 = vld [vmem:[%s1182 + $0x270] sm:$0xff]
        %v1262 = vld [vmem:[%s1182 + $0x278] sm:$0xff]
        %v1263 = vld [vmem:[%s1182 + $0x280] sm:$0xff]
        %v1264 = vld [vmem:[%s1182 + $0x288] sm:$0xff]
        %v1265 = vld [vmem:[%s1182 + $0x290] sm:$0xff]
        %v1266 = vld [vmem:[%s1182 + $0x298] sm:$0xff]
        %v1267 = vld [vmem:[%s1182 + $0x2a0] sm:$0xff]
        %v1268 = vld [vmem:[%s1182 + $0x2a8] sm:$0xff]
        %v1269 = vld [vmem:[%s1182 + $0x2b0] sm:$0xff]
        %v1270 = vld [vmem:[%s1182 + $0x2b8] sm:$0xff]
        %v1271 = vld [vmem:[%s1182 + $0x2c0] sm:$0xff]
        %v1272 = vld [vmem:[%s1182 + $0x2c8] sm:$0xff]
        %v1273 = vld [vmem:[%s1182 + $0x2d0] sm:$0xff]
        %v1274 = vld [vmem:[%s1182 + $0x2d8] sm:$0xff]
        %v1275 = vld [vmem:[%s1182 + $0x2e0] sm:$0xff]
        %v1276 = vld [vmem:[%s1182 + $0x2e8] sm:$0xff]
        %v1277 = vld [vmem:[%s1182 + $0x2f0] sm:$0xff]
        %v1278 = vld [vmem:[%s1182 + $0x2f8] sm:$0xff]
        %s1279 = smul.u32 %s34, 6
        %s1280 = scalar_lea.vmem %s5, %s1279
        %v1281 = vld [vmem:[%s1280] sm:$0x3f]
        %v1283 = vperm.slane %v1281, 0
        %v1284 = vperm.slane %v1281, 1
        %v1285 = vperm.slane %v1281, 2
        %v1286 = vperm.slane %v1281, 3
        %v1287 = vperm.slane %v1281, 4
        %v1288 = vperm.slane %v1281, 5
        %v1391 = vunpack.c.l.b16 %v1183
        %v1392 = vunpack.c.h.b16 %v1183
        %v1393 = vunpack.c.l.b16 %v1184
        %v1394 = vunpack.c.h.b16 %v1184
        %v1395 = vunpack.c.l.b16 %v1185
        %v1396 = vunpack.c.h.b16 %v1185
        %v1397 = vunpack.c.l.b16 %v1186
        %v1398 = vunpack.c.h.b16 %v1186
        %v1399 = vunpack.c.l.b16 %v1187
        %v1400 = vunpack.c.h.b16 %v1187
        %v1401 = vunpack.c.l.b16 %v1188
        %v1402 = vunpack.c.h.b16 %v1188
        %v1403 = vunpack.c.l.b16 %v1189
        %v1404 = vunpack.c.h.b16 %v1189
        %v1405 = vunpack.c.l.b16 %v1190
        %v1406 = vunpack.c.h.b16 %v1190
        %v1407 = vunpack.c.l.b16 %v1191
        %v1408 = vunpack.c.h.b16 %v1191
        %v1409 = vunpack.c.l.b16 %v1192
        %v1410 = vunpack.c.h.b16 %v1192
        %v1411 = vunpack.c.l.b16 %v1193
        %v1412 = vunpack.c.h.b16 %v1193
        %v1413 = vunpack.c.l.b16 %v1194
        %v1414 = vunpack.c.h.b16 %v1194
        %v1415 = vunpack.c.l.b16 %v1195
        %v1416 = vunpack.c.h.b16 %v1195
        %v1417 = vunpack.c.l.b16 %v1196
        %v1418 = vunpack.c.h.b16 %v1196
        %v1419 = vunpack.c.l.b16 %v1197
        %v1420 = vunpack.c.h.b16 %v1197
        %v1421 = vunpack.c.l.b16 %v1198
        %v1422 = vunpack.c.h.b16 %v1198
        %v1423 = vunpack.c.l.b16 %v1199
        %v1424 = vunpack.c.h.b16 %v1199
        %v1425 = vunpack.c.l.b16 %v1200
        %v1426 = vunpack.c.h.b16 %v1200
        %v1427 = vunpack.c.l.b16 %v1201
        %v1428 = vunpack.c.h.b16 %v1201
        %v1429 = vunpack.c.l.b16 %v1202
        %v1430 = vunpack.c.h.b16 %v1202
        %v1431 = vunpack.c.l.b16 %v1203
        %v1432 = vunpack.c.h.b16 %v1203
        %v1433 = vunpack.c.l.b16 %v1204
        %v1434 = vunpack.c.h.b16 %v1204
        %v1435 = vunpack.c.l.b16 %v1205
        %v1436 = vunpack.c.h.b16 %v1205
        %v1437 = vunpack.c.l.b16 %v1206
        %v1438 = vunpack.c.h.b16 %v1206
        %v1439 = vunpack.c.l.b16 %v1207
        %v1440 = vunpack.c.h.b16 %v1207
        %v1441 = vunpack.c.l.b16 %v1208
        %v1442 = vunpack.c.h.b16 %v1208
        %v1443 = vunpack.c.l.b16 %v1209
        %v1444 = vunpack.c.h.b16 %v1209
        %v1445 = vunpack.c.l.b16 %v1210
        %v1446 = vunpack.c.h.b16 %v1210
        %v1447 = vunpack.c.l.b16 %v1211
        %v1448 = vunpack.c.h.b16 %v1211
        %v1449 = vunpack.c.l.b16 %v1212
        %v1450 = vunpack.c.h.b16 %v1212
        %v1451 = vunpack.c.l.b16 %v1213
        %v1452 = vunpack.c.h.b16 %v1213
        %v1453 = vunpack.c.l.b16 %v1214
        %v1454 = vunpack.c.h.b16 %v1214
        %v1455 = vunpack.c.l.b16 %v1215
        %v1456 = vunpack.c.h.b16 %v1215
        %v1457 = vunpack.c.l.b16 %v1216
        %v1458 = vunpack.c.h.b16 %v1216
        %v1459 = vunpack.c.l.b16 %v1217
        %v1460 = vunpack.c.h.b16 %v1217
        %v1461 = vunpack.c.l.b16 %v1218
        %v1462 = vunpack.c.h.b16 %v1218
        %v1463 = vunpack.c.l.b16 %v1219
        %v1464 = vunpack.c.h.b16 %v1219
        %v1465 = vunpack.c.l.b16 %v1220
        %v1466 = vunpack.c.h.b16 %v1220
        %v1467 = vunpack.c.l.b16 %v1221
        %v1468 = vunpack.c.h.b16 %v1221
        %v1469 = vunpack.c.l.b16 %v1222
        %v1470 = vunpack.c.h.b16 %v1222
        %v1471 = vunpack.c.l.b16 %v1223
        %v1472 = vunpack.c.h.b16 %v1223
        %v1473 = vunpack.c.l.b16 %v1224
        %v1474 = vunpack.c.h.b16 %v1224
        %v1475 = vunpack.c.l.b16 %v1225
        %v1476 = vunpack.c.h.b16 %v1225
        %v1477 = vunpack.c.l.b16 %v1226
        %v1478 = vunpack.c.h.b16 %v1226
        %v1479 = vunpack.c.l.b16 %v1227
        %v1480 = vunpack.c.h.b16 %v1227
        %v1481 = vunpack.c.l.b16 %v1228
        %v1482 = vunpack.c.h.b16 %v1228
        %v1483 = vunpack.c.l.b16 %v1229
        %v1484 = vunpack.c.h.b16 %v1229
        %v1485 = vunpack.c.l.b16 %v1230
        %v1486 = vunpack.c.h.b16 %v1230
        %v1487 = vunpack.c.l.b16 %v1231
        %v1488 = vunpack.c.h.b16 %v1231
        %v1489 = vunpack.c.l.b16 %v1232
        %v1490 = vunpack.c.h.b16 %v1232
        %v1491 = vunpack.c.l.b16 %v1233
        %v1492 = vunpack.c.h.b16 %v1233
        %v1493 = vunpack.c.l.b16 %v1234
        %v1494 = vunpack.c.h.b16 %v1234
        %v1495 = vunpack.c.l.b16 %v1235
        %v1496 = vunpack.c.h.b16 %v1235
        %v1497 = vunpack.c.l.b16 %v1236
        %v1498 = vunpack.c.h.b16 %v1236
        %v1499 = vunpack.c.l.b16 %v1237
        %v1500 = vunpack.c.h.b16 %v1237
        %v1501 = vunpack.c.l.b16 %v1238
        %v1502 = vunpack.c.h.b16 %v1238
        %v1503 = vunpack.c.l.b16 %v1239
        %v1504 = vunpack.c.h.b16 %v1239
        %v1505 = vunpack.c.l.b16 %v1240
        %v1506 = vunpack.c.h.b16 %v1240
        %v1507 = vunpack.c.l.b16 %v1241
        %v1508 = vunpack.c.h.b16 %v1241
        %v1509 = vunpack.c.l.b16 %v1242
        %v1510 = vunpack.c.h.b16 %v1242
        %v1511 = vunpack.c.l.b16 %v1243
        %v1512 = vunpack.c.h.b16 %v1243
        %v1513 = vunpack.c.l.b16 %v1244
        %v1514 = vunpack.c.h.b16 %v1244
        %v1515 = vunpack.c.l.b16 %v1245
        %v1516 = vunpack.c.h.b16 %v1245
        %v1517 = vunpack.c.l.b16 %v1246
        %v1518 = vunpack.c.h.b16 %v1246
        %v1519 = vunpack.c.l.b16 %v1247
        %v1520 = vunpack.c.h.b16 %v1247
        %v1521 = vunpack.c.l.b16 %v1248
        %v1522 = vunpack.c.h.b16 %v1248
        %v1523 = vunpack.c.l.b16 %v1249
        %v1524 = vunpack.c.h.b16 %v1249
        %v1525 = vunpack.c.l.b16 %v1250
        %v1526 = vunpack.c.h.b16 %v1250
        %v1527 = vunpack.c.l.b16 %v1251
        %v1528 = vunpack.c.h.b16 %v1251
        %v1529 = vunpack.c.l.b16 %v1252
        %v1530 = vunpack.c.h.b16 %v1252
        %v1531 = vunpack.c.l.b16 %v1253
        %v1532 = vunpack.c.h.b16 %v1253
        %v1533 = vunpack.c.l.b16 %v1254
        %v1534 = vunpack.c.h.b16 %v1254
        %v1535 = vunpack.c.l.b16 %v1255
        %v1536 = vunpack.c.h.b16 %v1255
        %v1537 = vunpack.c.l.b16 %v1256
        %v1538 = vunpack.c.h.b16 %v1256
        %v1539 = vunpack.c.l.b16 %v1257
        %v1540 = vunpack.c.h.b16 %v1257
        %v1541 = vunpack.c.l.b16 %v1258
        %v1542 = vunpack.c.h.b16 %v1258
        %v1543 = vunpack.c.l.b16 %v1259
        %v1544 = vunpack.c.h.b16 %v1259
        %v1545 = vunpack.c.l.b16 %v1260
        %v1546 = vunpack.c.h.b16 %v1260
        %v1547 = vunpack.c.l.b16 %v1261
        %v1548 = vunpack.c.h.b16 %v1261
        %v1549 = vunpack.c.l.b16 %v1262
        %v1550 = vunpack.c.h.b16 %v1262
        %v1551 = vunpack.c.l.b16 %v1263
        %v1552 = vunpack.c.h.b16 %v1263
        %v1553 = vunpack.c.l.b16 %v1264
        %v1554 = vunpack.c.h.b16 %v1264
        %v1555 = vunpack.c.l.b16 %v1265
        %v1556 = vunpack.c.h.b16 %v1265
        %v1557 = vunpack.c.l.b16 %v1266
        %v1558 = vunpack.c.h.b16 %v1266
        %v1559 = vunpack.c.l.b16 %v1267
        %v1560 = vunpack.c.h.b16 %v1267
        %v1561 = vunpack.c.l.b16 %v1268
        %v1562 = vunpack.c.h.b16 %v1268
        %v1563 = vunpack.c.l.b16 %v1269
        %v1564 = vunpack.c.h.b16 %v1269
        %v1565 = vunpack.c.l.b16 %v1270
        %v1566 = vunpack.c.h.b16 %v1270
        %v1567 = vunpack.c.l.b16 %v1271
        %v1568 = vunpack.c.h.b16 %v1271
        %v1569 = vunpack.c.l.b16 %v1272
        %v1570 = vunpack.c.h.b16 %v1272
        %v1571 = vunpack.c.l.b16 %v1273
        %v1572 = vunpack.c.h.b16 %v1273
        %v1573 = vunpack.c.l.b16 %v1274
        %v1574 = vunpack.c.h.b16 %v1274
        %v1575 = vunpack.c.l.b16 %v1275
        %v1576 = vunpack.c.h.b16 %v1275
        %v1577 = vunpack.c.l.b16 %v1276
        %v1578 = vunpack.c.h.b16 %v1276
        %v1579 = vunpack.c.l.b16 %v1277
        %v1580 = vunpack.c.h.b16 %v1277
        %v1581 = vunpack.c.l.b16 %v1278
        %v1582 = vunpack.c.h.b16 %v1278
        %v1583 = vpack.c.b16 %v1397, %v1391
        %v1584 = vpack.c.b16 %v1398, %v1392
        %v1585 = vpack.c.b16 %v1399, %v1393
        %v1586 = vpack.c.b16 %v1400, %v1394
        %v1587 = vpack.c.b16 %v1401, %v1395
        %v1588 = vpack.c.b16 %v1402, %v1396
        %v1589 = vpack.c.b16 %v1409, %v1403
        %v1590 = vpack.c.b16 %v1410, %v1404
        %v1591 = vpack.c.b16 %v1411, %v1405
        %v1592 = vpack.c.b16 %v1412, %v1406
        %v1593 = vpack.c.b16 %v1413, %v1407
        %v1594 = vpack.c.b16 %v1414, %v1408
        %v1595 = vpack.c.b16 %v1421, %v1415
        %v1596 = vpack.c.b16 %v1422, %v1416
        %v1597 = vpack.c.b16 %v1423, %v1417
        %v1598 = vpack.c.b16 %v1424, %v1418
        %v1599 = vpack.c.b16 %v1425, %v1419
        %v1600 = vpack.c.b16 %v1426, %v1420
        %v1601 = vpack.c.b16 %v1433, %v1427
        %v1602 = vpack.c.b16 %v1434, %v1428
        %v1603 = vpack.c.b16 %v1435, %v1429
        %v1604 = vpack.c.b16 %v1436, %v1430
        %v1605 = vpack.c.b16 %v1437, %v1431
        %v1606 = vpack.c.b16 %v1438, %v1432
        %v1607 = vpack.c.b16 %v1445, %v1439
        %v1608 = vpack.c.b16 %v1446, %v1440
        %v1609 = vpack.c.b16 %v1447, %v1441
        %v1610 = vpack.c.b16 %v1448, %v1442
        %v1611 = vpack.c.b16 %v1449, %v1443
        %v1612 = vpack.c.b16 %v1450, %v1444
        %v1613 = vpack.c.b16 %v1457, %v1451
        %v1614 = vpack.c.b16 %v1458, %v1452
        %v1615 = vpack.c.b16 %v1459, %v1453
        %v1616 = vpack.c.b16 %v1460, %v1454
        %v1617 = vpack.c.b16 %v1461, %v1455
        %v1618 = vpack.c.b16 %v1462, %v1456
        %v1619 = vpack.c.b16 %v1469, %v1463
        %v1620 = vpack.c.b16 %v1470, %v1464
        %v1621 = vpack.c.b16 %v1471, %v1465
        %v1622 = vpack.c.b16 %v1472, %v1466
        %v1623 = vpack.c.b16 %v1473, %v1467
        %v1624 = vpack.c.b16 %v1474, %v1468
        %v1625 = vpack.c.b16 %v1481, %v1475
        %v1626 = vpack.c.b16 %v1482, %v1476
        %v1627 = vpack.c.b16 %v1483, %v1477
        %v1628 = vpack.c.b16 %v1484, %v1478
        %v1629 = vpack.c.b16 %v1485, %v1479
        %v1630 = vpack.c.b16 %v1486, %v1480
        %v1631 = vpack.c.b16 %v1493, %v1487
        %v1632 = vpack.c.b16 %v1494, %v1488
        %v1633 = vpack.c.b16 %v1495, %v1489
        %v1634 = vpack.c.b16 %v1496, %v1490
        %v1635 = vpack.c.b16 %v1497, %v1491
        %v1636 = vpack.c.b16 %v1498, %v1492
        %v1637 = vpack.c.b16 %v1505, %v1499
        %v1638 = vpack.c.b16 %v1506, %v1500
        %v1639 = vpack.c.b16 %v1507, %v1501
        %v1640 = vpack.c.b16 %v1508, %v1502
        %v1641 = vpack.c.b16 %v1509, %v1503
        %v1642 = vpack.c.b16 %v1510, %v1504
        %v1643 = vpack.c.b16 %v1517, %v1511
        %v1644 = vpack.c.b16 %v1518, %v1512
        %v1645 = vpack.c.b16 %v1519, %v1513
        %v1646 = vpack.c.b16 %v1520, %v1514
        %v1647 = vpack.c.b16 %v1521, %v1515
        %v1648 = vpack.c.b16 %v1522, %v1516
        %v1649 = vpack.c.b16 %v1529, %v1523
        %v1650 = vpack.c.b16 %v1530, %v1524
        %v1651 = vpack.c.b16 %v1531, %v1525
        %v1652 = vpack.c.b16 %v1532, %v1526
        %v1653 = vpack.c.b16 %v1533, %v1527
        %v1654 = vpack.c.b16 %v1534, %v1528
        %v1655 = vpack.c.b16 %v1541, %v1535
        %v1656 = vpack.c.b16 %v1542, %v1536
        %v1657 = vpack.c.b16 %v1543, %v1537
        %v1658 = vpack.c.b16 %v1544, %v1538
        %v1659 = vpack.c.b16 %v1545, %v1539
        %v1660 = vpack.c.b16 %v1546, %v1540
        %v1661 = vpack.c.b16 %v1553, %v1547
        %v1662 = vpack.c.b16 %v1554, %v1548
        %v1663 = vpack.c.b16 %v1555, %v1549
        %v1664 = vpack.c.b16 %v1556, %v1550
        %v1665 = vpack.c.b16 %v1557, %v1551
        %v1666 = vpack.c.b16 %v1558, %v1552
        %v1667 = vpack.c.b16 %v1565, %v1559
        %v1668 = vpack.c.b16 %v1566, %v1560
        %v1669 = vpack.c.b16 %v1567, %v1561
        %v1670 = vpack.c.b16 %v1568, %v1562
        %v1671 = vpack.c.b16 %v1569, %v1563
        %v1672 = vpack.c.b16 %v1570, %v1564
        %v1673 = vpack.c.b16 %v1577, %v1571
        %v1674 = vpack.c.b16 %v1578, %v1572
        %v1675 = vpack.c.b16 %v1579, %v1573
        %v1676 = vpack.c.b16 %v1580, %v1574
        %v1677 = vpack.c.b16 %v1581, %v1575
        %v1678 = vpack.c.b16 %v1582, %v1576
        %1775 = vmatpush.bf16.msra.mxu0 %v1625
        %1776 = vmatpush.bf16.msra.mxu0 %v1619
        %1777 = vmatpush.bf16.msra.mxu0 %v1613
        %1778 = vmatpush.bf16.msra.mxu0 %v1607
        %1779 = vmatpush.bf16.msra.mxu0 %v1601
        %1780 = vmatpush.bf16.msra.mxu0 %v1595
        %1781 = vmatpush.bf16.msra.mxu0 %v1589
        %1782 = vmatpush.bf16.msra.mxu0 %v1583
        %1783 = vmatmul.bf16.gmra.mxu0 %v1163
        %v1784 = vpop.f32.mrf.mxu0
        %v1785 = vadd.f32 %v1283, %v1784
        %v1786 = vpop.f32.mrf.mxu0
        %v1787 = vadd.f32 %v1283, %v1786
        %1788 = vmatmul.bf16.gmra.mxu0 %v1165
        %v1789 = vpop.f32.mrf.mxu0
        %v1790 = vadd.f32 %v1283, %v1789
        %v1791 = vpop.f32.mrf.mxu0
        %v1792 = vadd.f32 %v1283, %v1791
        %1793 = vmatmul.bf16.gmra.mxu0 %v1167
        %v1794 = vpop.f32.mrf.mxu0
        %v1795 = vadd.f32 %v1283, %v1794
        %v1796 = vpop.f32.mrf.mxu0
        %v1797 = vadd.f32 %v1283, %v1796
        %1798 = vmatmul.bf16.gmra.mxu0 %v1169
        %v1799 = vpop.f32.mrf.mxu0
        %v1800 = vadd.f32 %v1283, %v1799
        %v1801 = vpop.f32.mrf.mxu0
        %v1802 = vadd.f32 %v1283, %v1801
        %1803 = vmatmul.bf16.gmra.mxu0 %v1171
        %v1804 = vpop.f32.mrf.mxu0
        %v1805 = vadd.f32 %v1283, %v1804
        %v1806 = vpop.f32.mrf.mxu0
        %v1807 = vadd.f32 %v1283, %v1806
        %1808 = vmatmul.bf16.gmra.mxu0 %v1173
        %v1809 = vpop.f32.mrf.mxu0
        %v1810 = vadd.f32 %v1283, %v1809
        %v1811 = vpop.f32.mrf.mxu0
        %v1812 = vadd.f32 %v1283, %v1811
        %1813 = vmatmul.bf16.gmra.mxu0 %v1175
        %v1814 = vpop.f32.mrf.mxu0
        %v1815 = vadd.f32 %v1283, %v1814
        %v1816 = vpop.f32.mrf.mxu0
        %v1817 = vadd.f32 %v1283, %v1816
        %1818 = vmatmul.bf16.gmra.mxu0 %v1177
        %v1819 = vpop.f32.mrf.mxu0
        %v1820 = vadd.f32 %v1283, %v1819
        %v1821 = vpop.f32.mrf.mxu0
        %v1822 = vadd.f32 %v1283, %v1821
        %1823 = vdwg.mxu0
        %1824 = vmatpush.bf16.msra.mxu0 %v1673
        %1825 = vmatpush.bf16.msra.mxu0 %v1667
        %1826 = vmatpush.bf16.msra.mxu0 %v1661
        %1827 = vmatpush.bf16.msra.mxu0 %v1655
        %1828 = vmatpush.bf16.msra.mxu0 %v1649
        %1829 = vmatpush.bf16.msra.mxu0 %v1643
        %1830 = vmatpush.bf16.msra.mxu0 %v1637
        %1831 = vmatpush.bf16.msra.mxu0 %v1631
        %1832 = vmatmul.bf16.gmra.mxu0 %v1164
        %v1833 = vpop.f32.mrf.mxu0
        %v1834 = vadd.f32 %v1785, %v1833
        %v1835 = vpop.f32.mrf.mxu0
        %v1836 = vadd.f32 %v1787, %v1835
        %1837 = vmatmul.bf16.gmra.mxu0 %v1166
        %v1838 = vpop.f32.mrf.mxu0
        %v1839 = vadd.f32 %v1790, %v1838
        %v1840 = vpop.f32.mrf.mxu0
        %v1841 = vadd.f32 %v1792, %v1840
        %1842 = vmatmul.bf16.gmra.mxu0 %v1168
        %v1843 = vpop.f32.mrf.mxu0
        %v1844 = vadd.f32 %v1795, %v1843
        %v1845 = vpop.f32.mrf.mxu0
        %v1846 = vadd.f32 %v1797, %v1845
        %1847 = vmatmul.bf16.gmra.mxu0 %v1170
        %v1848 = vpop.f32.mrf.mxu0
        %v1849 = vadd.f32 %v1800, %v1848
        %v1850 = vpop.f32.mrf.mxu0
        %v1851 = vadd.f32 %v1802, %v1850
        %1852 = vmatmul.bf16.gmra.mxu0 %v1172
        %v1853 = vpop.f32.mrf.mxu0
        %v1854 = vadd.f32 %v1805, %v1853
        %v1855 = vpop.f32.mrf.mxu0
        %v1856 = vadd.f32 %v1807, %v1855
        %1857 = vmatmul.bf16.gmra.mxu0 %v1174
        %v1858 = vpop.f32.mrf.mxu0
        %v1859 = vadd.f32 %v1810, %v1858
        %v1860 = vpop.f32.mrf.mxu0
        %v1861 = vadd.f32 %v1812, %v1860
        %1862 = vmatmul.bf16.gmra.mxu0 %v1176
        %v1863 = vpop.f32.mrf.mxu0
        %v1864 = vadd.f32 %v1815, %v1863
        %v1865 = vpop.f32.mrf.mxu0
        %v1866 = vadd.f32 %v1817, %v1865
        %1867 = vmatmul.bf16.gmra.mxu0 %v1178
        %v1868 = vpop.f32.mrf.mxu0
        %v1869 = vadd.f32 %v1820, %v1868
        %v1870 = vpop.f32.mrf.mxu0
        %v1871 = vadd.f32 %v1822, %v1870
        %1872 = vdwg.mxu0
        %1873 = vmatpush.bf16.msra.mxu0 %v1626
        %1874 = vmatpush.bf16.msra.mxu0 %v1620
        %1875 = vmatpush.bf16.msra.mxu0 %v1614
        %1876 = vmatpush.bf16.msra.mxu0 %v1608
        %1877 = vmatpush.bf16.msra.mxu0 %v1602
        %1878 = vmatpush.bf16.msra.mxu0 %v1596
        %1879 = vmatpush.bf16.msra.mxu0 %v1590
        %1880 = vmatpush.bf16.msra.mxu0 %v1584
        %1881 = vmatmul.bf16.gmra.mxu0 %v1163
        %v1882 = vpop.f32.mrf.mxu0
        %v1883 = vadd.f32 %v1284, %v1882
        %v1884 = vpop.f32.mrf.mxu0
        %v1885 = vadd.f32 %v1284, %v1884
        %1886 = vmatmul.bf16.gmra.mxu0 %v1165
        %v1887 = vpop.f32.mrf.mxu0
        %v1888 = vadd.f32 %v1284, %v1887
        %v1889 = vpop.f32.mrf.mxu0
        %v1890 = vadd.f32 %v1284, %v1889
        %1891 = vmatmul.bf16.gmra.mxu0 %v1167
        %v1892 = vpop.f32.mrf.mxu0
        %v1893 = vadd.f32 %v1284, %v1892
        %v1894 = vpop.f32.mrf.mxu0
        %v1895 = vadd.f32 %v1284, %v1894
        %1896 = vmatmul.bf16.gmra.mxu0 %v1169
        %v1897 = vpop.f32.mrf.mxu0
        %v1898 = vadd.f32 %v1284, %v1897
        %v1899 = vpop.f32.mrf.mxu0
        %v1900 = vadd.f32 %v1284, %v1899
        %1901 = vmatmul.bf16.gmra.mxu0 %v1171
        %v1902 = vpop.f32.mrf.mxu0
        %v1903 = vadd.f32 %v1284, %v1902
        %v1904 = vpop.f32.mrf.mxu0
        %v1905 = vadd.f32 %v1284, %v1904
        %1906 = vmatmul.bf16.gmra.mxu0 %v1173
        %v1907 = vpop.f32.mrf.mxu0
        %v1908 = vadd.f32 %v1284, %v1907
        %v1909 = vpop.f32.mrf.mxu0
        %v1910 = vadd.f32 %v1284, %v1909
        %1911 = vmatmul.bf16.gmra.mxu0 %v1175
        %v1912 = vpop.f32.mrf.mxu0
        %v1913 = vadd.f32 %v1284, %v1912
        %v1914 = vpop.f32.mrf.mxu0
        %v1915 = vadd.f32 %v1284, %v1914
        %1916 = vmatmul.bf16.gmra.mxu0 %v1177
        %v1917 = vpop.f32.mrf.mxu0
        %v1918 = vadd.f32 %v1284, %v1917
        %v1919 = vpop.f32.mrf.mxu0
        %v1920 = vadd.f32 %v1284, %v1919
        %1921 = vdwg.mxu0
        %1922 = vmatpush.bf16.msra.mxu0 %v1674
        %1923 = vmatpush.bf16.msra.mxu0 %v1668
        %1924 = vmatpush.bf16.msra.mxu0 %v1662
        %1925 = vmatpush.bf16.msra.mxu0 %v1656
        %1926 = vmatpush.bf16.msra.mxu0 %v1650
        %1927 = vmatpush.bf16.msra.mxu0 %v1644
        %1928 = vmatpush.bf16.msra.mxu0 %v1638
        %1929 = vmatpush.bf16.msra.mxu0 %v1632
        %1930 = vmatmul.bf16.gmra.mxu0 %v1164
        %v1931 = vpop.f32.mrf.mxu0
        %v1932 = vadd.f32 %v1883, %v1931
        %v1933 = vpop.f32.mrf.mxu0
        %v1934 = vadd.f32 %v1885, %v1933
        %1935 = vmatmul.bf16.gmra.mxu0 %v1166
        %v1936 = vpop.f32.mrf.mxu0
        %v1937 = vadd.f32 %v1888, %v1936
        %v1938 = vpop.f32.mrf.mxu0
        %v1939 = vadd.f32 %v1890, %v1938
        %1940 = vmatmul.bf16.gmra.mxu0 %v1168
        %v1941 = vpop.f32.mrf.mxu0
        %v1942 = vadd.f32 %v1893, %v1941
        %v1943 = vpop.f32.mrf.mxu0
        %v1944 = vadd.f32 %v1895, %v1943
        %1945 = vmatmul.bf16.gmra.mxu0 %v1170
        %v1946 = vpop.f32.mrf.mxu0
        %v1947 = vadd.f32 %v1898, %v1946
        %v1948 = vpop.f32.mrf.mxu0
        %v1949 = vadd.f32 %v1900, %v1948
        %1950 = vmatmul.bf16.gmra.mxu0 %v1172
        %v1951 = vpop.f32.mrf.mxu0
        %v1952 = vadd.f32 %v1903, %v1951
        %v1953 = vpop.f32.mrf.mxu0
        %v1954 = vadd.f32 %v1905, %v1953
        %1955 = vmatmul.bf16.gmra.mxu0 %v1174
        %v1956 = vpop.f32.mrf.mxu0
        %v1957 = vadd.f32 %v1908, %v1956
        %v1958 = vpop.f32.mrf.mxu0
        %v1959 = vadd.f32 %v1910, %v1958
        %1960 = vmatmul.bf16.gmra.mxu0 %v1176
        %v1961 = vpop.f32.mrf.mxu0
        %v1962 = vadd.f32 %v1913, %v1961
        %v1963 = vpop.f32.mrf.mxu0
        %v1964 = vadd.f32 %v1915, %v1963
        %1965 = vmatmul.bf16.gmra.mxu0 %v1178
        %v1966 = vpop.f32.mrf.mxu0
        %v1967 = vadd.f32 %v1918, %v1966
        %v1968 = vpop.f32.mrf.mxu0
        %v1969 = vadd.f32 %v1920, %v1968
        %1970 = vdwg.mxu0
        %1971 = vmatpush.bf16.msra.mxu0 %v1627
        %1972 = vmatpush.bf16.msra.mxu0 %v1621
        %1973 = vmatpush.bf16.msra.mxu0 %v1615
        %1974 = vmatpush.bf16.msra.mxu0 %v1609
        %1975 = vmatpush.bf16.msra.mxu0 %v1603
        %1976 = vmatpush.bf16.msra.mxu0 %v1597
        %1977 = vmatpush.bf16.msra.mxu0 %v1591
        %1978 = vmatpush.bf16.msra.mxu0 %v1585
        %1979 = vmatmul.bf16.gmra.mxu0 %v1163
        %v1980 = vpop.f32.mrf.mxu0
        %v1981 = vadd.f32 %v1285, %v1980
        %v1982 = vpop.f32.mrf.mxu0
        %v1983 = vadd.f32 %v1285, %v1982
        %1984 = vmatmul.bf16.gmra.mxu0 %v1165
        %v1985 = vpop.f32.mrf.mxu0
        %v1986 = vadd.f32 %v1285, %v1985
        %v1987 = vpop.f32.mrf.mxu0
        %v1988 = vadd.f32 %v1285, %v1987
        %1989 = vmatmul.bf16.gmra.mxu0 %v1167
        %v1990 = vpop.f32.mrf.mxu0
        %v1991 = vadd.f32 %v1285, %v1990
        %v1992 = vpop.f32.mrf.mxu0
        %v1993 = vadd.f32 %v1285, %v1992
        %1994 = vmatmul.bf16.gmra.mxu0 %v1169
        %v1995 = vpop.f32.mrf.mxu0
        %v1996 = vadd.f32 %v1285, %v1995
        %v1997 = vpop.f32.mrf.mxu0
        %v1998 = vadd.f32 %v1285, %v1997
        %1999 = vmatmul.bf16.gmra.mxu0 %v1171
        %v2000 = vpop.f32.mrf.mxu0
        %v2001 = vadd.f32 %v1285, %v2000
        %v2002 = vpop.f32.mrf.mxu0
        %v2003 = vadd.f32 %v1285, %v2002
        %2004 = vmatmul.bf16.gmra.mxu0 %v1173
        %v2005 = vpop.f32.mrf.mxu0
        %v2006 = vadd.f32 %v1285, %v2005
        %v2007 = vpop.f32.mrf.mxu0
        %v2008 = vadd.f32 %v1285, %v2007
        %2009 = vmatmul.bf16.gmra.mxu0 %v1175
        %v2010 = vpop.f32.mrf.mxu0
        %v2011 = vadd.f32 %v1285, %v2010
        %v2012 = vpop.f32.mrf.mxu0
        %v2013 = vadd.f32 %v1285, %v2012
        %2014 = vmatmul.bf16.gmra.mxu0 %v1177
        %v2015 = vpop.f32.mrf.mxu0
        %v2016 = vadd.f32 %v1285, %v2015
        %v2017 = vpop.f32.mrf.mxu0
        %v2018 = vadd.f32 %v1285, %v2017
        %2019 = vdwg.mxu0
        %2020 = vmatpush.bf16.msra.mxu0 %v1675
        %2021 = vmatpush.bf16.msra.mxu0 %v1669
        %2022 = vmatpush.bf16.msra.mxu0 %v1663
        %2023 = vmatpush.bf16.msra.mxu0 %v1657
        %2024 = vmatpush.bf16.msra.mxu0 %v1651
        %2025 = vmatpush.bf16.msra.mxu0 %v1645
        %2026 = vmatpush.bf16.msra.mxu0 %v1639
        %2027 = vmatpush.bf16.msra.mxu0 %v1633
        %2028 = vmatmul.bf16.gmra.mxu0 %v1164
        %v2029 = vpop.f32.mrf.mxu0
        %v2030 = vadd.f32 %v1981, %v2029
        %v2031 = vpop.f32.mrf.mxu0
        %v2032 = vadd.f32 %v1983, %v2031
        %2033 = vmatmul.bf16.gmra.mxu0 %v1166
        %v2034 = vpop.f32.mrf.mxu0
        %v2035 = vadd.f32 %v1986, %v2034
        %v2036 = vpop.f32.mrf.mxu0
        %v2037 = vadd.f32 %v1988, %v2036
        %2038 = vmatmul.bf16.gmra.mxu0 %v1168
        %v2039 = vpop.f32.mrf.mxu0
        %v2040 = vadd.f32 %v1991, %v2039
        %v2041 = vpop.f32.mrf.mxu0
        %v2042 = vadd.f32 %v1993, %v2041
        %2043 = vmatmul.bf16.gmra.mxu0 %v1170
        %v2044 = vpop.f32.mrf.mxu0
        %v2045 = vadd.f32 %v1996, %v2044
        %v2046 = vpop.f32.mrf.mxu0
        %v2047 = vadd.f32 %v1998, %v2046
        %2048 = vmatmul.bf16.gmra.mxu0 %v1172
        %v2049 = vpop.f32.mrf.mxu0
        %v2050 = vadd.f32 %v2001, %v2049
        %v2051 = vpop.f32.mrf.mxu0
        %v2052 = vadd.f32 %v2003, %v2051
        %2053 = vmatmul.bf16.gmra.mxu0 %v1174
        %v2054 = vpop.f32.mrf.mxu0
        %v2055 = vadd.f32 %v2006, %v2054
        %v2056 = vpop.f32.mrf.mxu0
        %v2057 = vadd.f32 %v2008, %v2056
        %2058 = vmatmul.bf16.gmra.mxu0 %v1176
        %v2059 = vpop.f32.mrf.mxu0
        %v2060 = vadd.f32 %v2011, %v2059
        %v2061 = vpop.f32.mrf.mxu0
        %v2062 = vadd.f32 %v2013, %v2061
        %2063 = vmatmul.bf16.gmra.mxu0 %v1178
        %v2064 = vpop.f32.mrf.mxu0
        %v2065 = vadd.f32 %v2016, %v2064
        %v2066 = vpop.f32.mrf.mxu0
        %v2067 = vadd.f32 %v2018, %v2066
        %2068 = vdwg.mxu0
        %2069 = vmatpush.bf16.msra.mxu0 %v1628
        %2070 = vmatpush.bf16.msra.mxu0 %v1622
        %2071 = vmatpush.bf16.msra.mxu0 %v1616
        %2072 = vmatpush.bf16.msra.mxu0 %v1610
        %2073 = vmatpush.bf16.msra.mxu0 %v1604
        %2074 = vmatpush.bf16.msra.mxu0 %v1598
        %2075 = vmatpush.bf16.msra.mxu0 %v1592
        %2076 = vmatpush.bf16.msra.mxu0 %v1586
        %2077 = vmatmul.bf16.gmra.mxu0 %v1163
        %v2078 = vpop.f32.mrf.mxu0
        %v2079 = vadd.f32 %v1286, %v2078
        %v2080 = vpop.f32.mrf.mxu0
        %v2081 = vadd.f32 %v1286, %v2080
        %2082 = vmatmul.bf16.gmra.mxu0 %v1165
        %v2083 = vpop.f32.mrf.mxu0
        %v2084 = vadd.f32 %v1286, %v2083
        %v2085 = vpop.f32.mrf.mxu0
        %v2086 = vadd.f32 %v1286, %v2085
        %2087 = vmatmul.bf16.gmra.mxu0 %v1167
        %v2088 = vpop.f32.mrf.mxu0
        %v2089 = vadd.f32 %v1286, %v2088
        %v2090 = vpop.f32.mrf.mxu0
        %v2091 = vadd.f32 %v1286, %v2090
        %2092 = vmatmul.bf16.gmra.mxu0 %v1169
        %v2093 = vpop.f32.mrf.mxu0
        %v2094 = vadd.f32 %v1286, %v2093
        %v2095 = vpop.f32.mrf.mxu0
        %v2096 = vadd.f32 %v1286, %v2095
        %2097 = vmatmul.bf16.gmra.mxu0 %v1171
        %v2098 = vpop.f32.mrf.mxu0
        %v2099 = vadd.f32 %v1286, %v2098
        %v2100 = vpop.f32.mrf.mxu0
        %v2101 = vadd.f32 %v1286, %v2100
        %2102 = vmatmul.bf16.gmra.mxu0 %v1173
        %v2103 = vpop.f32.mrf.mxu0
        %v2104 = vadd.f32 %v1286, %v2103
        %v2105 = vpop.f32.mrf.mxu0
        %v2106 = vadd.f32 %v1286, %v2105
        %2107 = vmatmul.bf16.gmra.mxu0 %v1175
        %v2108 = vpop.f32.mrf.mxu0
        %v2109 = vadd.f32 %v1286, %v2108
        %v2110 = vpop.f32.mrf.mxu0
        %v2111 = vadd.f32 %v1286, %v2110
        %2112 = vmatmul.bf16.gmra.mxu0 %v1177
        %v2113 = vpop.f32.mrf.mxu0
        %v2114 = vadd.f32 %v1286, %v2113
        %v2115 = vpop.f32.mrf.mxu0
        %v2116 = vadd.f32 %v1286, %v2115
        %2117 = vdwg.mxu0
        %2118 = vmatpush.bf16.msra.mxu0 %v1676
        %2119 = vmatpush.bf16.msra.mxu0 %v1670
        %2120 = vmatpush.bf16.msra.mxu0 %v1664
        %2121 = vmatpush.bf16.msra.mxu0 %v1658
        %2122 = vmatpush.bf16.msra.mxu0 %v1652
        %2123 = vmatpush.bf16.msra.mxu0 %v1646
        %2124 = vmatpush.bf16.msra.mxu0 %v1640
        %2125 = vmatpush.bf16.msra.mxu0 %v1634
        %2126 = vmatmul.bf16.gmra.mxu0 %v1164
        %v2127 = vpop.f32.mrf.mxu0
        %v2128 = vadd.f32 %v2079, %v2127
        %v2129 = vpop.f32.mrf.mxu0
        %v2130 = vadd.f32 %v2081, %v2129
        %2131 = vmatmul.bf16.gmra.mxu0 %v1166
        %v2132 = vpop.f32.mrf.mxu0
        %v2133 = vadd.f32 %v2084, %v2132
        %v2134 = vpop.f32.mrf.mxu0
        %v2135 = vadd.f32 %v2086, %v2134
        %2136 = vmatmul.bf16.gmra.mxu0 %v1168
        %v2137 = vpop.f32.mrf.mxu0
        %v2138 = vadd.f32 %v2089, %v2137
        %v2139 = vpop.f32.mrf.mxu0
        %v2140 = vadd.f32 %v2091, %v2139
        %2141 = vmatmul.bf16.gmra.mxu0 %v1170
        %v2142 = vpop.f32.mrf.mxu0
        %v2143 = vadd.f32 %v2094, %v2142
        %v2144 = vpop.f32.mrf.mxu0
        %v2145 = vadd.f32 %v2096, %v2144
        %2146 = vmatmul.bf16.gmra.mxu0 %v1172
        %v2147 = vpop.f32.mrf.mxu0
        %v2148 = vadd.f32 %v2099, %v2147
        %v2149 = vpop.f32.mrf.mxu0
        %v2150 = vadd.f32 %v2101, %v2149
        %2151 = vmatmul.bf16.gmra.mxu0 %v1174
        %v2152 = vpop.f32.mrf.mxu0
        %v2153 = vadd.f32 %v2104, %v2152
        %v2154 = vpop.f32.mrf.mxu0
        %v2155 = vadd.f32 %v2106, %v2154
        %2156 = vmatmul.bf16.gmra.mxu0 %v1176
        %v2157 = vpop.f32.mrf.mxu0
        %v2158 = vadd.f32 %v2109, %v2157
        %v2159 = vpop.f32.mrf.mxu0
        %v2160 = vadd.f32 %v2111, %v2159
        %2161 = vmatmul.bf16.gmra.mxu0 %v1178
        %v2162 = vpop.f32.mrf.mxu0
        %v2163 = vadd.f32 %v2114, %v2162
        %v2164 = vpop.f32.mrf.mxu0
        %v2165 = vadd.f32 %v2116, %v2164
        %2166 = vdwg.mxu0
        %2167 = vmatpush.bf16.msra.mxu0 %v1629
        %2168 = vmatpush.bf16.msra.mxu0 %v1623
        %2169 = vmatpush.bf16.msra.mxu0 %v1617
        %2170 = vmatpush.bf16.msra.mxu0 %v1611
        %2171 = vmatpush.bf16.msra.mxu0 %v1605
        %2172 = vmatpush.bf16.msra.mxu0 %v1599
        %2173 = vmatpush.bf16.msra.mxu0 %v1593
        %2174 = vmatpush.bf16.msra.mxu0 %v1587
        %2175 = vmatmul.bf16.gmra.mxu0 %v1163
        %v2176 = vpop.f32.mrf.mxu0
        %v2177 = vadd.f32 %v1287, %v2176
        %v2178 = vpop.f32.mrf.mxu0
        %v2179 = vadd.f32 %v1287, %v2178
        %2180 = vmatmul.bf16.gmra.mxu0 %v1165
        %v2181 = vpop.f32.mrf.mxu0
        %v2182 = vadd.f32 %v1287, %v2181
        %v2183 = vpop.f32.mrf.mxu0
        %v2184 = vadd.f32 %v1287, %v2183
        %2185 = vmatmul.bf16.gmra.mxu0 %v1167
        %v2186 = vpop.f32.mrf.mxu0
        %v2187 = vadd.f32 %v1287, %v2186
        %v2188 = vpop.f32.mrf.mxu0
        %v2189 = vadd.f32 %v1287, %v2188
        %2190 = vmatmul.bf16.gmra.mxu0 %v1169
        %v2191 = vpop.f32.mrf.mxu0
        %v2192 = vadd.f32 %v1287, %v2191
        %v2193 = vpop.f32.mrf.mxu0
        %v2194 = vadd.f32 %v1287, %v2193
        %2195 = vmatmul.bf16.gmra.mxu0 %v1171
        %v2196 = vpop.f32.mrf.mxu0
        %v2197 = vadd.f32 %v1287, %v2196
        %v2198 = vpop.f32.mrf.mxu0
        %v2199 = vadd.f32 %v1287, %v2198
        %2200 = vmatmul.bf16.gmra.mxu0 %v1173
        %v2201 = vpop.f32.mrf.mxu0
        %v2202 = vadd.f32 %v1287, %v2201
        %v2203 = vpop.f32.mrf.mxu0
        %v2204 = vadd.f32 %v1287, %v2203
        %2205 = vmatmul.bf16.gmra.mxu0 %v1175
        %v2206 = vpop.f32.mrf.mxu0
        %v2207 = vadd.f32 %v1287, %v2206
        %v2208 = vpop.f32.mrf.mxu0
        %v2209 = vadd.f32 %v1287, %v2208
        %2210 = vmatmul.bf16.gmra.mxu0 %v1177
        %v2211 = vpop.f32.mrf.mxu0
        %v2212 = vadd.f32 %v1287, %v2211
        %v2213 = vpop.f32.mrf.mxu0
        %v2214 = vadd.f32 %v1287, %v2213
        %2215 = vdwg.mxu0
        %2216 = vmatpush.bf16.msra.mxu0 %v1677
        %2217 = vmatpush.bf16.msra.mxu0 %v1671
        %2218 = vmatpush.bf16.msra.mxu0 %v1665
        %2219 = vmatpush.bf16.msra.mxu0 %v1659
        %2220 = vmatpush.bf16.msra.mxu0 %v1653
        %2221 = vmatpush.bf16.msra.mxu0 %v1647
        %2222 = vmatpush.bf16.msra.mxu0 %v1641
        %2223 = vmatpush.bf16.msra.mxu0 %v1635
        %2224 = vmatmul.bf16.gmra.mxu0 %v1164
        %v2225 = vpop.f32.mrf.mxu0
        %v2226 = vadd.f32 %v2177, %v2225
        %v2227 = vpop.f32.mrf.mxu0
        %v2228 = vadd.f32 %v2179, %v2227
        %2229 = vmatmul.bf16.gmra.mxu0 %v1166
        %v2230 = vpop.f32.mrf.mxu0
        %v2231 = vadd.f32 %v2182, %v2230
        %v2232 = vpop.f32.mrf.mxu0
        %v2233 = vadd.f32 %v2184, %v2232
        %2234 = vmatmul.bf16.gmra.mxu0 %v1168
        %v2235 = vpop.f32.mrf.mxu0
        %v2236 = vadd.f32 %v2187, %v2235
        %v2237 = vpop.f32.mrf.mxu0
        %v2238 = vadd.f32 %v2189, %v2237
        %2239 = vmatmul.bf16.gmra.mxu0 %v1170
        %v2240 = vpop.f32.mrf.mxu0
        %v2241 = vadd.f32 %v2192, %v2240
        %v2242 = vpop.f32.mrf.mxu0
        %v2243 = vadd.f32 %v2194, %v2242
        %2244 = vmatmul.bf16.gmra.mxu0 %v1172
        %v2245 = vpop.f32.mrf.mxu0
        %v2246 = vadd.f32 %v2197, %v2245
        %v2247 = vpop.f32.mrf.mxu0
        %v2248 = vadd.f32 %v2199, %v2247
        %2249 = vmatmul.bf16.gmra.mxu0 %v1174
        %v2250 = vpop.f32.mrf.mxu0
        %v2251 = vadd.f32 %v2202, %v2250
        %v2252 = vpop.f32.mrf.mxu0
        %v2253 = vadd.f32 %v2204, %v2252
        %2254 = vmatmul.bf16.gmra.mxu0 %v1176
        %v2255 = vpop.f32.mrf.mxu0
        %v2256 = vadd.f32 %v2207, %v2255
        %v2257 = vpop.f32.mrf.mxu0
        %v2258 = vadd.f32 %v2209, %v2257
        %2259 = vmatmul.bf16.gmra.mxu0 %v1178
        %v2260 = vpop.f32.mrf.mxu0
        %v2261 = vadd.f32 %v2212, %v2260
        %v2262 = vpop.f32.mrf.mxu0
        %v2263 = vadd.f32 %v2214, %v2262
        %2264 = vdwg.mxu0
        %2265 = vmatpush.bf16.msra.mxu0 %v1630
        %2266 = vmatpush.bf16.msra.mxu0 %v1624
        %2267 = vmatpush.bf16.msra.mxu0 %v1618
        %2268 = vmatpush.bf16.msra.mxu0 %v1612
        %2269 = vmatpush.bf16.msra.mxu0 %v1606
        %2270 = vmatpush.bf16.msra.mxu0 %v1600
        %2271 = vmatpush.bf16.msra.mxu0 %v1594
        %2272 = vmatpush.bf16.msra.mxu0 %v1588
        %2273 = vmatmul.bf16.gmra.mxu0 %v1163
        %v2274 = vpop.f32.mrf.mxu0
        %v2275 = vadd.f32 %v1288, %v2274
        %v2276 = vpop.f32.mrf.mxu0
        %v2277 = vadd.f32 %v1288, %v2276
        %2278 = vmatmul.bf16.gmra.mxu0 %v1165
        %v2279 = vpop.f32.mrf.mxu0
        %v2280 = vadd.f32 %v1288, %v2279
        %v2281 = vpop.f32.mrf.mxu0
        %v2282 = vadd.f32 %v1288, %v2281
        %2283 = vmatmul.bf16.gmra.mxu0 %v1167
        %v2284 = vpop.f32.mrf.mxu0
        %v2285 = vadd.f32 %v1288, %v2284
        %v2286 = vpop.f32.mrf.mxu0
        %v2287 = vadd.f32 %v1288, %v2286
        %2288 = vmatmul.bf16.gmra.mxu0 %v1169
        %v2289 = vpop.f32.mrf.mxu0
        %v2290 = vadd.f32 %v1288, %v2289
        %v2291 = vpop.f32.mrf.mxu0
        %v2292 = vadd.f32 %v1288, %v2291
        %2293 = vmatmul.bf16.gmra.mxu0 %v1171
        %v2294 = vpop.f32.mrf.mxu0
        %v2295 = vadd.f32 %v1288, %v2294
        %v2296 = vpop.f32.mrf.mxu0
        %v2297 = vadd.f32 %v1288, %v2296
        %2298 = vmatmul.bf16.gmra.mxu0 %v1173
        %v2299 = vpop.f32.mrf.mxu0
        %v2300 = vadd.f32 %v1288, %v2299
        %v2301 = vpop.f32.mrf.mxu0
        %v2302 = vadd.f32 %v1288, %v2301
        %2303 = vmatmul.bf16.gmra.mxu0 %v1175
        %v2304 = vpop.f32.mrf.mxu0
        %v2305 = vadd.f32 %v1288, %v2304
        %v2306 = vpop.f32.mrf.mxu0
        %v2307 = vadd.f32 %v1288, %v2306
        %2308 = vmatmul.bf16.gmra.mxu0 %v1177
        %v2309 = vpop.f32.mrf.mxu0
        %v2310 = vadd.f32 %v1288, %v2309
        %v2311 = vpop.f32.mrf.mxu0
        %v2312 = vadd.f32 %v1288, %v2311
        %2313 = vdwg.mxu0
        %2314 = vmatpush.bf16.msra.mxu0 %v1678
        %2315 = vmatpush.bf16.msra.mxu0 %v1672
        %2316 = vmatpush.bf16.msra.mxu0 %v1666
        %2317 = vmatpush.bf16.msra.mxu0 %v1660
        %2318 = vmatpush.bf16.msra.mxu0 %v1654
        %2319 = vmatpush.bf16.msra.mxu0 %v1648
        %2320 = vmatpush.bf16.msra.mxu0 %v1642
        %2321 = vmatpush.bf16.msra.mxu0 %v1636
        %2322 = vmatmul.bf16.gmra.mxu0 %v1164
        %v2323 = vpop.f32.mrf.mxu0
        %v2324 = vadd.f32 %v2275, %v2323
        %v2325 = vpop.f32.mrf.mxu0
        %v2326 = vadd.f32 %v2277, %v2325
        %2327 = vmatmul.bf16.gmra.mxu0 %v1166
        %v2328 = vpop.f32.mrf.mxu0
        %v2329 = vadd.f32 %v2280, %v2328
        %v2330 = vpop.f32.mrf.mxu0
        %v2331 = vadd.f32 %v2282, %v2330
        %2332 = vmatmul.bf16.gmra.mxu0 %v1168
        %v2333 = vpop.f32.mrf.mxu0
        %v2334 = vadd.f32 %v2285, %v2333
        %v2335 = vpop.f32.mrf.mxu0
        %v2336 = vadd.f32 %v2287, %v2335
        %2337 = vmatmul.bf16.gmra.mxu0 %v1170
        %v2338 = vpop.f32.mrf.mxu0
        %v2339 = vadd.f32 %v2290, %v2338
        %v2340 = vpop.f32.mrf.mxu0
        %v2341 = vadd.f32 %v2292, %v2340
        %2342 = vmatmul.bf16.gmra.mxu0 %v1172
        %v2343 = vpop.f32.mrf.mxu0
        %v2344 = vadd.f32 %v2295, %v2343
        %v2345 = vpop.f32.mrf.mxu0
        %v2346 = vadd.f32 %v2297, %v2345
        %2347 = vmatmul.bf16.gmra.mxu0 %v1174
        %v2348 = vpop.f32.mrf.mxu0
        %v2349 = vadd.f32 %v2300, %v2348
        %v2350 = vpop.f32.mrf.mxu0
        %v2351 = vadd.f32 %v2302, %v2350
        %2352 = vmatmul.bf16.gmra.mxu0 %v1176
        %v2353 = vpop.f32.mrf.mxu0
        %v2354 = vadd.f32 %v2305, %v2353
        %v2355 = vpop.f32.mrf.mxu0
        %v2356 = vadd.f32 %v2307, %v2355
        %2357 = vmatmul.bf16.gmra.mxu0 %v1178
        %v2358 = vpop.f32.mrf.mxu0
        %v2359 = vadd.f32 %v2310, %v2358
        %v2360 = vpop.f32.mrf.mxu0
        %v2361 = vadd.f32 %v2312, %v2360
        %2362 = vdwg.mxu0
        %v2363 = vpack.c.bf16 %v1932, %v1834
        %v2364 = vpack.c.bf16 %v2128, %v2030
        %v2365 = vpack.c.bf16 %v2324, %v2226
        %v2366 = vpack.c.bf16 %v1934, %v1836
        %v2367 = vpack.c.bf16 %v2130, %v2032
        %v2368 = vpack.c.bf16 %v2326, %v2228
        %v2369 = vpack.c.bf16 %v1937, %v1839
        %v2370 = vpack.c.bf16 %v2133, %v2035
        %v2371 = vpack.c.bf16 %v2329, %v2231
        %v2372 = vpack.c.bf16 %v1939, %v1841
        %v2373 = vpack.c.bf16 %v2135, %v2037
        %v2374 = vpack.c.bf16 %v2331, %v2233
        %v2375 = vpack.c.bf16 %v1942, %v1844
        %v2376 = vpack.c.bf16 %v2138, %v2040
        %v2377 = vpack.c.bf16 %v2334, %v2236
        %v2378 = vpack.c.bf16 %v1944, %v1846
        %v2379 = vpack.c.bf16 %v2140, %v2042
        %v2380 = vpack.c.bf16 %v2336, %v2238
        %v2381 = vpack.c.bf16 %v1947, %v1849
        %v2382 = vpack.c.bf16 %v2143, %v2045
        %v2383 = vpack.c.bf16 %v2339, %v2241
        %v2384 = vpack.c.bf16 %v1949, %v1851
        %v2385 = vpack.c.bf16 %v2145, %v2047
        %v2386 = vpack.c.bf16 %v2341, %v2243
        %v2387 = vpack.c.bf16 %v1952, %v1854
        %v2388 = vpack.c.bf16 %v2148, %v2050
        %v2389 = vpack.c.bf16 %v2344, %v2246
        %v2390 = vpack.c.bf16 %v1954, %v1856
        %v2391 = vpack.c.bf16 %v2150, %v2052
        %v2392 = vpack.c.bf16 %v2346, %v2248
        %v2393 = vpack.c.bf16 %v1957, %v1859
        %v2394 = vpack.c.bf16 %v2153, %v2055
        %v2395 = vpack.c.bf16 %v2349, %v2251
        %v2396 = vpack.c.bf16 %v1959, %v1861
        %v2397 = vpack.c.bf16 %v2155, %v2057
        %v2398 = vpack.c.bf16 %v2351, %v2253
        %v2399 = vpack.c.bf16 %v1962, %v1864
        %v2400 = vpack.c.bf16 %v2158, %v2060
        %v2401 = vpack.c.bf16 %v2354, %v2256
        %v2402 = vpack.c.bf16 %v1964, %v1866
        %v2403 = vpack.c.bf16 %v2160, %v2062
        %v2404 = vpack.c.bf16 %v2356, %v2258
        %v2405 = vpack.c.bf16 %v1967, %v1869
        %v2406 = vpack.c.bf16 %v2163, %v2065
        %v2407 = vpack.c.bf16 %v2359, %v2261
        %v2408 = vpack.c.bf16 %v1969, %v1871
        %v2409 = vpack.c.bf16 %v2165, %v2067
        %v2410 = vpack.c.bf16 %v2361, %v2263
        %2411 = vst [vmem:[#allocation3] sm:$0xff] %v2363
        %2412 = vst [vmem:[#allocation3 + $0x8] sm:$0xff] %v2364
        %2413 = vst [vmem:[#allocation3 + $0x10] sm:$0xff] %v2365
        %2414 = vst [vmem:[#allocation3 + $0x18] sm:$0xff] %v2366
        %2415 = vst [vmem:[#allocation3 + $0x20] sm:$0xff] %v2367
        %2416 = vst [vmem:[#allocation3 + $0x28] sm:$0xff] %v2368
        %2417 = vst [vmem:[#allocation3 + $0x30] sm:$0xff] %v2369
        %2418 = vst [vmem:[#allocation3 + $0x38] sm:$0xff] %v2370
        %2419 = vst [vmem:[#allocation3 + $0x40] sm:$0xff] %v2371
        %2420 = vst [vmem:[#allocation3 + $0x48] sm:$0xff] %v2372
        %2421 = vst [vmem:[#allocation3 + $0x50] sm:$0xff] %v2373
        %2422 = vst [vmem:[#allocation3 + $0x58] sm:$0xff] %v2374
        %2423 = vst [vmem:[#allocation3 + $0x60] sm:$0xff] %v2375
        %2424 = vst [vmem:[#allocation3 + $0x68] sm:$0xff] %v2376
        %2425 = vst [vmem:[#allocation3 + $0x70] sm:$0xff] %v2377
        %2426 = vst [vmem:[#allocation3 + $0x78] sm:$0xff] %v2378
        %2427 = vst [vmem:[#allocation3 + $0x80] sm:$0xff] %v2379
        %2428 = vst [vmem:[#allocation3 + $0x88] sm:$0xff] %v2380
        %2429 = vst [vmem:[#allocation3 + $0x90] sm:$0xff] %v2381
        %2430 = vst [vmem:[#allocation3 + $0x98] sm:$0xff] %v2382
        %2431 = vst [vmem:[#allocation3 + $0xa0] sm:$0xff] %v2383
        %2432 = vst [vmem:[#allocation3 + $0xa8] sm:$0xff] %v2384
        %2433 = vst [vmem:[#allocation3 + $0xb0] sm:$0xff] %v2385
        %2434 = vst [vmem:[#allocation3 + $0xb8] sm:$0xff] %v2386
        %2435 = vst [vmem:[#allocation3 + $0xc0] sm:$0xff] %v2387
        %2436 = vst [vmem:[#allocation3 + $0xc8] sm:$0xff] %v2388
        %2437 = vst [vmem:[#allocation3 + $0xd0] sm:$0xff] %v2389
        %2438 = vst [vmem:[#allocation3 + $0xd8] sm:$0xff] %v2390
        %2439 = vst [vmem:[#allocation3 + $0xe0] sm:$0xff] %v2391
        %2440 = vst [vmem:[#allocation3 + $0xe8] sm:$0xff] %v2392
        %2441 = vst [vmem:[#allocation3 + $0xf0] sm:$0xff] %v2393
        %2442 = vst [vmem:[#allocation3 + $0xf8] sm:$0xff] %v2394
        %2443 = vst [vmem:[#allocation3 + $0x100] sm:$0xff] %v2395
        %2444 = vst [vmem:[#allocation3 + $0x108] sm:$0xff] %v2396
        %2445 = vst [vmem:[#allocation3 + $0x110] sm:$0xff] %v2397
        %2446 = vst [vmem:[#allocation3 + $0x118] sm:$0xff] %v2398
        %2447 = vst [vmem:[#allocation3 + $0x120] sm:$0xff] %v2399
        %2448 = vst [vmem:[#allocation3 + $0x128] sm:$0xff] %v2400
        %2449 = vst [vmem:[#allocation3 + $0x130] sm:$0xff] %v2401
        %2450 = vst [vmem:[#allocation3 + $0x138] sm:$0xff] %v2402
        %2451 = vst [vmem:[#allocation3 + $0x140] sm:$0xff] %v2403
        %2452 = vst [vmem:[#allocation3 + $0x148] sm:$0xff] %v2404
        %2453 = vst [vmem:[#allocation3 + $0x150] sm:$0xff] %v2405
        %2454 = vst [vmem:[#allocation3 + $0x158] sm:$0xff] %v2406
        %2455 = vst [vmem:[#allocation3 + $0x160] sm:$0xff] %v2407
        %2456 = vst [vmem:[#allocation3 + $0x168] sm:$0xff] %v2408
        %2457 = vst [vmem:[#allocation3 + $0x170] sm:$0xff] %v2409
        %2458 = vst [vmem:[#allocation3 + $0x178] sm:$0xff] %v2410
        %v2459 = vld [vmem:[#allocation3] sm:$0xf]
        %v2460 = vld [vmem:[#allocation3 + $0x18] sm:$0xf]
        %v2461 = vld [vmem:[#allocation3 + $0x30] sm:$0xf]
        %v2462 = vld [vmem:[#allocation3 + $0x48] sm:$0xf]
        %v2463 = vld [vmem:[#allocation3 + $0x60] sm:$0xf]
        %v2464 = vld [vmem:[#allocation3 + $0x78] sm:$0xf]
        %v2465 = vld [vmem:[#allocation3 + $0x90] sm:$0xf]
        %v2466 = vld [vmem:[#allocation3 + $0xa8] sm:$0xf]
        %v2467 = vld [vmem:[#allocation3 + $0xc0] sm:$0xf]
        %v2468 = vld [vmem:[#allocation3 + $0xd8] sm:$0xf]
        %v2469 = vld [vmem:[#allocation3 + $0xf0] sm:$0xf]
        %v2470 = vld [vmem:[#allocation3 + $0x108] sm:$0xf]
        %v2471 = vld [vmem:[#allocation3 + $0x120] sm:$0xf]
        %v2472 = vld [vmem:[#allocation3 + $0x138] sm:$0xf]
        %v2473 = vld [vmem:[#allocation3 + $0x150] sm:$0xf]
        %v2474 = vld [vmem:[#allocation3 + $0x168] sm:$0xf]
        %v2475 = vld [vmem:[#allocation3 + $0x8] sm:$0xf]
        %v2476 = vld [vmem:[#allocation3 + $0x20] sm:$0xf]
        %v2477 = vld [vmem:[#allocation3 + $0x38] sm:$0xf]
        %v2478 = vld [vmem:[#allocation3 + $0x50] sm:$0xf]
        %v2479 = vld [vmem:[#allocation3 + $0x68] sm:$0xf]
        %v2480 = vld [vmem:[#allocation3 + $0x80] sm:$0xf]
        %v2481 = vld [vmem:[#allocation3 + $0x98] sm:$0xf]
        %v2482 = vld [vmem:[#allocation3 + $0xb0] sm:$0xf]
        %v2483 = vld [vmem:[#allocation3 + $0xc8] sm:$0xf]
        %v2484 = vld [vmem:[#allocation3 + $0xe0] sm:$0xf]
        %v2485 = vld [vmem:[#allocation3 + $0xf8] sm:$0xf]
        %v2486 = vld [vmem:[#allocation3 + $0x110] sm:$0xf]
        %v2487 = vld [vmem:[#allocation3 + $0x128] sm:$0xf]
        %v2488 = vld [vmem:[#allocation3 + $0x140] sm:$0xf]
        %v2489 = vld [vmem:[#allocation3 + $0x158] sm:$0xf]
        %v2490 = vld [vmem:[#allocation3 + $0x170] sm:$0xf]
        %v2491 = vld [vmem:[#allocation3 + $0x10] sm:$0xf]
        %v2492 = vld [vmem:[#allocation3 + $0x28] sm:$0xf]
        %v2493 = vld [vmem:[#allocation3 + $0x40] sm:$0xf]
        %v2494 = vld [vmem:[#allocation3 + $0x58] sm:$0xf]
        %v2495 = vld [vmem:[#allocation3 + $0x70] sm:$0xf]
        %v2496 = vld [vmem:[#allocation3 + $0x88] sm:$0xf]
        %v2497 = vld [vmem:[#allocation3 + $0xa0] sm:$0xf]
        %v2498 = vld [vmem:[#allocation3 + $0xb8] sm:$0xf]
        %v2499 = vld [vmem:[#allocation3 + $0xd0] sm:$0xf]
        %v2500 = vld [vmem:[#allocation3 + $0xe8] sm:$0xf]
        %v2501 = vld [vmem:[#allocation3 + $0x100] sm:$0xf]
        %v2502 = vld [vmem:[#allocation3 + $0x118] sm:$0xf]
        %v2503 = vld [vmem:[#allocation3 + $0x130] sm:$0xf]
        %v2504 = vld [vmem:[#allocation3 + $0x148] sm:$0xf]
        %v2505 = vld [vmem:[#allocation3 + $0x160] sm:$0xf]
        %v2506 = vld [vmem:[#allocation3 + $0x178] sm:$0xf]
        %v2508 = vperm.slane %v1179, 0
        %v2526 = vunpack.c.l.b16 %v2459
        %v2527 = vunpack.c.l.b16 %v2460
        %v2528 = vunpack.c.l.b16 %v2461
        %v2529 = vunpack.c.l.b16 %v2462
        %v2530 = vunpack.c.l.b16 %v2463
        %v2531 = vunpack.c.l.b16 %v2464
        %v2532 = vunpack.c.l.b16 %v2465
        %v2533 = vunpack.c.l.b16 %v2466
        %v2534 = vunpack.c.l.b16 %v2467
        %v2535 = vunpack.c.l.b16 %v2468
        %v2536 = vunpack.c.l.b16 %v2469
        %v2537 = vunpack.c.l.b16 %v2470
        %v2538 = vunpack.c.l.b16 %v2471
        %v2539 = vunpack.c.l.b16 %v2472
        %v2540 = vunpack.c.l.b16 %v2473
        %v2541 = vunpack.c.l.b16 %v2474
        %v2542 = vpack.c.b16 %v2527, %v2526
        %v2543 = vpack.c.b16 %v2529, %v2528
        %v2544 = vpack.c.b16 %v2531, %v2530
        %v2545 = vpack.c.b16 %v2533, %v2532
        %v2546 = vpack.c.b16 %v2535, %v2534
        %v2547 = vpack.c.b16 %v2537, %v2536
        %v2548 = vpack.c.b16 %v2539, %v2538
        %v2549 = vpack.c.b16 %v2541, %v2540
        %v2566 = vunpack.c.l.b16 %v2475
        %v2567 = vunpack.c.l.b16 %v2476
        %v2568 = vunpack.c.l.b16 %v2477
        %v2569 = vunpack.c.l.b16 %v2478
        %v2570 = vunpack.c.l.b16 %v2479
        %v2571 = vunpack.c.l.b16 %v2480
        %v2572 = vunpack.c.l.b16 %v2481
        %v2573 = vunpack.c.l.b16 %v2482
        %v2574 = vunpack.c.l.b16 %v2483
        %v2575 = vunpack.c.l.b16 %v2484
        %v2576 = vunpack.c.l.b16 %v2485
        %v2577 = vunpack.c.l.b16 %v2486
        %v2578 = vunpack.c.l.b16 %v2487
        %v2579 = vunpack.c.l.b16 %v2488
        %v2580 = vunpack.c.l.b16 %v2489
        %v2581 = vunpack.c.l.b16 %v2490
        %v2582 = vpack.c.b16 %v2567, %v2566
        %v2583 = vpack.c.b16 %v2569, %v2568
        %v2584 = vpack.c.b16 %v2571, %v2570
        %v2585 = vpack.c.b16 %v2573, %v2572
        %v2586 = vpack.c.b16 %v2575, %v2574
        %v2587 = vpack.c.b16 %v2577, %v2576
        %v2588 = vpack.c.b16 %v2579, %v2578
        %v2589 = vpack.c.b16 %v2581, %v2580
        %vm2590 = vcmask 523264
        %v2592 = vsel %vm2590, %v2542, 0
        %v2595 = vsel %vm2590, %v2543, 0
        %v2598 = vsel %vm2590, %v2544, 0
        %v2601 = vsel %vm2590, %v2545, 0
        %v2604 = vsel %vm2590, %v2546, 0
        %v2607 = vsel %vm2590, %v2547, 0
        %v2610 = vsel %vm2590, %v2548, 0
        %v2613 = vsel %vm2590, %v2549, 0
        %v2616 = vsel %vm2590, %v2582, 0
        %v2619 = vsel %vm2590, %v2583, 0
        %v2622 = vsel %vm2590, %v2584, 0
        %v2625 = vsel %vm2590, %v2585, 0
        %v2628 = vsel %vm2590, %v2586, 0
        %v2631 = vsel %vm2590, %v2587, 0
        %v2634 = vsel %vm2590, %v2588, 0
        %v2637 = vsel %vm2590, %v2589, 0
        %2639 = vmatpush.bf16.xpose.msra.mxu0 %v2637
        %2640 = vmatpush.bf16.xpose.msra.mxu0 %v2634
        %2641 = vmatpush.bf16.xpose.msra.mxu0 %v2631
        %2642 = vmatpush.bf16.xpose.msra.mxu0 %v2628
        %2643 = vmatpush.bf16.xpose.msra.mxu0 %v2625
        %2644 = vmatpush.bf16.xpose.msra.mxu0 %v2622
        %2645 = vmatpush.bf16.xpose.msra.mxu0 %v2619
        %2646 = vmatpush.bf16.xpose.msra.mxu0 %v2616
        %2647 = vmatmul.bf16.gmra.mxu0 %v2592
        %v2648 = vpop.f32.mrf.mxu0
        %v2649 = vadd.f32 %v2508, %v2648
        %v2650 = vpop.f32.mrf.mxu0
        %v2651 = vadd.f32 %v2508, %v2650
        %2652 = vmatmul.bf16.gmra.mxu0 %v2595
        %v2653 = vpop.f32.mrf.mxu0
        %v2654 = vadd.f32 %v2508, %v2653
        %v2655 = vpop.f32.mrf.mxu0
        %v2656 = vadd.f32 %v2508, %v2655
        %2657 = vmatmul.bf16.gmra.mxu0 %v2598
        %v2658 = vpop.f32.mrf.mxu0
        %v2659 = vadd.f32 %v2508, %v2658
        %v2660 = vpop.f32.mrf.mxu0
        %v2661 = vadd.f32 %v2508, %v2660
        %2662 = vmatmul.bf16.gmra.mxu0 %v2601
        %v2663 = vpop.f32.mrf.mxu0
        %v2664 = vadd.f32 %v2508, %v2663
        %v2665 = vpop.f32.mrf.mxu0
        %v2666 = vadd.f32 %v2508, %v2665
        %2667 = vmatmul.bf16.gmra.mxu0 %v2604
        %v2668 = vpop.f32.mrf.mxu0
        %v2669 = vadd.f32 %v2508, %v2668
        %v2670 = vpop.f32.mrf.mxu0
        %v2671 = vadd.f32 %v2508, %v2670
        %2672 = vmatmul.bf16.gmra.mxu0 %v2607
        %v2673 = vpop.f32.mrf.mxu0
        %v2674 = vadd.f32 %v2508, %v2673
        %v2675 = vpop.f32.mrf.mxu0
        %v2676 = vadd.f32 %v2508, %v2675
        %2677 = vmatmul.bf16.gmra.mxu0 %v2610
        %v2678 = vpop.f32.mrf.mxu0
        %v2679 = vadd.f32 %v2508, %v2678
        %v2680 = vpop.f32.mrf.mxu0
        %v2681 = vadd.f32 %v2508, %v2680
        %2682 = vmatmul.bf16.gmra.mxu0 %v2613
        %v2683 = vpop.f32.mrf.mxu0
        %v2684 = vadd.f32 %v2508, %v2683
        %v2685 = vpop.f32.mrf.mxu0
        %v2686 = vadd.f32 %v2508, %v2685
        %2687 = vdwg.mxu0
        %2688 = vmax.xlane.f32.xlu0 %v2649
        %v2689 = vpop.xlane.xlu0 %2688
        %2690 = vmax.xlane.f32.xlu0 %v2651
        %v2691 = vpop.xlane.xlu0 %2690
        %2692 = vmax.xlane.f32.xlu0 %v2654
        %v2693 = vpop.xlane.xlu0 %2692
        %2694 = vmax.xlane.f32.xlu0 %v2656
        %v2695 = vpop.xlane.xlu0 %2694
        %2696 = vmax.xlane.f32.xlu0 %v2659
        %v2697 = vpop.xlane.xlu0 %2696
        %2698 = vmax.xlane.f32.xlu0 %v2661
        %v2699 = vpop.xlane.xlu0 %2698
        %2700 = vmax.xlane.f32.xlu0 %v2664
        %v2701 = vpop.xlane.xlu0 %2700
        %2702 = vmax.xlane.f32.xlu0 %v2666
        %v2703 = vpop.xlane.xlu0 %2702
        %2704 = vmax.xlane.f32.xlu0 %v2669
        %v2705 = vpop.xlane.xlu0 %2704
        %2706 = vmax.xlane.f32.xlu0 %v2671
        %v2707 = vpop.xlane.xlu0 %2706
        %2708 = vmax.xlane.f32.xlu0 %v2674
        %v2709 = vpop.xlane.xlu0 %2708
        %2710 = vmax.xlane.f32.xlu0 %v2676
        %v2711 = vpop.xlane.xlu0 %2710
        %2712 = vmax.xlane.f32.xlu0 %v2679
        %v2713 = vpop.xlane.xlu0 %2712
        %2714 = vmax.xlane.f32.xlu0 %v2681
        %v2715 = vpop.xlane.xlu0 %2714
        %2716 = vmax.xlane.f32.xlu0 %v2684
        %v2717 = vpop.xlane.xlu0 %2716
        %2718 = vmax.xlane.f32.xlu0 %v2686
        %v2719 = vpop.xlane.xlu0 %2718
        %v2720 = vsub.f32 %v2649, %v2689
        %v2721 = vsub.f32 %v2651, %v2691
        %v2722 = vsub.f32 %v2654, %v2693
        %v2723 = vsub.f32 %v2656, %v2695
        %v2724 = vsub.f32 %v2659, %v2697
        %v2725 = vsub.f32 %v2661, %v2699
        %v2726 = vsub.f32 %v2664, %v2701
        %v2727 = vsub.f32 %v2666, %v2703
        %v2728 = vsub.f32 %v2669, %v2705
        %v2729 = vsub.f32 %v2671, %v2707
        %v2730 = vsub.f32 %v2674, %v2709
        %v2731 = vsub.f32 %v2676, %v2711
        %v2732 = vsub.f32 %v2679, %v2713
        %v2733 = vsub.f32 %v2681, %v2715
        %v2734 = vsub.f32 %v2684, %v2717
        %v2735 = vsub.f32 %v2686, %v2719
        %v2736 = vmul.f32 %v2720, 1.442695
        %v2737 = vpow.pop %v2736
        %v2738 = vmul.f32 %v2721, 1.442695
        %v2739 = vpow.pop %v2738
        %v2740 = vmul.f32 %v2722, 1.442695
        %v2741 = vpow.pop %v2740
        %v2742 = vmul.f32 %v2723, 1.442695
        %v2743 = vpow.pop %v2742
        %v2744 = vmul.f32 %v2724, 1.442695
        %v2745 = vpow.pop %v2744
        %v2746 = vmul.f32 %v2725, 1.442695
        %v2747 = vpow.pop %v2746
        %v2748 = vmul.f32 %v2726, 1.442695
        %v2749 = vpow.pop %v2748
        %v2750 = vmul.f32 %v2727, 1.442695
        %v2751 = vpow.pop %v2750
        %v2752 = vmul.f32 %v2728, 1.442695
        %v2753 = vpow.pop %v2752
        %v2754 = vmul.f32 %v2729, 1.442695
        %v2755 = vpow.pop %v2754
        %v2756 = vmul.f32 %v2730, 1.442695
        %v2757 = vpow.pop %v2756
        %v2758 = vmul.f32 %v2731, 1.442695
        %v2759 = vpow.pop %v2758
        %v2760 = vmul.f32 %v2732, 1.442695
        %v2761 = vpow.pop %v2760
        %v2762 = vmul.f32 %v2733, 1.442695
        %v2763 = vpow.pop %v2762
        %v2764 = vmul.f32 %v2734, 1.442695
        %v2765 = vpow.pop %v2764
        %v2766 = vmul.f32 %v2735, 1.442695
        %v2767 = vpow.pop %v2766
        %2768 = vadd.xlane.f32.xlu0 %v2737
        %v2769 = vpop.xlane.xlu0 %2768
        %2770 = vadd.xlane.f32.xlu0 %v2739
        %v2771 = vpop.xlane.xlu0 %2770
        %2772 = vadd.xlane.f32.xlu0 %v2741
        %v2773 = vpop.xlane.xlu0 %2772
        %2774 = vadd.xlane.f32.xlu0 %v2743
        %v2775 = vpop.xlane.xlu0 %2774
        %2776 = vadd.xlane.f32.xlu0 %v2745
        %v2777 = vpop.xlane.xlu0 %2776
        %2778 = vadd.xlane.f32.xlu0 %v2747
        %v2779 = vpop.xlane.xlu0 %2778
        %2780 = vadd.xlane.f32.xlu0 %v2749
        %v2781 = vpop.xlane.xlu0 %2780
        %2782 = vadd.xlane.f32.xlu0 %v2751
        %v2783 = vpop.xlane.xlu0 %2782
        %2784 = vadd.xlane.f32.xlu0 %v2753
        %v2785 = vpop.xlane.xlu0 %2784
        %2786 = vadd.xlane.f32.xlu0 %v2755
        %v2787 = vpop.xlane.xlu0 %2786
        %2788 = vadd.xlane.f32.xlu0 %v2757
        %v2789 = vpop.xlane.xlu0 %2788
        %2790 = vadd.xlane.f32.xlu0 %v2759
        %v2791 = vpop.xlane.xlu0 %2790
        %2792 = vadd.xlane.f32.xlu0 %v2761
        %v2793 = vpop.xlane.xlu0 %2792
        %2794 = vadd.xlane.f32.xlu0 %v2763
        %v2795 = vpop.xlane.xlu0 %2794
        %2796 = vadd.xlane.f32.xlu0 %v2765
        %v2797 = vpop.xlane.xlu0 %2796
        %2798 = vadd.xlane.f32.xlu0 %v2767
        %v2799 = vpop.xlane.xlu0 %2798
        %v2800 = vrcp.pop %v2769
        %v2801 = vrcp.pop %v2771
        %v2802 = vrcp.pop %v2773
        %v2803 = vrcp.pop %v2775
        %v2804 = vrcp.pop %v2777
        %v2805 = vrcp.pop %v2779
        %v2806 = vrcp.pop %v2781
        %v2807 = vrcp.pop %v2783
        %v2808 = vrcp.pop %v2785
        %v2809 = vrcp.pop %v2787
        %v2810 = vrcp.pop %v2789
        %v2811 = vrcp.pop %v2791
        %v2812 = vrcp.pop %v2793
        %v2813 = vrcp.pop %v2795
        %v2814 = vrcp.pop %v2797
        %v2815 = vrcp.pop %v2799
        %v2816 = vpack.c.bf16 %v2739, %v2737
        %v2817 = vpack.c.bf16 %v2743, %v2741
        %v2818 = vpack.c.bf16 %v2747, %v2745
        %v2819 = vpack.c.bf16 %v2751, %v2749
        %v2820 = vpack.c.bf16 %v2755, %v2753
        %v2821 = vpack.c.bf16 %v2759, %v2757
        %v2822 = vpack.c.bf16 %v2763, %v2761
        %v2823 = vpack.c.bf16 %v2767, %v2765
        %v2840 = vunpack.c.l.b16 %v2491
        %v2841 = vunpack.c.l.b16 %v2492
        %v2842 = vunpack.c.l.b16 %v2493
        %v2843 = vunpack.c.l.b16 %v2494
        %v2844 = vunpack.c.l.b16 %v2495
        %v2845 = vunpack.c.l.b16 %v2496
        %v2846 = vunpack.c.l.b16 %v2497
        %v2847 = vunpack.c.l.b16 %v2498
        %v2848 = vunpack.c.l.b16 %v2499
        %v2849 = vunpack.c.l.b16 %v2500
        %v2850 = vunpack.c.l.b16 %v2501
        %v2851 = vunpack.c.l.b16 %v2502
        %v2852 = vunpack.c.l.b16 %v2503
        %v2853 = vunpack.c.l.b16 %v2504
        %v2854 = vunpack.c.l.b16 %v2505
        %v2855 = vunpack.c.l.b16 %v2506
        %v2856 = vpack.c.b16 %v2841, %v2840
        %v2857 = vpack.c.b16 %v2843, %v2842
        %v2858 = vpack.c.b16 %v2845, %v2844
        %v2859 = vpack.c.b16 %v2847, %v2846
        %v2860 = vpack.c.b16 %v2849, %v2848
        %v2861 = vpack.c.b16 %v2851, %v2850
        %v2862 = vpack.c.b16 %v2853, %v2852
        %v2863 = vpack.c.b16 %v2855, %v2854
        %2872 = vmatpush.bf16.msra.mxu0 %v2863
        %2873 = vmatpush.bf16.msra.mxu0 %v2862
        %2874 = vmatpush.bf16.msra.mxu0 %v2861
        %2875 = vmatpush.bf16.msra.mxu0 %v2860
        %2876 = vmatpush.bf16.msra.mxu0 %v2859
        %2877 = vmatpush.bf16.msra.mxu0 %v2858
        %2878 = vmatpush.bf16.msra.mxu0 %v2857
        %2879 = vmatpush.bf16.msra.mxu0 %v2856
        %2880 = vmatmul.bf16.gmra.mxu0 %v2816
        %v2881 = vpop.f32.mrf.mxu0
        %v2882 = vadd.f32 0.0, %v2881
        %v2883 = vpop.f32.mrf.mxu0
        %v2884 = vadd.f32 0.0, %v2883
        %2885 = vmatmul.bf16.gmra.mxu0 %v2817
        %v2886 = vpop.f32.mrf.mxu0
        %v2887 = vadd.f32 0.0, %v2886
        %v2888 = vpop.f32.mrf.mxu0
        %v2889 = vadd.f32 0.0, %v2888
        %2890 = vmatmul.bf16.gmra.mxu0 %v2818
        %v2891 = vpop.f32.mrf.mxu0
        %v2892 = vadd.f32 0.0, %v2891
        %v2893 = vpop.f32.mrf.mxu0
        %v2894 = vadd.f32 0.0, %v2893
        %2895 = vmatmul.bf16.gmra.mxu0 %v2819
        %v2896 = vpop.f32.mrf.mxu0
        %v2897 = vadd.f32 0.0, %v2896
        %v2898 = vpop.f32.mrf.mxu0
        %v2899 = vadd.f32 0.0, %v2898
        %2900 = vmatmul.bf16.gmra.mxu0 %v2820
        %v2901 = vpop.f32.mrf.mxu0
        %v2902 = vadd.f32 0.0, %v2901
        %v2903 = vpop.f32.mrf.mxu0
        %v2904 = vadd.f32 0.0, %v2903
        %2905 = vmatmul.bf16.gmra.mxu0 %v2821
        %v2906 = vpop.f32.mrf.mxu0
        %v2907 = vadd.f32 0.0, %v2906
        %v2908 = vpop.f32.mrf.mxu0
        %v2909 = vadd.f32 0.0, %v2908
        %2910 = vmatmul.bf16.gmra.mxu0 %v2822
        %v2911 = vpop.f32.mrf.mxu0
        %v2912 = vadd.f32 0.0, %v2911
        %v2913 = vpop.f32.mrf.mxu0
        %v2914 = vadd.f32 0.0, %v2913
        %2915 = vmatmul.bf16.gmra.mxu0 %v2823
        %v2916 = vpop.f32.mrf.mxu0
        %v2917 = vadd.f32 0.0, %v2916
        %v2918 = vpop.f32.mrf.mxu0
        %v2919 = vadd.f32 0.0, %v2918
        %2920 = vdwg.mxu0
        %v2921 = vmul.f32 %v2882, %v2800
        %v2922 = vmul.f32 %v2884, %v2801
        %v2923 = vmul.f32 %v2887, %v2802
        %v2924 = vmul.f32 %v2889, %v2803
        %v2925 = vmul.f32 %v2892, %v2804
        %v2926 = vmul.f32 %v2894, %v2805
        %v2927 = vmul.f32 %v2897, %v2806
        %v2928 = vmul.f32 %v2899, %v2807
        %v2929 = vmul.f32 %v2902, %v2808
        %v2930 = vmul.f32 %v2904, %v2809
        %v2931 = vmul.f32 %v2907, %v2810
        %v2932 = vmul.f32 %v2909, %v2811
        %v2933 = vmul.f32 %v2912, %v2812
        %v2934 = vmul.f32 %v2914, %v2813
        %v2935 = vmul.f32 %v2917, %v2814
        %v2936 = vmul.f32 %v2919, %v2815
        %v2937 = vpack.c.bf16 %v2921, %v2921
        %v2938 = vpack.c.bf16 %v2922, %v2922
        %v2939 = vpack.c.bf16 %v2923, %v2923
        %v2940 = vpack.c.bf16 %v2924, %v2924
        %v2941 = vpack.c.bf16 %v2925, %v2925
        %v2942 = vpack.c.bf16 %v2926, %v2926
        %v2943 = vpack.c.bf16 %v2927, %v2927
        %v2944 = vpack.c.bf16 %v2928, %v2928
        %v2945 = vpack.c.bf16 %v2929, %v2929
        %v2946 = vpack.c.bf16 %v2930, %v2930
        %v2947 = vpack.c.bf16 %v2931, %v2931
        %v2948 = vpack.c.bf16 %v2932, %v2932
        %v2949 = vpack.c.bf16 %v2933, %v2933
        %v2950 = vpack.c.bf16 %v2934, %v2934
        %v2951 = vpack.c.bf16 %v2935, %v2935
        %v2952 = vpack.c.bf16 %v2936, %v2936
        %vm2953 = vcmask 519168
        %2954 = vst.msk [vmem:[#allocation4] sm:$0xf] %vm2953, %v2937
        %2955 = vst.msk [vmem:[#allocation4 + $0x8] sm:$0xf] %vm2953, %v2938
        %2956 = vst.msk [vmem:[#allocation4 + $0x10] sm:$0xf] %vm2953, %v2939
        %2957 = vst.msk [vmem:[#allocation4 + $0x18] sm:$0xf] %vm2953, %v2940
        %2958 = vst.msk [vmem:[#allocation4 + $0x20] sm:$0xf] %vm2953, %v2941
        %2959 = vst.msk [vmem:[#allocation4 + $0x28] sm:$0xf] %vm2953, %v2942
        %2960 = vst.msk [vmem:[#allocation4 + $0x30] sm:$0xf] %vm2953, %v2943
        %2961 = vst.msk [vmem:[#allocation4 + $0x38] sm:$0xf] %vm2953, %v2944
        %2962 = vst.msk [vmem:[#allocation4 + $0x40] sm:$0xf] %vm2953, %v2945
        %2963 = vst.msk [vmem:[#allocation4 + $0x48] sm:$0xf] %vm2953, %v2946
        %2964 = vst.msk [vmem:[#allocation4 + $0x50] sm:$0xf] %vm2953, %v2947
        %2965 = vst.msk [vmem:[#allocation4 + $0x58] sm:$0xf] %vm2953, %v2948
        %2966 = vst.msk [vmem:[#allocation4 + $0x60] sm:$0xf] %vm2953, %v2949
        %2967 = vst.msk [vmem:[#allocation4 + $0x68] sm:$0xf] %vm2953, %v2950
        %2968 = vst.msk [vmem:[#allocation4 + $0x70] sm:$0xf] %vm2953, %v2951
        %2969 = vst.msk [vmem:[#allocation4 + $0x78] sm:$0xf] %vm2953, %v2952
        %v2970 = vld [vmem:[#allocation3] sm:$0xf]
        %v2971 = vld [vmem:[#allocation3 + $0x18] sm:$0xf]
        %v2972 = vld [vmem:[#allocation3 + $0x30] sm:$0xf]
        %v2973 = vld [vmem:[#allocation3 + $0x48] sm:$0xf]
        %v2974 = vld [vmem:[#allocation3 + $0x60] sm:$0xf]
        %v2975 = vld [vmem:[#allocation3 + $0x78] sm:$0xf]
        %v2976 = vld [vmem:[#allocation3 + $0x90] sm:$0xf]
        %v2977 = vld [vmem:[#allocation3 + $0xa8] sm:$0xf]
        %v2978 = vld [vmem:[#allocation3 + $0xc0] sm:$0xf]
        %v2979 = vld [vmem:[#allocation3 + $0xd8] sm:$0xf]
        %v2980 = vld [vmem:[#allocation3 + $0xf0] sm:$0xf]
        %v2981 = vld [vmem:[#allocation3 + $0x108] sm:$0xf]
        %v2982 = vld [vmem:[#allocation3 + $0x120] sm:$0xf]
        %v2983 = vld [vmem:[#allocation3 + $0x138] sm:$0xf]
        %v2984 = vld [vmem:[#allocation3 + $0x150] sm:$0xf]
        %v2985 = vld [vmem:[#allocation3 + $0x168] sm:$0xf]
        %v2986 = vld [vmem:[#allocation3 + $0x8] sm:$0xf]
        %v2987 = vld [vmem:[#allocation3 + $0x20] sm:$0xf]
        %v2988 = vld [vmem:[#allocation3 + $0x38] sm:$0xf]
        %v2989 = vld [vmem:[#allocation3 + $0x50] sm:$0xf]
        %v2990 = vld [vmem:[#allocation3 + $0x68] sm:$0xf]
        %v2991 = vld [vmem:[#allocation3 + $0x80] sm:$0xf]
        %v2992 = vld [vmem:[#allocation3 + $0x98] sm:$0xf]
        %v2993 = vld [vmem:[#allocation3 + $0xb0] sm:$0xf]
        %v2994 = vld [vmem:[#allocation3 + $0xc8] sm:$0xf]
        %v2995 = vld [vmem:[#allocation3 + $0xe0] sm:$0xf]
        %v2996 = vld [vmem:[#allocation3 + $0xf8] sm:$0xf]
        %v2997 = vld [vmem:[#allocation3 + $0x110] sm:$0xf]
        %v2998 = vld [vmem:[#allocation3 + $0x128] sm:$0xf]
        %v2999 = vld [vmem:[#allocation3 + $0x140] sm:$0xf]
        %v3000 = vld [vmem:[#allocation3 + $0x158] sm:$0xf]
        %v3001 = vld [vmem:[#allocation3 + $0x170] sm:$0xf]
        %v3002 = vld [vmem:[#allocation3 + $0x10] sm:$0xf]
        %v3003 = vld [vmem:[#allocation3 + $0x28] sm:$0xf]
        %v3004 = vld [vmem:[#allocation3 + $0x40] sm:$0xf]
        %v3005 = vld [vmem:[#allocation3 + $0x58] sm:$0xf]
        %v3006 = vld [vmem:[#allocation3 + $0x70] sm:$0xf]
        %v3007 = vld [vmem:[#allocation3 + $0x88] sm:$0xf]
        %v3008 = vld [vmem:[#allocation3 + $0xa0] sm:$0xf]
        %v3009 = vld [vmem:[#allocation3 + $0xb8] sm:$0xf]
        %v3010 = vld [vmem:[#allocation3 + $0xd0] sm:$0xf]
        %v3011 = vld [vmem:[#allocation3 + $0xe8] sm:$0xf]
        %v3012 = vld [vmem:[#allocation3 + $0x100] sm:$0xf]
        %v3013 = vld [vmem:[#allocation3 + $0x118] sm:$0xf]
        %v3014 = vld [vmem:[#allocation3 + $0x130] sm:$0xf]
        %v3015 = vld [vmem:[#allocation3 + $0x148] sm:$0xf]
        %v3016 = vld [vmem:[#allocation3 + $0x160] sm:$0xf]
        %v3017 = vld [vmem:[#allocation3 + $0x178] sm:$0xf]
        %v3034 = vunpack.c.l.b16 %v2970
        %v3035 = vunpack.c.l.b16 %v2971
        %v3036 = vunpack.c.l.b16 %v2972
        %v3037 = vunpack.c.l.b16 %v2973
        %v3038 = vunpack.c.l.b16 %v2974
        %v3039 = vunpack.c.l.b16 %v2975
        %v3040 = vunpack.c.l.b16 %v2976
        %v3041 = vunpack.c.l.b16 %v2977
        %v3042 = vunpack.c.l.b16 %v2978
        %v3043 = vunpack.c.l.b16 %v2979
        %v3044 = vunpack.c.l.b16 %v2980
        %v3045 = vunpack.c.l.b16 %v2981
        %v3046 = vunpack.c.l.b16 %v2982
        %v3047 = vunpack.c.l.b16 %v2983
        %v3048 = vunpack.c.l.b16 %v2984
        %v3049 = vunpack.c.l.b16 %v2985
        %v3050 = vpack.c.b16 %v3035, %v3034
        %v3051 = vpack.c.b16 %v3037, %v3036
        %v3052 = vpack.c.b16 %v3039, %v3038
        %v3053 = vpack.c.b16 %v3041, %v3040
        %v3054 = vpack.c.b16 %v3043, %v3042
        %v3055 = vpack.c.b16 %v3045, %v3044
        %v3056 = vpack.c.b16 %v3047, %v3046
        %v3057 = vpack.c.b16 %v3049, %v3048
        %3058 = vrot.lane.b32.xlu0 %v3050, 64
        %v3059 = vpop.permute.xlu0 %3058
        %3060 = vrot.lane.b32.xlu0 %v3051, 64
        %v3061 = vpop.permute.xlu0 %3060
        %3062 = vrot.lane.b32.xlu0 %v3052, 64
        %v3063 = vpop.permute.xlu0 %3062
        %3064 = vrot.lane.b32.xlu0 %v3053, 64
        %v3065 = vpop.permute.xlu0 %3064
        %3066 = vrot.lane.b32.xlu0 %v3054, 64
        %v3067 = vpop.permute.xlu0 %3066
        %3068 = vrot.lane.b32.xlu0 %v3055, 64
        %v3069 = vpop.permute.xlu0 %3068
        %3070 = vrot.lane.b32.xlu0 %v3056, 64
        %v3071 = vpop.permute.xlu0 %3070
        %3072 = vrot.lane.b32.xlu0 %v3057, 64
        %v3073 = vpop.permute.xlu0 %3072
        %v3090 = vunpack.c.l.b16 %v2986
        %v3091 = vunpack.c.l.b16 %v2987
        %v3092 = vunpack.c.l.b16 %v2988
        %v3093 = vunpack.c.l.b16 %v2989
        %v3094 = vunpack.c.l.b16 %v2990
        %v3095 = vunpack.c.l.b16 %v2991
        %v3096 = vunpack.c.l.b16 %v2992
        %v3097 = vunpack.c.l.b16 %v2993
        %v3098 = vunpack.c.l.b16 %v2994
        %v3099 = vunpack.c.l.b16 %v2995
        %v3100 = vunpack.c.l.b16 %v2996
        %v3101 = vunpack.c.l.b16 %v2997
        %v3102 = vunpack.c.l.b16 %v2998
        %v3103 = vunpack.c.l.b16 %v2999
        %v3104 = vunpack.c.l.b16 %v3000
        %v3105 = vunpack.c.l.b16 %v3001
        %v3106 = vpack.c.b16 %v3091, %v3090
        %v3107 = vpack.c.b16 %v3093, %v3092
        %v3108 = vpack.c.b16 %v3095, %v3094
        %v3109 = vpack.c.b16 %v3097, %v3096
        %v3110 = vpack.c.b16 %v3099, %v3098
        %v3111 = vpack.c.b16 %v3101, %v3100
        %v3112 = vpack.c.b16 %v3103, %v3102
        %v3113 = vpack.c.b16 %v3105, %v3104
        %3114 = vrot.lane.b32.xlu0 %v3106, 64
        %v3115 = vpop.permute.xlu0 %3114
        %3116 = vrot.lane.b32.xlu0 %v3107, 64
        %v3117 = vpop.permute.xlu0 %3116
        %3118 = vrot.lane.b32.xlu0 %v3108, 64
        %v3119 = vpop.permute.xlu0 %3118
        %3120 = vrot.lane.b32.xlu0 %v3109, 64
        %v3121 = vpop.permute.xlu0 %3120
        %3122 = vrot.lane.b32.xlu0 %v3110, 64
        %v3123 = vpop.permute.xlu0 %3122
        %3124 = vrot.lane.b32.xlu0 %v3111, 64
        %v3125 = vpop.permute.xlu0 %3124
        %3126 = vrot.lane.b32.xlu0 %v3112, 64
        %v3127 = vpop.permute.xlu0 %3126
        %3128 = vrot.lane.b32.xlu0 %v3113, 64
        %v3129 = vpop.permute.xlu0 %3128
        %v3131 = vsel %vm2590, %v3059, 0
        %v3134 = vsel %vm2590, %v3061, 0
        %v3137 = vsel %vm2590, %v3063, 0
        %v3140 = vsel %vm2590, %v3065, 0
        %v3143 = vsel %vm2590, %v3067, 0
        %v3146 = vsel %vm2590, %v3069, 0
        %v3149 = vsel %vm2590, %v3071, 0
        %v3152 = vsel %vm2590, %v3073, 0
        %v3155 = vsel %vm2590, %v3115, 0
        %v3158 = vsel %vm2590, %v3117, 0
        %v3161 = vsel %vm2590, %v3119, 0
        %v3164 = vsel %vm2590, %v3121, 0
        %v3167 = vsel %vm2590, %v3123, 0
        %v3170 = vsel %vm2590, %v3125, 0
        %v3173 = vsel %vm2590, %v3127, 0
        %v3176 = vsel %vm2590, %v3129, 0
        %3178 = vmatpush.bf16.xpose.msra.mxu0 %v3176
        %3179 = vmatpush.bf16.xpose.msra.mxu0 %v3173
        %3180 = vmatpush.bf16.xpose.msra.mxu0 %v3170
        %3181 = vmatpush.bf16.xpose.msra.mxu0 %v3167
        %3182 = vmatpush.bf16.xpose.msra.mxu0 %v3164
        %3183 = vmatpush.bf16.xpose.msra.mxu0 %v3161
        %3184 = vmatpush.bf16.xpose.msra.mxu0 %v3158
        %3185 = vmatpush.bf16.xpose.msra.mxu0 %v3155
        %3186 = vmatmul.bf16.gmra.mxu0 %v3131
        %v3187 = vpop.f32.mrf.mxu0
        %v3188 = vadd.f32 %v2508, %v3187
        %v3189 = vpop.f32.mrf.mxu0
        %v3190 = vadd.f32 %v2508, %v3189
        %3191 = vmatmul.bf16.gmra.mxu0 %v3134
        %v3192 = vpop.f32.mrf.mxu0
        %v3193 = vadd.f32 %v2508, %v3192
        %v3194 = vpop.f32.mrf.mxu0
        %v3195 = vadd.f32 %v2508, %v3194
        %3196 = vmatmul.bf16.gmra.mxu0 %v3137
        %v3197 = vpop.f32.mrf.mxu0
        %v3198 = vadd.f32 %v2508, %v3197
        %v3199 = vpop.f32.mrf.mxu0
        %v3200 = vadd.f32 %v2508, %v3199
        %3201 = vmatmul.bf16.gmra.mxu0 %v3140
        %v3202 = vpop.f32.mrf.mxu0
        %v3203 = vadd.f32 %v2508, %v3202
        %v3204 = vpop.f32.mrf.mxu0
        %v3205 = vadd.f32 %v2508, %v3204
        %3206 = vmatmul.bf16.gmra.mxu0 %v3143
        %v3207 = vpop.f32.mrf.mxu0
        %v3208 = vadd.f32 %v2508, %v3207
        %v3209 = vpop.f32.mrf.mxu0
        %v3210 = vadd.f32 %v2508, %v3209
        %3211 = vmatmul.bf16.gmra.mxu0 %v3146
        %v3212 = vpop.f32.mrf.mxu0
        %v3213 = vadd.f32 %v2508, %v3212
        %v3214 = vpop.f32.mrf.mxu0
        %v3215 = vadd.f32 %v2508, %v3214
        %3216 = vmatmul.bf16.gmra.mxu0 %v3149
        %v3217 = vpop.f32.mrf.mxu0
        %v3218 = vadd.f32 %v2508, %v3217
        %v3219 = vpop.f32.mrf.mxu0
        %v3220 = vadd.f32 %v2508, %v3219
        %3221 = vmatmul.bf16.gmra.mxu0 %v3152
        %v3222 = vpop.f32.mrf.mxu0
        %v3223 = vadd.f32 %v2508, %v3222
        %v3224 = vpop.f32.mrf.mxu0
        %v3225 = vadd.f32 %v2508, %v3224
        %3226 = vdwg.mxu0
        %3227 = vmax.xlane.f32.xlu0 %v3188
        %v3228 = vpop.xlane.xlu0 %3227
        %3229 = vmax.xlane.f32.xlu0 %v3190
        %v3230 = vpop.xlane.xlu0 %3229
        %3231 = vmax.xlane.f32.xlu0 %v3193
        %v3232 = vpop.xlane.xlu0 %3231
        %3233 = vmax.xlane.f32.xlu0 %v3195
        %v3234 = vpop.xlane.xlu0 %3233
        %3235 = vmax.xlane.f32.xlu0 %v3198
        %v3236 = vpop.xlane.xlu0 %3235
        %3237 = vmax.xlane.f32.xlu0 %v3200
        %v3238 = vpop.xlane.xlu0 %3237
        %3239 = vmax.xlane.f32.xlu0 %v3203
        %v3240 = vpop.xlane.xlu0 %3239
        %3241 = vmax.xlane.f32.xlu0 %v3205
        %v3242 = vpop.xlane.xlu0 %3241
        %3243 = vmax.xlane.f32.xlu0 %v3208
        %v3244 = vpop.xlane.xlu0 %3243
        %3245 = vmax.xlane.f32.xlu0 %v3210
        %v3246 = vpop.xlane.xlu0 %3245
        %3247 = vmax.xlane.f32.xlu0 %v3213
        %v3248 = vpop.xlane.xlu0 %3247
        %3249 = vmax.xlane.f32.xlu0 %v3215
        %v3250 = vpop.xlane.xlu0 %3249
        %3251 = vmax.xlane.f32.xlu0 %v3218
        %v3252 = vpop.xlane.xlu0 %3251
        %3253 = vmax.xlane.f32.xlu0 %v3220
        %v3254 = vpop.xlane.xlu0 %3253
        %3255 = vmax.xlane.f32.xlu0 %v3223
        %v3256 = vpop.xlane.xlu0 %3255
        %3257 = vmax.xlane.f32.xlu0 %v3225
        %v3258 = vpop.xlane.xlu0 %3257
        %v3259 = vsub.f32 %v3188, %v3228
        %v3260 = vsub.f32 %v3190, %v3230
        %v3261 = vsub.f32 %v3193, %v3232
        %v3262 = vsub.f32 %v3195, %v3234
        %v3263 = vsub.f32 %v3198, %v3236
        %v3264 = vsub.f32 %v3200, %v3238
        %v3265 = vsub.f32 %v3203, %v3240
        %v3266 = vsub.f32 %v3205, %v3242
        %v3267 = vsub.f32 %v3208, %v3244
        %v3268 = vsub.f32 %v3210, %v3246
        %v3269 = vsub.f32 %v3213, %v3248
        %v3270 = vsub.f32 %v3215, %v3250
        %v3271 = vsub.f32 %v3218, %v3252
        %v3272 = vsub.f32 %v3220, %v3254
        %v3273 = vsub.f32 %v3223, %v3256
        %v3274 = vsub.f32 %v3225, %v3258
        %v3275 = vmul.f32 %v3259, 1.442695
        %v3276 = vpow.pop %v3275
        %v3277 = vmul.f32 %v3260, 1.442695
        %v3278 = vpow.pop %v3277
        %v3279 = vmul.f32 %v3261, 1.442695
        %v3280 = vpow.pop %v3279
        %v3281 = vmul.f32 %v3262, 1.442695
        %v3282 = vpow.pop %v3281
        %v3283 = vmul.f32 %v3263, 1.442695
        %v3284 = vpow.pop %v3283
        %v3285 = vmul.f32 %v3264, 1.442695
        %v3286 = vpow.pop %v3285
        %v3287 = vmul.f32 %v3265, 1.442695
        %v3288 = vpow.pop %v3287
        %v3289 = vmul.f32 %v3266, 1.442695
        %v3290 = vpow.pop %v3289
        %v3291 = vmul.f32 %v3267, 1.442695
        %v3292 = vpow.pop %v3291
        %v3293 = vmul.f32 %v3268, 1.442695
        %v3294 = vpow.pop %v3293
        %v3295 = vmul.f32 %v3269, 1.442695
        %v3296 = vpow.pop %v3295
        %v3297 = vmul.f32 %v3270, 1.442695
        %v3298 = vpow.pop %v3297
        %v3299 = vmul.f32 %v3271, 1.442695
        %v3300 = vpow.pop %v3299
        %v3301 = vmul.f32 %v3272, 1.442695
        %v3302 = vpow.pop %v3301
        %v3303 = vmul.f32 %v3273, 1.442695
        %v3304 = vpow.pop %v3303
        %v3305 = vmul.f32 %v3274, 1.442695
        %v3306 = vpow.pop %v3305
        %3307 = vadd.xlane.f32.xlu0 %v3276
        %v3308 = vpop.xlane.xlu0 %3307
        %3309 = vadd.xlane.f32.xlu0 %v3278
        %v3310 = vpop.xlane.xlu0 %3309
        %3311 = vadd.xlane.f32.xlu0 %v3280
        %v3312 = vpop.xlane.xlu0 %3311
        %3313 = vadd.xlane.f32.xlu0 %v3282
        %v3314 = vpop.xlane.xlu0 %3313
        %3315 = vadd.xlane.f32.xlu0 %v3284
        %v3316 = vpop.xlane.xlu0 %3315
        %3317 = vadd.xlane.f32.xlu0 %v3286
        %v3318 = vpop.xlane.xlu0 %3317
        %3319 = vadd.xlane.f32.xlu0 %v3288
        %v3320 = vpop.xlane.xlu0 %3319
        %3321 = vadd.xlane.f32.xlu0 %v3290
        %v3322 = vpop.xlane.xlu0 %3321
        %3323 = vadd.xlane.f32.xlu0 %v3292
        %v3324 = vpop.xlane.xlu0 %3323
        %3325 = vadd.xlane.f32.xlu0 %v3294
        %v3326 = vpop.xlane.xlu0 %3325
        %3327 = vadd.xlane.f32.xlu0 %v3296
        %v3328 = vpop.xlane.xlu0 %3327
        %3329 = vadd.xlane.f32.xlu0 %v3298
        %v3330 = vpop.xlane.xlu0 %3329
        %3331 = vadd.xlane.f32.xlu0 %v3300
        %v3332 = vpop.xlane.xlu0 %3331
        %3333 = vadd.xlane.f32.xlu0 %v3302
        %v3334 = vpop.xlane.xlu0 %3333
        %3335 = vadd.xlane.f32.xlu0 %v3304
        %v3336 = vpop.xlane.xlu0 %3335
        %3337 = vadd.xlane.f32.xlu0 %v3306
        %v3338 = vpop.xlane.xlu0 %3337
        %v3339 = vrcp.pop %v3308
        %v3340 = vrcp.pop %v3310
        %v3341 = vrcp.pop %v3312
        %v3342 = vrcp.pop %v3314
        %v3343 = vrcp.pop %v3316
        %v3344 = vrcp.pop %v3318
        %v3345 = vrcp.pop %v3320
        %v3346 = vrcp.pop %v3322
        %v3347 = vrcp.pop %v3324
        %v3348 = vrcp.pop %v3326
        %v3349 = vrcp.pop %v3328
        %v3350 = vrcp.pop %v3330
        %v3351 = vrcp.pop %v3332
        %v3352 = vrcp.pop %v3334
        %v3353 = vrcp.pop %v3336
        %v3354 = vrcp.pop %v3338
        %v3355 = vpack.c.bf16 %v3278, %v3276
        %v3356 = vpack.c.bf16 %v3282, %v3280
        %v3357 = vpack.c.bf16 %v3286, %v3284
        %v3358 = vpack.c.bf16 %v3290, %v3288
        %v3359 = vpack.c.bf16 %v3294, %v3292
        %v3360 = vpack.c.bf16 %v3298, %v3296
        %v3361 = vpack.c.bf16 %v3302, %v3300
        %v3362 = vpack.c.bf16 %v3306, %v3304
        %v3379 = vunpack.c.l.b16 %v3002
        %v3380 = vunpack.c.l.b16 %v3003
        %v3381 = vunpack.c.l.b16 %v3004
        %v3382 = vunpack.c.l.b16 %v3005
        %v3383 = vunpack.c.l.b16 %v3006
        %v3384 = vunpack.c.l.b16 %v3007
        %v3385 = vunpack.c.l.b16 %v3008
        %v3386 = vunpack.c.l.b16 %v3009
        %v3387 = vunpack.c.l.b16 %v3010
        %v3388 = vunpack.c.l.b16 %v3011
        %v3389 = vunpack.c.l.b16 %v3012
        %v3390 = vunpack.c.l.b16 %v3013
        %v3391 = vunpack.c.l.b16 %v3014
        %v3392 = vunpack.c.l.b16 %v3015
        %v3393 = vunpack.c.l.b16 %v3016
        %v3394 = vunpack.c.l.b16 %v3017
        %v3395 = vpack.c.b16 %v3380, %v3379
        %v3396 = vpack.c.b16 %v3382, %v3381
        %v3397 = vpack.c.b16 %v3384, %v3383
        %v3398 = vpack.c.b16 %v3386, %v3385
        %v3399 = vpack.c.b16 %v3388, %v3387
        %v3400 = vpack.c.b16 %v3390, %v3389
        %v3401 = vpack.c.b16 %v3392, %v3391
        %v3402 = vpack.c.b16 %v3394, %v3393
        %3403 = vrot.lane.b32.xlu0 %v3395, 64
        %v3404 = vpop.permute.xlu0 %3403
        %3405 = vrot.lane.b32.xlu0 %v3396, 64
        %v3406 = vpop.permute.xlu0 %3405
        %3407 = vrot.lane.b32.xlu0 %v3397, 64
        %v3408 = vpop.permute.xlu0 %3407
        %3409 = vrot.lane.b32.xlu0 %v3398, 64
        %v3410 = vpop.permute.xlu0 %3409
        %3411 = vrot.lane.b32.xlu0 %v3399, 64
        %v3412 = vpop.permute.xlu0 %3411
        %3413 = vrot.lane.b32.xlu0 %v3400, 64
        %v3414 = vpop.permute.xlu0 %3413
        %3415 = vrot.lane.b32.xlu0 %v3401, 64
        %v3416 = vpop.permute.xlu0 %3415
        %3417 = vrot.lane.b32.xlu0 %v3402, 64
        %v3418 = vpop.permute.xlu0 %3417
        %3427 = vmatpush.bf16.msra.mxu0 %v3418
        %3428 = vmatpush.bf16.msra.mxu0 %v3416
        %3429 = vmatpush.bf16.msra.mxu0 %v3414
        %3430 = vmatpush.bf16.msra.mxu0 %v3412
        %3431 = vmatpush.bf16.msra.mxu0 %v3410
        %3432 = vmatpush.bf16.msra.mxu0 %v3408
        %3433 = vmatpush.bf16.msra.mxu0 %v3406
        %3434 = vmatpush.bf16.msra.mxu0 %v3404
        %3435 = vmatmul.bf16.gmra.mxu0 %v3355
        %v3436 = vpop.f32.mrf.mxu0
        %v3437 = vadd.f32 0.0, %v3436
        %v3438 = vpop.f32.mrf.mxu0
        %v3439 = vadd.f32 0.0, %v3438
        %3440 = vmatmul.bf16.gmra.mxu0 %v3356
        %v3441 = vpop.f32.mrf.mxu0
        %v3442 = vadd.f32 0.0, %v3441
        %v3443 = vpop.f32.mrf.mxu0
        %v3444 = vadd.f32 0.0, %v3443
        %3445 = vmatmul.bf16.gmra.mxu0 %v3357
        %v3446 = vpop.f32.mrf.mxu0
        %v3447 = vadd.f32 0.0, %v3446
        %v3448 = vpop.f32.mrf.mxu0
        %v3449 = vadd.f32 0.0, %v3448
        %3450 = vmatmul.bf16.gmra.mxu0 %v3358
        %v3451 = vpop.f32.mrf.mxu0
        %v3452 = vadd.f32 0.0, %v3451
        %v3453 = vpop.f32.mrf.mxu0
        %v3454 = vadd.f32 0.0, %v3453
        %3455 = vmatmul.bf16.gmra.mxu0 %v3359
        %v3456 = vpop.f32.mrf.mxu0
        %v3457 = vadd.f32 0.0, %v3456
        %v3458 = vpop.f32.mrf.mxu0
        %v3459 = vadd.f32 0.0, %v3458
        %3460 = vmatmul.bf16.gmra.mxu0 %v3360
        %v3461 = vpop.f32.mrf.mxu0
        %v3462 = vadd.f32 0.0, %v3461
        %v3463 = vpop.f32.mrf.mxu0
        %v3464 = vadd.f32 0.0, %v3463
        %3465 = vmatmul.bf16.gmra.mxu0 %v3361
        %v3466 = vpop.f32.mrf.mxu0
        %v3467 = vadd.f32 0.0, %v3466
        %v3468 = vpop.f32.mrf.mxu0
        %v3469 = vadd.f32 0.0, %v3468
        %3470 = vmatmul.bf16.gmra.mxu0 %v3362
        %v3471 = vpop.f32.mrf.mxu0
        %v3472 = vadd.f32 0.0, %v3471
        %v3473 = vpop.f32.mrf.mxu0
        %v3474 = vadd.f32 0.0, %v3473
        %3475 = vdwg.mxu0
        %v3476 = vmul.f32 %v3437, %v3339
        %v3477 = vmul.f32 %v3439, %v3340
        %v3478 = vmul.f32 %v3442, %v3341
        %v3479 = vmul.f32 %v3444, %v3342
        %v3480 = vmul.f32 %v3447, %v3343
        %v3481 = vmul.f32 %v3449, %v3344
        %v3482 = vmul.f32 %v3452, %v3345
        %v3483 = vmul.f32 %v3454, %v3346
        %v3484 = vmul.f32 %v3457, %v3347
        %v3485 = vmul.f32 %v3459, %v3348
        %v3486 = vmul.f32 %v3462, %v3349
        %v3487 = vmul.f32 %v3464, %v3350
        %v3488 = vmul.f32 %v3467, %v3351
        %v3489 = vmul.f32 %v3469, %v3352
        %v3490 = vmul.f32 %v3472, %v3353
        %v3491 = vmul.f32 %v3474, %v3354
        %v3492 = vpack.c.bf16 %v3476, %v3476
        %v3493 = vpack.c.bf16 %v3477, %v3477
        %v3494 = vpack.c.bf16 %v3478, %v3478
        %v3495 = vpack.c.bf16 %v3479, %v3479
        %v3496 = vpack.c.bf16 %v3480, %v3480
        %v3497 = vpack.c.bf16 %v3481, %v3481
        %v3498 = vpack.c.bf16 %v3482, %v3482
        %v3499 = vpack.c.bf16 %v3483, %v3483
        %v3500 = vpack.c.bf16 %v3484, %v3484
        %v3501 = vpack.c.bf16 %v3485, %v3485
        %v3502 = vpack.c.bf16 %v3486, %v3486
        %v3503 = vpack.c.bf16 %v3487, %v3487
        %v3504 = vpack.c.bf16 %v3488, %v3488
        %v3505 = vpack.c.bf16 %v3489, %v3489
        %v3506 = vpack.c.bf16 %v3490, %v3490
        %v3507 = vpack.c.bf16 %v3491, %v3491
        %3524 = vrot.lane.b32.xlu0 %v3492, 64
        %v3525 = vpop.permute.xlu0 %3524
        %3526 = vrot.lane.b32.xlu0 %v3493, 64
        %v3527 = vpop.permute.xlu0 %3526
        %3528 = vrot.lane.b32.xlu0 %v3494, 64
        %v3529 = vpop.permute.xlu0 %3528
        %3530 = vrot.lane.b32.xlu0 %v3495, 64
        %v3531 = vpop.permute.xlu0 %3530
        %3532 = vrot.lane.b32.xlu0 %v3496, 64
        %v3533 = vpop.permute.xlu0 %3532
        %3534 = vrot.lane.b32.xlu0 %v3497, 64
        %v3535 = vpop.permute.xlu0 %3534
        %3536 = vrot.lane.b32.xlu0 %v3498, 64
        %v3537 = vpop.permute.xlu0 %3536
        %3538 = vrot.lane.b32.xlu0 %v3499, 64
        %v3539 = vpop.permute.xlu0 %3538
        %3540 = vrot.lane.b32.xlu0 %v3500, 64
        %v3541 = vpop.permute.xlu0 %3540
        %3542 = vrot.lane.b32.xlu0 %v3501, 64
        %v3543 = vpop.permute.xlu0 %3542
        %3544 = vrot.lane.b32.xlu0 %v3502, 64
        %v3545 = vpop.permute.xlu0 %3544
        %3546 = vrot.lane.b32.xlu0 %v3503, 64
        %v3547 = vpop.permute.xlu0 %3546
        %3548 = vrot.lane.b32.xlu0 %v3504, 64
        %v3549 = vpop.permute.xlu0 %3548
        %3550 = vrot.lane.b32.xlu0 %v3505, 64
        %v3551 = vpop.permute.xlu0 %3550
        %3552 = vrot.lane.b32.xlu0 %v3506, 64
        %v3553 = vpop.permute.xlu0 %3552
        %3554 = vrot.lane.b32.xlu0 %v3507, 64
        %v3555 = vpop.permute.xlu0 %3554
        %vm3572 = vcmask 1043968
        %3573 = vst.msk [vmem:[#allocation4] sm:$0xf] %vm3572, %v3525
        %3574 = vst.msk [vmem:[#allocation4 + $0x8] sm:$0xf] %vm3572, %v3527
        %3575 = vst.msk [vmem:[#allocation4 + $0x10] sm:$0xf] %vm3572, %v3529
        %3576 = vst.msk [vmem:[#allocation4 + $0x18] sm:$0xf] %vm3572, %v3531
        %3577 = vst.msk [vmem:[#allocation4 + $0x20] sm:$0xf] %vm3572, %v3533
        %3578 = vst.msk [vmem:[#allocation4 + $0x28] sm:$0xf] %vm3572, %v3535
        %3579 = vst.msk [vmem:[#allocation4 + $0x30] sm:$0xf] %vm3572, %v3537
        %3580 = vst.msk [vmem:[#allocation4 + $0x38] sm:$0xf] %vm3572, %v3539
        %3581 = vst.msk [vmem:[#allocation4 + $0x40] sm:$0xf] %vm3572, %v3541
        %3582 = vst.msk [vmem:[#allocation4 + $0x48] sm:$0xf] %vm3572, %v3543
        %3583 = vst.msk [vmem:[#allocation4 + $0x50] sm:$0xf] %vm3572, %v3545
        %3584 = vst.msk [vmem:[#allocation4 + $0x58] sm:$0xf] %vm3572, %v3547
        %3585 = vst.msk [vmem:[#allocation4 + $0x60] sm:$0xf] %vm3572, %v3549
        %3586 = vst.msk [vmem:[#allocation4 + $0x68] sm:$0xf] %vm3572, %v3551
        %3587 = vst.msk [vmem:[#allocation4 + $0x70] sm:$0xf] %vm3572, %v3553
        %3588 = vst.msk [vmem:[#allocation4 + $0x78] sm:$0xf] %vm3572, %v3555
        %v3589 = vld [vmem:[#allocation3 + $0x4] sm:$0xf]
        %v3590 = vld [vmem:[#allocation3 + $0x1c] sm:$0xf]
        %v3591 = vld [vmem:[#allocation3 + $0x34] sm:$0xf]
        %v3592 = vld [vmem:[#allocation3 + $0x4c] sm:$0xf]
        %v3593 = vld [vmem:[#allocation3 + $0x64] sm:$0xf]
        %v3594 = vld [vmem:[#allocation3 + $0x7c] sm:$0xf]
        %v3595 = vld [vmem:[#allocation3 + $0x94] sm:$0xf]
        %v3596 = vld [vmem:[#allocation3 + $0xac] sm:$0xf]
        %v3597 = vld [vmem:[#allocation3 + $0xc4] sm:$0xf]
        %v3598 = vld [vmem:[#allocation3 + $0xdc] sm:$0xf]
        %v3599 = vld [vmem:[#allocation3 + $0xf4] sm:$0xf]
        %v3600 = vld [vmem:[#allocation3 + $0x10c] sm:$0xf]
        %v3601 = vld [vmem:[#allocation3 + $0x124] sm:$0xf]
        %v3602 = vld [vmem:[#allocation3 + $0x13c] sm:$0xf]
        %v3603 = vld [vmem:[#allocation3 + $0x154] sm:$0xf]
        %v3604 = vld [vmem:[#allocation3 + $0x16c] sm:$0xf]
        %v3605 = vld [vmem:[#allocation3 + $0xc] sm:$0xf]
        %v3606 = vld [vmem:[#allocation3 + $0x24] sm:$0xf]
        %v3607 = vld [vmem:[#allocation3 + $0x3c] sm:$0xf]
        %v3608 = vld [vmem:[#allocation3 + $0x54] sm:$0xf]
        %v3609 = vld [vmem:[#allocation3 + $0x6c] sm:$0xf]
        %v3610 = vld [vmem:[#allocation3 + $0x84] sm:$0xf]
        %v3611 = vld [vmem:[#allocation3 + $0x9c] sm:$0xf]
        %v3612 = vld [vmem:[#allocation3 + $0xb4] sm:$0xf]
        %v3613 = vld [vmem:[#allocation3 + $0xcc] sm:$0xf]
        %v3614 = vld [vmem:[#allocation3 + $0xe4] sm:$0xf]
        %v3615 = vld [vmem:[#allocation3 + $0xfc] sm:$0xf]
        %v3616 = vld [vmem:[#allocation3 + $0x114] sm:$0xf]
        %v3617 = vld [vmem:[#allocation3 + $0x12c] sm:$0xf]
        %v3618 = vld [vmem:[#allocation3 + $0x144] sm:$0xf]
        %v3619 = vld [vmem:[#allocation3 + $0x15c] sm:$0xf]
        %v3620 = vld [vmem:[#allocation3 + $0x174] sm:$0xf]
        %v3621 = vld [vmem:[#allocation3 + $0x14] sm:$0xf]
        %v3622 = vld [vmem:[#allocation3 + $0x2c] sm:$0xf]
        %v3623 = vld [vmem:[#allocation3 + $0x44] sm:$0xf]
        %v3624 = vld [vmem:[#allocation3 + $0x5c] sm:$0xf]
        %v3625 = vld [vmem:[#allocation3 + $0x74] sm:$0xf]
        %v3626 = vld [vmem:[#allocation3 + $0x8c] sm:$0xf]
        %v3627 = vld [vmem:[#allocation3 + $0xa4] sm:$0xf]
        %v3628 = vld [vmem:[#allocation3 + $0xbc] sm:$0xf]
        %v3629 = vld [vmem:[#allocation3 + $0xd4] sm:$0xf]
        %v3630 = vld [vmem:[#allocation3 + $0xec] sm:$0xf]
        %v3631 = vld [vmem:[#allocation3 + $0x104] sm:$0xf]
        %v3632 = vld [vmem:[#allocation3 + $0x11c] sm:$0xf]
        %v3633 = vld [vmem:[#allocation3 + $0x134] sm:$0xf]
        %v3634 = vld [vmem:[#allocation3 + $0x14c] sm:$0xf]
        %v3635 = vld [vmem:[#allocation3 + $0x164] sm:$0xf]
        %v3636 = vld [vmem:[#allocation3 + $0x17c] sm:$0xf]
        %v3653 = vunpack.c.l.b16 %v3589
        %v3654 = vunpack.c.l.b16 %v3590
        %v3655 = vunpack.c.l.b16 %v3591
        %v3656 = vunpack.c.l.b16 %v3592
        %v3657 = vunpack.c.l.b16 %v3593
        %v3658 = vunpack.c.l.b16 %v3594
        %v3659 = vunpack.c.l.b16 %v3595
        %v3660 = vunpack.c.l.b16 %v3596
        %v3661 = vunpack.c.l.b16 %v3597
        %v3662 = vunpack.c.l.b16 %v3598
        %v3663 = vunpack.c.l.b16 %v3599
        %v3664 = vunpack.c.l.b16 %v3600
        %v3665 = vunpack.c.l.b16 %v3601
        %v3666 = vunpack.c.l.b16 %v3602
        %v3667 = vunpack.c.l.b16 %v3603
        %v3668 = vunpack.c.l.b16 %v3604
        %v3669 = vpack.c.b16 %v3654, %v3653
        %v3670 = vpack.c.b16 %v3656, %v3655
        %v3671 = vpack.c.b16 %v3658, %v3657
        %v3672 = vpack.c.b16 %v3660, %v3659
        %v3673 = vpack.c.b16 %v3662, %v3661
        %v3674 = vpack.c.b16 %v3664, %v3663
        %v3675 = vpack.c.b16 %v3666, %v3665
        %v3676 = vpack.c.b16 %v3668, %v3667
        %v3693 = vunpack.c.l.b16 %v3605
        %v3694 = vunpack.c.l.b16 %v3606
        %v3695 = vunpack.c.l.b16 %v3607
        %v3696 = vunpack.c.l.b16 %v3608
        %v3697 = vunpack.c.l.b16 %v3609
        %v3698 = vunpack.c.l.b16 %v3610
        %v3699 = vunpack.c.l.b16 %v3611
        %v3700 = vunpack.c.l.b16 %v3612
        %v3701 = vunpack.c.l.b16 %v3613
        %v3702 = vunpack.c.l.b16 %v3614
        %v3703 = vunpack.c.l.b16 %v3615
        %v3704 = vunpack.c.l.b16 %v3616
        %v3705 = vunpack.c.l.b16 %v3617
        %v3706 = vunpack.c.l.b16 %v3618
        %v3707 = vunpack.c.l.b16 %v3619
        %v3708 = vunpack.c.l.b16 %v3620
        %v3709 = vpack.c.b16 %v3694, %v3693
        %v3710 = vpack.c.b16 %v3696, %v3695
        %v3711 = vpack.c.b16 %v3698, %v3697
        %v3712 = vpack.c.b16 %v3700, %v3699
        %v3713 = vpack.c.b16 %v3702, %v3701
        %v3714 = vpack.c.b16 %v3704, %v3703
        %v3715 = vpack.c.b16 %v3706, %v3705
        %v3716 = vpack.c.b16 %v3708, %v3707
        %v3718 = vsel %vm2590, %v3669, 0
        %v3721 = vsel %vm2590, %v3670, 0
        %v3724 = vsel %vm2590, %v3671, 0
        %v3727 = vsel %vm2590, %v3672, 0
        %v3730 = vsel %vm2590, %v3673, 0
        %v3733 = vsel %vm2590, %v3674, 0
        %v3736 = vsel %vm2590, %v3675, 0
        %v3739 = vsel %vm2590, %v3676, 0
        %v3742 = vsel %vm2590, %v3709, 0
        %v3745 = vsel %vm2590, %v3710, 0
        %v3748 = vsel %vm2590, %v3711, 0
        %v3751 = vsel %vm2590, %v3712, 0
        %v3754 = vsel %vm2590, %v3713, 0
        %v3757 = vsel %vm2590, %v3714, 0
        %v3760 = vsel %vm2590, %v3715, 0
        %v3763 = vsel %vm2590, %v3716, 0
        %3765 = vmatpush.bf16.xpose.msra.mxu0 %v3763
        %3766 = vmatpush.bf16.xpose.msra.mxu0 %v3760
        %3767 = vmatpush.bf16.xpose.msra.mxu0 %v3757
        %3768 = vmatpush.bf16.xpose.msra.mxu0 %v3754
        %3769 = vmatpush.bf16.xpose.msra.mxu0 %v3751
        %3770 = vmatpush.bf16.xpose.msra.mxu0 %v3748
        %3771 = vmatpush.bf16.xpose.msra.mxu0 %v3745
        %3772 = vmatpush.bf16.xpose.msra.mxu0 %v3742
        %3773 = vmatmul.bf16.gmra.mxu0 %v3718
        %v3774 = vpop.f32.mrf.mxu0
        %v3775 = vadd.f32 %v2508, %v3774
        %v3776 = vpop.f32.mrf.mxu0
        %v3777 = vadd.f32 %v2508, %v3776
        %3778 = vmatmul.bf16.gmra.mxu0 %v3721
        %v3779 = vpop.f32.mrf.mxu0
        %v3780 = vadd.f32 %v2508, %v3779
        %v3781 = vpop.f32.mrf.mxu0
        %v3782 = vadd.f32 %v2508, %v3781
        %3783 = vmatmul.bf16.gmra.mxu0 %v3724
        %v3784 = vpop.f32.mrf.mxu0
        %v3785 = vadd.f32 %v2508, %v3784
        %v3786 = vpop.f32.mrf.mxu0
        %v3787 = vadd.f32 %v2508, %v3786
        %3788 = vmatmul.bf16.gmra.mxu0 %v3727
        %v3789 = vpop.f32.mrf.mxu0
        %v3790 = vadd.f32 %v2508, %v3789
        %v3791 = vpop.f32.mrf.mxu0
        %v3792 = vadd.f32 %v2508, %v3791
        %3793 = vmatmul.bf16.gmra.mxu0 %v3730
        %v3794 = vpop.f32.mrf.mxu0
        %v3795 = vadd.f32 %v2508, %v3794
        %v3796 = vpop.f32.mrf.mxu0
        %v3797 = vadd.f32 %v2508, %v3796
        %3798 = vmatmul.bf16.gmra.mxu0 %v3733
        %v3799 = vpop.f32.mrf.mxu0
        %v3800 = vadd.f32 %v2508, %v3799
        %v3801 = vpop.f32.mrf.mxu0
        %v3802 = vadd.f32 %v2508, %v3801
        %3803 = vmatmul.bf16.gmra.mxu0 %v3736
        %v3804 = vpop.f32.mrf.mxu0
        %v3805 = vadd.f32 %v2508, %v3804
        %v3806 = vpop.f32.mrf.mxu0
        %v3807 = vadd.f32 %v2508, %v3806
        %3808 = vmatmul.bf16.gmra.mxu0 %v3739
        %v3809 = vpop.f32.mrf.mxu0
        %v3810 = vadd.f32 %v2508, %v3809
        %v3811 = vpop.f32.mrf.mxu0
        %v3812 = vadd.f32 %v2508, %v3811
        %3813 = vdwg.mxu0
        %3814 = vmax.xlane.f32.xlu0 %v3775
        %v3815 = vpop.xlane.xlu0 %3814
        %3816 = vmax.xlane.f32.xlu0 %v3777
        %v3817 = vpop.xlane.xlu0 %3816
        %3818 = vmax.xlane.f32.xlu0 %v3780
        %v3819 = vpop.xlane.xlu0 %3818
        %3820 = vmax.xlane.f32.xlu0 %v3782
        %v3821 = vpop.xlane.xlu0 %3820
        %3822 = vmax.xlane.f32.xlu0 %v3785
        %v3823 = vpop.xlane.xlu0 %3822
        %3824 = vmax.xlane.f32.xlu0 %v3787
        %v3825 = vpop.xlane.xlu0 %3824
        %3826 = vmax.xlane.f32.xlu0 %v3790
        %v3827 = vpop.xlane.xlu0 %3826
        %3828 = vmax.xlane.f32.xlu0 %v3792
        %v3829 = vpop.xlane.xlu0 %3828
        %3830 = vmax.xlane.f32.xlu0 %v3795
        %v3831 = vpop.xlane.xlu0 %3830
        %3832 = vmax.xlane.f32.xlu0 %v3797
        %v3833 = vpop.xlane.xlu0 %3832
        %3834 = vmax.xlane.f32.xlu0 %v3800
        %v3835 = vpop.xlane.xlu0 %3834
        %3836 = vmax.xlane.f32.xlu0 %v3802
        %v3837 = vpop.xlane.xlu0 %3836
        %3838 = vmax.xlane.f32.xlu0 %v3805
        %v3839 = vpop.xlane.xlu0 %3838
        %3840 = vmax.xlane.f32.xlu0 %v3807
        %v3841 = vpop.xlane.xlu0 %3840
        %3842 = vmax.xlane.f32.xlu0 %v3810
        %v3843 = vpop.xlane.xlu0 %3842
        %3844 = vmax.xlane.f32.xlu0 %v3812
        %v3845 = vpop.xlane.xlu0 %3844
        %v3846 = vsub.f32 %v3775, %v3815
        %v3847 = vsub.f32 %v3777, %v3817
        %v3848 = vsub.f32 %v3780, %v3819
        %v3849 = vsub.f32 %v3782, %v3821
        %v3850 = vsub.f32 %v3785, %v3823
        %v3851 = vsub.f32 %v3787, %v3825
        %v3852 = vsub.f32 %v3790, %v3827
        %v3853 = vsub.f32 %v3792, %v3829
        %v3854 = vsub.f32 %v3795, %v3831
        %v3855 = vsub.f32 %v3797, %v3833
        %v3856 = vsub.f32 %v3800, %v3835
        %v3857 = vsub.f32 %v3802, %v3837
        %v3858 = vsub.f32 %v3805, %v3839
        %v3859 = vsub.f32 %v3807, %v3841
        %v3860 = vsub.f32 %v3810, %v3843
        %v3861 = vsub.f32 %v3812, %v3845
        %v3862 = vmul.f32 %v3846, 1.442695
        %v3863 = vpow.pop %v3862
        %v3864 = vmul.f32 %v3847, 1.442695
        %v3865 = vpow.pop %v3864
        %v3866 = vmul.f32 %v3848, 1.442695
        %v3867 = vpow.pop %v3866
        %v3868 = vmul.f32 %v3849, 1.442695
        %v3869 = vpow.pop %v3868
        %v3870 = vmul.f32 %v3850, 1.442695
        %v3871 = vpow.pop %v3870
        %v3872 = vmul.f32 %v3851, 1.442695
        %v3873 = vpow.pop %v3872
        %v3874 = vmul.f32 %v3852, 1.442695
        %v3875 = vpow.pop %v3874
        %v3876 = vmul.f32 %v3853, 1.442695
        %v3877 = vpow.pop %v3876
        %v3878 = vmul.f32 %v3854, 1.442695
        %v3879 = vpow.pop %v3878
        %v3880 = vmul.f32 %v3855, 1.442695
        %v3881 = vpow.pop %v3880
        %v3882 = vmul.f32 %v3856, 1.442695
        %v3883 = vpow.pop %v3882
        %v3884 = vmul.f32 %v3857, 1.442695
        %v3885 = vpow.pop %v3884
        %v3886 = vmul.f32 %v3858, 1.442695
        %v3887 = vpow.pop %v3886
        %v3888 = vmul.f32 %v3859, 1.442695
        %v3889 = vpow.pop %v3888
        %v3890 = vmul.f32 %v3860, 1.442695
        %v3891 = vpow.pop %v3890
        %v3892 = vmul.f32 %v3861, 1.442695
        %v3893 = vpow.pop %v3892
        %3894 = vadd.xlane.f32.xlu0 %v3863
        %v3895 = vpop.xlane.xlu0 %3894
        %3896 = vadd.xlane.f32.xlu0 %v3865
        %v3897 = vpop.xlane.xlu0 %3896
        %3898 = vadd.xlane.f32.xlu0 %v3867
        %v3899 = vpop.xlane.xlu0 %3898
        %3900 = vadd.xlane.f32.xlu0 %v3869
        %v3901 = vpop.xlane.xlu0 %3900
        %3902 = vadd.xlane.f32.xlu0 %v3871
        %v3903 = vpop.xlane.xlu0 %3902
        %3904 = vadd.xlane.f32.xlu0 %v3873
        %v3905 = vpop.xlane.xlu0 %3904
        %3906 = vadd.xlane.f32.xlu0 %v3875
        %v3907 = vpop.xlane.xlu0 %3906
        %3908 = vadd.xlane.f32.xlu0 %v3877
        %v3909 = vpop.xlane.xlu0 %3908
        %3910 = vadd.xlane.f32.xlu0 %v3879
        %v3911 = vpop.xlane.xlu0 %3910
        %3912 = vadd.xlane.f32.xlu0 %v3881
        %v3913 = vpop.xlane.xlu0 %3912
        %3914 = vadd.xlane.f32.xlu0 %v3883
        %v3915 = vpop.xlane.xlu0 %3914
        %3916 = vadd.xlane.f32.xlu0 %v3885
        %v3917 = vpop.xlane.xlu0 %3916
        %3918 = vadd.xlane.f32.xlu0 %v3887
        %v3919 = vpop.xlane.xlu0 %3918
        %3920 = vadd.xlane.f32.xlu0 %v3889
        %v3921 = vpop.xlane.xlu0 %3920
        %3922 = vadd.xlane.f32.xlu0 %v3891
        %v3923 = vpop.xlane.xlu0 %3922
        %3924 = vadd.xlane.f32.xlu0 %v3893
        %v3925 = vpop.xlane.xlu0 %3924
        %v3926 = vrcp.pop %v3895
        %v3927 = vrcp.pop %v3897
        %v3928 = vrcp.pop %v3899
        %v3929 = vrcp.pop %v3901
        %v3930 = vrcp.pop %v3903
        %v3931 = vrcp.pop %v3905
        %v3932 = vrcp.pop %v3907
        %v3933 = vrcp.pop %v3909
        %v3934 = vrcp.pop %v3911
        %v3935 = vrcp.pop %v3913
        %v3936 = vrcp.pop %v3915
        %v3937 = vrcp.pop %v3917
        %v3938 = vrcp.pop %v3919
        %v3939 = vrcp.pop %v3921
        %v3940 = vrcp.pop %v3923
        %v3941 = vrcp.pop %v3925
        %v3942 = vpack.c.bf16 %v3865, %v3863
        %v3943 = vpack.c.bf16 %v3869, %v3867
        %v3944 = vpack.c.bf16 %v3873, %v3871
        %v3945 = vpack.c.bf16 %v3877, %v3875
        %v3946 = vpack.c.bf16 %v3881, %v3879
        %v3947 = vpack.c.bf16 %v3885, %v3883
        %v3948 = vpack.c.bf16 %v3889, %v3887
        %v3949 = vpack.c.bf16 %v3893, %v3891
        %v3966 = vunpack.c.l.b16 %v3621
        %v3967 = vunpack.c.l.b16 %v3622
        %v3968 = vunpack.c.l.b16 %v3623
        %v3969 = vunpack.c.l.b16 %v3624
        %v3970 = vunpack.c.l.b16 %v3625
        %v3971 = vunpack.c.l.b16 %v3626
        %v3972 = vunpack.c.l.b16 %v3627
        %v3973 = vunpack.c.l.b16 %v3628
        %v3974 = vunpack.c.l.b16 %v3629
        %v3975 = vunpack.c.l.b16 %v3630
        %v3976 = vunpack.c.l.b16 %v3631
        %v3977 = vunpack.c.l.b16 %v3632
        %v3978 = vunpack.c.l.b16 %v3633
        %v3979 = vunpack.c.l.b16 %v3634
        %v3980 = vunpack.c.l.b16 %v3635
        %v3981 = vunpack.c.l.b16 %v3636
        %v3982 = vpack.c.b16 %v3967, %v3966
        %v3983 = vpack.c.b16 %v3969, %v3968
        %v3984 = vpack.c.b16 %v3971, %v3970
        %v3985 = vpack.c.b16 %v3973, %v3972
        %v3986 = vpack.c.b16 %v3975, %v3974
        %v3987 = vpack.c.b16 %v3977, %v3976
        %v3988 = vpack.c.b16 %v3979, %v3978
        %v3989 = vpack.c.b16 %v3981, %v3980
        %3998 = vmatpush.bf16.msra.mxu0 %v3989
        %3999 = vmatpush.bf16.msra.mxu0 %v3988
        %4000 = vmatpush.bf16.msra.mxu0 %v3987
        %4001 = vmatpush.bf16.msra.mxu0 %v3986
        %4002 = vmatpush.bf16.msra.mxu0 %v3985
        %4003 = vmatpush.bf16.msra.mxu0 %v3984
        %4004 = vmatpush.bf16.msra.mxu0 %v3983
        %4005 = vmatpush.bf16.msra.mxu0 %v3982
        %4006 = vmatmul.bf16.gmra.mxu0 %v3942
        %v4007 = vpop.f32.mrf.mxu0
        %v4008 = vadd.f32 0.0, %v4007
        %v4009 = vpop.f32.mrf.mxu0
        %v4010 = vadd.f32 0.0, %v4009
        %4011 = vmatmul.bf16.gmra.mxu0 %v3943
        %v4012 = vpop.f32.mrf.mxu0
        %v4013 = vadd.f32 0.0, %v4012
        %v4014 = vpop.f32.mrf.mxu0
        %v4015 = vadd.f32 0.0, %v4014
        %4016 = vmatmul.bf16.gmra.mxu0 %v3944
        %v4017 = vpop.f32.mrf.mxu0
        %v4018 = vadd.f32 0.0, %v4017
        %v4019 = vpop.f32.mrf.mxu0
        %v4020 = vadd.f32 0.0, %v4019
        %4021 = vmatmul.bf16.gmra.mxu0 %v3945
        %v4022 = vpop.f32.mrf.mxu0
        %v4023 = vadd.f32 0.0, %v4022
        %v4024 = vpop.f32.mrf.mxu0
        %v4025 = vadd.f32 0.0, %v4024
        %4026 = vmatmul.bf16.gmra.mxu0 %v3946
        %v4027 = vpop.f32.mrf.mxu0
        %v4028 = vadd.f32 0.0, %v4027
        %v4029 = vpop.f32.mrf.mxu0
        %v4030 = vadd.f32 0.0, %v4029
        %4031 = vmatmul.bf16.gmra.mxu0 %v3947
        %v4032 = vpop.f32.mrf.mxu0
        %v4033 = vadd.f32 0.0, %v4032
        %v4034 = vpop.f32.mrf.mxu0
        %v4035 = vadd.f32 0.0, %v4034
        %4036 = vmatmul.bf16.gmra.mxu0 %v3948
        %v4037 = vpop.f32.mrf.mxu0
        %v4038 = vadd.f32 0.0, %v4037
        %v4039 = vpop.f32.mrf.mxu0
        %v4040 = vadd.f32 0.0, %v4039
        %4041 = vmatmul.bf16.gmra.mxu0 %v3949
        %v4042 = vpop.f32.mrf.mxu0
        %v4043 = vadd.f32 0.0, %v4042
        %v4044 = vpop.f32.mrf.mxu0
        %v4045 = vadd.f32 0.0, %v4044
        %4046 = vdwg.mxu0
        %v4047 = vmul.f32 %v4008, %v3926
        %v4048 = vmul.f32 %v4010, %v3927
        %v4049 = vmul.f32 %v4013, %v3928
        %v4050 = vmul.f32 %v4015, %v3929
        %v4051 = vmul.f32 %v4018, %v3930
        %v4052 = vmul.f32 %v4020, %v3931
        %v4053 = vmul.f32 %v4023, %v3932
        %v4054 = vmul.f32 %v4025, %v3933
        %v4055 = vmul.f32 %v4028, %v3934
        %v4056 = vmul.f32 %v4030, %v3935
        %v4057 = vmul.f32 %v4033, %v3936
        %v4058 = vmul.f32 %v4035, %v3937
        %v4059 = vmul.f32 %v4038, %v3938
        %v4060 = vmul.f32 %v4040, %v3939
        %v4061 = vmul.f32 %v4043, %v3940
        %v4062 = vmul.f32 %v4045, %v3941
        %v4063 = vpack.c.bf16 %v4047, %v4047
        %v4064 = vpack.c.bf16 %v4048, %v4048
        %v4065 = vpack.c.bf16 %v4049, %v4049
        %v4066 = vpack.c.bf16 %v4050, %v4050
        %v4067 = vpack.c.bf16 %v4051, %v4051
        %v4068 = vpack.c.bf16 %v4052, %v4052
        %v4069 = vpack.c.bf16 %v4053, %v4053
        %v4070 = vpack.c.bf16 %v4054, %v4054
        %v4071 = vpack.c.bf16 %v4055, %v4055
        %v4072 = vpack.c.bf16 %v4056, %v4056
        %v4073 = vpack.c.bf16 %v4057, %v4057
        %v4074 = vpack.c.bf16 %v4058, %v4058
        %v4075 = vpack.c.bf16 %v4059, %v4059
        %v4076 = vpack.c.bf16 %v4060, %v4060
        %v4077 = vpack.c.bf16 %v4061, %v4061
        %v4078 = vpack.c.bf16 %v4062, %v4062
        %4079 = vst.msk [vmem:[#allocation4 + $0x4] sm:$0xf] %vm2953, %v4063
        %4080 = vst.msk [vmem:[#allocation4 + $0xc] sm:$0xf] %vm2953, %v4064
        %4081 = vst.msk [vmem:[#allocation4 + $0x14] sm:$0xf] %vm2953, %v4065
        %4082 = vst.msk [vmem:[#allocation4 + $0x1c] sm:$0xf] %vm2953, %v4066
        %4083 = vst.msk [vmem:[#allocation4 + $0x24] sm:$0xf] %vm2953, %v4067
        %4084 = vst.msk [vmem:[#allocation4 + $0x2c] sm:$0xf] %vm2953, %v4068
        %4085 = vst.msk [vmem:[#allocation4 + $0x34] sm:$0xf] %vm2953, %v4069
        %4086 = vst.msk [vmem:[#allocation4 + $0x3c] sm:$0xf] %vm2953, %v4070
        %4087 = vst.msk [vmem:[#allocation4 + $0x44] sm:$0xf] %vm2953, %v4071
        %4088 = vst.msk [vmem:[#allocation4 + $0x4c] sm:$0xf] %vm2953, %v4072
        %4089 = vst.msk [vmem:[#allocation4 + $0x54] sm:$0xf] %vm2953, %v4073
        %4090 = vst.msk [vmem:[#allocation4 + $0x5c] sm:$0xf] %vm2953, %v4074
        %4091 = vst.msk [vmem:[#allocation4 + $0x64] sm:$0xf] %vm2953, %v4075
        %4092 = vst.msk [vmem:[#allocation4 + $0x6c] sm:$0xf] %vm2953, %v4076
        %4093 = vst.msk [vmem:[#allocation4 + $0x74] sm:$0xf] %vm2953, %v4077
        %4094 = vst.msk [vmem:[#allocation4 + $0x7c] sm:$0xf] %vm2953, %v4078
        %v4095 = vld [vmem:[#allocation3 + $0x4] sm:$0xf]
        %v4096 = vld [vmem:[#allocation3 + $0x1c] sm:$0xf]
        %v4097 = vld [vmem:[#allocation3 + $0x34] sm:$0xf]
        %v4098 = vld [vmem:[#allocation3 + $0x4c] sm:$0xf]
        %v4099 = vld [vmem:[#allocation3 + $0x64] sm:$0xf]
        %v4100 = vld [vmem:[#allocation3 + $0x7c] sm:$0xf]
        %v4101 = vld [vmem:[#allocation3 + $0x94] sm:$0xf]
        %v4102 = vld [vmem:[#allocation3 + $0xac] sm:$0xf]
        %v4103 = vld [vmem:[#allocation3 + $0xc4] sm:$0xf]
        %v4104 = vld [vmem:[#allocation3 + $0xdc] sm:$0xf]
        %v4105 = vld [vmem:[#allocation3 + $0xf4] sm:$0xf]
        %v4106 = vld [vmem:[#allocation3 + $0x10c] sm:$0xf]
        %v4107 = vld [vmem:[#allocation3 + $0x124] sm:$0xf]
        %v4108 = vld [vmem:[#allocation3 + $0x13c] sm:$0xf]
        %v4109 = vld [vmem:[#allocation3 + $0x154] sm:$0xf]
        %v4110 = vld [vmem:[#allocation3 + $0x16c] sm:$0xf]
        %v4111 = vld [vmem:[#allocation3 + $0xc] sm:$0xf]
        %v4112 = vld [vmem:[#allocation3 + $0x24] sm:$0xf]
        %v4113 = vld [vmem:[#allocation3 + $0x3c] sm:$0xf]
        %v4114 = vld [vmem:[#allocation3 + $0x54] sm:$0xf]
        %v4115 = vld [vmem:[#allocation3 + $0x6c] sm:$0xf]
        %v4116 = vld [vmem:[#allocation3 + $0x84] sm:$0xf]
        %v4117 = vld [vmem:[#allocation3 + $0x9c] sm:$0xf]
        %v4118 = vld [vmem:[#allocation3 + $0xb4] sm:$0xf]
        %v4119 = vld [vmem:[#allocation3 + $0xcc] sm:$0xf]
        %v4120 = vld [vmem:[#allocation3 + $0xe4] sm:$0xf]
        %v4121 = vld [vmem:[#allocation3 + $0xfc] sm:$0xf]
        %v4122 = vld [vmem:[#allocation3 + $0x114] sm:$0xf]
        %v4123 = vld [vmem:[#allocation3 + $0x12c] sm:$0xf]
        %v4124 = vld [vmem:[#allocation3 + $0x144] sm:$0xf]
        %v4125 = vld [vmem:[#allocation3 + $0x15c] sm:$0xf]
        %v4126 = vld [vmem:[#allocation3 + $0x174] sm:$0xf]
        %v4127 = vld [vmem:[#allocation3 + $0x14] sm:$0xf]
        %v4128 = vld [vmem:[#allocation3 + $0x2c] sm:$0xf]
        %v4129 = vld [vmem:[#allocation3 + $0x44] sm:$0xf]
        %v4130 = vld [vmem:[#allocation3 + $0x5c] sm:$0xf]
        %v4131 = vld [vmem:[#allocation3 + $0x74] sm:$0xf]
        %v4132 = vld [vmem:[#allocation3 + $0x8c] sm:$0xf]
        %v4133 = vld [vmem:[#allocation3 + $0xa4] sm:$0xf]
        %v4134 = vld [vmem:[#allocation3 + $0xbc] sm:$0xf]
        %v4135 = vld [vmem:[#allocation3 + $0xd4] sm:$0xf]
        %v4136 = vld [vmem:[#allocation3 + $0xec] sm:$0xf]
        %v4137 = vld [vmem:[#allocation3 + $0x104] sm:$0xf]
        %v4138 = vld [vmem:[#allocation3 + $0x11c] sm:$0xf]
        %v4139 = vld [vmem:[#allocation3 + $0x134] sm:$0xf]
        %v4140 = vld [vmem:[#allocation3 + $0x14c] sm:$0xf]
        %v4141 = vld [vmem:[#allocation3 + $0x164] sm:$0xf]
        %v4142 = vld [vmem:[#allocation3 + $0x17c] sm:$0xf]
        %v4159 = vunpack.c.l.b16 %v4095
        %v4160 = vunpack.c.l.b16 %v4096
        %v4161 = vunpack.c.l.b16 %v4097
        %v4162 = vunpack.c.l.b16 %v4098
        %v4163 = vunpack.c.l.b16 %v4099
        %v4164 = vunpack.c.l.b16 %v4100
        %v4165 = vunpack.c.l.b16 %v4101
        %v4166 = vunpack.c.l.b16 %v4102
        %v4167 = vunpack.c.l.b16 %v4103
        %v4168 = vunpack.c.l.b16 %v4104
        %v4169 = vunpack.c.l.b16 %v4105
        %v4170 = vunpack.c.l.b16 %v4106
        %v4171 = vunpack.c.l.b16 %v4107
        %v4172 = vunpack.c.l.b16 %v4108
        %v4173 = vunpack.c.l.b16 %v4109
        %v4174 = vunpack.c.l.b16 %v4110
        %v4175 = vpack.c.b16 %v4160, %v4159
        %v4176 = vpack.c.b16 %v4162, %v4161
        %v4177 = vpack.c.b16 %v4164, %v4163
        %v4178 = vpack.c.b16 %v4166, %v4165
        %v4179 = vpack.c.b16 %v4168, %v4167
        %v4180 = vpack.c.b16 %v4170, %v4169
        %v4181 = vpack.c.b16 %v4172, %v4171
        %v4182 = vpack.c.b16 %v4174, %v4173
        %4183 = vrot.lane.b32.xlu0 %v4175, 64
        %v4184 = vpop.permute.xlu0 %4183
        %4185 = vrot.lane.b32.xlu0 %v4176, 64
        %v4186 = vpop.permute.xlu0 %4185
        %4187 = vrot.lane.b32.xlu0 %v4177, 64
        %v4188 = vpop.permute.xlu0 %4187
        %4189 = vrot.lane.b32.xlu0 %v4178, 64
        %v4190 = vpop.permute.xlu0 %4189
        %4191 = vrot.lane.b32.xlu0 %v4179, 64
        %v4192 = vpop.permute.xlu0 %4191
        %4193 = vrot.lane.b32.xlu0 %v4180, 64
        %v4194 = vpop.permute.xlu0 %4193
        %4195 = vrot.lane.b32.xlu0 %v4181, 64
        %v4196 = vpop.permute.xlu0 %4195
        %4197 = vrot.lane.b32.xlu0 %v4182, 64
        %v4198 = vpop.permute.xlu0 %4197
        %v4215 = vunpack.c.l.b16 %v4111
        %v4216 = vunpack.c.l.b16 %v4112
        %v4217 = vunpack.c.l.b16 %v4113
        %v4218 = vunpack.c.l.b16 %v4114
        %v4219 = vunpack.c.l.b16 %v4115
        %v4220 = vunpack.c.l.b16 %v4116
        %v4221 = vunpack.c.l.b16 %v4117
        %v4222 = vunpack.c.l.b16 %v4118
        %v4223 = vunpack.c.l.b16 %v4119
        %v4224 = vunpack.c.l.b16 %v4120
        %v4225 = vunpack.c.l.b16 %v4121
        %v4226 = vunpack.c.l.b16 %v4122
        %v4227 = vunpack.c.l.b16 %v4123
        %v4228 = vunpack.c.l.b16 %v4124
        %v4229 = vunpack.c.l.b16 %v4125
        %v4230 = vunpack.c.l.b16 %v4126
        %v4231 = vpack.c.b16 %v4216, %v4215
        %v4232 = vpack.c.b16 %v4218, %v4217
        %v4233 = vpack.c.b16 %v4220, %v4219
        %v4234 = vpack.c.b16 %v4222, %v4221
        %v4235 = vpack.c.b16 %v4224, %v4223
        %v4236 = vpack.c.b16 %v4226, %v4225
        %v4237 = vpack.c.b16 %v4228, %v4227
        %v4238 = vpack.c.b16 %v4230, %v4229
        %4239 = vrot.lane.b32.xlu0 %v4231, 64
        %v4240 = vpop.permute.xlu0 %4239
        %4241 = vrot.lane.b32.xlu0 %v4232, 64
        %v4242 = vpop.permute.xlu0 %4241
        %4243 = vrot.lane.b32.xlu0 %v4233, 64
        %v4244 = vpop.permute.xlu0 %4243
        %4245 = vrot.lane.b32.xlu0 %v4234, 64
        %v4246 = vpop.permute.xlu0 %4245
        %4247 = vrot.lane.b32.xlu0 %v4235, 64
        %v4248 = vpop.permute.xlu0 %4247
        %4249 = vrot.lane.b32.xlu0 %v4236, 64
        %v4250 = vpop.permute.xlu0 %4249
        %4251 = vrot.lane.b32.xlu0 %v4237, 64
        %v4252 = vpop.permute.xlu0 %4251
        %4253 = vrot.lane.b32.xlu0 %v4238, 64
        %v4254 = vpop.permute.xlu0 %4253
        %v4256 = vsel %vm2590, %v4184, 0
        %v4259 = vsel %vm2590, %v4186, 0
        %v4262 = vsel %vm2590, %v4188, 0
        %v4265 = vsel %vm2590, %v4190, 0
        %v4268 = vsel %vm2590, %v4192, 0
        %v4271 = vsel %vm2590, %v4194, 0
        %v4274 = vsel %vm2590, %v4196, 0
        %v4277 = vsel %vm2590, %v4198, 0
        %v4280 = vsel %vm2590, %v4240, 0
        %v4283 = vsel %vm2590, %v4242, 0
        %v4286 = vsel %vm2590, %v4244, 0
        %v4289 = vsel %vm2590, %v4246, 0
        %v4292 = vsel %vm2590, %v4248, 0
        %v4295 = vsel %vm2590, %v4250, 0
        %v4298 = vsel %vm2590, %v4252, 0
        %v4301 = vsel %vm2590, %v4254, 0
        %4303 = vmatpush.bf16.xpose.msra.mxu0 %v4301
        %4304 = vmatpush.bf16.xpose.msra.mxu0 %v4298
        %4305 = vmatpush.bf16.xpose.msra.mxu0 %v4295
        %4306 = vmatpush.bf16.xpose.msra.mxu0 %v4292
        %4307 = vmatpush.bf16.xpose.msra.mxu0 %v4289
        %4308 = vmatpush.bf16.xpose.msra.mxu0 %v4286
        %4309 = vmatpush.bf16.xpose.msra.mxu0 %v4283
        %4310 = vmatpush.bf16.xpose.msra.mxu0 %v4280
        %4311 = vmatmul.bf16.gmra.mxu0 %v4256
        %v4312 = vpop.f32.mrf.mxu0
        %v4313 = vadd.f32 %v2508, %v4312
        %v4314 = vpop.f32.mrf.mxu0
        %v4315 = vadd.f32 %v2508, %v4314
        %4316 = vmatmul.bf16.gmra.mxu0 %v4259
        %v4317 = vpop.f32.mrf.mxu0
        %v4318 = vadd.f32 %v2508, %v4317
        %v4319 = vpop.f32.mrf.mxu0
        %v4320 = vadd.f32 %v2508, %v4319
        %4321 = vmatmul.bf16.gmra.mxu0 %v4262
        %v4322 = vpop.f32.mrf.mxu0
        %v4323 = vadd.f32 %v2508, %v4322
        %v4324 = vpop.f32.mrf.mxu0
        %v4325 = vadd.f32 %v2508, %v4324
        %4326 = vmatmul.bf16.gmra.mxu0 %v4265
        %v4327 = vpop.f32.mrf.mxu0
        %v4328 = vadd.f32 %v2508, %v4327
        %v4329 = vpop.f32.mrf.mxu0
        %v4330 = vadd.f32 %v2508, %v4329
        %4331 = vmatmul.bf16.gmra.mxu0 %v4268
        %v4332 = vpop.f32.mrf.mxu0
        %v4333 = vadd.f32 %v2508, %v4332
        %v4334 = vpop.f32.mrf.mxu0
        %v4335 = vadd.f32 %v2508, %v4334
        %4336 = vmatmul.bf16.gmra.mxu0 %v4271
        %v4337 = vpop.f32.mrf.mxu0
        %v4338 = vadd.f32 %v2508, %v4337
        %v4339 = vpop.f32.mrf.mxu0
        %v4340 = vadd.f32 %v2508, %v4339
        %4341 = vmatmul.bf16.gmra.mxu0 %v4274
        %v4342 = vpop.f32.mrf.mxu0
        %v4343 = vadd.f32 %v2508, %v4342
        %v4344 = vpop.f32.mrf.mxu0
        %v4345 = vadd.f32 %v2508, %v4344
        %4346 = vmatmul.bf16.gmra.mxu0 %v4277
        %v4347 = vpop.f32.mrf.mxu0
        %v4348 = vadd.f32 %v2508, %v4347
        %v4349 = vpop.f32.mrf.mxu0
        %v4350 = vadd.f32 %v2508, %v4349
        %4351 = vdwg.mxu0
        %4352 = vmax.xlane.f32.xlu0 %v4313
        %v4353 = vpop.xlane.xlu0 %4352
        %4354 = vmax.xlane.f32.xlu0 %v4315
        %v4355 = vpop.xlane.xlu0 %4354
        %4356 = vmax.xlane.f32.xlu0 %v4318
        %v4357 = vpop.xlane.xlu0 %4356
        %4358 = vmax.xlane.f32.xlu0 %v4320
        %v4359 = vpop.xlane.xlu0 %4358
        %4360 = vmax.xlane.f32.xlu0 %v4323
        %v4361 = vpop.xlane.xlu0 %4360
        %4362 = vmax.xlane.f32.xlu0 %v4325
        %v4363 = vpop.xlane.xlu0 %4362
        %4364 = vmax.xlane.f32.xlu0 %v4328
        %v4365 = vpop.xlane.xlu0 %4364
        %4366 = vmax.xlane.f32.xlu0 %v4330
        %v4367 = vpop.xlane.xlu0 %4366
        %4368 = vmax.xlane.f32.xlu0 %v4333
        %v4369 = vpop.xlane.xlu0 %4368
        %4370 = vmax.xlane.f32.xlu0 %v4335
        %v4371 = vpop.xlane.xlu0 %4370
        %4372 = vmax.xlane.f32.xlu0 %v4338
        %v4373 = vpop.xlane.xlu0 %4372
        %4374 = vmax.xlane.f32.xlu0 %v4340
        %v4375 = vpop.xlane.xlu0 %4374
        %4376 = vmax.xlane.f32.xlu0 %v4343
        %v4377 = vpop.xlane.xlu0 %4376
        %4378 = vmax.xlane.f32.xlu0 %v4345
        %v4379 = vpop.xlane.xlu0 %4378
        %4380 = vmax.xlane.f32.xlu0 %v4348
        %v4381 = vpop.xlane.xlu0 %4380
        %4382 = vmax.xlane.f32.xlu0 %v4350
        %v4383 = vpop.xlane.xlu0 %4382
        %v4384 = vsub.f32 %v4313, %v4353
        %v4385 = vsub.f32 %v4315, %v4355
        %v4386 = vsub.f32 %v4318, %v4357
        %v4387 = vsub.f32 %v4320, %v4359
        %v4388 = vsub.f32 %v4323, %v4361
        %v4389 = vsub.f32 %v4325, %v4363
        %v4390 = vsub.f32 %v4328, %v4365
        %v4391 = vsub.f32 %v4330, %v4367
        %v4392 = vsub.f32 %v4333, %v4369
        %v4393 = vsub.f32 %v4335, %v4371
        %v4394 = vsub.f32 %v4338, %v4373
        %v4395 = vsub.f32 %v4340, %v4375
        %v4396 = vsub.f32 %v4343, %v4377
        %v4397 = vsub.f32 %v4345, %v4379
        %v4398 = vsub.f32 %v4348, %v4381
        %v4399 = vsub.f32 %v4350, %v4383
        %v4400 = vmul.f32 %v4384, 1.442695
        %v4401 = vpow.pop %v4400
        %v4402 = vmul.f32 %v4385, 1.442695
        %v4403 = vpow.pop %v4402
        %v4404 = vmul.f32 %v4386, 1.442695
        %v4405 = vpow.pop %v4404
        %v4406 = vmul.f32 %v4387, 1.442695
        %v4407 = vpow.pop %v4406
        %v4408 = vmul.f32 %v4388, 1.442695
        %v4409 = vpow.pop %v4408
        %v4410 = vmul.f32 %v4389, 1.442695
        %v4411 = vpow.pop %v4410
        %v4412 = vmul.f32 %v4390, 1.442695
        %v4413 = vpow.pop %v4412
        %v4414 = vmul.f32 %v4391, 1.442695
        %v4415 = vpow.pop %v4414
        %v4416 = vmul.f32 %v4392, 1.442695
        %v4417 = vpow.pop %v4416
        %v4418 = vmul.f32 %v4393, 1.442695
        %v4419 = vpow.pop %v4418
        %v4420 = vmul.f32 %v4394, 1.442695
        %v4421 = vpow.pop %v4420
        %v4422 = vmul.f32 %v4395, 1.442695
        %v4423 = vpow.pop %v4422
        %v4424 = vmul.f32 %v4396, 1.442695
        %v4425 = vpow.pop %v4424
        %v4426 = vmul.f32 %v4397, 1.442695
        %v4427 = vpow.pop %v4426
        %v4428 = vmul.f32 %v4398, 1.442695
        %v4429 = vpow.pop %v4428
        %v4430 = vmul.f32 %v4399, 1.442695
        %v4431 = vpow.pop %v4430
        %4432 = vadd.xlane.f32.xlu0 %v4401
        %v4433 = vpop.xlane.xlu0 %4432
        %4434 = vadd.xlane.f32.xlu0 %v4403
        %v4435 = vpop.xlane.xlu0 %4434
        %4436 = vadd.xlane.f32.xlu0 %v4405
        %v4437 = vpop.xlane.xlu0 %4436
        %4438 = vadd.xlane.f32.xlu0 %v4407
        %v4439 = vpop.xlane.xlu0 %4438
        %4440 = vadd.xlane.f32.xlu0 %v4409
        %v4441 = vpop.xlane.xlu0 %4440
        %4442 = vadd.xlane.f32.xlu0 %v4411
        %v4443 = vpop.xlane.xlu0 %4442
        %4444 = vadd.xlane.f32.xlu0 %v4413
        %v4445 = vpop.xlane.xlu0 %4444
        %4446 = vadd.xlane.f32.xlu0 %v4415
        %v4447 = vpop.xlane.xlu0 %4446
        %4448 = vadd.xlane.f32.xlu0 %v4417
        %v4449 = vpop.xlane.xlu0 %4448
        %4450 = vadd.xlane.f32.xlu0 %v4419
        %v4451 = vpop.xlane.xlu0 %4450
        %4452 = vadd.xlane.f32.xlu0 %v4421
        %v4453 = vpop.xlane.xlu0 %4452
        %4454 = vadd.xlane.f32.xlu0 %v4423
        %v4455 = vpop.xlane.xlu0 %4454
        %4456 = vadd.xlane.f32.xlu0 %v4425
        %v4457 = vpop.xlane.xlu0 %4456
        %4458 = vadd.xlane.f32.xlu0 %v4427
        %v4459 = vpop.xlane.xlu0 %4458
        %4460 = vadd.xlane.f32.xlu0 %v4429
        %v4461 = vpop.xlane.xlu0 %4460
        %4462 = vadd.xlane.f32.xlu0 %v4431
        %v4463 = vpop.xlane.xlu0 %4462
        %v4464 = vrcp.pop %v4433
        %v4465 = vrcp.pop %v4435
        %v4466 = vrcp.pop %v4437
        %v4467 = vrcp.pop %v4439
        %v4468 = vrcp.pop %v4441
        %v4469 = vrcp.pop %v4443
        %v4470 = vrcp.pop %v4445
        %v4471 = vrcp.pop %v4447
        %v4472 = vrcp.pop %v4449
        %v4473 = vrcp.pop %v4451
        %v4474 = vrcp.pop %v4453
        %v4475 = vrcp.pop %v4455
        %v4476 = vrcp.pop %v4457
        %v4477 = vrcp.pop %v4459
        %v4478 = vrcp.pop %v4461
        %v4479 = vrcp.pop %v4463
        %v4480 = vpack.c.bf16 %v4403, %v4401
        %v4481 = vpack.c.bf16 %v4407, %v4405
        %v4482 = vpack.c.bf16 %v4411, %v4409
        %v4483 = vpack.c.bf16 %v4415, %v4413
        %v4484 = vpack.c.bf16 %v4419, %v4417
        %v4485 = vpack.c.bf16 %v4423, %v4421
        %v4486 = vpack.c.bf16 %v4427, %v4425
        %v4487 = vpack.c.bf16 %v4431, %v4429
        %v4504 = vunpack.c.l.b16 %v4127
        %v4505 = vunpack.c.l.b16 %v4128
        %v4506 = vunpack.c.l.b16 %v4129
        %v4507 = vunpack.c.l.b16 %v4130
        %v4508 = vunpack.c.l.b16 %v4131
        %v4509 = vunpack.c.l.b16 %v4132
        %v4510 = vunpack.c.l.b16 %v4133
        %v4511 = vunpack.c.l.b16 %v4134
        %v4512 = vunpack.c.l.b16 %v4135
        %v4513 = vunpack.c.l.b16 %v4136
        %v4514 = vunpack.c.l.b16 %v4137
        %v4515 = vunpack.c.l.b16 %v4138
        %v4516 = vunpack.c.l.b16 %v4139
        %v4517 = vunpack.c.l.b16 %v4140
        %v4518 = vunpack.c.l.b16 %v4141
        %v4519 = vunpack.c.l.b16 %v4142
        %v4520 = vpack.c.b16 %v4505, %v4504
        %v4521 = vpack.c.b16 %v4507, %v4506
        %v4522 = vpack.c.b16 %v4509, %v4508
        %v4523 = vpack.c.b16 %v4511, %v4510
        %v4524 = vpack.c.b16 %v4513, %v4512
        %v4525 = vpack.c.b16 %v4515, %v4514
        %v4526 = vpack.c.b16 %v4517, %v4516
        %v4527 = vpack.c.b16 %v4519, %v4518
        %4528 = vrot.lane.b32.xlu0 %v4520, 64
        %v4529 = vpop.permute.xlu0 %4528
        %4530 = vrot.lane.b32.xlu0 %v4521, 64
        %v4531 = vpop.permute.xlu0 %4530
        %4532 = vrot.lane.b32.xlu0 %v4522, 64
        %v4533 = vpop.permute.xlu0 %4532
        %4534 = vrot.lane.b32.xlu0 %v4523, 64
        %v4535 = vpop.permute.xlu0 %4534
        %4536 = vrot.lane.b32.xlu0 %v4524, 64
        %v4537 = vpop.permute.xlu0 %4536
        %4538 = vrot.lane.b32.xlu0 %v4525, 64
        %v4539 = vpop.permute.xlu0 %4538
        %4540 = vrot.lane.b32.xlu0 %v4526, 64
        %v4541 = vpop.permute.xlu0 %4540
        %4542 = vrot.lane.b32.xlu0 %v4527, 64
        %v4543 = vpop.permute.xlu0 %4542
        %4552 = vmatpush.bf16.msra.mxu0 %v4543
        %4553 = vmatpush.bf16.msra.mxu0 %v4541
        %4554 = vmatpush.bf16.msra.mxu0 %v4539
        %4555 = vmatpush.bf16.msra.mxu0 %v4537
        %4556 = vmatpush.bf16.msra.mxu0 %v4535
        %4557 = vmatpush.bf16.msra.mxu0 %v4533
        %4558 = vmatpush.bf16.msra.mxu0 %v4531
        %4559 = vmatpush.bf16.msra.mxu0 %v4529
        %4560 = vmatmul.bf16.gmra.mxu0 %v4480
        %v4561 = vpop.f32.mrf.mxu0
        %v4562 = vadd.f32 0.0, %v4561
        %v4563 = vpop.f32.mrf.mxu0
        %v4564 = vadd.f32 0.0, %v4563
        %4565 = vmatmul.bf16.gmra.mxu0 %v4481
        %v4566 = vpop.f32.mrf.mxu0
        %v4567 = vadd.f32 0.0, %v4566
        %v4568 = vpop.f32.mrf.mxu0
        %v4569 = vadd.f32 0.0, %v4568
        %4570 = vmatmul.bf16.gmra.mxu0 %v4482
        %v4571 = vpop.f32.mrf.mxu0
        %v4572 = vadd.f32 0.0, %v4571
        %v4573 = vpop.f32.mrf.mxu0
        %v4574 = vadd.f32 0.0, %v4573
        %4575 = vmatmul.bf16.gmra.mxu0 %v4483
        %v4576 = vpop.f32.mrf.mxu0
        %v4577 = vadd.f32 0.0, %v4576
        %v4578 = vpop.f32.mrf.mxu0
        %v4579 = vadd.f32 0.0, %v4578
        %4580 = vmatmul.bf16.gmra.mxu0 %v4484
        %v4581 = vpop.f32.mrf.mxu0
        %v4582 = vadd.f32 0.0, %v4581
        %v4583 = vpop.f32.mrf.mxu0
        %v4584 = vadd.f32 0.0, %v4583
        %4585 = vmatmul.bf16.gmra.mxu0 %v4485
        %v4586 = vpop.f32.mrf.mxu0
        %v4587 = vadd.f32 0.0, %v4586
        %v4588 = vpop.f32.mrf.mxu0
        %v4589 = vadd.f32 0.0, %v4588
        %4590 = vmatmul.bf16.gmra.mxu0 %v4486
        %v4591 = vpop.f32.mrf.mxu0
        %v4592 = vadd.f32 0.0, %v4591
        %v4593 = vpop.f32.mrf.mxu0
        %v4594 = vadd.f32 0.0, %v4593
        %4595 = vmatmul.bf16.gmra.mxu0 %v4487
        %v4596 = vpop.f32.mrf.mxu0
        %v4597 = vadd.f32 0.0, %v4596
        %v4598 = vpop.f32.mrf.mxu0
        %v4599 = vadd.f32 0.0, %v4598
        %4600 = vdwg.mxu0
        %v4601 = vmul.f32 %v4562, %v4464
        %v4602 = vmul.f32 %v4564, %v4465
        %v4603 = vmul.f32 %v4567, %v4466
        %v4604 = vmul.f32 %v4569, %v4467
        %v4605 = vmul.f32 %v4572, %v4468
        %v4606 = vmul.f32 %v4574, %v4469
        %v4607 = vmul.f32 %v4577, %v4470
        %v4608 = vmul.f32 %v4579, %v4471
        %v4609 = vmul.f32 %v4582, %v4472
        %v4610 = vmul.f32 %v4584, %v4473
        %v4611 = vmul.f32 %v4587, %v4474
        %v4612 = vmul.f32 %v4589, %v4475
        %v4613 = vmul.f32 %v4592, %v4476
        %v4614 = vmul.f32 %v4594, %v4477
        %v4615 = vmul.f32 %v4597, %v4478
        %v4616 = vmul.f32 %v4599, %v4479
        %v4617 = vpack.c.bf16 %v4601, %v4601
        %v4618 = vpack.c.bf16 %v4602, %v4602
        %v4619 = vpack.c.bf16 %v4603, %v4603
        %v4620 = vpack.c.bf16 %v4604, %v4604
        %v4621 = vpack.c.bf16 %v4605, %v4605
        %v4622 = vpack.c.bf16 %v4606, %v4606
        %v4623 = vpack.c.bf16 %v4607, %v4607
        %v4624 = vpack.c.bf16 %v4608, %v4608
        %v4625 = vpack.c.bf16 %v4609, %v4609
        %v4626 = vpack.c.bf16 %v4610, %v4610
        %v4627 = vpack.c.bf16 %v4611, %v4611
        %v4628 = vpack.c.bf16 %v4612, %v4612
        %v4629 = vpack.c.bf16 %v4613, %v4613
        %v4630 = vpack.c.bf16 %v4614, %v4614
        %v4631 = vpack.c.bf16 %v4615, %v4615
        %v4632 = vpack.c.bf16 %v4616, %v4616
        %4649 = vrot.lane.b32.xlu0 %v4617, 64
        %v4650 = vpop.permute.xlu0 %4649
        %4651 = vrot.lane.b32.xlu0 %v4618, 64
        %v4652 = vpop.permute.xlu0 %4651
        %4653 = vrot.lane.b32.xlu0 %v4619, 64
        %v4654 = vpop.permute.xlu0 %4653
        %4655 = vrot.lane.b32.xlu0 %v4620, 64
        %v4656 = vpop.permute.xlu0 %4655
        %4657 = vrot.lane.b32.xlu0 %v4621, 64
        %v4658 = vpop.permute.xlu0 %4657
        %4659 = vrot.lane.b32.xlu0 %v4622, 64
        %v4660 = vpop.permute.xlu0 %4659
        %4661 = vrot.lane.b32.xlu0 %v4623, 64
        %v4662 = vpop.permute.xlu0 %4661
        %4663 = vrot.lane.b32.xlu0 %v4624, 64
        %v4664 = vpop.permute.xlu0 %4663
        %4665 = vrot.lane.b32.xlu0 %v4625, 64
        %v4666 = vpop.permute.xlu0 %4665
        %4667 = vrot.lane.b32.xlu0 %v4626, 64
        %v4668 = vpop.permute.xlu0 %4667
        %4669 = vrot.lane.b32.xlu0 %v4627, 64
        %v4670 = vpop.permute.xlu0 %4669
        %4671 = vrot.lane.b32.xlu0 %v4628, 64
        %v4672 = vpop.permute.xlu0 %4671
        %4673 = vrot.lane.b32.xlu0 %v4629, 64
        %v4674 = vpop.permute.xlu0 %4673
        %4675 = vrot.lane.b32.xlu0 %v4630, 64
        %v4676 = vpop.permute.xlu0 %4675
        %4677 = vrot.lane.b32.xlu0 %v4631, 64
        %v4678 = vpop.permute.xlu0 %4677
        %4679 = vrot.lane.b32.xlu0 %v4632, 64
        %v4680 = vpop.permute.xlu0 %4679
        %4697 = vst.msk [vmem:[#allocation4 + $0x4] sm:$0xf] %vm3572, %v4650
        %4698 = vst.msk [vmem:[#allocation4 + $0xc] sm:$0xf] %vm3572, %v4652
        %4699 = vst.msk [vmem:[#allocation4 + $0x14] sm:$0xf] %vm3572, %v4654
        %4700 = vst.msk [vmem:[#allocation4 + $0x1c] sm:$0xf] %vm3572, %v4656
        %4701 = vst.msk [vmem:[#allocation4 + $0x24] sm:$0xf] %vm3572, %v4658
        %4702 = vst.msk [vmem:[#allocation4 + $0x2c] sm:$0xf] %vm3572, %v4660
        %4703 = vst.msk [vmem:[#allocation4 + $0x34] sm:$0xf] %vm3572, %v4662
        %4704 = vst.msk [vmem:[#allocation4 + $0x3c] sm:$0xf] %vm3572, %v4664
        %4705 = vst.msk [vmem:[#allocation4 + $0x44] sm:$0xf] %vm3572, %v4666
        %4706 = vst.msk [vmem:[#allocation4 + $0x4c] sm:$0xf] %vm3572, %v4668
        %4707 = vst.msk [vmem:[#allocation4 + $0x54] sm:$0xf] %vm3572, %v4670
        %4708 = vst.msk [vmem:[#allocation4 + $0x5c] sm:$0xf] %vm3572, %v4672
        %4709 = vst.msk [vmem:[#allocation4 + $0x64] sm:$0xf] %vm3572, %v4674
        %4710 = vst.msk [vmem:[#allocation4 + $0x6c] sm:$0xf] %vm3572, %v4676
        %4711 = vst.msk [vmem:[#allocation4 + $0x74] sm:$0xf] %vm3572, %v4678
        %4712 = vst.msk [vmem:[#allocation4 + $0x7c] sm:$0xf] %vm3572, %v4680
        %v4713 = vld [vmem:[#allocation4] sm:$0xff]
        %v4714 = vld [vmem:[#allocation4 + $0x8] sm:$0xff]
        %v4715 = vld [vmem:[#allocation4 + $0x10] sm:$0xff]
        %v4716 = vld [vmem:[#allocation4 + $0x18] sm:$0xff]
        %v4717 = vld [vmem:[#allocation4 + $0x20] sm:$0xff]
        %v4718 = vld [vmem:[#allocation4 + $0x28] sm:$0xff]
        %v4719 = vld [vmem:[#allocation4 + $0x30] sm:$0xff]
        %v4720 = vld [vmem:[#allocation4 + $0x38] sm:$0xff]
        %v4721 = vld [vmem:[#allocation4 + $0x40] sm:$0xff]
        %v4722 = vld [vmem:[#allocation4 + $0x48] sm:$0xff]
        %v4723 = vld [vmem:[#allocation4 + $0x50] sm:$0xff]
        %v4724 = vld [vmem:[#allocation4 + $0x58] sm:$0xff]
        %v4725 = vld [vmem:[#allocation4 + $0x60] sm:$0xff]
        %v4726 = vld [vmem:[#allocation4 + $0x68] sm:$0xff]
        %v4727 = vld [vmem:[#allocation4 + $0x70] sm:$0xff]
        %v4728 = vld [vmem:[#allocation4 + $0x78] sm:$0xff]
        %s4729 = smul.u32 %s34, 64
        %s4730 = smul.addr %s4729, 4
        %s4731 = scalar_lea.vmem %s6, %s4730
        %v4732 = vld [vmem:[%s4731] sm:$0xff]
        %v4733 = vld [vmem:[%s4731 + $0x8] sm:$0xff]
        %v4734 = vld [vmem:[%s4731 + $0x10] sm:$0xff]
        %v4735 = vld [vmem:[%s4731 + $0x18] sm:$0xff]
        %v4736 = vld [vmem:[%s4731 + $0x20] sm:$0xff]
        %v4737 = vld [vmem:[%s4731 + $0x28] sm:$0xff]
        %v4738 = vld [vmem:[%s4731 + $0x30] sm:$0xff]
        %v4739 = vld [vmem:[%s4731 + $0x38] sm:$0xff]
        %v4740 = vld [vmem:[%s4731 + $0x40] sm:$0xff]
        %v4741 = vld [vmem:[%s4731 + $0x48] sm:$0xff]
        %v4742 = vld [vmem:[%s4731 + $0x50] sm:$0xff]
        %v4743 = vld [vmem:[%s4731 + $0x58] sm:$0xff]
        %v4744 = vld [vmem:[%s4731 + $0x60] sm:$0xff]
        %v4745 = vld [vmem:[%s4731 + $0x68] sm:$0xff]
        %v4746 = vld [vmem:[%s4731 + $0x70] sm:$0xff]
        %v4747 = vld [vmem:[%s4731 + $0x78] sm:$0xff]
        %v4748 = vld [vmem:[%s4731 + $0x80] sm:$0xff]
        %v4749 = vld [vmem:[%s4731 + $0x88] sm:$0xff]
        %v4750 = vld [vmem:[%s4731 + $0x90] sm:$0xff]
        %v4751 = vld [vmem:[%s4731 + $0x98] sm:$0xff]
        %v4752 = vld [vmem:[%s4731 + $0xa0] sm:$0xff]
        %v4753 = vld [vmem:[%s4731 + $0xa8] sm:$0xff]
        %v4754 = vld [vmem:[%s4731 + $0xb0] sm:$0xff]
        %v4755 = vld [vmem:[%s4731 + $0xb8] sm:$0xff]
        %v4756 = vld [vmem:[%s4731 + $0xc0] sm:$0xff]
        %v4757 = vld [vmem:[%s4731 + $0xc8] sm:$0xff]
        %v4758 = vld [vmem:[%s4731 + $0xd0] sm:$0xff]
        %v4759 = vld [vmem:[%s4731 + $0xd8] sm:$0xff]
        %v4760 = vld [vmem:[%s4731 + $0xe0] sm:$0xff]
        %v4761 = vld [vmem:[%s4731 + $0xe8] sm:$0xff]
        %v4762 = vld [vmem:[%s4731 + $0xf0] sm:$0xff]
        %v4763 = vld [vmem:[%s4731 + $0xf8] sm:$0xff]
        %s4764 = smul.u32 %s34, 2
        %s4765 = scalar_lea.vmem %s7, %s4764
        %v4766 = vld [vmem:[%s4765] sm:$0x3]
        %v4768 = vperm.slane %v4766, 0
        %v4769 = vperm.slane %v4766, 1
        %v4788 = vunpack.c.l.b16 %v4713
        %v4789 = vunpack.c.h.b16 %v4713
        %v4790 = vunpack.c.l.b16 %v4714
        %v4791 = vunpack.c.h.b16 %v4714
        %v4792 = vunpack.c.l.b16 %v4715
        %v4793 = vunpack.c.h.b16 %v4715
        %v4794 = vunpack.c.l.b16 %v4716
        %v4795 = vunpack.c.h.b16 %v4716
        %v4796 = vunpack.c.l.b16 %v4717
        %v4797 = vunpack.c.h.b16 %v4717
        %v4798 = vunpack.c.l.b16 %v4718
        %v4799 = vunpack.c.h.b16 %v4718
        %v4800 = vunpack.c.l.b16 %v4719
        %v4801 = vunpack.c.h.b16 %v4719
        %v4802 = vunpack.c.l.b16 %v4720
        %v4803 = vunpack.c.h.b16 %v4720
        %v4804 = vunpack.c.l.b16 %v4721
        %v4805 = vunpack.c.h.b16 %v4721
        %v4806 = vunpack.c.l.b16 %v4722
        %v4807 = vunpack.c.h.b16 %v4722
        %v4808 = vunpack.c.l.b16 %v4723
        %v4809 = vunpack.c.h.b16 %v4723
        %v4810 = vunpack.c.l.b16 %v4724
        %v4811 = vunpack.c.h.b16 %v4724
        %v4812 = vunpack.c.l.b16 %v4725
        %v4813 = vunpack.c.h.b16 %v4725
        %v4814 = vunpack.c.l.b16 %v4726
        %v4815 = vunpack.c.h.b16 %v4726
        %v4816 = vunpack.c.l.b16 %v4727
        %v4817 = vunpack.c.h.b16 %v4727
        %v4818 = vunpack.c.l.b16 %v4728
        %v4819 = vunpack.c.h.b16 %v4728
        %v4820 = vpack.c.b16 %v4790, %v4788
        %v4821 = vpack.c.b16 %v4791, %v4789
        %v4822 = vpack.c.b16 %v4794, %v4792
        %v4823 = vpack.c.b16 %v4795, %v4793
        %v4824 = vpack.c.b16 %v4798, %v4796
        %v4825 = vpack.c.b16 %v4799, %v4797
        %v4826 = vpack.c.b16 %v4802, %v4800
        %v4827 = vpack.c.b16 %v4803, %v4801
        %v4828 = vpack.c.b16 %v4806, %v4804
        %v4829 = vpack.c.b16 %v4807, %v4805
        %v4830 = vpack.c.b16 %v4810, %v4808
        %v4831 = vpack.c.b16 %v4811, %v4809
        %v4832 = vpack.c.b16 %v4814, %v4812
        %v4833 = vpack.c.b16 %v4815, %v4813
        %v4834 = vpack.c.b16 %v4818, %v4816
        %v4835 = vpack.c.b16 %v4819, %v4817
        %v4884 = vunpack.c.l.b16 %v4732
        %v4885 = vunpack.c.h.b16 %v4732
        %v4886 = vunpack.c.l.b16 %v4733
        %v4887 = vunpack.c.h.b16 %v4733
        %v4888 = vunpack.c.l.b16 %v4734
        %v4889 = vunpack.c.h.b16 %v4734
        %v4890 = vunpack.c.l.b16 %v4735
        %v4891 = vunpack.c.h.b16 %v4735
        %v4892 = vunpack.c.l.b16 %v4736
        %v4893 = vunpack.c.h.b16 %v4736
        %v4894 = vunpack.c.l.b16 %v4737
        %v4895 = vunpack.c.h.b16 %v4737
        %v4896 = vunpack.c.l.b16 %v4738
        %v4897 = vunpack.c.h.b16 %v4738
        %v4898 = vunpack.c.l.b16 %v4739
        %v4899 = vunpack.c.h.b16 %v4739
        %v4900 = vunpack.c.l.b16 %v4740
        %v4901 = vunpack.c.h.b16 %v4740
        %v4902 = vunpack.c.l.b16 %v4741
        %v4903 = vunpack.c.h.b16 %v4741
        %v4904 = vunpack.c.l.b16 %v4742
        %v4905 = vunpack.c.h.b16 %v4742
        %v4906 = vunpack.c.l.b16 %v4743
        %v4907 = vunpack.c.h.b16 %v4743
        %v4908 = vunpack.c.l.b16 %v4744
        %v4909 = vunpack.c.h.b16 %v4744
        %v4910 = vunpack.c.l.b16 %v4745
        %v4911 = vunpack.c.h.b16 %v4745
        %v4912 = vunpack.c.l.b16 %v4746
        %v4913 = vunpack.c.h.b16 %v4746
        %v4914 = vunpack.c.l.b16 %v4747
        %v4915 = vunpack.c.h.b16 %v4747
        %v4916 = vunpack.c.l.b16 %v4748
        %v4917 = vunpack.c.h.b16 %v4748
        %v4918 = vunpack.c.l.b16 %v4749
        %v4919 = vunpack.c.h.b16 %v4749
        %v4920 = vunpack.c.l.b16 %v4750
        %v4921 = vunpack.c.h.b16 %v4750
        %v4922 = vunpack.c.l.b16 %v4751
        %v4923 = vunpack.c.h.b16 %v4751
        %v4924 = vunpack.c.l.b16 %v4752
        %v4925 = vunpack.c.h.b16 %v4752
        %v4926 = vunpack.c.l.b16 %v4753
        %v4927 = vunpack.c.h.b16 %v4753
        %v4928 = vunpack.c.l.b16 %v4754
        %v4929 = vunpack.c.h.b16 %v4754
        %v4930 = vunpack.c.l.b16 %v4755
        %v4931 = vunpack.c.h.b16 %v4755
        %v4932 = vunpack.c.l.b16 %v4756
        %v4933 = vunpack.c.h.b16 %v4756
        %v4934 = vunpack.c.l.b16 %v4757
        %v4935 = vunpack.c.h.b16 %v4757
        %v4936 = vunpack.c.l.b16 %v4758
        %v4937 = vunpack.c.h.b16 %v4758
        %v4938 = vunpack.c.l.b16 %v4759
        %v4939 = vunpack.c.h.b16 %v4759
        %v4940 = vunpack.c.l.b16 %v4760
        %v4941 = vunpack.c.h.b16 %v4760
        %v4942 = vunpack.c.l.b16 %v4761
        %v4943 = vunpack.c.h.b16 %v4761
        %v4944 = vunpack.c.l.b16 %v4762
        %v4945 = vunpack.c.h.b16 %v4762
        %v4946 = vunpack.c.l.b16 %v4763
        %v4947 = vunpack.c.h.b16 %v4763
        %v4948 = vpack.c.b16 %v4886, %v4884
        %v4949 = vpack.c.b16 %v4887, %v4885
        %v4950 = vpack.c.b16 %v4890, %v4888
        %v4951 = vpack.c.b16 %v4891, %v4889
        %v4952 = vpack.c.b16 %v4894, %v4892
        %v4953 = vpack.c.b16 %v4895, %v4893
        %v4954 = vpack.c.b16 %v4898, %v4896
        %v4955 = vpack.c.b16 %v4899, %v4897
        %v4956 = vpack.c.b16 %v4902, %v4900
        %v4957 = vpack.c.b16 %v4903, %v4901
        %v4958 = vpack.c.b16 %v4906, %v4904
        %v4959 = vpack.c.b16 %v4907, %v4905
        %v4960 = vpack.c.b16 %v4910, %v4908
        %v4961 = vpack.c.b16 %v4911, %v4909
        %v4962 = vpack.c.b16 %v4914, %v4912
        %v4963 = vpack.c.b16 %v4915, %v4913
        %v4964 = vpack.c.b16 %v4918, %v4916
        %v4965 = vpack.c.b16 %v4919, %v4917
        %v4966 = vpack.c.b16 %v4922, %v4920
        %v4967 = vpack.c.b16 %v4923, %v4921
        %v4968 = vpack.c.b16 %v4926, %v4924
        %v4969 = vpack.c.b16 %v4927, %v4925
        %v4970 = vpack.c.b16 %v4930, %v4928
        %v4971 = vpack.c.b16 %v4931, %v4929
        %v4972 = vpack.c.b16 %v4934, %v4932
        %v4973 = vpack.c.b16 %v4935, %v4933
        %v4974 = vpack.c.b16 %v4938, %v4936
        %v4975 = vpack.c.b16 %v4939, %v4937
        %v4976 = vpack.c.b16 %v4942, %v4940
        %v4977 = vpack.c.b16 %v4943, %v4941
        %v4978 = vpack.c.b16 %v4946, %v4944
        %v4979 = vpack.c.b16 %v4947, %v4945
        %5012 = vmatpush.bf16.msra.mxu0 %v4962
        %5013 = vmatpush.bf16.msra.mxu0 %v4960
        %5014 = vmatpush.bf16.msra.mxu0 %v4958
        %5015 = vmatpush.bf16.msra.mxu0 %v4956
        %5016 = vmatpush.bf16.msra.mxu0 %v4954
        %5017 = vmatpush.bf16.msra.mxu0 %v4952
        %5018 = vmatpush.bf16.msra.mxu0 %v4950
        %5019 = vmatpush.bf16.msra.mxu0 %v4948
        %5020 = vmatmul.bf16.gmra.mxu0 %v4820
        %v5021 = vpop.f32.mrf.mxu0
        %v5022 = vadd.f32 %v4768, %v5021
        %v5023 = vpop.f32.mrf.mxu0
        %v5024 = vadd.f32 %v4768, %v5023
        %5025 = vmatmul.bf16.gmra.mxu0 %v4822
        %v5026 = vpop.f32.mrf.mxu0
        %v5027 = vadd.f32 %v4768, %v5026
        %v5028 = vpop.f32.mrf.mxu0
        %v5029 = vadd.f32 %v4768, %v5028
        %5030 = vmatmul.bf16.gmra.mxu0 %v4824
        %v5031 = vpop.f32.mrf.mxu0
        %v5032 = vadd.f32 %v4768, %v5031
        %v5033 = vpop.f32.mrf.mxu0
        %v5034 = vadd.f32 %v4768, %v5033
        %5035 = vmatmul.bf16.gmra.mxu0 %v4826
        %v5036 = vpop.f32.mrf.mxu0
        %v5037 = vadd.f32 %v4768, %v5036
        %v5038 = vpop.f32.mrf.mxu0
        %v5039 = vadd.f32 %v4768, %v5038
        %5040 = vmatmul.bf16.gmra.mxu0 %v4828
        %v5041 = vpop.f32.mrf.mxu0
        %v5042 = vadd.f32 %v4768, %v5041
        %v5043 = vpop.f32.mrf.mxu0
        %v5044 = vadd.f32 %v4768, %v5043
        %5045 = vmatmul.bf16.gmra.mxu0 %v4830
        %v5046 = vpop.f32.mrf.mxu0
        %v5047 = vadd.f32 %v4768, %v5046
        %v5048 = vpop.f32.mrf.mxu0
        %v5049 = vadd.f32 %v4768, %v5048
        %5050 = vmatmul.bf16.gmra.mxu0 %v4832
        %v5051 = vpop.f32.mrf.mxu0
        %v5052 = vadd.f32 %v4768, %v5051
        %v5053 = vpop.f32.mrf.mxu0
        %v5054 = vadd.f32 %v4768, %v5053
        %5055 = vmatmul.bf16.gmra.mxu0 %v4834
        %v5056 = vpop.f32.mrf.mxu0
        %v5057 = vadd.f32 %v4768, %v5056
        %v5058 = vpop.f32.mrf.mxu0
        %v5059 = vadd.f32 %v4768, %v5058
        %5060 = vdwg.mxu0
        %5061 = vmatpush.bf16.msra.mxu0 %v4978
        %5062 = vmatpush.bf16.msra.mxu0 %v4976
        %5063 = vmatpush.bf16.msra.mxu0 %v4974
        %5064 = vmatpush.bf16.msra.mxu0 %v4972
        %5065 = vmatpush.bf16.msra.mxu0 %v4970
        %5066 = vmatpush.bf16.msra.mxu0 %v4968
        %5067 = vmatpush.bf16.msra.mxu0 %v4966
        %5068 = vmatpush.bf16.msra.mxu0 %v4964
        %5069 = vmatmul.bf16.gmra.mxu0 %v4821
        %v5070 = vpop.f32.mrf.mxu0
        %v5071 = vadd.f32 %v5022, %v5070
        %v5072 = vpop.f32.mrf.mxu0
        %v5073 = vadd.f32 %v5024, %v5072
        %5074 = vmatmul.bf16.gmra.mxu0 %v4823
        %v5075 = vpop.f32.mrf.mxu0
        %v5076 = vadd.f32 %v5027, %v5075
        %v5077 = vpop.f32.mrf.mxu0
        %v5078 = vadd.f32 %v5029, %v5077
        %5079 = vmatmul.bf16.gmra.mxu0 %v4825
        %v5080 = vpop.f32.mrf.mxu0
        %v5081 = vadd.f32 %v5032, %v5080
        %v5082 = vpop.f32.mrf.mxu0
        %v5083 = vadd.f32 %v5034, %v5082
        %5084 = vmatmul.bf16.gmra.mxu0 %v4827
        %v5085 = vpop.f32.mrf.mxu0
        %v5086 = vadd.f32 %v5037, %v5085
        %v5087 = vpop.f32.mrf.mxu0
        %v5088 = vadd.f32 %v5039, %v5087
        %5089 = vmatmul.bf16.gmra.mxu0 %v4829
        %v5090 = vpop.f32.mrf.mxu0
        %v5091 = vadd.f32 %v5042, %v5090
        %v5092 = vpop.f32.mrf.mxu0
        %v5093 = vadd.f32 %v5044, %v5092
        %5094 = vmatmul.bf16.gmra.mxu0 %v4831
        %v5095 = vpop.f32.mrf.mxu0
        %v5096 = vadd.f32 %v5047, %v5095
        %v5097 = vpop.f32.mrf.mxu0
        %v5098 = vadd.f32 %v5049, %v5097
        %5099 = vmatmul.bf16.gmra.mxu0 %v4833
        %v5100 = vpop.f32.mrf.mxu0
        %v5101 = vadd.f32 %v5052, %v5100
        %v5102 = vpop.f32.mrf.mxu0
        %v5103 = vadd.f32 %v5054, %v5102
        %5104 = vmatmul.bf16.gmra.mxu0 %v4835
        %v5105 = vpop.f32.mrf.mxu0
        %v5106 = vadd.f32 %v5057, %v5105
        %v5107 = vpop.f32.mrf.mxu0
        %v5108 = vadd.f32 %v5059, %v5107
        %5109 = vdwg.mxu0
        %5110 = vmatpush.bf16.msra.mxu0 %v4963
        %5111 = vmatpush.bf16.msra.mxu0 %v4961
        %5112 = vmatpush.bf16.msra.mxu0 %v4959
        %5113 = vmatpush.bf16.msra.mxu0 %v4957
        %5114 = vmatpush.bf16.msra.mxu0 %v4955
        %5115 = vmatpush.bf16.msra.mxu0 %v4953
        %5116 = vmatpush.bf16.msra.mxu0 %v4951
        %5117 = vmatpush.bf16.msra.mxu0 %v4949
        %5118 = vmatmul.bf16.gmra.mxu0 %v4820
        %v5119 = vpop.f32.mrf.mxu0
        %v5120 = vadd.f32 %v4769, %v5119
        %v5121 = vpop.f32.mrf.mxu0
        %v5122 = vadd.f32 %v4769, %v5121
        %5123 = vmatmul.bf16.gmra.mxu0 %v4822
        %v5124 = vpop.f32.mrf.mxu0
        %v5125 = vadd.f32 %v4769, %v5124
        %v5126 = vpop.f32.mrf.mxu0
        %v5127 = vadd.f32 %v4769, %v5126
        %5128 = vmatmul.bf16.gmra.mxu0 %v4824
        %v5129 = vpop.f32.mrf.mxu0
        %v5130 = vadd.f32 %v4769, %v5129
        %v5131 = vpop.f32.mrf.mxu0
        %v5132 = vadd.f32 %v4769, %v5131
        %5133 = vmatmul.bf16.gmra.mxu0 %v4826
        %v5134 = vpop.f32.mrf.mxu0
        %v5135 = vadd.f32 %v4769, %v5134
        %v5136 = vpop.f32.mrf.mxu0
        %v5137 = vadd.f32 %v4769, %v5136
        %5138 = vmatmul.bf16.gmra.mxu0 %v4828
        %v5139 = vpop.f32.mrf.mxu0
        %v5140 = vadd.f32 %v4769, %v5139
        %v5141 = vpop.f32.mrf.mxu0
        %v5142 = vadd.f32 %v4769, %v5141
        %5143 = vmatmul.bf16.gmra.mxu0 %v4830
        %v5144 = vpop.f32.mrf.mxu0
        %v5145 = vadd.f32 %v4769, %v5144
        %v5146 = vpop.f32.mrf.mxu0
        %v5147 = vadd.f32 %v4769, %v5146
        %5148 = vmatmul.bf16.gmra.mxu0 %v4832
        %v5149 = vpop.f32.mrf.mxu0
        %v5150 = vadd.f32 %v4769, %v5149
        %v5151 = vpop.f32.mrf.mxu0
        %v5152 = vadd.f32 %v4769, %v5151
        %5153 = vmatmul.bf16.gmra.mxu0 %v4834
        %v5154 = vpop.f32.mrf.mxu0
        %v5155 = vadd.f32 %v4769, %v5154
        %v5156 = vpop.f32.mrf.mxu0
        %v5157 = vadd.f32 %v4769, %v5156
        %5158 = vdwg.mxu0
        %5159 = vmatpush.bf16.msra.mxu0 %v4979
        %5160 = vmatpush.bf16.msra.mxu0 %v4977
        %5161 = vmatpush.bf16.msra.mxu0 %v4975
        %5162 = vmatpush.bf16.msra.mxu0 %v4973
        %5163 = vmatpush.bf16.msra.mxu0 %v4971
        %5164 = vmatpush.bf16.msra.mxu0 %v4969
        %5165 = vmatpush.bf16.msra.mxu0 %v4967
        %5166 = vmatpush.bf16.msra.mxu0 %v4965
        %5167 = vmatmul.bf16.gmra.mxu0 %v4821
        %v5168 = vpop.f32.mrf.mxu0
        %v5169 = vadd.f32 %v5120, %v5168
        %v5170 = vpop.f32.mrf.mxu0
        %v5171 = vadd.f32 %v5122, %v5170
        %5172 = vmatmul.bf16.gmra.mxu0 %v4823
        %v5173 = vpop.f32.mrf.mxu0
        %v5174 = vadd.f32 %v5125, %v5173
        %v5175 = vpop.f32.mrf.mxu0
        %v5176 = vadd.f32 %v5127, %v5175
        %5177 = vmatmul.bf16.gmra.mxu0 %v4825
        %v5178 = vpop.f32.mrf.mxu0
        %v5179 = vadd.f32 %v5130, %v5178
        %v5180 = vpop.f32.mrf.mxu0
        %v5181 = vadd.f32 %v5132, %v5180
        %5182 = vmatmul.bf16.gmra.mxu0 %v4827
        %v5183 = vpop.f32.mrf.mxu0
        %v5184 = vadd.f32 %v5135, %v5183
        %v5185 = vpop.f32.mrf.mxu0
        %v5186 = vadd.f32 %v5137, %v5185
        %5187 = vmatmul.bf16.gmra.mxu0 %v4829
        %v5188 = vpop.f32.mrf.mxu0
        %v5189 = vadd.f32 %v5140, %v5188
        %v5190 = vpop.f32.mrf.mxu0
        %v5191 = vadd.f32 %v5142, %v5190
        %5192 = vmatmul.bf16.gmra.mxu0 %v4831
        %v5193 = vpop.f32.mrf.mxu0
        %v5194 = vadd.f32 %v5145, %v5193
        %v5195 = vpop.f32.mrf.mxu0
        %v5196 = vadd.f32 %v5147, %v5195
        %5197 = vmatmul.bf16.gmra.mxu0 %v4833
        %v5198 = vpop.f32.mrf.mxu0
        %v5199 = vadd.f32 %v5150, %v5198
        %v5200 = vpop.f32.mrf.mxu0
        %v5201 = vadd.f32 %v5152, %v5200
        %5202 = vmatmul.bf16.gmra.mxu0 %v4835
        %v5203 = vpop.f32.mrf.mxu0
        %v5204 = vadd.f32 %v5155, %v5203
        %v5205 = vpop.f32.mrf.mxu0
        %v5206 = vadd.f32 %v5157, %v5205
        %5207 = vdwg.mxu0
        %v5208 = vadd.f32 %v1131, %v5071
        %v5209 = vadd.f32 %v1132, %v5169
        %v5210 = vadd.f32 %v1133, %v5073
        %v5211 = vadd.f32 %v1134, %v5171
        %v5212 = vadd.f32 %v1135, %v5076
        %v5213 = vadd.f32 %v1136, %v5174
        %v5214 = vadd.f32 %v1137, %v5078
        %v5215 = vadd.f32 %v1138, %v5176
        %v5216 = vadd.f32 %v1139, %v5081
        %v5217 = vadd.f32 %v1140, %v5179
        %v5218 = vadd.f32 %v1141, %v5083
        %v5219 = vadd.f32 %v1142, %v5181
        %v5220 = vadd.f32 %v1143, %v5086
        %v5221 = vadd.f32 %v1144, %v5184
        %v5222 = vadd.f32 %v1145, %v5088
        %v5223 = vadd.f32 %v1146, %v5186
        %v5224 = vadd.f32 %v1147, %v5091
        %v5225 = vadd.f32 %v1148, %v5189
        %v5226 = vadd.f32 %v1149, %v5093
        %v5227 = vadd.f32 %v1150, %v5191
        %v5228 = vadd.f32 %v1151, %v5096
        %v5229 = vadd.f32 %v1152, %v5194
        %v5230 = vadd.f32 %v1153, %v5098
        %v5231 = vadd.f32 %v1154, %v5196
        %v5232 = vadd.f32 %v1155, %v5101
        %v5233 = vadd.f32 %v1156, %v5199
        %v5234 = vadd.f32 %v1157, %v5103
        %v5235 = vadd.f32 %v1158, %v5201
        %v5236 = vadd.f32 %v1159, %v5106
        %v5237 = vadd.f32 %v1160, %v5204
        %v5238 = vadd.f32 %v1161, %v5108
        %v5239 = vadd.f32 %v1162, %v5206
        %s5240 = scalar_lea.vmem %s8, %s4764
        %v5241 = vld [vmem:[%s5240] sm:$0x3]
        %s5242 = scalar_lea.vmem %s9, %s4764
        %v5243 = vld [vmem:[%s5242] sm:$0x3]
        %v5244 = vadd.f32 %v5208, %v5209
        %5245 = vadd.xlane.f32.xlu0 %v5244
        %v5246 = vpop.xlane.xlu0 %5245
        %v5247 = vadd.f32 %v5210, %v5211
        %5248 = vadd.xlane.f32.xlu0 %v5247
        %v5249 = vpop.xlane.xlu0 %5248
        %v5250 = vadd.f32 %v5212, %v5213
        %5251 = vadd.xlane.f32.xlu0 %v5250
        %v5252 = vpop.xlane.xlu0 %5251
        %v5253 = vadd.f32 %v5214, %v5215
        %5254 = vadd.xlane.f32.xlu0 %v5253
        %v5255 = vpop.xlane.xlu0 %5254
        %v5256 = vadd.f32 %v5216, %v5217
        %5257 = vadd.xlane.f32.xlu0 %v5256
        %v5258 = vpop.xlane.xlu0 %5257
        %v5259 = vadd.f32 %v5218, %v5219
        %5260 = vadd.xlane.f32.xlu0 %v5259
        %v5261 = vpop.xlane.xlu0 %5260
        %v5262 = vadd.f32 %v5220, %v5221
        %5263 = vadd.xlane.f32.xlu0 %v5262
        %v5264 = vpop.xlane.xlu0 %5263
        %v5265 = vadd.f32 %v5222, %v5223
        %5266 = vadd.xlane.f32.xlu0 %v5265
        %v5267 = vpop.xlane.xlu0 %5266
        %v5268 = vadd.f32 %v5224, %v5225
        %5269 = vadd.xlane.f32.xlu0 %v5268
        %v5270 = vpop.xlane.xlu0 %5269
        %v5271 = vadd.f32 %v5226, %v5227
        %5272 = vadd.xlane.f32.xlu0 %v5271
        %v5273 = vpop.xlane.xlu0 %5272
        %v5274 = vadd.f32 %v5228, %v5229
        %5275 = vadd.xlane.f32.xlu0 %v5274
        %v5276 = vpop.xlane.xlu0 %5275
        %v5277 = vadd.f32 %v5230, %v5231
        %5278 = vadd.xlane.f32.xlu0 %v5277
        %v5279 = vpop.xlane.xlu0 %5278
        %v5280 = vadd.f32 %v5232, %v5233
        %5281 = vadd.xlane.f32.xlu0 %v5280
        %v5282 = vpop.xlane.xlu0 %5281
        %v5283 = vadd.f32 %v5234, %v5235
        %5284 = vadd.xlane.f32.xlu0 %v5283
        %v5285 = vpop.xlane.xlu0 %5284
        %v5286 = vadd.f32 %v5236, %v5237
        %5287 = vadd.xlane.f32.xlu0 %v5286
        %v5288 = vpop.xlane.xlu0 %5287
        %v5289 = vadd.f32 %v5238, %v5239
        %5290 = vadd.xlane.f32.xlu0 %v5289
        %v5291 = vpop.xlane.xlu0 %5290
        %v5292 = vrcp.pop 256.0
        %v5293 = vmul.f32 256.0, %v5292
        %v5294 = vsub.f32 1.0, %v5293
        %v5295 = vmul.f32 %v5292, %v5294
        %v5296 = vadd.f32 %v5292, %v5295
        %vm5297 = vweird.f32 %v5292
        %v5298 = vsel %vm5297, %v5292, %v5296
        %v5299 = vmul.f32 %v5246, %v5298
        %v5300 = vmul.f32 %v5249, %v5298
        %v5301 = vmul.f32 %v5252, %v5298
        %v5302 = vmul.f32 %v5255, %v5298
        %v5303 = vmul.f32 %v5258, %v5298
        %v5304 = vmul.f32 %v5261, %v5298
        %v5305 = vmul.f32 %v5264, %v5298
        %v5306 = vmul.f32 %v5267, %v5298
        %v5307 = vmul.f32 %v5270, %v5298
        %v5308 = vmul.f32 %v5273, %v5298
        %v5309 = vmul.f32 %v5276, %v5298
        %v5310 = vmul.f32 %v5279, %v5298
        %v5311 = vmul.f32 %v5282, %v5298
        %v5312 = vmul.f32 %v5285, %v5298
        %v5313 = vmul.f32 %v5288, %v5298
        %v5314 = vmul.f32 %v5291, %v5298
        %v5315 = vsub.f32 %v5208, %v5299
        %v5316 = vsub.f32 %v5209, %v5299
        %v5317 = vsub.f32 %v5210, %v5300
        %v5318 = vsub.f32 %v5211, %v5300
        %v5319 = vsub.f32 %v5212, %v5301
        %v5320 = vsub.f32 %v5213, %v5301
        %v5321 = vsub.f32 %v5214, %v5302
        %v5322 = vsub.f32 %v5215, %v5302
        %v5323 = vsub.f32 %v5216, %v5303
        %v5324 = vsub.f32 %v5217, %v5303
        %v5325 = vsub.f32 %v5218, %v5304
        %v5326 = vsub.f32 %v5219, %v5304
        %v5327 = vsub.f32 %v5220, %v5305
        %v5328 = vsub.f32 %v5221, %v5305
        %v5329 = vsub.f32 %v5222, %v5306
        %v5330 = vsub.f32 %v5223, %v5306
        %v5331 = vsub.f32 %v5224, %v5307
        %v5332 = vsub.f32 %v5225, %v5307
        %v5333 = vsub.f32 %v5226, %v5308
        %v5334 = vsub.f32 %v5227, %v5308
        %v5335 = vsub.f32 %v5228, %v5309
        %v5336 = vsub.f32 %v5229, %v5309
        %v5337 = vsub.f32 %v5230, %v5310
        %v5338 = vsub.f32 %v5231, %v5310
        %v5339 = vsub.f32 %v5232, %v5311
        %v5340 = vsub.f32 %v5233, %v5311
        %v5341 = vsub.f32 %v5234, %v5312
        %v5342 = vsub.f32 %v5235, %v5312
        %v5343 = vsub.f32 %v5236, %v5313
        %v5344 = vsub.f32 %v5237, %v5313
        %v5345 = vsub.f32 %v5238, %v5314
        %v5346 = vsub.f32 %v5239, %v5314
        %v5347 = vmul.f32 %v5315, %v5315
        %v5348 = vmul.f32 %v5316, %v5316
        %v5349 = vmul.f32 %v5317, %v5317
        %v5350 = vmul.f32 %v5318, %v5318
        %v5351 = vmul.f32 %v5319, %v5319
        %v5352 = vmul.f32 %v5320, %v5320
        %v5353 = vmul.f32 %v5321, %v5321
        %v5354 = vmul.f32 %v5322, %v5322
        %v5355 = vmul.f32 %v5323, %v5323
        %v5356 = vmul.f32 %v5324, %v5324
        %v5357 = vmul.f32 %v5325, %v5325
        %v5358 = vmul.f32 %v5326, %v5326
        %v5359 = vmul.f32 %v5327, %v5327
        %v5360 = vmul.f32 %v5328, %v5328
        %v5361 = vmul.f32 %v5329, %v5329
        %v5362 = vmul.f32 %v5330, %v5330
        %v5363 = vmul.f32 %v5331, %v5331
        %v5364 = vmul.f32 %v5332, %v5332
        %v5365 = vmul.f32 %v5333, %v5333
        %v5366 = vmul.f32 %v5334, %v5334
        %v5367 = vmul.f32 %v5335, %v5335
        %v5368 = vmul.f32 %v5336, %v5336
        %v5369 = vmul.f32 %v5337, %v5337
        %v5370 = vmul.f32 %v5338, %v5338
        %v5371 = vmul.f32 %v5339, %v5339
        %v5372 = vmul.f32 %v5340, %v5340
        %v5373 = vmul.f32 %v5341, %v5341
        %v5374 = vmul.f32 %v5342, %v5342
        %v5375 = vmul.f32 %v5343, %v5343
        %v5376 = vmul.f32 %v5344, %v5344
        %v5377 = vmul.f32 %v5345, %v5345
        %v5378 = vmul.f32 %v5346, %v5346
        %v5379 = vadd.f32 %v5347, %v5348
        %5380 = vadd.xlane.f32.xlu0 %v5379
        %v5381 = vpop.xlane.xlu0 %5380
        %v5382 = vadd.f32 %v5349, %v5350
        %5383 = vadd.xlane.f32.xlu0 %v5382
        %v5384 = vpop.xlane.xlu0 %5383
        %v5385 = vadd.f32 %v5351, %v5352
        %5386 = vadd.xlane.f32.xlu0 %v5385
        %v5387 = vpop.xlane.xlu0 %5386
        %v5388 = vadd.f32 %v5353, %v5354
        %5389 = vadd.xlane.f32.xlu0 %v5388
        %v5390 = vpop.xlane.xlu0 %5389
        %v5391 = vadd.f32 %v5355, %v5356
        %5392 = vadd.xlane.f32.xlu0 %v5391
        %v5393 = vpop.xlane.xlu0 %5392
        %v5394 = vadd.f32 %v5357, %v5358
        %5395 = vadd.xlane.f32.xlu0 %v5394
        %v5396 = vpop.xlane.xlu0 %5395
        %v5397 = vadd.f32 %v5359, %v5360
        %5398 = vadd.xlane.f32.xlu0 %v5397
        %v5399 = vpop.xlane.xlu0 %5398
        %v5400 = vadd.f32 %v5361, %v5362
        %5401 = vadd.xlane.f32.xlu0 %v5400
        %v5402 = vpop.xlane.xlu0 %5401
        %v5403 = vadd.f32 %v5363, %v5364
        %5404 = vadd.xlane.f32.xlu0 %v5403
        %v5405 = vpop.xlane.xlu0 %5404
        %v5406 = vadd.f32 %v5365, %v5366
        %5407 = vadd.xlane.f32.xlu0 %v5406
        %v5408 = vpop.xlane.xlu0 %5407
        %v5409 = vadd.f32 %v5367, %v5368
        %5410 = vadd.xlane.f32.xlu0 %v5409
        %v5411 = vpop.xlane.xlu0 %5410
        %v5412 = vadd.f32 %v5369, %v5370
        %5413 = vadd.xlane.f32.xlu0 %v5412
        %v5414 = vpop.xlane.xlu0 %5413
        %v5415 = vadd.f32 %v5371, %v5372
        %5416 = vadd.xlane.f32.xlu0 %v5415
        %v5417 = vpop.xlane.xlu0 %5416
        %v5418 = vadd.f32 %v5373, %v5374
        %5419 = vadd.xlane.f32.xlu0 %v5418
        %v5420 = vpop.xlane.xlu0 %5419
        %v5421 = vadd.f32 %v5375, %v5376
        %5422 = vadd.xlane.f32.xlu0 %v5421
        %v5423 = vpop.xlane.xlu0 %5422
        %v5424 = vadd.f32 %v5377, %v5378
        %5425 = vadd.xlane.f32.xlu0 %v5424
        %v5426 = vpop.xlane.xlu0 %5425
        %v5427 = vmul.f32 %v5381, %v5298
        %v5428 = vmul.f32 %v5384, %v5298
        %v5429 = vmul.f32 %v5387, %v5298
        %v5430 = vmul.f32 %v5390, %v5298
        %v5431 = vmul.f32 %v5393, %v5298
        %v5432 = vmul.f32 %v5396, %v5298
        %v5433 = vmul.f32 %v5399, %v5298
        %v5434 = vmul.f32 %v5402, %v5298
        %v5435 = vmul.f32 %v5405, %v5298
        %v5436 = vmul.f32 %v5408, %v5298
        %v5437 = vmul.f32 %v5411, %v5298
        %v5438 = vmul.f32 %v5414, %v5298
        %v5439 = vmul.f32 %v5417, %v5298
        %v5440 = vmul.f32 %v5420, %v5298
        %v5441 = vmul.f32 %v5423, %v5298
        %v5442 = vmul.f32 %v5426, %v5298
        %v5443 = vadd.f32 %v5427, 1e-12
        %v5444 = vadd.f32 %v5428, 1e-12
        %v5445 = vadd.f32 %v5429, 1e-12
        %v5446 = vadd.f32 %v5430, 1e-12
        %v5447 = vadd.f32 %v5431, 1e-12
        %v5448 = vadd.f32 %v5432, 1e-12
        %v5449 = vadd.f32 %v5433, 1e-12
        %v5450 = vadd.f32 %v5434, 1e-12
        %v5451 = vadd.f32 %v5435, 1e-12
        %v5452 = vadd.f32 %v5436, 1e-12
        %v5453 = vadd.f32 %v5437, 1e-12
        %v5454 = vadd.f32 %v5438, 1e-12
        %v5455 = vadd.f32 %v5439, 1e-12
        %v5456 = vadd.f32 %v5440, 1e-12
        %v5457 = vadd.f32 %v5441, 1e-12
        %v5458 = vadd.f32 %v5442, 1e-12
        %v5459 = vrsqrt.pop %v5443
        %v5460 = vmul.f32 %v5459, %v5443
        %v5461 = vmul.f32 %v5460, %v5459
        %v5462 = vmul.f32 0.5, %v5461
        %v5463 = vsub.f32 1.5, %v5462
        %v5464 = vmul.f32 %v5459, %v5463
        %vm5465 = vweird.f32 %v5443
        %vm5466 = vweird.f32 %v5459
        %vm5467 = vmor %vm5465, %vm5466
        %v5468 = vsel %vm5467, %v5459, %v5464
        %v5469 = vrsqrt.pop %v5444
        %v5470 = vmul.f32 %v5469, %v5444
        %v5471 = vmul.f32 %v5470, %v5469
        %v5472 = vmul.f32 0.5, %v5471
        %v5473 = vsub.f32 1.5, %v5472
        %v5474 = vmul.f32 %v5469, %v5473
        %vm5475 = vweird.f32 %v5444
        %vm5476 = vweird.f32 %v5469
        %vm5477 = vmor %vm5475, %vm5476
        %v5478 = vsel %vm5477, %v5469, %v5474
        %v5479 = vrsqrt.pop %v5445
        %v5480 = vmul.f32 %v5479, %v5445
        %v5481 = vmul.f32 %v5480, %v5479
        %v5482 = vmul.f32 0.5, %v5481
        %v5483 = vsub.f32 1.5, %v5482
        %v5484 = vmul.f32 %v5479, %v5483
        %vm5485 = vweird.f32 %v5445
        %vm5486 = vweird.f32 %v5479
        %vm5487 = vmor %vm5485, %vm5486
        %v5488 = vsel %vm5487, %v5479, %v5484
        %v5489 = vrsqrt.pop %v5446
        %v5490 = vmul.f32 %v5489, %v5446
        %v5491 = vmul.f32 %v5490, %v5489
        %v5492 = vmul.f32 0.5, %v5491
        %v5493 = vsub.f32 1.5, %v5492
        %v5494 = vmul.f32 %v5489, %v5493
        %vm5495 = vweird.f32 %v5446
        %vm5496 = vweird.f32 %v5489
        %vm5497 = vmor %vm5495, %vm5496
        %v5498 = vsel %vm5497, %v5489, %v5494
        %v5499 = vrsqrt.pop %v5447
        %v5500 = vmul.f32 %v5499, %v5447
        %v5501 = vmul.f32 %v5500, %v5499
        %v5502 = vmul.f32 0.5, %v5501
        %v5503 = vsub.f32 1.5, %v5502
        %v5504 = vmul.f32 %v5499, %v5503
        %vm5505 = vweird.f32 %v5447
        %vm5506 = vweird.f32 %v5499
        %vm5507 = vmor %vm5505, %vm5506
        %v5508 = vsel %vm5507, %v5499, %v5504
        %v5509 = vrsqrt.pop %v5448
        %v5510 = vmul.f32 %v5509, %v5448
        %v5511 = vmul.f32 %v5510, %v5509
        %v5512 = vmul.f32 0.5, %v5511
        %v5513 = vsub.f32 1.5, %v5512
        %v5514 = vmul.f32 %v5509, %v5513
        %vm5515 = vweird.f32 %v5448
        %vm5516 = vweird.f32 %v5509
        %vm5517 = vmor %vm5515, %vm5516
        %v5518 = vsel %vm5517, %v5509, %v5514
        %v5519 = vrsqrt.pop %v5449
        %v5520 = vmul.f32 %v5519, %v5449
        %v5521 = vmul.f32 %v5520, %v5519
        %v5522 = vmul.f32 0.5, %v5521
        %v5523 = vsub.f32 1.5, %v5522
        %v5524 = vmul.f32 %v5519, %v5523
        %vm5525 = vweird.f32 %v5449
        %vm5526 = vweird.f32 %v5519
        %vm5527 = vmor %vm5525, %vm5526
        %v5528 = vsel %vm5527, %v5519, %v5524
        %v5529 = vrsqrt.pop %v5450
        %v5530 = vmul.f32 %v5529, %v5450
        %v5531 = vmul.f32 %v5530, %v5529
        %v5532 = vmul.f32 0.5, %v5531
        %v5533 = vsub.f32 1.5, %v5532
        %v5534 = vmul.f32 %v5529, %v5533
        %vm5535 = vweird.f32 %v5450
        %vm5536 = vweird.f32 %v5529
        %vm5537 = vmor %vm5535, %vm5536
        %v5538 = vsel %vm5537, %v5529, %v5534
        %v5539 = vrsqrt.pop %v5451
        %v5540 = vmul.f32 %v5539, %v5451
        %v5541 = vmul.f32 %v5540, %v5539
        %v5542 = vmul.f32 0.5, %v5541
        %v5543 = vsub.f32 1.5, %v5542
        %v5544 = vmul.f32 %v5539, %v5543
        %vm5545 = vweird.f32 %v5451
        %vm5546 = vweird.f32 %v5539
        %vm5547 = vmor %vm5545, %vm5546
        %v5548 = vsel %vm5547, %v5539, %v5544
        %v5549 = vrsqrt.pop %v5452
        %v5550 = vmul.f32 %v5549, %v5452
        %v5551 = vmul.f32 %v5550, %v5549
        %v5552 = vmul.f32 0.5, %v5551
        %v5553 = vsub.f32 1.5, %v5552
        %v5554 = vmul.f32 %v5549, %v5553
        %vm5555 = vweird.f32 %v5452
        %vm5556 = vweird.f32 %v5549
        %vm5557 = vmor %vm5555, %vm5556
        %v5558 = vsel %vm5557, %v5549, %v5554
        %v5559 = vrsqrt.pop %v5453
        %v5560 = vmul.f32 %v5559, %v5453
        %v5561 = vmul.f32 %v5560, %v5559
        %v5562 = vmul.f32 0.5, %v5561
        %v5563 = vsub.f32 1.5, %v5562
        %v5564 = vmul.f32 %v5559, %v5563
        %vm5565 = vweird.f32 %v5453
        %vm5566 = vweird.f32 %v5559
        %vm5567 = vmor %vm5565, %vm5566
        %v5568 = vsel %vm5567, %v5559, %v5564
        %v5569 = vrsqrt.pop %v5454
        %v5570 = vmul.f32 %v5569, %v5454
        %v5571 = vmul.f32 %v5570, %v5569
        %v5572 = vmul.f32 0.5, %v5571
        %v5573 = vsub.f32 1.5, %v5572
        %v5574 = vmul.f32 %v5569, %v5573
        %vm5575 = vweird.f32 %v5454
        %vm5576 = vweird.f32 %v5569
        %vm5577 = vmor %vm5575, %vm5576
        %v5578 = vsel %vm5577, %v5569, %v5574
        %v5579 = vrsqrt.pop %v5455
        %v5580 = vmul.f32 %v5579, %v5455
        %v5581 = vmul.f32 %v5580, %v5579
        %v5582 = vmul.f32 0.5, %v5581
        %v5583 = vsub.f32 1.5, %v5582
        %v5584 = vmul.f32 %v5579, %v5583
        %vm5585 = vweird.f32 %v5455
        %vm5586 = vweird.f32 %v5579
        %vm5587 = vmor %vm5585, %vm5586
        %v5588 = vsel %vm5587, %v5579, %v5584
        %v5589 = vrsqrt.pop %v5456
        %v5590 = vmul.f32 %v5589, %v5456
        %v5591 = vmul.f32 %v5590, %v5589
        %v5592 = vmul.f32 0.5, %v5591
        %v5593 = vsub.f32 1.5, %v5592
        %v5594 = vmul.f32 %v5589, %v5593
        %vm5595 = vweird.f32 %v5456
        %vm5596 = vweird.f32 %v5589
        %vm5597 = vmor %vm5595, %vm5596
        %v5598 = vsel %vm5597, %v5589, %v5594
        %v5599 = vrsqrt.pop %v5457
        %v5600 = vmul.f32 %v5599, %v5457
        %v5601 = vmul.f32 %v5600, %v5599
        %v5602 = vmul.f32 0.5, %v5601
        %v5603 = vsub.f32 1.5, %v5602
        %v5604 = vmul.f32 %v5599, %v5603
        %vm5605 = vweird.f32 %v5457
        %vm5606 = vweird.f32 %v5599
        %vm5607 = vmor %vm5605, %vm5606
        %v5608 = vsel %vm5607, %v5599, %v5604
        %v5609 = vrsqrt.pop %v5458
        %v5610 = vmul.f32 %v5609, %v5458
        %v5611 = vmul.f32 %v5610, %v5609
        %v5612 = vmul.f32 0.5, %v5611
        %v5613 = vsub.f32 1.5, %v5612
        %v5614 = vmul.f32 %v5609, %v5613
        %vm5615 = vweird.f32 %v5458
        %vm5616 = vweird.f32 %v5609
        %vm5617 = vmor %vm5615, %vm5616
        %v5618 = vsel %vm5617, %v5609, %v5614
        %v5619 = vmul.f32 %v5315, %v5468
        %v5620 = vmul.f32 %v5316, %v5468
        %v5621 = vmul.f32 %v5317, %v5478
        %v5622 = vmul.f32 %v5318, %v5478
        %v5623 = vmul.f32 %v5319, %v5488
        %v5624 = vmul.f32 %v5320, %v5488
        %v5625 = vmul.f32 %v5321, %v5498
        %v5626 = vmul.f32 %v5322, %v5498
        %v5627 = vmul.f32 %v5323, %v5508
        %v5628 = vmul.f32 %v5324, %v5508
        %v5629 = vmul.f32 %v5325, %v5518
        %v5630 = vmul.f32 %v5326, %v5518
        %v5631 = vmul.f32 %v5327, %v5528
        %v5632 = vmul.f32 %v5328, %v5528
        %v5633 = vmul.f32 %v5329, %v5538
        %v5634 = vmul.f32 %v5330, %v5538
        %v5635 = vmul.f32 %v5331, %v5548
        %v5636 = vmul.f32 %v5332, %v5548
        %v5637 = vmul.f32 %v5333, %v5558
        %v5638 = vmul.f32 %v5334, %v5558
        %v5639 = vmul.f32 %v5335, %v5568
        %v5640 = vmul.f32 %v5336, %v5568
        %v5641 = vmul.f32 %v5337, %v5578
        %v5642 = vmul.f32 %v5338, %v5578
        %v5643 = vmul.f32 %v5339, %v5588
        %v5644 = vmul.f32 %v5340, %v5588
        %v5645 = vmul.f32 %v5341, %v5598
        %v5646 = vmul.f32 %v5342, %v5598
        %v5647 = vmul.f32 %v5343, %v5608
        %v5648 = vmul.f32 %v5344, %v5608
        %v5649 = vmul.f32 %v5345, %v5618
        %v5650 = vmul.f32 %v5346, %v5618
        %v5652 = vperm.slane %v5241, 0
        %v5653 = vperm.slane %v5241, 1
        %v5656 = vmul.f32 %v5619, %v5652
        %v5657 = vmul.f32 %v5620, %v5653
        %v5658 = vmul.f32 %v5621, %v5652
        %v5659 = vmul.f32 %v5622, %v5653
        %v5660 = vmul.f32 %v5623, %v5652
        %v5661 = vmul.f32 %v5624, %v5653
        %v5662 = vmul.f32 %v5625, %v5652
        %v5663 = vmul.f32 %v5626, %v5653
        %v5664 = vmul.f32 %v5627, %v5652
        %v5665 = vmul.f32 %v5628, %v5653
        %v5666 = vmul.f32 %v5629, %v5652
        %v5667 = vmul.f32 %v5630, %v5653
        %v5668 = vmul.f32 %v5631, %v5652
        %v5669 = vmul.f32 %v5632, %v5653
        %v5670 = vmul.f32 %v5633, %v5652
        %v5671 = vmul.f32 %v5634, %v5653
        %v5672 = vmul.f32 %v5635, %v5652
        %v5673 = vmul.f32 %v5636, %v5653
        %v5674 = vmul.f32 %v5637, %v5652
        %v5675 = vmul.f32 %v5638, %v5653
        %v5676 = vmul.f32 %v5639, %v5652
        %v5677 = vmul.f32 %v5640, %v5653
        %v5678 = vmul.f32 %v5641, %v5652
        %v5679 = vmul.f32 %v5642, %v5653
        %v5680 = vmul.f32 %v5643, %v5652
        %v5681 = vmul.f32 %v5644, %v5653
        %v5682 = vmul.f32 %v5645, %v5652
        %v5683 = vmul.f32 %v5646, %v5653
        %v5684 = vmul.f32 %v5647, %v5652
        %v5685 = vmul.f32 %v5648, %v5653
        %v5686 = vmul.f32 %v5649, %v5652
        %v5687 = vmul.f32 %v5650, %v5653
        %v5689 = vperm.slane %v5243, 0
        %v5690 = vperm.slane %v5243, 1
        %v5693 = vadd.f32 %v5656, %v5689
        %v5694 = vadd.f32 %v5657, %v5690
        %v5695 = vadd.f32 %v5658, %v5689
        %v5696 = vadd.f32 %v5659, %v5690
        %v5697 = vadd.f32 %v5660, %v5689
        %v5698 = vadd.f32 %v5661, %v5690
        %v5699 = vadd.f32 %v5662, %v5689
        %v5700 = vadd.f32 %v5663, %v5690
        %v5701 = vadd.f32 %v5664, %v5689
        %v5702 = vadd.f32 %v5665, %v5690
        %v5703 = vadd.f32 %v5666, %v5689
        %v5704 = vadd.f32 %v5667, %v5690
        %v5705 = vadd.f32 %v5668, %v5689
        %v5706 = vadd.f32 %v5669, %v5690
        %v5707 = vadd.f32 %v5670, %v5689
        %v5708 = vadd.f32 %v5671, %v5690
        %v5709 = vadd.f32 %v5672, %v5689
        %v5710 = vadd.f32 %v5673, %v5690
        %v5711 = vadd.f32 %v5674, %v5689
        %v5712 = vadd.f32 %v5675, %v5690
        %v5713 = vadd.f32 %v5676, %v5689
        %v5714 = vadd.f32 %v5677, %v5690
        %v5715 = vadd.f32 %v5678, %v5689
        %v5716 = vadd.f32 %v5679, %v5690
        %v5717 = vadd.f32 %v5680, %v5689
        %v5718 = vadd.f32 %v5681, %v5690
        %v5719 = vadd.f32 %v5682, %v5689
        %v5720 = vadd.f32 %v5683, %v5690
        %v5721 = vadd.f32 %v5684, %v5689
        %v5722 = vadd.f32 %v5685, %v5690
        %v5723 = vadd.f32 %v5686, %v5689
        %v5724 = vadd.f32 %v5687, %v5690
        %v5725 = vpack.c.bf16 %v5695, %v5693
        %v5726 = vpack.c.bf16 %v5696, %v5694
        %v5727 = vpack.c.bf16 %v5699, %v5697
        %v5728 = vpack.c.bf16 %v5700, %v5698
        %v5729 = vpack.c.bf16 %v5703, %v5701
        %v5730 = vpack.c.bf16 %v5704, %v5702
        %v5731 = vpack.c.bf16 %v5707, %v5705
        %v5732 = vpack.c.bf16 %v5708, %v5706
        %v5733 = vpack.c.bf16 %v5711, %v5709
        %v5734 = vpack.c.bf16 %v5712, %v5710
        %v5735 = vpack.c.bf16 %v5715, %v5713
        %v5736 = vpack.c.bf16 %v5716, %v5714
        %v5737 = vpack.c.bf16 %v5719, %v5717
        %v5738 = vpack.c.bf16 %v5720, %v5718
        %v5739 = vpack.c.bf16 %v5723, %v5721
        %v5740 = vpack.c.bf16 %v5724, %v5722
        %s5741 = smul.u32 %s34, 256
        %s5742 = smul.addr %s5741, 4
        %s5743 = scalar_lea.vmem %s10, %s5742
        %v5744 = vld [vmem:[%s5743] sm:$0xff]
        %v5745 = vld [vmem:[%s5743 + $0x8] sm:$0xff]
        %v5746 = vld [vmem:[%s5743 + $0x10] sm:$0xff]
        %v5747 = vld [vmem:[%s5743 + $0x18] sm:$0xff]
        %v5748 = vld [vmem:[%s5743 + $0x20] sm:$0xff]
        %v5749 = vld [vmem:[%s5743 + $0x28] sm:$0xff]
        %v5750 = vld [vmem:[%s5743 + $0x30] sm:$0xff]
        %v5751 = vld [vmem:[%s5743 + $0x38] sm:$0xff]
        %v5752 = vld [vmem:[%s5743 + $0x40] sm:$0xff]
        %v5753 = vld [vmem:[%s5743 + $0x48] sm:$0xff]
        %v5754 = vld [vmem:[%s5743 + $0x50] sm:$0xff]
        %v5755 = vld [vmem:[%s5743 + $0x58] sm:$0xff]
        %v5756 = vld [vmem:[%s5743 + $0x60] sm:$0xff]
        %v5757 = vld [vmem:[%s5743 + $0x68] sm:$0xff]
        %v5758 = vld [vmem:[%s5743 + $0x70] sm:$0xff]
        %v5759 = vld [vmem:[%s5743 + $0x78] sm:$0xff]
        %v5760 = vld [vmem:[%s5743 + $0x80] sm:$0xff]
        %v5761 = vld [vmem:[%s5743 + $0x88] sm:$0xff]
        %v5762 = vld [vmem:[%s5743 + $0x90] sm:$0xff]
        %v5763 = vld [vmem:[%s5743 + $0x98] sm:$0xff]
        %v5764 = vld [vmem:[%s5743 + $0xa0] sm:$0xff]
        %v5765 = vld [vmem:[%s5743 + $0xa8] sm:$0xff]
        %v5766 = vld [vmem:[%s5743 + $0xb0] sm:$0xff]
        %v5767 = vld [vmem:[%s5743 + $0xb8] sm:$0xff]
        %v5768 = vld [vmem:[%s5743 + $0xc0] sm:$0xff]
        %v5769 = vld [vmem:[%s5743 + $0xc8] sm:$0xff]
        %v5770 = vld [vmem:[%s5743 + $0xd0] sm:$0xff]
        %v5771 = vld [vmem:[%s5743 + $0xd8] sm:$0xff]
        %v5772 = vld [vmem:[%s5743 + $0xe0] sm:$0xff]
        %v5773 = vld [vmem:[%s5743 + $0xe8] sm:$0xff]
        %v5774 = vld [vmem:[%s5743 + $0xf0] sm:$0xff]
        %v5775 = vld [vmem:[%s5743 + $0xf8] sm:$0xff]
        %v5776 = vld [vmem:[%s5743 + $0x100] sm:$0xff]
        %v5777 = vld [vmem:[%s5743 + $0x108] sm:$0xff]
        %v5778 = vld [vmem:[%s5743 + $0x110] sm:$0xff]
        %v5779 = vld [vmem:[%s5743 + $0x118] sm:$0xff]
        %v5780 = vld [vmem:[%s5743 + $0x120] sm:$0xff]
        %v5781 = vld [vmem:[%s5743 + $0x128] sm:$0xff]
        %v5782 = vld [vmem:[%s5743 + $0x130] sm:$0xff]
        %v5783 = vld [vmem:[%s5743 + $0x138] sm:$0xff]
        %v5784 = vld [vmem:[%s5743 + $0x140] sm:$0xff]
        %v5785 = vld [vmem:[%s5743 + $0x148] sm:$0xff]
        %v5786 = vld [vmem:[%s5743 + $0x150] sm:$0xff]
        %v5787 = vld [vmem:[%s5743 + $0x158] sm:$0xff]
        %v5788 = vld [vmem:[%s5743 + $0x160] sm:$0xff]
        %v5789 = vld [vmem:[%s5743 + $0x168] sm:$0xff]
        %v5790 = vld [vmem:[%s5743 + $0x170] sm:$0xff]
        %v5791 = vld [vmem:[%s5743 + $0x178] sm:$0xff]
        %v5792 = vld [vmem:[%s5743 + $0x180] sm:$0xff]
        %v5793 = vld [vmem:[%s5743 + $0x188] sm:$0xff]
        %v5794 = vld [vmem:[%s5743 + $0x190] sm:$0xff]
        %v5795 = vld [vmem:[%s5743 + $0x198] sm:$0xff]
        %v5796 = vld [vmem:[%s5743 + $0x1a0] sm:$0xff]
        %v5797 = vld [vmem:[%s5743 + $0x1a8] sm:$0xff]
        %v5798 = vld [vmem:[%s5743 + $0x1b0] sm:$0xff]
        %v5799 = vld [vmem:[%s5743 + $0x1b8] sm:$0xff]
        %v5800 = vld [vmem:[%s5743 + $0x1c0] sm:$0xff]
        %v5801 = vld [vmem:[%s5743 + $0x1c8] sm:$0xff]
        %v5802 = vld [vmem:[%s5743 + $0x1d0] sm:$0xff]
        %v5803 = vld [vmem:[%s5743 + $0x1d8] sm:$0xff]
        %v5804 = vld [vmem:[%s5743 + $0x1e0] sm:$0xff]
        %v5805 = vld [vmem:[%s5743 + $0x1e8] sm:$0xff]
        %v5806 = vld [vmem:[%s5743 + $0x1f0] sm:$0xff]
        %v5807 = vld [vmem:[%s5743 + $0x1f8] sm:$0xff]
        %v5808 = vld [vmem:[%s5743 + $0x200] sm:$0xff]
        %v5809 = vld [vmem:[%s5743 + $0x208] sm:$0xff]
        %v5810 = vld [vmem:[%s5743 + $0x210] sm:$0xff]
        %v5811 = vld [vmem:[%s5743 + $0x218] sm:$0xff]
        %v5812 = vld [vmem:[%s5743 + $0x220] sm:$0xff]
        %v5813 = vld [vmem:[%s5743 + $0x228] sm:$0xff]
        %v5814 = vld [vmem:[%s5743 + $0x230] sm:$0xff]
        %v5815 = vld [vmem:[%s5743 + $0x238] sm:$0xff]
        %v5816 = vld [vmem:[%s5743 + $0x240] sm:$0xff]
        %v5817 = vld [vmem:[%s5743 + $0x248] sm:$0xff]
        %v5818 = vld [vmem:[%s5743 + $0x250] sm:$0xff]
        %v5819 = vld [vmem:[%s5743 + $0x258] sm:$0xff]
        %v5820 = vld [vmem:[%s5743 + $0x260] sm:$0xff]
        %v5821 = vld [vmem:[%s5743 + $0x268] sm:$0xff]
        %v5822 = vld [vmem:[%s5743 + $0x270] sm:$0xff]
        %v5823 = vld [vmem:[%s5743 + $0x278] sm:$0xff]
        %v5824 = vld [vmem:[%s5743 + $0x280] sm:$0xff]
        %v5825 = vld [vmem:[%s5743 + $0x288] sm:$0xff]
        %v5826 = vld [vmem:[%s5743 + $0x290] sm:$0xff]
        %v5827 = vld [vmem:[%s5743 + $0x298] sm:$0xff]
        %v5828 = vld [vmem:[%s5743 + $0x2a0] sm:$0xff]
        %v5829 = vld [vmem:[%s5743 + $0x2a8] sm:$0xff]
        %v5830 = vld [vmem:[%s5743 + $0x2b0] sm:$0xff]
        %v5831 = vld [vmem:[%s5743 + $0x2b8] sm:$0xff]
        %v5832 = vld [vmem:[%s5743 + $0x2c0] sm:$0xff]
        %v5833 = vld [vmem:[%s5743 + $0x2c8] sm:$0xff]
        %v5834 = vld [vmem:[%s5743 + $0x2d0] sm:$0xff]
        %v5835 = vld [vmem:[%s5743 + $0x2d8] sm:$0xff]
        %v5836 = vld [vmem:[%s5743 + $0x2e0] sm:$0xff]
        %v5837 = vld [vmem:[%s5743 + $0x2e8] sm:$0xff]
        %v5838 = vld [vmem:[%s5743 + $0x2f0] sm:$0xff]
        %v5839 = vld [vmem:[%s5743 + $0x2f8] sm:$0xff]
        %v5840 = vld [vmem:[%s5743 + $0x300] sm:$0xff]
        %v5841 = vld [vmem:[%s5743 + $0x308] sm:$0xff]
        %v5842 = vld [vmem:[%s5743 + $0x310] sm:$0xff]
        %v5843 = vld [vmem:[%s5743 + $0x318] sm:$0xff]
        %v5844 = vld [vmem:[%s5743 + $0x320] sm:$0xff]
        %v5845 = vld [vmem:[%s5743 + $0x328] sm:$0xff]
        %v5846 = vld [vmem:[%s5743 + $0x330] sm:$0xff]
        %v5847 = vld [vmem:[%s5743 + $0x338] sm:$0xff]
        %v5848 = vld [vmem:[%s5743 + $0x340] sm:$0xff]
        %v5849 = vld [vmem:[%s5743 + $0x348] sm:$0xff]
        %v5850 = vld [vmem:[%s5743 + $0x350] sm:$0xff]
        %v5851 = vld [vmem:[%s5743 + $0x358] sm:$0xff]
        %v5852 = vld [vmem:[%s5743 + $0x360] sm:$0xff]
        %v5853 = vld [vmem:[%s5743 + $0x368] sm:$0xff]
        %v5854 = vld [vmem:[%s5743 + $0x370] sm:$0xff]
        %v5855 = vld [vmem:[%s5743 + $0x378] sm:$0xff]
        %v5856 = vld [vmem:[%s5743 + $0x380] sm:$0xff]
        %v5857 = vld [vmem:[%s5743 + $0x388] sm:$0xff]
        %v5858 = vld [vmem:[%s5743 + $0x390] sm:$0xff]
        %v5859 = vld [vmem:[%s5743 + $0x398] sm:$0xff]
        %v5860 = vld [vmem:[%s5743 + $0x3a0] sm:$0xff]
        %v5861 = vld [vmem:[%s5743 + $0x3a8] sm:$0xff]
        %v5862 = vld [vmem:[%s5743 + $0x3b0] sm:$0xff]
        %v5863 = vld [vmem:[%s5743 + $0x3b8] sm:$0xff]
        %v5864 = vld [vmem:[%s5743 + $0x3c0] sm:$0xff]
        %v5865 = vld [vmem:[%s5743 + $0x3c8] sm:$0xff]
        %v5866 = vld [vmem:[%s5743 + $0x3d0] sm:$0xff]
        %v5867 = vld [vmem:[%s5743 + $0x3d8] sm:$0xff]
        %v5868 = vld [vmem:[%s5743 + $0x3e0] sm:$0xff]
        %v5869 = vld [vmem:[%s5743 + $0x3e8] sm:$0xff]
        %v5870 = vld [vmem:[%s5743 + $0x3f0] sm:$0xff]
        %v5871 = vld [vmem:[%s5743 + $0x3f8] sm:$0xff]
        %s5872 = smul.u32 %s34, 8
        %s5873 = scalar_lea.vmem %s11, %s5872
        %v5874 = vld [vmem:[%s5873] sm:$0xff]
        %v5876 = vperm.slane %v5874, 0
        %v5877 = vperm.slane %v5874, 1
        %v5878 = vperm.slane %v5874, 2
        %v5879 = vperm.slane %v5874, 3
        %v5880 = vperm.slane %v5874, 4
        %v5881 = vperm.slane %v5874, 5
        %v5882 = vperm.slane %v5874, 6
        %v5883 = vperm.slane %v5874, 7
        %v6020 = vunpack.c.l.b16 %v5744
        %v6021 = vunpack.c.h.b16 %v5744
        %v6022 = vunpack.c.l.b16 %v5745
        %v6023 = vunpack.c.h.b16 %v5745
        %v6024 = vunpack.c.l.b16 %v5746
        %v6025 = vunpack.c.h.b16 %v5746
        %v6026 = vunpack.c.l.b16 %v5747
        %v6027 = vunpack.c.h.b16 %v5747
        %v6028 = vunpack.c.l.b16 %v5748
        %v6029 = vunpack.c.h.b16 %v5748
        %v6030 = vunpack.c.l.b16 %v5749
        %v6031 = vunpack.c.h.b16 %v5749
        %v6032 = vunpack.c.l.b16 %v5750
        %v6033 = vunpack.c.h.b16 %v5750
        %v6034 = vunpack.c.l.b16 %v5751
        %v6035 = vunpack.c.h.b16 %v5751
        %v6036 = vunpack.c.l.b16 %v5752
        %v6037 = vunpack.c.h.b16 %v5752
        %v6038 = vunpack.c.l.b16 %v5753
        %v6039 = vunpack.c.h.b16 %v5753
        %v6040 = vunpack.c.l.b16 %v5754
        %v6041 = vunpack.c.h.b16 %v5754
        %v6042 = vunpack.c.l.b16 %v5755
        %v6043 = vunpack.c.h.b16 %v5755
        %v6044 = vunpack.c.l.b16 %v5756
        %v6045 = vunpack.c.h.b16 %v5756
        %v6046 = vunpack.c.l.b16 %v5757
        %v6047 = vunpack.c.h.b16 %v5757
        %v6048 = vunpack.c.l.b16 %v5758
        %v6049 = vunpack.c.h.b16 %v5758
        %v6050 = vunpack.c.l.b16 %v5759
        %v6051 = vunpack.c.h.b16 %v5759
        %v6052 = vunpack.c.l.b16 %v5760
        %v6053 = vunpack.c.h.b16 %v5760
        %v6054 = vunpack.c.l.b16 %v5761
        %v6055 = vunpack.c.h.b16 %v5761
        %v6056 = vunpack.c.l.b16 %v5762
        %v6057 = vunpack.c.h.b16 %v5762
        %v6058 = vunpack.c.l.b16 %v5763
        %v6059 = vunpack.c.h.b16 %v5763
        %v6060 = vunpack.c.l.b16 %v5764
        %v6061 = vunpack.c.h.b16 %v5764
        %v6062 = vunpack.c.l.b16 %v5765
        %v6063 = vunpack.c.h.b16 %v5765
        %v6064 = vunpack.c.l.b16 %v5766
        %v6065 = vunpack.c.h.b16 %v5766
        %v6066 = vunpack.c.l.b16 %v5767
        %v6067 = vunpack.c.h.b16 %v5767
        %v6068 = vunpack.c.l.b16 %v5768
        %v6069 = vunpack.c.h.b16 %v5768
        %v6070 = vunpack.c.l.b16 %v5769
        %v6071 = vunpack.c.h.b16 %v5769
        %v6072 = vunpack.c.l.b16 %v5770
        %v6073 = vunpack.c.h.b16 %v5770
        %v6074 = vunpack.c.l.b16 %v5771
        %v6075 = vunpack.c.h.b16 %v5771
        %v6076 = vunpack.c.l.b16 %v5772
        %v6077 = vunpack.c.h.b16 %v5772
        %v6078 = vunpack.c.l.b16 %v5773
        %v6079 = vunpack.c.h.b16 %v5773
        %v6080 = vunpack.c.l.b16 %v5774
        %v6081 = vunpack.c.h.b16 %v5774
        %v6082 = vunpack.c.l.b16 %v5775
        %v6083 = vunpack.c.h.b16 %v5775
        %v6084 = vunpack.c.l.b16 %v5776
        %v6085 = vunpack.c.h.b16 %v5776
        %v6086 = vunpack.c.l.b16 %v5777
        %v6087 = vunpack.c.h.b16 %v5777
        %v6088 = vunpack.c.l.b16 %v5778
        %v6089 = vunpack.c.h.b16 %v5778
        %v6090 = vunpack.c.l.b16 %v5779
        %v6091 = vunpack.c.h.b16 %v5779
        %v6092 = vunpack.c.l.b16 %v5780
        %v6093 = vunpack.c.h.b16 %v5780
        %v6094 = vunpack.c.l.b16 %v5781
        %v6095 = vunpack.c.h.b16 %v5781
        %v6096 = vunpack.c.l.b16 %v5782
        %v6097 = vunpack.c.h.b16 %v5782
        %v6098 = vunpack.c.l.b16 %v5783
        %v6099 = vunpack.c.h.b16 %v5783
        %v6100 = vunpack.c.l.b16 %v5784
        %v6101 = vunpack.c.h.b16 %v5784
        %v6102 = vunpack.c.l.b16 %v5785
        %v6103 = vunpack.c.h.b16 %v5785
        %v6104 = vunpack.c.l.b16 %v5786
        %v6105 = vunpack.c.h.b16 %v5786
        %v6106 = vunpack.c.l.b16 %v5787
        %v6107 = vunpack.c.h.b16 %v5787
        %v6108 = vunpack.c.l.b16 %v5788
        %v6109 = vunpack.c.h.b16 %v5788
        %v6110 = vunpack.c.l.b16 %v5789
        %v6111 = vunpack.c.h.b16 %v5789
        %v6112 = vunpack.c.l.b16 %v5790
        %v6113 = vunpack.c.h.b16 %v5790
        %v6114 = vunpack.c.l.b16 %v5791
        %v6115 = vunpack.c.h.b16 %v5791
        %v6116 = vunpack.c.l.b16 %v5792
        %v6117 = vunpack.c.h.b16 %v5792
        %v6118 = vunpack.c.l.b16 %v5793
        %v6119 = vunpack.c.h.b16 %v5793
        %v6120 = vunpack.c.l.b16 %v5794
        %v6121 = vunpack.c.h.b16 %v5794
        %v6122 = vunpack.c.l.b16 %v5795
        %v6123 = vunpack.c.h.b16 %v5795
        %v6124 = vunpack.c.l.b16 %v5796
        %v6125 = vunpack.c.h.b16 %v5796
        %v6126 = vunpack.c.l.b16 %v5797
        %v6127 = vunpack.c.h.b16 %v5797
        %v6128 = vunpack.c.l.b16 %v5798
        %v6129 = vunpack.c.h.b16 %v5798
        %v6130 = vunpack.c.l.b16 %v5799
        %v6131 = vunpack.c.h.b16 %v5799
        %v6132 = vunpack.c.l.b16 %v5800
        %v6133 = vunpack.c.h.b16 %v5800
        %v6134 = vunpack.c.l.b16 %v5801
        %v6135 = vunpack.c.h.b16 %v5801
        %v6136 = vunpack.c.l.b16 %v5802
        %v6137 = vunpack.c.h.b16 %v5802
        %v6138 = vunpack.c.l.b16 %v5803
        %v6139 = vunpack.c.h.b16 %v5803
        %v6140 = vunpack.c.l.b16 %v5804
        %v6141 = vunpack.c.h.b16 %v5804
        %v6142 = vunpack.c.l.b16 %v5805
        %v6143 = vunpack.c.h.b16 %v5805
        %v6144 = vunpack.c.l.b16 %v5806
        %v6145 = vunpack.c.h.b16 %v5806
        %v6146 = vunpack.c.l.b16 %v5807
        %v6147 = vunpack.c.h.b16 %v5807
        %v6148 = vunpack.c.l.b16 %v5808
        %v6149 = vunpack.c.h.b16 %v5808
        %v6150 = vunpack.c.l.b16 %v5809
        %v6151 = vunpack.c.h.b16 %v5809
        %v6152 = vunpack.c.l.b16 %v5810
        %v6153 = vunpack.c.h.b16 %v5810
        %v6154 = vunpack.c.l.b16 %v5811
        %v6155 = vunpack.c.h.b16 %v5811
        %v6156 = vunpack.c.l.b16 %v5812
        %v6157 = vunpack.c.h.b16 %v5812
        %v6158 = vunpack.c.l.b16 %v5813
        %v6159 = vunpack.c.h.b16 %v5813
        %v6160 = vunpack.c.l.b16 %v5814
        %v6161 = vunpack.c.h.b16 %v5814
        %v6162 = vunpack.c.l.b16 %v5815
        %v6163 = vunpack.c.h.b16 %v5815
        %v6164 = vunpack.c.l.b16 %v5816
        %v6165 = vunpack.c.h.b16 %v5816
        %v6166 = vunpack.c.l.b16 %v5817
        %v6167 = vunpack.c.h.b16 %v5817
        %v6168 = vunpack.c.l.b16 %v5818
        %v6169 = vunpack.c.h.b16 %v5818
        %v6170 = vunpack.c.l.b16 %v5819
        %v6171 = vunpack.c.h.b16 %v5819
        %v6172 = vunpack.c.l.b16 %v5820
        %v6173 = vunpack.c.h.b16 %v5820
        %v6174 = vunpack.c.l.b16 %v5821
        %v6175 = vunpack.c.h.b16 %v5821
        %v6176 = vunpack.c.l.b16 %v5822
        %v6177 = vunpack.c.h.b16 %v5822
        %v6178 = vunpack.c.l.b16 %v5823
        %v6179 = vunpack.c.h.b16 %v5823
        %v6180 = vunpack.c.l.b16 %v5824
        %v6181 = vunpack.c.h.b16 %v5824
        %v6182 = vunpack.c.l.b16 %v5825
        %v6183 = vunpack.c.h.b16 %v5825
        %v6184 = vunpack.c.l.b16 %v5826
        %v6185 = vunpack.c.h.b16 %v5826
        %v6186 = vunpack.c.l.b16 %v5827
        %v6187 = vunpack.c.h.b16 %v5827
        %v6188 = vunpack.c.l.b16 %v5828
        %v6189 = vunpack.c.h.b16 %v5828
        %v6190 = vunpack.c.l.b16 %v5829
        %v6191 = vunpack.c.h.b16 %v5829
        %v6192 = vunpack.c.l.b16 %v5830
        %v6193 = vunpack.c.h.b16 %v5830
        %v6194 = vunpack.c.l.b16 %v5831
        %v6195 = vunpack.c.h.b16 %v5831
        %v6196 = vunpack.c.l.b16 %v5832
        %v6197 = vunpack.c.h.b16 %v5832
        %v6198 = vunpack.c.l.b16 %v5833
        %v6199 = vunpack.c.h.b16 %v5833
        %v6200 = vunpack.c.l.b16 %v5834
        %v6201 = vunpack.c.h.b16 %v5834
        %v6202 = vunpack.c.l.b16 %v5835
        %v6203 = vunpack.c.h.b16 %v5835
        %v6204 = vunpack.c.l.b16 %v5836
        %v6205 = vunpack.c.h.b16 %v5836
        %v6206 = vunpack.c.l.b16 %v5837
        %v6207 = vunpack.c.h.b16 %v5837
        %v6208 = vunpack.c.l.b16 %v5838
        %v6209 = vunpack.c.h.b16 %v5838
        %v6210 = vunpack.c.l.b16 %v5839
        %v6211 = vunpack.c.h.b16 %v5839
        %v6212 = vunpack.c.l.b16 %v5840
        %v6213 = vunpack.c.h.b16 %v5840
        %v6214 = vunpack.c.l.b16 %v5841
        %v6215 = vunpack.c.h.b16 %v5841
        %v6216 = vunpack.c.l.b16 %v5842
        %v6217 = vunpack.c.h.b16 %v5842
        %v6218 = vunpack.c.l.b16 %v5843
        %v6219 = vunpack.c.h.b16 %v5843
        %v6220 = vunpack.c.l.b16 %v5844
        %v6221 = vunpack.c.h.b16 %v5844
        %v6222 = vunpack.c.l.b16 %v5845
        %v6223 = vunpack.c.h.b16 %v5845
        %v6224 = vunpack.c.l.b16 %v5846
        %v6225 = vunpack.c.h.b16 %v5846
        %v6226 = vunpack.c.l.b16 %v5847
        %v6227 = vunpack.c.h.b16 %v5847
        %v6228 = vunpack.c.l.b16 %v5848
        %v6229 = vunpack.c.h.b16 %v5848
        %v6230 = vunpack.c.l.b16 %v5849
        %v6231 = vunpack.c.h.b16 %v5849
        %v6232 = vunpack.c.l.b16 %v5850
        %v6233 = vunpack.c.h.b16 %v5850
        %v6234 = vunpack.c.l.b16 %v5851
        %v6235 = vunpack.c.h.b16 %v5851
        %v6236 = vunpack.c.l.b16 %v5852
        %v6237 = vunpack.c.h.b16 %v5852
        %v6238 = vunpack.c.l.b16 %v5853
        %v6239 = vunpack.c.h.b16 %v5853
        %v6240 = vunpack.c.l.b16 %v5854
        %v6241 = vunpack.c.h.b16 %v5854
        %v6242 = vunpack.c.l.b16 %v5855
        %v6243 = vunpack.c.h.b16 %v5855
        %v6244 = vunpack.c.l.b16 %v5856
        %v6245 = vunpack.c.h.b16 %v5856
        %v6246 = vunpack.c.l.b16 %v5857
        %v6247 = vunpack.c.h.b16 %v5857
        %v6248 = vunpack.c.l.b16 %v5858
        %v6249 = vunpack.c.h.b16 %v5858
        %v6250 = vunpack.c.l.b16 %v5859
        %v6251 = vunpack.c.h.b16 %v5859
        %v6252 = vunpack.c.l.b16 %v5860
        %v6253 = vunpack.c.h.b16 %v5860
        %v6254 = vunpack.c.l.b16 %v5861
        %v6255 = vunpack.c.h.b16 %v5861
        %v6256 = vunpack.c.l.b16 %v5862
        %v6257 = vunpack.c.h.b16 %v5862
        %v6258 = vunpack.c.l.b16 %v5863
        %v6259 = vunpack.c.h.b16 %v5863
        %v6260 = vunpack.c.l.b16 %v5864
        %v6261 = vunpack.c.h.b16 %v5864
        %v6262 = vunpack.c.l.b16 %v5865
        %v6263 = vunpack.c.h.b16 %v5865
        %v6264 = vunpack.c.l.b16 %v5866
        %v6265 = vunpack.c.h.b16 %v5866
        %v6266 = vunpack.c.l.b16 %v5867
        %v6267 = vunpack.c.h.b16 %v5867
        %v6268 = vunpack.c.l.b16 %v5868
        %v6269 = vunpack.c.h.b16 %v5868
        %v6270 = vunpack.c.l.b16 %v5869
        %v6271 = vunpack.c.h.b16 %v5869
        %v6272 = vunpack.c.l.b16 %v5870
        %v6273 = vunpack.c.h.b16 %v5870
        %v6274 = vunpack.c.l.b16 %v5871
        %v6275 = vunpack.c.h.b16 %v5871
        %v6276 = vpack.c.b16 %v6028, %v6020
        %v6277 = vpack.c.b16 %v6029, %v6021
        %v6278 = vpack.c.b16 %v6030, %v6022
        %v6279 = vpack.c.b16 %v6031, %v6023
        %v6280 = vpack.c.b16 %v6032, %v6024
        %v6281 = vpack.c.b16 %v6033, %v6025
        %v6282 = vpack.c.b16 %v6034, %v6026
        %v6283 = vpack.c.b16 %v6035, %v6027
        %v6284 = vpack.c.b16 %v6044, %v6036
        %v6285 = vpack.c.b16 %v6045, %v6037
        %v6286 = vpack.c.b16 %v6046, %v6038
        %v6287 = vpack.c.b16 %v6047, %v6039
        %v6288 = vpack.c.b16 %v6048, %v6040
        %v6289 = vpack.c.b16 %v6049, %v6041
        %v6290 = vpack.c.b16 %v6050, %v6042
        %v6291 = vpack.c.b16 %v6051, %v6043
        %v6292 = vpack.c.b16 %v6060, %v6052
        %v6293 = vpack.c.b16 %v6061, %v6053
        %v6294 = vpack.c.b16 %v6062, %v6054
        %v6295 = vpack.c.b16 %v6063, %v6055
        %v6296 = vpack.c.b16 %v6064, %v6056
        %v6297 = vpack.c.b16 %v6065, %v6057
        %v6298 = vpack.c.b16 %v6066, %v6058
        %v6299 = vpack.c.b16 %v6067, %v6059
        %v6300 = vpack.c.b16 %v6076, %v6068
        %v6301 = vpack.c.b16 %v6077, %v6069
        %v6302 = vpack.c.b16 %v6078, %v6070
        %v6303 = vpack.c.b16 %v6079, %v6071
        %v6304 = vpack.c.b16 %v6080, %v6072
        %v6305 = vpack.c.b16 %v6081, %v6073
        %v6306 = vpack.c.b16 %v6082, %v6074
        %v6307 = vpack.c.b16 %v6083, %v6075
        %v6308 = vpack.c.b16 %v6092, %v6084
        %v6309 = vpack.c.b16 %v6093, %v6085
        %v6310 = vpack.c.b16 %v6094, %v6086
        %v6311 = vpack.c.b16 %v6095, %v6087
        %v6312 = vpack.c.b16 %v6096, %v6088
        %v6313 = vpack.c.b16 %v6097, %v6089
        %v6314 = vpack.c.b16 %v6098, %v6090
        %v6315 = vpack.c.b16 %v6099, %v6091
        %v6316 = vpack.c.b16 %v6108, %v6100
        %v6317 = vpack.c.b16 %v6109, %v6101
        %v6318 = vpack.c.b16 %v6110, %v6102
        %v6319 = vpack.c.b16 %v6111, %v6103
        %v6320 = vpack.c.b16 %v6112, %v6104
        %v6321 = vpack.c.b16 %v6113, %v6105
        %v6322 = vpack.c.b16 %v6114, %v6106
        %v6323 = vpack.c.b16 %v6115, %v6107
        %v6324 = vpack.c.b16 %v6124, %v6116
        %v6325 = vpack.c.b16 %v6125, %v6117
        %v6326 = vpack.c.b16 %v6126, %v6118
        %v6327 = vpack.c.b16 %v6127, %v6119
        %v6328 = vpack.c.b16 %v6128, %v6120
        %v6329 = vpack.c.b16 %v6129, %v6121
        %v6330 = vpack.c.b16 %v6130, %v6122
        %v6331 = vpack.c.b16 %v6131, %v6123
        %v6332 = vpack.c.b16 %v6140, %v6132
        %v6333 = vpack.c.b16 %v6141, %v6133
        %v6334 = vpack.c.b16 %v6142, %v6134
        %v6335 = vpack.c.b16 %v6143, %v6135
        %v6336 = vpack.c.b16 %v6144, %v6136
        %v6337 = vpack.c.b16 %v6145, %v6137
        %v6338 = vpack.c.b16 %v6146, %v6138
        %v6339 = vpack.c.b16 %v6147, %v6139
        %v6340 = vpack.c.b16 %v6156, %v6148
        %v6341 = vpack.c.b16 %v6157, %v6149
        %v6342 = vpack.c.b16 %v6158, %v6150
        %v6343 = vpack.c.b16 %v6159, %v6151
        %v6344 = vpack.c.b16 %v6160, %v6152
        %v6345 = vpack.c.b16 %v6161, %v6153
        %v6346 = vpack.c.b16 %v6162, %v6154
        %v6347 = vpack.c.b16 %v6163, %v6155
        %v6348 = vpack.c.b16 %v6172, %v6164
        %v6349 = vpack.c.b16 %v6173, %v6165
        %v6350 = vpack.c.b16 %v6174, %v6166
        %v6351 = vpack.c.b16 %v6175, %v6167
        %v6352 = vpack.c.b16 %v6176, %v6168
        %v6353 = vpack.c.b16 %v6177, %v6169
        %v6354 = vpack.c.b16 %v6178, %v6170
        %v6355 = vpack.c.b16 %v6179, %v6171
        %v6356 = vpack.c.b16 %v6188, %v6180
        %v6357 = vpack.c.b16 %v6189, %v6181
        %v6358 = vpack.c.b16 %v6190, %v6182
        %v6359 = vpack.c.b16 %v6191, %v6183
        %v6360 = vpack.c.b16 %v6192, %v6184
        %v6361 = vpack.c.b16 %v6193, %v6185
        %v6362 = vpack.c.b16 %v6194, %v6186
        %v6363 = vpack.c.b16 %v6195, %v6187
        %v6364 = vpack.c.b16 %v6204, %v6196
        %v6365 = vpack.c.b16 %v6205, %v6197
        %v6366 = vpack.c.b16 %v6206, %v6198
        %v6367 = vpack.c.b16 %v6207, %v6199
        %v6368 = vpack.c.b16 %v6208, %v6200
        %v6369 = vpack.c.b16 %v6209, %v6201
        %v6370 = vpack.c.b16 %v6210, %v6202
        %v6371 = vpack.c.b16 %v6211, %v6203
        %v6372 = vpack.c.b16 %v6220, %v6212
        %v6373 = vpack.c.b16 %v6221, %v6213
        %v6374 = vpack.c.b16 %v6222, %v6214
        %v6375 = vpack.c.b16 %v6223, %v6215
        %v6376 = vpack.c.b16 %v6224, %v6216
        %v6377 = vpack.c.b16 %v6225, %v6217
        %v6378 = vpack.c.b16 %v6226, %v6218
        %v6379 = vpack.c.b16 %v6227, %v6219
        %v6380 = vpack.c.b16 %v6236, %v6228
        %v6381 = vpack.c.b16 %v6237, %v6229
        %v6382 = vpack.c.b16 %v6238, %v6230
        %v6383 = vpack.c.b16 %v6239, %v6231
        %v6384 = vpack.c.b16 %v6240, %v6232
        %v6385 = vpack.c.b16 %v6241, %v6233
        %v6386 = vpack.c.b16 %v6242, %v6234
        %v6387 = vpack.c.b16 %v6243, %v6235
        %v6388 = vpack.c.b16 %v6252, %v6244
        %v6389 = vpack.c.b16 %v6253, %v6245
        %v6390 = vpack.c.b16 %v6254, %v6246
        %v6391 = vpack.c.b16 %v6255, %v6247
        %v6392 = vpack.c.b16 %v6256, %v6248
        %v6393 = vpack.c.b16 %v6257, %v6249
        %v6394 = vpack.c.b16 %v6258, %v6250
        %v6395 = vpack.c.b16 %v6259, %v6251
        %v6396 = vpack.c.b16 %v6268, %v6260
        %v6397 = vpack.c.b16 %v6269, %v6261
        %v6398 = vpack.c.b16 %v6270, %v6262
        %v6399 = vpack.c.b16 %v6271, %v6263
        %v6400 = vpack.c.b16 %v6272, %v6264
        %v6401 = vpack.c.b16 %v6273, %v6265
        %v6402 = vpack.c.b16 %v6274, %v6266
        %v6403 = vpack.c.b16 %v6275, %v6267
        %6532 = vmatpush.bf16.msra.mxu0 %v6332
        %6533 = vmatpush.bf16.msra.mxu0 %v6324
        %6534 = vmatpush.bf16.msra.mxu0 %v6316
        %6535 = vmatpush.bf16.msra.mxu0 %v6308
        %6536 = vmatpush.bf16.msra.mxu0 %v6300
        %6537 = vmatpush.bf16.msra.mxu0 %v6292
        %6538 = vmatpush.bf16.msra.mxu0 %v6284
        %6539 = vmatpush.bf16.msra.mxu0 %v6276
        %6540 = vmatmul.bf16.gmra.mxu0 %v5725
        %v6541 = vpop.f32.mrf.mxu0
        %v6542 = vadd.f32 %v5876, %v6541
        %v6543 = vpop.f32.mrf.mxu0
        %v6544 = vadd.f32 %v5876, %v6543
        %6545 = vmatmul.bf16.gmra.mxu0 %v5727
        %v6546 = vpop.f32.mrf.mxu0
        %v6547 = vadd.f32 %v5876, %v6546
        %v6548 = vpop.f32.mrf.mxu0
        %v6549 = vadd.f32 %v5876, %v6548
        %6550 = vmatmul.bf16.gmra.mxu0 %v5729
        %v6551 = vpop.f32.mrf.mxu0
        %v6552 = vadd.f32 %v5876, %v6551
        %v6553 = vpop.f32.mrf.mxu0
        %v6554 = vadd.f32 %v5876, %v6553
        %6555 = vmatmul.bf16.gmra.mxu0 %v5731
        %v6556 = vpop.f32.mrf.mxu0
        %v6557 = vadd.f32 %v5876, %v6556
        %v6558 = vpop.f32.mrf.mxu0
        %v6559 = vadd.f32 %v5876, %v6558
        %6560 = vmatmul.bf16.gmra.mxu0 %v5733
        %v6561 = vpop.f32.mrf.mxu0
        %v6562 = vadd.f32 %v5876, %v6561
        %v6563 = vpop.f32.mrf.mxu0
        %v6564 = vadd.f32 %v5876, %v6563
        %6565 = vmatmul.bf16.gmra.mxu0 %v5735
        %v6566 = vpop.f32.mrf.mxu0
        %v6567 = vadd.f32 %v5876, %v6566
        %v6568 = vpop.f32.mrf.mxu0
        %v6569 = vadd.f32 %v5876, %v6568
        %6570 = vmatmul.bf16.gmra.mxu0 %v5737
        %v6571 = vpop.f32.mrf.mxu0
        %v6572 = vadd.f32 %v5876, %v6571
        %v6573 = vpop.f32.mrf.mxu0
        %v6574 = vadd.f32 %v5876, %v6573
        %6575 = vmatmul.bf16.gmra.mxu0 %v5739
        %v6576 = vpop.f32.mrf.mxu0
        %v6577 = vadd.f32 %v5876, %v6576
        %v6578 = vpop.f32.mrf.mxu0
        %v6579 = vadd.f32 %v5876, %v6578
        %6580 = vdwg.mxu0
        %6581 = vmatpush.bf16.msra.mxu0 %v6396
        %6582 = vmatpush.bf16.msra.mxu0 %v6388
        %6583 = vmatpush.bf16.msra.mxu0 %v6380
        %6584 = vmatpush.bf16.msra.mxu0 %v6372
        %6585 = vmatpush.bf16.msra.mxu0 %v6364
        %6586 = vmatpush.bf16.msra.mxu0 %v6356
        %6587 = vmatpush.bf16.msra.mxu0 %v6348
        %6588 = vmatpush.bf16.msra.mxu0 %v6340
        %6589 = vmatmul.bf16.gmra.mxu0 %v5726
        %v6590 = vpop.f32.mrf.mxu0
        %v6591 = vadd.f32 %v6542, %v6590
        %v6592 = vpop.f32.mrf.mxu0
        %v6593 = vadd.f32 %v6544, %v6592
        %6594 = vmatmul.bf16.gmra.mxu0 %v5728
        %v6595 = vpop.f32.mrf.mxu0
        %v6596 = vadd.f32 %v6547, %v6595
        %v6597 = vpop.f32.mrf.mxu0
        %v6598 = vadd.f32 %v6549, %v6597
        %6599 = vmatmul.bf16.gmra.mxu0 %v5730
        %v6600 = vpop.f32.mrf.mxu0
        %v6601 = vadd.f32 %v6552, %v6600
        %v6602 = vpop.f32.mrf.mxu0
        %v6603 = vadd.f32 %v6554, %v6602
        %6604 = vmatmul.bf16.gmra.mxu0 %v5732
        %v6605 = vpop.f32.mrf.mxu0
        %v6606 = vadd.f32 %v6557, %v6605
        %v6607 = vpop.f32.mrf.mxu0
        %v6608 = vadd.f32 %v6559, %v6607
        %6609 = vmatmul.bf16.gmra.mxu0 %v5734
        %v6610 = vpop.f32.mrf.mxu0
        %v6611 = vadd.f32 %v6562, %v6610
        %v6612 = vpop.f32.mrf.mxu0
        %v6613 = vadd.f32 %v6564, %v6612
        %6614 = vmatmul.bf16.gmra.mxu0 %v5736
        %v6615 = vpop.f32.mrf.mxu0
        %v6616 = vadd.f32 %v6567, %v6615
        %v6617 = vpop.f32.mrf.mxu0
        %v6618 = vadd.f32 %v6569, %v6617
        %6619 = vmatmul.bf16.gmra.mxu0 %v5738
        %v6620 = vpop.f32.mrf.mxu0
        %v6621 = vadd.f32 %v6572, %v6620
        %v6622 = vpop.f32.mrf.mxu0
        %v6623 = vadd.f32 %v6574, %v6622
        %6624 = vmatmul.bf16.gmra.mxu0 %v5740
        %v6625 = vpop.f32.mrf.mxu0
        %v6626 = vadd.f32 %v6577, %v6625
        %v6627 = vpop.f32.mrf.mxu0
        %v6628 = vadd.f32 %v6579, %v6627
        %6629 = vdwg.mxu0
        %6630 = vmatpush.bf16.msra.mxu0 %v6333
        %6631 = vmatpush.bf16.msra.mxu0 %v6325
        %6632 = vmatpush.bf16.msra.mxu0 %v6317
        %6633 = vmatpush.bf16.msra.mxu0 %v6309
        %6634 = vmatpush.bf16.msra.mxu0 %v6301
        %6635 = vmatpush.bf16.msra.mxu0 %v6293
        %6636 = vmatpush.bf16.msra.mxu0 %v6285
        %6637 = vmatpush.bf16.msra.mxu0 %v6277
        %6638 = vmatmul.bf16.gmra.mxu0 %v5725
        %v6639 = vpop.f32.mrf.mxu0
        %v6640 = vadd.f32 %v5877, %v6639
        %v6641 = vpop.f32.mrf.mxu0
        %v6642 = vadd.f32 %v5877, %v6641
        %6643 = vmatmul.bf16.gmra.mxu0 %v5727
        %v6644 = vpop.f32.mrf.mxu0
        %v6645 = vadd.f32 %v5877, %v6644
        %v6646 = vpop.f32.mrf.mxu0
        %v6647 = vadd.f32 %v5877, %v6646
        %6648 = vmatmul.bf16.gmra.mxu0 %v5729
        %v6649 = vpop.f32.mrf.mxu0
        %v6650 = vadd.f32 %v5877, %v6649
        %v6651 = vpop.f32.mrf.mxu0
        %v6652 = vadd.f32 %v5877, %v6651
        %6653 = vmatmul.bf16.gmra.mxu0 %v5731
        %v6654 = vpop.f32.mrf.mxu0
        %v6655 = vadd.f32 %v5877, %v6654
        %v6656 = vpop.f32.mrf.mxu0
        %v6657 = vadd.f32 %v5877, %v6656
        %6658 = vmatmul.bf16.gmra.mxu0 %v5733
        %v6659 = vpop.f32.mrf.mxu0
        %v6660 = vadd.f32 %v5877, %v6659
        %v6661 = vpop.f32.mrf.mxu0
        %v6662 = vadd.f32 %v5877, %v6661
        %6663 = vmatmul.bf16.gmra.mxu0 %v5735
        %v6664 = vpop.f32.mrf.mxu0
        %v6665 = vadd.f32 %v5877, %v6664
        %v6666 = vpop.f32.mrf.mxu0
        %v6667 = vadd.f32 %v5877, %v6666
        %6668 = vmatmul.bf16.gmra.mxu0 %v5737
        %v6669 = vpop.f32.mrf.mxu0
        %v6670 = vadd.f32 %v5877, %v6669
        %v6671 = vpop.f32.mrf.mxu0
        %v6672 = vadd.f32 %v5877, %v6671
        %6673 = vmatmul.bf16.gmra.mxu0 %v5739
        %v6674 = vpop.f32.mrf.mxu0
        %v6675 = vadd.f32 %v5877, %v6674
        %v6676 = vpop.f32.mrf.mxu0
        %v6677 = vadd.f32 %v5877, %v6676
        %6678 = vdwg.mxu0
        %6679 = vmatpush.bf16.msra.mxu0 %v6397
        %6680 = vmatpush.bf16.msra.mxu0 %v6389
        %6681 = vmatpush.bf16.msra.mxu0 %v6381
        %6682 = vmatpush.bf16.msra.mxu0 %v6373
        %6683 = vmatpush.bf16.msra.mxu0 %v6365
        %6684 = vmatpush.bf16.msra.mxu0 %v6357
        %6685 = vmatpush.bf16.msra.mxu0 %v6349
        %6686 = vmatpush.bf16.msra.mxu0 %v6341
        %6687 = vmatmul.bf16.gmra.mxu0 %v5726
        %v6688 = vpop.f32.mrf.mxu0
        %v6689 = vadd.f32 %v6640, %v6688
        %v6690 = vpop.f32.mrf.mxu0
        %v6691 = vadd.f32 %v6642, %v6690
        %6692 = vmatmul.bf16.gmra.mxu0 %v5728
        %v6693 = vpop.f32.mrf.mxu0
        %v6694 = vadd.f32 %v6645, %v6693
        %v6695 = vpop.f32.mrf.mxu0
        %v6696 = vadd.f32 %v6647, %v6695
        %6697 = vmatmul.bf16.gmra.mxu0 %v5730
        %v6698 = vpop.f32.mrf.mxu0
        %v6699 = vadd.f32 %v6650, %v6698
        %v6700 = vpop.f32.mrf.mxu0
        %v6701 = vadd.f32 %v6652, %v6700
        %6702 = vmatmul.bf16.gmra.mxu0 %v5732
        %v6703 = vpop.f32.mrf.mxu0
        %v6704 = vadd.f32 %v6655, %v6703
        %v6705 = vpop.f32.mrf.mxu0
        %v6706 = vadd.f32 %v6657, %v6705
        %6707 = vmatmul.bf16.gmra.mxu0 %v5734
        %v6708 = vpop.f32.mrf.mxu0
        %v6709 = vadd.f32 %v6660, %v6708
        %v6710 = vpop.f32.mrf.mxu0
        %v6711 = vadd.f32 %v6662, %v6710
        %6712 = vmatmul.bf16.gmra.mxu0 %v5736
        %v6713 = vpop.f32.mrf.mxu0
        %v6714 = vadd.f32 %v6665, %v6713
        %v6715 = vpop.f32.mrf.mxu0
        %v6716 = vadd.f32 %v6667, %v6715
        %6717 = vmatmul.bf16.gmra.mxu0 %v5738
        %v6718 = vpop.f32.mrf.mxu0
        %v6719 = vadd.f32 %v6670, %v6718
        %v6720 = vpop.f32.mrf.mxu0
        %v6721 = vadd.f32 %v6672, %v6720
        %6722 = vmatmul.bf16.gmra.mxu0 %v5740
        %v6723 = vpop.f32.mrf.mxu0
        %v6724 = vadd.f32 %v6675, %v6723
        %v6725 = vpop.f32.mrf.mxu0
        %v6726 = vadd.f32 %v6677, %v6725
        %6727 = vdwg.mxu0
        %6728 = vmatpush.bf16.msra.mxu0 %v6334
        %6729 = vmatpush.bf16.msra.mxu0 %v6326
        %6730 = vmatpush.bf16.msra.mxu0 %v6318
        %6731 = vmatpush.bf16.msra.mxu0 %v6310
        %6732 = vmatpush.bf16.msra.mxu0 %v6302
        %6733 = vmatpush.bf16.msra.mxu0 %v6294
        %6734 = vmatpush.bf16.msra.mxu0 %v6286
        %6735 = vmatpush.bf16.msra.mxu0 %v6278
        %6736 = vmatmul.bf16.gmra.mxu0 %v5725
        %v6737 = vpop.f32.mrf.mxu0
        %v6738 = vadd.f32 %v5878, %v6737
        %v6739 = vpop.f32.mrf.mxu0
        %v6740 = vadd.f32 %v5878, %v6739
        %6741 = vmatmul.bf16.gmra.mxu0 %v5727
        %v6742 = vpop.f32.mrf.mxu0
        %v6743 = vadd.f32 %v5878, %v6742
        %v6744 = vpop.f32.mrf.mxu0
        %v6745 = vadd.f32 %v5878, %v6744
        %6746 = vmatmul.bf16.gmra.mxu0 %v5729
        %v6747 = vpop.f32.mrf.mxu0
        %v6748 = vadd.f32 %v5878, %v6747
        %v6749 = vpop.f32.mrf.mxu0
        %v6750 = vadd.f32 %v5878, %v6749
        %6751 = vmatmul.bf16.gmra.mxu0 %v5731
        %v6752 = vpop.f32.mrf.mxu0
        %v6753 = vadd.f32 %v5878, %v6752
        %v6754 = vpop.f32.mrf.mxu0
        %v6755 = vadd.f32 %v5878, %v6754
        %6756 = vmatmul.bf16.gmra.mxu0 %v5733
        %v6757 = vpop.f32.mrf.mxu0
        %v6758 = vadd.f32 %v5878, %v6757
        %v6759 = vpop.f32.mrf.mxu0
        %v6760 = vadd.f32 %v5878, %v6759
        %6761 = vmatmul.bf16.gmra.mxu0 %v5735
        %v6762 = vpop.f32.mrf.mxu0
        %v6763 = vadd.f32 %v5878, %v6762
        %v6764 = vpop.f32.mrf.mxu0
        %v6765 = vadd.f32 %v5878, %v6764
        %6766 = vmatmul.bf16.gmra.mxu0 %v5737
        %v6767 = vpop.f32.mrf.mxu0
        %v6768 = vadd.f32 %v5878, %v6767
        %v6769 = vpop.f32.mrf.mxu0
        %v6770 = vadd.f32 %v5878, %v6769
        %6771 = vmatmul.bf16.gmra.mxu0 %v5739
        %v6772 = vpop.f32.mrf.mxu0
        %v6773 = vadd.f32 %v5878, %v6772
        %v6774 = vpop.f32.mrf.mxu0
        %v6775 = vadd.f32 %v5878, %v6774
        %6776 = vdwg.mxu0
        %6777 = vmatpush.bf16.msra.mxu0 %v6398
        %6778 = vmatpush.bf16.msra.mxu0 %v6390
        %6779 = vmatpush.bf16.msra.mxu0 %v6382
        %6780 = vmatpush.bf16.msra.mxu0 %v6374
        %6781 = vmatpush.bf16.msra.mxu0 %v6366
        %6782 = vmatpush.bf16.msra.mxu0 %v6358
        %6783 = vmatpush.bf16.msra.mxu0 %v6350
        %6784 = vmatpush.bf16.msra.mxu0 %v6342
        %6785 = vmatmul.bf16.gmra.mxu0 %v5726
        %v6786 = vpop.f32.mrf.mxu0
        %v6787 = vadd.f32 %v6738, %v6786
        %v6788 = vpop.f32.mrf.mxu0
        %v6789 = vadd.f32 %v6740, %v6788
        %6790 = vmatmul.bf16.gmra.mxu0 %v5728
        %v6791 = vpop.f32.mrf.mxu0
        %v6792 = vadd.f32 %v6743, %v6791
        %v6793 = vpop.f32.mrf.mxu0
        %v6794 = vadd.f32 %v6745, %v6793
        %6795 = vmatmul.bf16.gmra.mxu0 %v5730
        %v6796 = vpop.f32.mrf.mxu0
        %v6797 = vadd.f32 %v6748, %v6796
        %v6798 = vpop.f32.mrf.mxu0
        %v6799 = vadd.f32 %v6750, %v6798
        %6800 = vmatmul.bf16.gmra.mxu0 %v5732
        %v6801 = vpop.f32.mrf.mxu0
        %v6802 = vadd.f32 %v6753, %v6801
        %v6803 = vpop.f32.mrf.mxu0
        %v6804 = vadd.f32 %v6755, %v6803
        %6805 = vmatmul.bf16.gmra.mxu0 %v5734
        %v6806 = vpop.f32.mrf.mxu0
        %v6807 = vadd.f32 %v6758, %v6806
        %v6808 = vpop.f32.mrf.mxu0
        %v6809 = vadd.f32 %v6760, %v6808
        %6810 = vmatmul.bf16.gmra.mxu0 %v5736
        %v6811 = vpop.f32.mrf.mxu0
        %v6812 = vadd.f32 %v6763, %v6811
        %v6813 = vpop.f32.mrf.mxu0
        %v6814 = vadd.f32 %v6765, %v6813
        %6815 = vmatmul.bf16.gmra.mxu0 %v5738
        %v6816 = vpop.f32.mrf.mxu0
        %v6817 = vadd.f32 %v6768, %v6816
        %v6818 = vpop.f32.mrf.mxu0
        %v6819 = vadd.f32 %v6770, %v6818
        %6820 = vmatmul.bf16.gmra.mxu0 %v5740
        %v6821 = vpop.f32.mrf.mxu0
        %v6822 = vadd.f32 %v6773, %v6821
        %v6823 = vpop.f32.mrf.mxu0
        %v6824 = vadd.f32 %v6775, %v6823
        %6825 = vdwg.mxu0
        %6826 = vmatpush.bf16.msra.mxu0 %v6335
        %6827 = vmatpush.bf16.msra.mxu0 %v6327
        %6828 = vmatpush.bf16.msra.mxu0 %v6319
        %6829 = vmatpush.bf16.msra.mxu0 %v6311
        %6830 = vmatpush.bf16.msra.mxu0 %v6303
        %6831 = vmatpush.bf16.msra.mxu0 %v6295
        %6832 = vmatpush.bf16.msra.mxu0 %v6287
        %6833 = vmatpush.bf16.msra.mxu0 %v6279
        %6834 = vmatmul.bf16.gmra.mxu0 %v5725
        %v6835 = vpop.f32.mrf.mxu0
        %v6836 = vadd.f32 %v5879, %v6835
        %v6837 = vpop.f32.mrf.mxu0
        %v6838 = vadd.f32 %v5879, %v6837
        %6839 = vmatmul.bf16.gmra.mxu0 %v5727
        %v6840 = vpop.f32.mrf.mxu0
        %v6841 = vadd.f32 %v5879, %v6840
        %v6842 = vpop.f32.mrf.mxu0
        %v6843 = vadd.f32 %v5879, %v6842
        %6844 = vmatmul.bf16.gmra.mxu0 %v5729
        %v6845 = vpop.f32.mrf.mxu0
        %v6846 = vadd.f32 %v5879, %v6845
        %v6847 = vpop.f32.mrf.mxu0
        %v6848 = vadd.f32 %v5879, %v6847
        %6849 = vmatmul.bf16.gmra.mxu0 %v5731
        %v6850 = vpop.f32.mrf.mxu0
        %v6851 = vadd.f32 %v5879, %v6850
        %v6852 = vpop.f32.mrf.mxu0
        %v6853 = vadd.f32 %v5879, %v6852
        %6854 = vmatmul.bf16.gmra.mxu0 %v5733
        %v6855 = vpop.f32.mrf.mxu0
        %v6856 = vadd.f32 %v5879, %v6855
        %v6857 = vpop.f32.mrf.mxu0
        %v6858 = vadd.f32 %v5879, %v6857
        %6859 = vmatmul.bf16.gmra.mxu0 %v5735
        %v6860 = vpop.f32.mrf.mxu0
        %v6861 = vadd.f32 %v5879, %v6860
        %v6862 = vpop.f32.mrf.mxu0
        %v6863 = vadd.f32 %v5879, %v6862
        %6864 = vmatmul.bf16.gmra.mxu0 %v5737
        %v6865 = vpop.f32.mrf.mxu0
        %v6866 = vadd.f32 %v5879, %v6865
        %v6867 = vpop.f32.mrf.mxu0
        %v6868 = vadd.f32 %v5879, %v6867
        %6869 = vmatmul.bf16.gmra.mxu0 %v5739
        %v6870 = vpop.f32.mrf.mxu0
        %v6871 = vadd.f32 %v5879, %v6870
        %v6872 = vpop.f32.mrf.mxu0
        %v6873 = vadd.f32 %v5879, %v6872
        %6874 = vdwg.mxu0
        %6875 = vmatpush.bf16.msra.mxu0 %v6399
        %6876 = vmatpush.bf16.msra.mxu0 %v6391
        %6877 = vmatpush.bf16.msra.mxu0 %v6383
        %6878 = vmatpush.bf16.msra.mxu0 %v6375
        %6879 = vmatpush.bf16.msra.mxu0 %v6367
        %6880 = vmatpush.bf16.msra.mxu0 %v6359
        %6881 = vmatpush.bf16.msra.mxu0 %v6351
        %6882 = vmatpush.bf16.msra.mxu0 %v6343
        %6883 = vmatmul.bf16.gmra.mxu0 %v5726
        %v6884 = vpop.f32.mrf.mxu0
        %v6885 = vadd.f32 %v6836, %v6884
        %v6886 = vpop.f32.mrf.mxu0
        %v6887 = vadd.f32 %v6838, %v6886
        %6888 = vmatmul.bf16.gmra.mxu0 %v5728
        %v6889 = vpop.f32.mrf.mxu0
        %v6890 = vadd.f32 %v6841, %v6889
        %v6891 = vpop.f32.mrf.mxu0
        %v6892 = vadd.f32 %v6843, %v6891
        %6893 = vmatmul.bf16.gmra.mxu0 %v5730
        %v6894 = vpop.f32.mrf.mxu0
        %v6895 = vadd.f32 %v6846, %v6894
        %v6896 = vpop.f32.mrf.mxu0
        %v6897 = vadd.f32 %v6848, %v6896
        %6898 = vmatmul.bf16.gmra.mxu0 %v5732
        %v6899 = vpop.f32.mrf.mxu0
        %v6900 = vadd.f32 %v6851, %v6899
        %v6901 = vpop.f32.mrf.mxu0
        %v6902 = vadd.f32 %v6853, %v6901
        %6903 = vmatmul.bf16.gmra.mxu0 %v5734
        %v6904 = vpop.f32.mrf.mxu0
        %v6905 = vadd.f32 %v6856, %v6904
        %v6906 = vpop.f32.mrf.mxu0
        %v6907 = vadd.f32 %v6858, %v6906
        %6908 = vmatmul.bf16.gmra.mxu0 %v5736
        %v6909 = vpop.f32.mrf.mxu0
        %v6910 = vadd.f32 %v6861, %v6909
        %v6911 = vpop.f32.mrf.mxu0
        %v6912 = vadd.f32 %v6863, %v6911
        %6913 = vmatmul.bf16.gmra.mxu0 %v5738
        %v6914 = vpop.f32.mrf.mxu0
        %v6915 = vadd.f32 %v6866, %v6914
        %v6916 = vpop.f32.mrf.mxu0
        %v6917 = vadd.f32 %v6868, %v6916
        %6918 = vmatmul.bf16.gmra.mxu0 %v5740
        %v6919 = vpop.f32.mrf.mxu0
        %v6920 = vadd.f32 %v6871, %v6919
        %v6921 = vpop.f32.mrf.mxu0
        %v6922 = vadd.f32 %v6873, %v6921
        %6923 = vdwg.mxu0
        %6924 = vmatpush.bf16.msra.mxu0 %v6336
        %6925 = vmatpush.bf16.msra.mxu0 %v6328
        %6926 = vmatpush.bf16.msra.mxu0 %v6320
        %6927 = vmatpush.bf16.msra.mxu0 %v6312
        %6928 = vmatpush.bf16.msra.mxu0 %v6304
        %6929 = vmatpush.bf16.msra.mxu0 %v6296
        %6930 = vmatpush.bf16.msra.mxu0 %v6288
        %6931 = vmatpush.bf16.msra.mxu0 %v6280
        %6932 = vmatmul.bf16.gmra.mxu0 %v5725
        %v6933 = vpop.f32.mrf.mxu0
        %v6934 = vadd.f32 %v5880, %v6933
        %v6935 = vpop.f32.mrf.mxu0
        %v6936 = vadd.f32 %v5880, %v6935
        %6937 = vmatmul.bf16.gmra.mxu0 %v5727
        %v6938 = vpop.f32.mrf.mxu0
        %v6939 = vadd.f32 %v5880, %v6938
        %v6940 = vpop.f32.mrf.mxu0
        %v6941 = vadd.f32 %v5880, %v6940
        %6942 = vmatmul.bf16.gmra.mxu0 %v5729
        %v6943 = vpop.f32.mrf.mxu0
        %v6944 = vadd.f32 %v5880, %v6943
        %v6945 = vpop.f32.mrf.mxu0
        %v6946 = vadd.f32 %v5880, %v6945
        %6947 = vmatmul.bf16.gmra.mxu0 %v5731
        %v6948 = vpop.f32.mrf.mxu0
        %v6949 = vadd.f32 %v5880, %v6948
        %v6950 = vpop.f32.mrf.mxu0
        %v6951 = vadd.f32 %v5880, %v6950
        %6952 = vmatmul.bf16.gmra.mxu0 %v5733
        %v6953 = vpop.f32.mrf.mxu0
        %v6954 = vadd.f32 %v5880, %v6953
        %v6955 = vpop.f32.mrf.mxu0
        %v6956 = vadd.f32 %v5880, %v6955
        %6957 = vmatmul.bf16.gmra.mxu0 %v5735
        %v6958 = vpop.f32.mrf.mxu0
        %v6959 = vadd.f32 %v5880, %v6958
        %v6960 = vpop.f32.mrf.mxu0
        %v6961 = vadd.f32 %v5880, %v6960
        %6962 = vmatmul.bf16.gmra.mxu0 %v5737
        %v6963 = vpop.f32.mrf.mxu0
        %v6964 = vadd.f32 %v5880, %v6963
        %v6965 = vpop.f32.mrf.mxu0
        %v6966 = vadd.f32 %v5880, %v6965
        %6967 = vmatmul.bf16.gmra.mxu0 %v5739
        %v6968 = vpop.f32.mrf.mxu0
        %v6969 = vadd.f32 %v5880, %v6968
        %v6970 = vpop.f32.mrf.mxu0
        %v6971 = vadd.f32 %v5880, %v6970
        %6972 = vdwg.mxu0
        %6973 = vmatpush.bf16.msra.mxu0 %v6400
        %6974 = vmatpush.bf16.msra.mxu0 %v6392
        %6975 = vmatpush.bf16.msra.mxu0 %v6384
        %6976 = vmatpush.bf16.msra.mxu0 %v6376
        %6977 = vmatpush.bf16.msra.mxu0 %v6368
        %6978 = vmatpush.bf16.msra.mxu0 %v6360
        %6979 = vmatpush.bf16.msra.mxu0 %v6352
        %6980 = vmatpush.bf16.msra.mxu0 %v6344
        %6981 = vmatmul.bf16.gmra.mxu0 %v5726
        %v6982 = vpop.f32.mrf.mxu0
        %v6983 = vadd.f32 %v6934, %v6982
        %v6984 = vpop.f32.mrf.mxu0
        %v6985 = vadd.f32 %v6936, %v6984
        %6986 = vmatmul.bf16.gmra.mxu0 %v5728
        %v6987 = vpop.f32.mrf.mxu0
        %v6988 = vadd.f32 %v6939, %v6987
        %v6989 = vpop.f32.mrf.mxu0
        %v6990 = vadd.f32 %v6941, %v6989
        %6991 = vmatmul.bf16.gmra.mxu0 %v5730
        %v6992 = vpop.f32.mrf.mxu0
        %v6993 = vadd.f32 %v6944, %v6992
        %v6994 = vpop.f32.mrf.mxu0
        %v6995 = vadd.f32 %v6946, %v6994
        %6996 = vmatmul.bf16.gmra.mxu0 %v5732
        %v6997 = vpop.f32.mrf.mxu0
        %v6998 = vadd.f32 %v6949, %v6997
        %v6999 = vpop.f32.mrf.mxu0
        %v7000 = vadd.f32 %v6951, %v6999
        %7001 = vmatmul.bf16.gmra.mxu0 %v5734
        %v7002 = vpop.f32.mrf.mxu0
        %v7003 = vadd.f32 %v6954, %v7002
        %v7004 = vpop.f32.mrf.mxu0
        %v7005 = vadd.f32 %v6956, %v7004
        %7006 = vmatmul.bf16.gmra.mxu0 %v5736
        %v7007 = vpop.f32.mrf.mxu0
        %v7008 = vadd.f32 %v6959, %v7007
        %v7009 = vpop.f32.mrf.mxu0
        %v7010 = vadd.f32 %v6961, %v7009
        %7011 = vmatmul.bf16.gmra.mxu0 %v5738
        %v7012 = vpop.f32.mrf.mxu0
        %v7013 = vadd.f32 %v6964, %v7012
        %v7014 = vpop.f32.mrf.mxu0
        %v7015 = vadd.f32 %v6966, %v7014
        %7016 = vmatmul.bf16.gmra.mxu0 %v5740
        %v7017 = vpop.f32.mrf.mxu0
        %v7018 = vadd.f32 %v6969, %v7017
        %v7019 = vpop.f32.mrf.mxu0
        %v7020 = vadd.f32 %v6971, %v7019
        %7021 = vdwg.mxu0
        %7022 = vmatpush.bf16.msra.mxu0 %v6337
        %7023 = vmatpush.bf16.msra.mxu0 %v6329
        %7024 = vmatpush.bf16.msra.mxu0 %v6321
        %7025 = vmatpush.bf16.msra.mxu0 %v6313
        %7026 = vmatpush.bf16.msra.mxu0 %v6305
        %7027 = vmatpush.bf16.msra.mxu0 %v6297
        %7028 = vmatpush.bf16.msra.mxu0 %v6289
        %7029 = vmatpush.bf16.msra.mxu0 %v6281
        %7030 = vmatmul.bf16.gmra.mxu0 %v5725
        %v7031 = vpop.f32.mrf.mxu0
        %v7032 = vadd.f32 %v5881, %v7031
        %v7033 = vpop.f32.mrf.mxu0
        %v7034 = vadd.f32 %v5881, %v7033
        %7035 = vmatmul.bf16.gmra.mxu0 %v5727
        %v7036 = vpop.f32.mrf.mxu0
        %v7037 = vadd.f32 %v5881, %v7036
        %v7038 = vpop.f32.mrf.mxu0
        %v7039 = vadd.f32 %v5881, %v7038
        %7040 = vmatmul.bf16.gmra.mxu0 %v5729
        %v7041 = vpop.f32.mrf.mxu0
        %v7042 = vadd.f32 %v5881, %v7041
        %v7043 = vpop.f32.mrf.mxu0
        %v7044 = vadd.f32 %v5881, %v7043
        %7045 = vmatmul.bf16.gmra.mxu0 %v5731
        %v7046 = vpop.f32.mrf.mxu0
        %v7047 = vadd.f32 %v5881, %v7046
        %v7048 = vpop.f32.mrf.mxu0
        %v7049 = vadd.f32 %v5881, %v7048
        %7050 = vmatmul.bf16.gmra.mxu0 %v5733
        %v7051 = vpop.f32.mrf.mxu0
        %v7052 = vadd.f32 %v5881, %v7051
        %v7053 = vpop.f32.mrf.mxu0
        %v7054 = vadd.f32 %v5881, %v7053
        %7055 = vmatmul.bf16.gmra.mxu0 %v5735
        %v7056 = vpop.f32.mrf.mxu0
        %v7057 = vadd.f32 %v5881, %v7056
        %v7058 = vpop.f32.mrf.mxu0
        %v7059 = vadd.f32 %v5881, %v7058
        %7060 = vmatmul.bf16.gmra.mxu0 %v5737
        %v7061 = vpop.f32.mrf.mxu0
        %v7062 = vadd.f32 %v5881, %v7061
        %v7063 = vpop.f32.mrf.mxu0
        %v7064 = vadd.f32 %v5881, %v7063
        %7065 = vmatmul.bf16.gmra.mxu0 %v5739
        %v7066 = vpop.f32.mrf.mxu0
        %v7067 = vadd.f32 %v5881, %v7066
        %v7068 = vpop.f32.mrf.mxu0
        %v7069 = vadd.f32 %v5881, %v7068
        %7070 = vdwg.mxu0
        %7071 = vmatpush.bf16.msra.mxu0 %v6401
        %7072 = vmatpush.bf16.msra.mxu0 %v6393
        %7073 = vmatpush.bf16.msra.mxu0 %v6385
        %7074 = vmatpush.bf16.msra.mxu0 %v6377
        %7075 = vmatpush.bf16.msra.mxu0 %v6369
        %7076 = vmatpush.bf16.msra.mxu0 %v6361
        %7077 = vmatpush.bf16.msra.mxu0 %v6353
        %7078 = vmatpush.bf16.msra.mxu0 %v6345
        %7079 = vmatmul.bf16.gmra.mxu0 %v5726
        %v7080 = vpop.f32.mrf.mxu0
        %v7081 = vadd.f32 %v7032, %v7080
        %v7082 = vpop.f32.mrf.mxu0
        %v7083 = vadd.f32 %v7034, %v7082
        %7084 = vmatmul.bf16.gmra.mxu0 %v5728
        %v7085 = vpop.f32.mrf.mxu0
        %v7086 = vadd.f32 %v7037, %v7085
        %v7087 = vpop.f32.mrf.mxu0
        %v7088 = vadd.f32 %v7039, %v7087
        %7089 = vmatmul.bf16.gmra.mxu0 %v5730
        %v7090 = vpop.f32.mrf.mxu0
        %v7091 = vadd.f32 %v7042, %v7090
        %v7092 = vpop.f32.mrf.mxu0
        %v7093 = vadd.f32 %v7044, %v7092
        %7094 = vmatmul.bf16.gmra.mxu0 %v5732
        %v7095 = vpop.f32.mrf.mxu0
        %v7096 = vadd.f32 %v7047, %v7095
        %v7097 = vpop.f32.mrf.mxu0
        %v7098 = vadd.f32 %v7049, %v7097
        %7099 = vmatmul.bf16.gmra.mxu0 %v5734
        %v7100 = vpop.f32.mrf.mxu0
        %v7101 = vadd.f32 %v7052, %v7100
        %v7102 = vpop.f32.mrf.mxu0
        %v7103 = vadd.f32 %v7054, %v7102
        %7104 = vmatmul.bf16.gmra.mxu0 %v5736
        %v7105 = vpop.f32.mrf.mxu0
        %v7106 = vadd.f32 %v7057, %v7105
        %v7107 = vpop.f32.mrf.mxu0
        %v7108 = vadd.f32 %v7059, %v7107
        %7109 = vmatmul.bf16.gmra.mxu0 %v5738
        %v7110 = vpop.f32.mrf.mxu0
        %v7111 = vadd.f32 %v7062, %v7110
        %v7112 = vpop.f32.mrf.mxu0
        %v7113 = vadd.f32 %v7064, %v7112
        %7114 = vmatmul.bf16.gmra.mxu0 %v5740
        %v7115 = vpop.f32.mrf.mxu0
        %v7116 = vadd.f32 %v7067, %v7115
        %v7117 = vpop.f32.mrf.mxu0
        %v7118 = vadd.f32 %v7069, %v7117
        %7119 = vdwg.mxu0
        %7120 = vmatpush.bf16.msra.mxu0 %v6338
        %7121 = vmatpush.bf16.msra.mxu0 %v6330
        %7122 = vmatpush.bf16.msra.mxu0 %v6322
        %7123 = vmatpush.bf16.msra.mxu0 %v6314
        %7124 = vmatpush.bf16.msra.mxu0 %v6306
        %7125 = vmatpush.bf16.msra.mxu0 %v6298
        %7126 = vmatpush.bf16.msra.mxu0 %v6290
        %7127 = vmatpush.bf16.msra.mxu0 %v6282
        %7128 = vmatmul.bf16.gmra.mxu0 %v5725
        %v7129 = vpop.f32.mrf.mxu0
        %v7130 = vadd.f32 %v5882, %v7129
        %v7131 = vpop.f32.mrf.mxu0
        %v7132 = vadd.f32 %v5882, %v7131
        %7133 = vmatmul.bf16.gmra.mxu0 %v5727
        %v7134 = vpop.f32.mrf.mxu0
        %v7135 = vadd.f32 %v5882, %v7134
        %v7136 = vpop.f32.mrf.mxu0
        %v7137 = vadd.f32 %v5882, %v7136
        %7138 = vmatmul.bf16.gmra.mxu0 %v5729
        %v7139 = vpop.f32.mrf.mxu0
        %v7140 = vadd.f32 %v5882, %v7139
        %v7141 = vpop.f32.mrf.mxu0
        %v7142 = vadd.f32 %v5882, %v7141
        %7143 = vmatmul.bf16.gmra.mxu0 %v5731
        %v7144 = vpop.f32.mrf.mxu0
        %v7145 = vadd.f32 %v5882, %v7144
        %v7146 = vpop.f32.mrf.mxu0
        %v7147 = vadd.f32 %v5882, %v7146
        %7148 = vmatmul.bf16.gmra.mxu0 %v5733
        %v7149 = vpop.f32.mrf.mxu0
        %v7150 = vadd.f32 %v5882, %v7149
        %v7151 = vpop.f32.mrf.mxu0
        %v7152 = vadd.f32 %v5882, %v7151
        %7153 = vmatmul.bf16.gmra.mxu0 %v5735
        %v7154 = vpop.f32.mrf.mxu0
        %v7155 = vadd.f32 %v5882, %v7154
        %v7156 = vpop.f32.mrf.mxu0
        %v7157 = vadd.f32 %v5882, %v7156
        %7158 = vmatmul.bf16.gmra.mxu0 %v5737
        %v7159 = vpop.f32.mrf.mxu0
        %v7160 = vadd.f32 %v5882, %v7159
        %v7161 = vpop.f32.mrf.mxu0
        %v7162 = vadd.f32 %v5882, %v7161
        %7163 = vmatmul.bf16.gmra.mxu0 %v5739
        %v7164 = vpop.f32.mrf.mxu0
        %v7165 = vadd.f32 %v5882, %v7164
        %v7166 = vpop.f32.mrf.mxu0
        %v7167 = vadd.f32 %v5882, %v7166
        %7168 = vdwg.mxu0
        %7169 = vmatpush.bf16.msra.mxu0 %v6402
        %7170 = vmatpush.bf16.msra.mxu0 %v6394
        %7171 = vmatpush.bf16.msra.mxu0 %v6386
        %7172 = vmatpush.bf16.msra.mxu0 %v6378
        %7173 = vmatpush.bf16.msra.mxu0 %v6370
        %7174 = vmatpush.bf16.msra.mxu0 %v6362
        %7175 = vmatpush.bf16.msra.mxu0 %v6354
        %7176 = vmatpush.bf16.msra.mxu0 %v6346
        %7177 = vmatmul.bf16.gmra.mxu0 %v5726
        %v7178 = vpop.f32.mrf.mxu0
        %v7179 = vadd.f32 %v7130, %v7178
        %v7180 = vpop.f32.mrf.mxu0
        %v7181 = vadd.f32 %v7132, %v7180
        %7182 = vmatmul.bf16.gmra.mxu0 %v5728
        %v7183 = vpop.f32.mrf.mxu0
        %v7184 = vadd.f32 %v7135, %v7183
        %v7185 = vpop.f32.mrf.mxu0
        %v7186 = vadd.f32 %v7137, %v7185
        %7187 = vmatmul.bf16.gmra.mxu0 %v5730
        %v7188 = vpop.f32.mrf.mxu0
        %v7189 = vadd.f32 %v7140, %v7188
        %v7190 = vpop.f32.mrf.mxu0
        %v7191 = vadd.f32 %v7142, %v7190
        %7192 = vmatmul.bf16.gmra.mxu0 %v5732
        %v7193 = vpop.f32.mrf.mxu0
        %v7194 = vadd.f32 %v7145, %v7193
        %v7195 = vpop.f32.mrf.mxu0
        %v7196 = vadd.f32 %v7147, %v7195
        %7197 = vmatmul.bf16.gmra.mxu0 %v5734
        %v7198 = vpop.f32.mrf.mxu0
        %v7199 = vadd.f32 %v7150, %v7198
        %v7200 = vpop.f32.mrf.mxu0
        %v7201 = vadd.f32 %v7152, %v7200
        %7202 = vmatmul.bf16.gmra.mxu0 %v5736
        %v7203 = vpop.f32.mrf.mxu0
        %v7204 = vadd.f32 %v7155, %v7203
        %v7205 = vpop.f32.mrf.mxu0
        %v7206 = vadd.f32 %v7157, %v7205
        %7207 = vmatmul.bf16.gmra.mxu0 %v5738
        %v7208 = vpop.f32.mrf.mxu0
        %v7209 = vadd.f32 %v7160, %v7208
        %v7210 = vpop.f32.mrf.mxu0
        %v7211 = vadd.f32 %v7162, %v7210
        %7212 = vmatmul.bf16.gmra.mxu0 %v5740
        %v7213 = vpop.f32.mrf.mxu0
        %v7214 = vadd.f32 %v7165, %v7213
        %v7215 = vpop.f32.mrf.mxu0
        %v7216 = vadd.f32 %v7167, %v7215
        %7217 = vdwg.mxu0
        %7218 = vmatpush.bf16.msra.mxu0 %v6339
        %7219 = vmatpush.bf16.msra.mxu0 %v6331
        %7220 = vmatpush.bf16.msra.mxu0 %v6323
        %7221 = vmatpush.bf16.msra.mxu0 %v6315
        %7222 = vmatpush.bf16.msra.mxu0 %v6307
        %7223 = vmatpush.bf16.msra.mxu0 %v6299
        %7224 = vmatpush.bf16.msra.mxu0 %v6291
        %7225 = vmatpush.bf16.msra.mxu0 %v6283
        %7226 = vmatmul.bf16.gmra.mxu0 %v5725
        %v7227 = vpop.f32.mrf.mxu0
        %v7228 = vadd.f32 %v5883, %v7227
        %v7229 = vpop.f32.mrf.mxu0
        %v7230 = vadd.f32 %v5883, %v7229
        %7231 = vmatmul.bf16.gmra.mxu0 %v5727
        %v7232 = vpop.f32.mrf.mxu0
        %v7233 = vadd.f32 %v5883, %v7232
        %v7234 = vpop.f32.mrf.mxu0
        %v7235 = vadd.f32 %v5883, %v7234
        %7236 = vmatmul.bf16.gmra.mxu0 %v5729
        %v7237 = vpop.f32.mrf.mxu0
        %v7238 = vadd.f32 %v5883, %v7237
        %v7239 = vpop.f32.mrf.mxu0
        %v7240 = vadd.f32 %v5883, %v7239
        %7241 = vmatmul.bf16.gmra.mxu0 %v5731
        %v7242 = vpop.f32.mrf.mxu0
        %v7243 = vadd.f32 %v5883, %v7242
        %v7244 = vpop.f32.mrf.mxu0
        %v7245 = vadd.f32 %v5883, %v7244
        %7246 = vmatmul.bf16.gmra.mxu0 %v5733
        %v7247 = vpop.f32.mrf.mxu0
        %v7248 = vadd.f32 %v5883, %v7247
        %v7249 = vpop.f32.mrf.mxu0
        %v7250 = vadd.f32 %v5883, %v7249
        %7251 = vmatmul.bf16.gmra.mxu0 %v5735
        %v7252 = vpop.f32.mrf.mxu0
        %v7253 = vadd.f32 %v5883, %v7252
        %v7254 = vpop.f32.mrf.mxu0
        %v7255 = vadd.f32 %v5883, %v7254
        %7256 = vmatmul.bf16.gmra.mxu0 %v5737
        %v7257 = vpop.f32.mrf.mxu0
        %v7258 = vadd.f32 %v5883, %v7257
        %v7259 = vpop.f32.mrf.mxu0
        %v7260 = vadd.f32 %v5883, %v7259
        %7261 = vmatmul.bf16.gmra.mxu0 %v5739
        %v7262 = vpop.f32.mrf.mxu0
        %v7263 = vadd.f32 %v5883, %v7262
        %v7264 = vpop.f32.mrf.mxu0
        %v7265 = vadd.f32 %v5883, %v7264
        %7266 = vdwg.mxu0
        %7267 = vmatpush.bf16.msra.mxu0 %v6403
        %7268 = vmatpush.bf16.msra.mxu0 %v6395
        %7269 = vmatpush.bf16.msra.mxu0 %v6387
        %7270 = vmatpush.bf16.msra.mxu0 %v6379
        %7271 = vmatpush.bf16.msra.mxu0 %v6371
        %7272 = vmatpush.bf16.msra.mxu0 %v6363
        %7273 = vmatpush.bf16.msra.mxu0 %v6355
        %7274 = vmatpush.bf16.msra.mxu0 %v6347
        %7275 = vmatmul.bf16.gmra.mxu0 %v5726
        %v7276 = vpop.f32.mrf.mxu0
        %v7277 = vadd.f32 %v7228, %v7276
        %v7278 = vpop.f32.mrf.mxu0
        %v7279 = vadd.f32 %v7230, %v7278
        %7280 = vmatmul.bf16.gmra.mxu0 %v5728
        %v7281 = vpop.f32.mrf.mxu0
        %v7282 = vadd.f32 %v7233, %v7281
        %v7283 = vpop.f32.mrf.mxu0
        %v7284 = vadd.f32 %v7235, %v7283
        %7285 = vmatmul.bf16.gmra.mxu0 %v5730
        %v7286 = vpop.f32.mrf.mxu0
        %v7287 = vadd.f32 %v7238, %v7286
        %v7288 = vpop.f32.mrf.mxu0
        %v7289 = vadd.f32 %v7240, %v7288
        %7290 = vmatmul.bf16.gmra.mxu0 %v5732
        %v7291 = vpop.f32.mrf.mxu0
        %v7292 = vadd.f32 %v7243, %v7291
        %v7293 = vpop.f32.mrf.mxu0
        %v7294 = vadd.f32 %v7245, %v7293
        %7295 = vmatmul.bf16.gmra.mxu0 %v5734
        %v7296 = vpop.f32.mrf.mxu0
        %v7297 = vadd.f32 %v7248, %v7296
        %v7298 = vpop.f32.mrf.mxu0
        %v7299 = vadd.f32 %v7250, %v7298
        %7300 = vmatmul.bf16.gmra.mxu0 %v5736
        %v7301 = vpop.f32.mrf.mxu0
        %v7302 = vadd.f32 %v7253, %v7301
        %v7303 = vpop.f32.mrf.mxu0
        %v7304 = vadd.f32 %v7255, %v7303
        %7305 = vmatmul.bf16.gmra.mxu0 %v5738
        %v7306 = vpop.f32.mrf.mxu0
        %v7307 = vadd.f32 %v7258, %v7306
        %v7308 = vpop.f32.mrf.mxu0
        %v7309 = vadd.f32 %v7260, %v7308
        %7310 = vmatmul.bf16.gmra.mxu0 %v5740
        %v7311 = vpop.f32.mrf.mxu0
        %v7312 = vadd.f32 %v7263, %v7311
        %v7313 = vpop.f32.mrf.mxu0
        %v7314 = vadd.f32 %v7265, %v7313
        %7315 = vdwg.mxu0
        %v7316 = vmul.f32 %v6591, 0.5
        %v7317 = vmul.f32 %v6689, 0.5
        %v7318 = vmul.f32 %v6787, 0.5
        %v7319 = vmul.f32 %v6885, 0.5
        %v7320 = vmul.f32 %v6983, 0.5
        %v7321 = vmul.f32 %v7081, 0.5
        %v7322 = vmul.f32 %v7179, 0.5
        %v7323 = vmul.f32 %v7277, 0.5
        %v7324 = vmul.f32 %v6593, 0.5
        %v7325 = vmul.f32 %v6691, 0.5
        %v7326 = vmul.f32 %v6789, 0.5
        %v7327 = vmul.f32 %v6887, 0.5
        %v7328 = vmul.f32 %v6985, 0.5
        %v7329 = vmul.f32 %v7083, 0.5
        %v7330 = vmul.f32 %v7181, 0.5
        %v7331 = vmul.f32 %v7279, 0.5
        %v7332 = vmul.f32 %v6596, 0.5
        %v7333 = vmul.f32 %v6694, 0.5
        %v7334 = vmul.f32 %v6792, 0.5
        %v7335 = vmul.f32 %v6890, 0.5
        %v7336 = vmul.f32 %v6988, 0.5
        %v7337 = vmul.f32 %v7086, 0.5
        %v7338 = vmul.f32 %v7184, 0.5
        %v7339 = vmul.f32 %v7282, 0.5
        %v7340 = vmul.f32 %v6598, 0.5
        %v7341 = vmul.f32 %v6696, 0.5
        %v7342 = vmul.f32 %v6794, 0.5
        %v7343 = vmul.f32 %v6892, 0.5
        %v7344 = vmul.f32 %v6990, 0.5
        %v7345 = vmul.f32 %v7088, 0.5
        %v7346 = vmul.f32 %v7186, 0.5
        %v7347 = vmul.f32 %v7284, 0.5
        %v7348 = vmul.f32 %v6601, 0.5
        %v7349 = vmul.f32 %v6699, 0.5
        %v7350 = vmul.f32 %v6797, 0.5
        %v7351 = vmul.f32 %v6895, 0.5
        %v7352 = vmul.f32 %v6993, 0.5
        %v7353 = vmul.f32 %v7091, 0.5
        %v7354 = vmul.f32 %v7189, 0.5
        %v7355 = vmul.f32 %v7287, 0.5
        %v7356 = vmul.f32 %v6603, 0.5
        %v7357 = vmul.f32 %v6701, 0.5
        %v7358 = vmul.f32 %v6799, 0.5
        %v7359 = vmul.f32 %v6897, 0.5
        %v7360 = vmul.f32 %v6995, 0.5
        %v7361 = vmul.f32 %v7093, 0.5
        %v7362 = vmul.f32 %v7191, 0.5
        %v7363 = vmul.f32 %v7289, 0.5
        %v7364 = vmul.f32 %v6606, 0.5
        %v7365 = vmul.f32 %v6704, 0.5
        %v7366 = vmul.f32 %v6802, 0.5
        %v7367 = vmul.f32 %v6900, 0.5
        %v7368 = vmul.f32 %v6998, 0.5
        %v7369 = vmul.f32 %v7096, 0.5
        %v7370 = vmul.f32 %v7194, 0.5
        %v7371 = vmul.f32 %v7292, 0.5
        %v7372 = vmul.f32 %v6608, 0.5
        %v7373 = vmul.f32 %v6706, 0.5
        %v7374 = vmul.f32 %v6804, 0.5
        %v7375 = vmul.f32 %v6902, 0.5
        %v7376 = vmul.f32 %v7000, 0.5
        %v7377 = vmul.f32 %v7098, 0.5
        %v7378 = vmul.f32 %v7196, 0.5
        %v7379 = vmul.f32 %v7294, 0.5
        %v7380 = vmul.f32 %v6611, 0.5
        %v7381 = vmul.f32 %v6709, 0.5
        %v7382 = vmul.f32 %v6807, 0.5
        %v7383 = vmul.f32 %v6905, 0.5
        %v7384 = vmul.f32 %v7003, 0.5
        %v7385 = vmul.f32 %v7101, 0.5
        %v7386 = vmul.f32 %v7199, 0.5
        %v7387 = vmul.f32 %v7297, 0.5
        %v7388 = vmul.f32 %v6613, 0.5
        %v7389 = vmul.f32 %v6711, 0.5
        %v7390 = vmul.f32 %v6809, 0.5
        %v7391 = vmul.f32 %v6907, 0.5
        %v7392 = vmul.f32 %v7005, 0.5
        %v7393 = vmul.f32 %v7103, 0.5
        %v7394 = vmul.f32 %v7201, 0.5
        %v7395 = vmul.f32 %v7299, 0.5
        %v7396 = vmul.f32 %v6616, 0.5
        %v7397 = vmul.f32 %v6714, 0.5
        %v7398 = vmul.f32 %v6812, 0.5
        %v7399 = vmul.f32 %v6910, 0.5
        %v7400 = vmul.f32 %v7008, 0.5
        %v7401 = vmul.f32 %v7106, 0.5
        %v7402 = vmul.f32 %v7204, 0.5
        %v7403 = vmul.f32 %v7302, 0.5
        %v7404 = vmul.f32 %v6618, 0.5
        %v7405 = vmul.f32 %v6716, 0.5
        %v7406 = vmul.f32 %v6814, 0.5
        %v7407 = vmul.f32 %v6912, 0.5
        %v7408 = vmul.f32 %v7010, 0.5
        %v7409 = vmul.f32 %v7108, 0.5
        %v7410 = vmul.f32 %v7206, 0.5
        %v7411 = vmul.f32 %v7304, 0.5
        %v7412 = vmul.f32 %v6621, 0.5
        %v7413 = vmul.f32 %v6719, 0.5
        %v7414 = vmul.f32 %v6817, 0.5
        %v7415 = vmul.f32 %v6915, 0.5
        %v7416 = vmul.f32 %v7013, 0.5
        %v7417 = vmul.f32 %v7111, 0.5
        %v7418 = vmul.f32 %v7209, 0.5
        %v7419 = vmul.f32 %v7307, 0.5
        %v7420 = vmul.f32 %v6623, 0.5
        %v7421 = vmul.f32 %v6721, 0.5
        %v7422 = vmul.f32 %v6819, 0.5
        %v7423 = vmul.f32 %v6917, 0.5
        %v7424 = vmul.f32 %v7015, 0.5
        %v7425 = vmul.f32 %v7113, 0.5
        %v7426 = vmul.f32 %v7211, 0.5
        %v7427 = vmul.f32 %v7309, 0.5
        %v7428 = vmul.f32 %v6626, 0.5
        %v7429 = vmul.f32 %v6724, 0.5
        %v7430 = vmul.f32 %v6822, 0.5
        %v7431 = vmul.f32 %v6920, 0.5
        %v7432 = vmul.f32 %v7018, 0.5
        %v7433 = vmul.f32 %v7116, 0.5
        %v7434 = vmul.f32 %v7214, 0.5
        %v7435 = vmul.f32 %v7312, 0.5
        %v7436 = vmul.f32 %v6628, 0.5
        %v7437 = vmul.f32 %v6726, 0.5
        %v7438 = vmul.f32 %v6824, 0.5
        %v7439 = vmul.f32 %v6922, 0.5
        %v7440 = vmul.f32 %v7020, 0.5
        %v7441 = vmul.f32 %v7118, 0.5
        %v7442 = vmul.f32 %v7216, 0.5
        %v7443 = vmul.f32 %v7314, 0.5
        %v7444 = vmul.f32 %v6591, 0.044715
        %v7445 = vmul.f32 %v6689, 0.044715
        %v7446 = vmul.f32 %v6787, 0.044715
        %v7447 = vmul.f32 %v6885, 0.044715
        %v7448 = vmul.f32 %v6983, 0.044715
        %v7449 = vmul.f32 %v7081, 0.044715
        %v7450 = vmul.f32 %v7179, 0.044715
        %v7451 = vmul.f32 %v7277, 0.044715
        %v7452 = vmul.f32 %v6593, 0.044715
        %v7453 = vmul.f32 %v6691, 0.044715
        %v7454 = vmul.f32 %v6789, 0.044715
        %v7455 = vmul.f32 %v6887, 0.044715
        %v7456 = vmul.f32 %v6985, 0.044715
        %v7457 = vmul.f32 %v7083, 0.044715
        %v7458 = vmul.f32 %v7181, 0.044715
        %v7459 = vmul.f32 %v7279, 0.044715
        %v7460 = vmul.f32 %v6596, 0.044715
        %v7461 = vmul.f32 %v6694, 0.044715
        %v7462 = vmul.f32 %v6792, 0.044715
        %v7463 = vmul.f32 %v6890, 0.044715
        %v7464 = vmul.f32 %v6988, 0.044715
        %v7465 = vmul.f32 %v7086, 0.044715
        %v7466 = vmul.f32 %v7184, 0.044715
        %v7467 = vmul.f32 %v7282, 0.044715
        %v7468 = vmul.f32 %v6598, 0.044715
        %v7469 = vmul.f32 %v6696, 0.044715
        %v7470 = vmul.f32 %v6794, 0.044715
        %v7471 = vmul.f32 %v6892, 0.044715
        %v7472 = vmul.f32 %v6990, 0.044715
        %v7473 = vmul.f32 %v7088, 0.044715
        %v7474 = vmul.f32 %v7186, 0.044715
        %v7475 = vmul.f32 %v7284, 0.044715
        %v7476 = vmul.f32 %v6601, 0.044715
        %v7477 = vmul.f32 %v6699, 0.044715
        %v7478 = vmul.f32 %v6797, 0.044715
        %v7479 = vmul.f32 %v6895, 0.044715
        %v7480 = vmul.f32 %v6993, 0.044715
        %v7481 = vmul.f32 %v7091, 0.044715
        %v7482 = vmul.f32 %v7189, 0.044715
        %v7483 = vmul.f32 %v7287, 0.044715
        %v7484 = vmul.f32 %v6603, 0.044715
        %v7485 = vmul.f32 %v6701, 0.044715
        %v7486 = vmul.f32 %v6799, 0.044715
        %v7487 = vmul.f32 %v6897, 0.044715
        %v7488 = vmul.f32 %v6995, 0.044715
        %v7489 = vmul.f32 %v7093, 0.044715
        %v7490 = vmul.f32 %v7191, 0.044715
        %v7491 = vmul.f32 %v7289, 0.044715
        %v7492 = vmul.f32 %v6606, 0.044715
        %v7493 = vmul.f32 %v6704, 0.044715
        %v7494 = vmul.f32 %v6802, 0.044715
        %v7495 = vmul.f32 %v6900, 0.044715
        %v7496 = vmul.f32 %v6998, 0.044715
        %v7497 = vmul.f32 %v7096, 0.044715
        %v7498 = vmul.f32 %v7194, 0.044715
        %v7499 = vmul.f32 %v7292, 0.044715
        %v7500 = vmul.f32 %v6608, 0.044715
        %v7501 = vmul.f32 %v6706, 0.044715
        %v7502 = vmul.f32 %v6804, 0.044715
        %v7503 = vmul.f32 %v6902, 0.044715
        %v7504 = vmul.f32 %v7000, 0.044715
        %v7505 = vmul.f32 %v7098, 0.044715
        %v7506 = vmul.f32 %v7196, 0.044715
        %v7507 = vmul.f32 %v7294, 0.044715
        %v7508 = vmul.f32 %v6611, 0.044715
        %v7509 = vmul.f32 %v6709, 0.044715
        %v7510 = vmul.f32 %v6807, 0.044715
        %v7511 = vmul.f32 %v6905, 0.044715
        %v7512 = vmul.f32 %v7003, 0.044715
        %v7513 = vmul.f32 %v7101, 0.044715
        %v7514 = vmul.f32 %v7199, 0.044715
        %v7515 = vmul.f32 %v7297, 0.044715
        %v7516 = vmul.f32 %v6613, 0.044715
        %v7517 = vmul.f32 %v6711, 0.044715
        %v7518 = vmul.f32 %v6809, 0.044715
        %v7519 = vmul.f32 %v6907, 0.044715
        %v7520 = vmul.f32 %v7005, 0.044715
        %v7521 = vmul.f32 %v7103, 0.044715
        %v7522 = vmul.f32 %v7201, 0.044715
        %v7523 = vmul.f32 %v7299, 0.044715
        %v7524 = vmul.f32 %v6616, 0.044715
        %v7525 = vmul.f32 %v6714, 0.044715
        %v7526 = vmul.f32 %v6812, 0.044715
        %v7527 = vmul.f32 %v6910, 0.044715
        %v7528 = vmul.f32 %v7008, 0.044715
        %v7529 = vmul.f32 %v7106, 0.044715
        %v7530 = vmul.f32 %v7204, 0.044715
        %v7531 = vmul.f32 %v7302, 0.044715
        %v7532 = vmul.f32 %v6618, 0.044715
        %v7533 = vmul.f32 %v6716, 0.044715
        %v7534 = vmul.f32 %v6814, 0.044715
        %v7535 = vmul.f32 %v6912, 0.044715
        %v7536 = vmul.f32 %v7010, 0.044715
        %v7537 = vmul.f32 %v7108, 0.044715
        %v7538 = vmul.f32 %v7206, 0.044715
        %v7539 = vmul.f32 %v7304, 0.044715
        %v7540 = vmul.f32 %v6621, 0.044715
        %v7541 = vmul.f32 %v6719, 0.044715
        %v7542 = vmul.f32 %v6817, 0.044715
        %v7543 = vmul.f32 %v6915, 0.044715
        %v7544 = vmul.f32 %v7013, 0.044715
        %v7545 = vmul.f32 %v7111, 0.044715
        %v7546 = vmul.f32 %v7209, 0.044715
        %v7547 = vmul.f32 %v7307, 0.044715
        %v7548 = vmul.f32 %v6623, 0.044715
        %v7549 = vmul.f32 %v6721, 0.044715
        %v7550 = vmul.f32 %v6819, 0.044715
        %v7551 = vmul.f32 %v6917, 0.044715
        %v7552 = vmul.f32 %v7015, 0.044715
        %v7553 = vmul.f32 %v7113, 0.044715
        %v7554 = vmul.f32 %v7211, 0.044715
        %v7555 = vmul.f32 %v7309, 0.044715
        %v7556 = vmul.f32 %v6626, 0.044715
        %v7557 = vmul.f32 %v6724, 0.044715
        %v7558 = vmul.f32 %v6822, 0.044715
        %v7559 = vmul.f32 %v6920, 0.044715
        %v7560 = vmul.f32 %v7018, 0.044715
        %v7561 = vmul.f32 %v7116, 0.044715
        %v7562 = vmul.f32 %v7214, 0.044715
        %v7563 = vmul.f32 %v7312, 0.044715
        %v7564 = vmul.f32 %v6628, 0.044715
        %v7565 = vmul.f32 %v6726, 0.044715
        %v7566 = vmul.f32 %v6824, 0.044715
        %v7567 = vmul.f32 %v6922, 0.044715
        %v7568 = vmul.f32 %v7020, 0.044715
        %v7569 = vmul.f32 %v7118, 0.044715
        %v7570 = vmul.f32 %v7216, 0.044715
        %v7571 = vmul.f32 %v7314, 0.044715
        %v7572 = vmul.f32 %v7444, %v6591
        %v7573 = vmul.f32 %v7445, %v6689
        %v7574 = vmul.f32 %v7446, %v6787
        %v7575 = vmul.f32 %v7447, %v6885
        %v7576 = vmul.f32 %v7448, %v6983
        %v7577 = vmul.f32 %v7449, %v7081
        %v7578 = vmul.f32 %v7450, %v7179
        %v7579 = vmul.f32 %v7451, %v7277
        %v7580 = vmul.f32 %v7452, %v6593
        %v7581 = vmul.f32 %v7453, %v6691
        %v7582 = vmul.f32 %v7454, %v6789
        %v7583 = vmul.f32 %v7455, %v6887
        %v7584 = vmul.f32 %v7456, %v6985
        %v7585 = vmul.f32 %v7457, %v7083
        %v7586 = vmul.f32 %v7458, %v7181
        %v7587 = vmul.f32 %v7459, %v7279
        %v7588 = vmul.f32 %v7460, %v6596
        %v7589 = vmul.f32 %v7461, %v6694
        %v7590 = vmul.f32 %v7462, %v6792
        %v7591 = vmul.f32 %v7463, %v6890
        %v7592 = vmul.f32 %v7464, %v6988
        %v7593 = vmul.f32 %v7465, %v7086
        %v7594 = vmul.f32 %v7466, %v7184
        %v7595 = vmul.f32 %v7467, %v7282
        %v7596 = vmul.f32 %v7468, %v6598
        %v7597 = vmul.f32 %v7469, %v6696
        %v7598 = vmul.f32 %v7470, %v6794
        %v7599 = vmul.f32 %v7471, %v6892
        %v7600 = vmul.f32 %v7472, %v6990
        %v7601 = vmul.f32 %v7473, %v7088
        %v7602 = vmul.f32 %v7474, %v7186
        %v7603 = vmul.f32 %v7475, %v7284
        %v7604 = vmul.f32 %v7476, %v6601
        %v7605 = vmul.f32 %v7477, %v6699
        %v7606 = vmul.f32 %v7478, %v6797
        %v7607 = vmul.f32 %v7479, %v6895
        %v7608 = vmul.f32 %v7480, %v6993
        %v7609 = vmul.f32 %v7481, %v7091
        %v7610 = vmul.f32 %v7482, %v7189
        %v7611 = vmul.f32 %v7483, %v7287
        %v7612 = vmul.f32 %v7484, %v6603
        %v7613 = vmul.f32 %v7485, %v6701
        %v7614 = vmul.f32 %v7486, %v6799
        %v7615 = vmul.f32 %v7487, %v6897
        %v7616 = vmul.f32 %v7488, %v6995
        %v7617 = vmul.f32 %v7489, %v7093
        %v7618 = vmul.f32 %v7490, %v7191
        %v7619 = vmul.f32 %v7491, %v7289
        %v7620 = vmul.f32 %v7492, %v6606
        %v7621 = vmul.f32 %v7493, %v6704
        %v7622 = vmul.f32 %v7494, %v6802
        %v7623 = vmul.f32 %v7495, %v6900
        %v7624 = vmul.f32 %v7496, %v6998
        %v7625 = vmul.f32 %v7497, %v7096
        %v7626 = vmul.f32 %v7498, %v7194
        %v7627 = vmul.f32 %v7499, %v7292
        %v7628 = vmul.f32 %v7500, %v6608
        %v7629 = vmul.f32 %v7501, %v6706
        %v7630 = vmul.f32 %v7502, %v6804
        %v7631 = vmul.f32 %v7503, %v6902
        %v7632 = vmul.f32 %v7504, %v7000
        %v7633 = vmul.f32 %v7505, %v7098
        %v7634 = vmul.f32 %v7506, %v7196
        %v7635 = vmul.f32 %v7507, %v7294
        %v7636 = vmul.f32 %v7508, %v6611
        %v7637 = vmul.f32 %v7509, %v6709
        %v7638 = vmul.f32 %v7510, %v6807
        %v7639 = vmul.f32 %v7511, %v6905
        %v7640 = vmul.f32 %v7512, %v7003
        %v7641 = vmul.f32 %v7513, %v7101
        %v7642 = vmul.f32 %v7514, %v7199
        %v7643 = vmul.f32 %v7515, %v7297
        %v7644 = vmul.f32 %v7516, %v6613
        %v7645 = vmul.f32 %v7517, %v6711
        %v7646 = vmul.f32 %v7518, %v6809
        %v7647 = vmul.f32 %v7519, %v6907
        %v7648 = vmul.f32 %v7520, %v7005
        %v7649 = vmul.f32 %v7521, %v7103
        %v7650 = vmul.f32 %v7522, %v7201
        %v7651 = vmul.f32 %v7523, %v7299
        %v7652 = vmul.f32 %v7524, %v6616
        %v7653 = vmul.f32 %v7525, %v6714
        %v7654 = vmul.f32 %v7526, %v6812
        %v7655 = vmul.f32 %v7527, %v6910
        %v7656 = vmul.f32 %v7528, %v7008
        %v7657 = vmul.f32 %v7529, %v7106
        %v7658 = vmul.f32 %v7530, %v7204
        %v7659 = vmul.f32 %v7531, %v7302
        %v7660 = vmul.f32 %v7532, %v6618
        %v7661 = vmul.f32 %v7533, %v6716
        %v7662 = vmul.f32 %v7534, %v6814
        %v7663 = vmul.f32 %v7535, %v6912
        %v7664 = vmul.f32 %v7536, %v7010
        %v7665 = vmul.f32 %v7537, %v7108
        %v7666 = vmul.f32 %v7538, %v7206
        %v7667 = vmul.f32 %v7539, %v7304
        %v7668 = vmul.f32 %v7540, %v6621
        %v7669 = vmul.f32 %v7541, %v6719
        %v7670 = vmul.f32 %v7542, %v6817
        %v7671 = vmul.f32 %v7543, %v6915
        %v7672 = vmul.f32 %v7544, %v7013
        %v7673 = vmul.f32 %v7545, %v7111
        %v7674 = vmul.f32 %v7546, %v7209
        %v7675 = vmul.f32 %v7547, %v7307
        %v7676 = vmul.f32 %v7548, %v6623
        %v7677 = vmul.f32 %v7549, %v6721
        %v7678 = vmul.f32 %v7550, %v6819
        %v7679 = vmul.f32 %v7551, %v6917
        %v7680 = vmul.f32 %v7552, %v7015
        %v7681 = vmul.f32 %v7553, %v7113
        %v7682 = vmul.f32 %v7554, %v7211
        %v7683 = vmul.f32 %v7555, %v7309
        %v7684 = vmul.f32 %v7556, %v6626
        %v7685 = vmul.f32 %v7557, %v6724
        %v7686 = vmul.f32 %v7558, %v6822
        %v7687 = vmul.f32 %v7559, %v6920
        %v7688 = vmul.f32 %v7560, %v7018
        %v7689 = vmul.f32 %v7561, %v7116
        %v7690 = vmul.f32 %v7562, %v7214
        %v7691 = vmul.f32 %v7563, %v7312
        %v7692 = vmul.f32 %v7564, %v6628
        %v7693 = vmul.f32 %v7565, %v6726
        %v7694 = vmul.f32 %v7566, %v6824
        %v7695 = vmul.f32 %v7567, %v6922
        %v7696 = vmul.f32 %v7568, %v7020
        %v7697 = vmul.f32 %v7569, %v7118
        %v7698 = vmul.f32 %v7570, %v7216
        %v7699 = vmul.f32 %v7571, %v7314
        %v7700 = vmul.f32 %v7572, %v6591
        %v7701 = vmul.f32 %v7573, %v6689
        %v7702 = vmul.f32 %v7574, %v6787
        %v7703 = vmul.f32 %v7575, %v6885
        %v7704 = vmul.f32 %v7576, %v6983
        %v7705 = vmul.f32 %v7577, %v7081
        %v7706 = vmul.f32 %v7578, %v7179
        %v7707 = vmul.f32 %v7579, %v7277
        %v7708 = vmul.f32 %v7580, %v6593
        %v7709 = vmul.f32 %v7581, %v6691
        %v7710 = vmul.f32 %v7582, %v6789
        %v7711 = vmul.f32 %v7583, %v6887
        %v7712 = vmul.f32 %v7584, %v6985
        %v7713 = vmul.f32 %v7585, %v7083
        %v7714 = vmul.f32 %v7586, %v7181
        %v7715 = vmul.f32 %v7587, %v7279
        %v7716 = vmul.f32 %v7588, %v6596
        %v7717 = vmul.f32 %v7589, %v6694
        %v7718 = vmul.f32 %v7590, %v6792
        %v7719 = vmul.f32 %v7591, %v6890
        %v7720 = vmul.f32 %v7592, %v6988
        %v7721 = vmul.f32 %v7593, %v7086
        %v7722 = vmul.f32 %v7594, %v7184
        %v7723 = vmul.f32 %v7595, %v7282
        %v7724 = vmul.f32 %v7596, %v6598
        %v7725 = vmul.f32 %v7597, %v6696
        %v7726 = vmul.f32 %v7598, %v6794
        %v7727 = vmul.f32 %v7599, %v6892
        %v7728 = vmul.f32 %v7600, %v6990
        %v7729 = vmul.f32 %v7601, %v7088
        %v7730 = vmul.f32 %v7602, %v7186
        %v7731 = vmul.f32 %v7603, %v7284
        %v7732 = vmul.f32 %v7604, %v6601
        %v7733 = vmul.f32 %v7605, %v6699
        %v7734 = vmul.f32 %v7606, %v6797
        %v7735 = vmul.f32 %v7607, %v6895
        %v7736 = vmul.f32 %v7608, %v6993
        %v7737 = vmul.f32 %v7609, %v7091
        %v7738 = vmul.f32 %v7610, %v7189
        %v7739 = vmul.f32 %v7611, %v7287
        %v7740 = vmul.f32 %v7612, %v6603
        %v7741 = vmul.f32 %v7613, %v6701
        %v7742 = vmul.f32 %v7614, %v6799
        %v7743 = vmul.f32 %v7615, %v6897
        %v7744 = vmul.f32 %v7616, %v6995
        %v7745 = vmul.f32 %v7617, %v7093
        %v7746 = vmul.f32 %v7618, %v7191
        %v7747 = vmul.f32 %v7619, %v7289
        %v7748 = vmul.f32 %v7620, %v6606
        %v7749 = vmul.f32 %v7621, %v6704
        %v7750 = vmul.f32 %v7622, %v6802
        %v7751 = vmul.f32 %v7623, %v6900
        %v7752 = vmul.f32 %v7624, %v6998
        %v7753 = vmul.f32 %v7625, %v7096
        %v7754 = vmul.f32 %v7626, %v7194
        %v7755 = vmul.f32 %v7627, %v7292
        %v7756 = vmul.f32 %v7628, %v6608
        %v7757 = vmul.f32 %v7629, %v6706
        %v7758 = vmul.f32 %v7630, %v6804
        %v7759 = vmul.f32 %v7631, %v6902
        %v7760 = vmul.f32 %v7632, %v7000
        %v7761 = vmul.f32 %v7633, %v7098
        %v7762 = vmul.f32 %v7634, %v7196
        %v7763 = vmul.f32 %v7635, %v7294
        %v7764 = vmul.f32 %v7636, %v6611
        %v7765 = vmul.f32 %v7637, %v6709
        %v7766 = vmul.f32 %v7638, %v6807
        %v7767 = vmul.f32 %v7639, %v6905
        %v7768 = vmul.f32 %v7640, %v7003
        %v7769 = vmul.f32 %v7641, %v7101
        %v7770 = vmul.f32 %v7642, %v7199
        %v7771 = vmul.f32 %v7643, %v7297
        %v7772 = vmul.f32 %v7644, %v6613
        %v7773 = vmul.f32 %v7645, %v6711
        %v7774 = vmul.f32 %v7646, %v6809
        %v7775 = vmul.f32 %v7647, %v6907
        %v7776 = vmul.f32 %v7648, %v7005
        %v7777 = vmul.f32 %v7649, %v7103
        %v7778 = vmul.f32 %v7650, %v7201
        %v7779 = vmul.f32 %v7651, %v7299
        %v7780 = vmul.f32 %v7652, %v6616
        %v7781 = vmul.f32 %v7653, %v6714
        %v7782 = vmul.f32 %v7654, %v6812
        %v7783 = vmul.f32 %v7655, %v6910
        %v7784 = vmul.f32 %v7656, %v7008
        %v7785 = vmul.f32 %v7657, %v7106
        %v7786 = vmul.f32 %v7658, %v7204
        %v7787 = vmul.f32 %v7659, %v7302
        %v7788 = vmul.f32 %v7660, %v6618
        %v7789 = vmul.f32 %v7661, %v6716
        %v7790 = vmul.f32 %v7662, %v6814
        %v7791 = vmul.f32 %v7663, %v6912
        %v7792 = vmul.f32 %v7664, %v7010
        %v7793 = vmul.f32 %v7665, %v7108
        %v7794 = vmul.f32 %v7666, %v7206
        %v7795 = vmul.f32 %v7667, %v7304
        %v7796 = vmul.f32 %v7668, %v6621
        %v7797 = vmul.f32 %v7669, %v6719
        %v7798 = vmul.f32 %v7670, %v6817
        %v7799 = vmul.f32 %v7671, %v6915
        %v7800 = vmul.f32 %v7672, %v7013
        %v7801 = vmul.f32 %v7673, %v7111
        %v7802 = vmul.f32 %v7674, %v7209
        %v7803 = vmul.f32 %v7675, %v7307
        %v7804 = vmul.f32 %v7676, %v6623
        %v7805 = vmul.f32 %v7677, %v6721
        %v7806 = vmul.f32 %v7678, %v6819
        %v7807 = vmul.f32 %v7679, %v6917
        %v7808 = vmul.f32 %v7680, %v7015
        %v7809 = vmul.f32 %v7681, %v7113
        %v7810 = vmul.f32 %v7682, %v7211
        %v7811 = vmul.f32 %v7683, %v7309
        %v7812 = vmul.f32 %v7684, %v6626
        %v7813 = vmul.f32 %v7685, %v6724
        %v7814 = vmul.f32 %v7686, %v6822
        %v7815 = vmul.f32 %v7687, %v6920
        %v7816 = vmul.f32 %v7688, %v7018
        %v7817 = vmul.f32 %v7689, %v7116
        %v7818 = vmul.f32 %v7690, %v7214
        %v7819 = vmul.f32 %v7691, %v7312
        %v7820 = vmul.f32 %v7692, %v6628
        %v7821 = vmul.f32 %v7693, %v6726
        %v7822 = vmul.f32 %v7694, %v6824
        %v7823 = vmul.f32 %v7695, %v6922
        %v7824 = vmul.f32 %v7696, %v7020
        %v7825 = vmul.f32 %v7697, %v7118
        %v7826 = vmul.f32 %v7698, %v7216
        %v7827 = vmul.f32 %v7699, %v7314
        %v7828 = vadd.f32 %v6591, %v7700
        %v7829 = vadd.f32 %v6689, %v7701
        %v7830 = vadd.f32 %v6787, %v7702
        %v7831 = vadd.f32 %v6885, %v7703
        %v7832 = vadd.f32 %v6983, %v7704
        %v7833 = vadd.f32 %v7081, %v7705
        %v7834 = vadd.f32 %v7179, %v7706
        %v7835 = vadd.f32 %v7277, %v7707
        %v7836 = vadd.f32 %v6593, %v7708
        %v7837 = vadd.f32 %v6691, %v7709
        %v7838 = vadd.f32 %v6789, %v7710
        %v7839 = vadd.f32 %v6887, %v7711
        %v7840 = vadd.f32 %v6985, %v7712
        %v7841 = vadd.f32 %v7083, %v7713
        %v7842 = vadd.f32 %v7181, %v7714
        %v7843 = vadd.f32 %v7279, %v7715
        %v7844 = vadd.f32 %v6596, %v7716
        %v7845 = vadd.f32 %v6694, %v7717
        %v7846 = vadd.f32 %v6792, %v7718
        %v7847 = vadd.f32 %v6890, %v7719
        %v7848 = vadd.f32 %v6988, %v7720
        %v7849 = vadd.f32 %v7086, %v7721
        %v7850 = vadd.f32 %v7184, %v7722
        %v7851 = vadd.f32 %v7282, %v7723
        %v7852 = vadd.f32 %v6598, %v7724
        %v7853 = vadd.f32 %v6696, %v7725
        %v7854 = vadd.f32 %v6794, %v7726
        %v7855 = vadd.f32 %v6892, %v7727
        %v7856 = vadd.f32 %v6990, %v7728
        %v7857 = vadd.f32 %v7088, %v7729
        %v7858 = vadd.f32 %v7186, %v7730
        %v7859 = vadd.f32 %v7284, %v7731
        %v7860 = vadd.f32 %v6601, %v7732
        %v7861 = vadd.f32 %v6699, %v7733
        %v7862 = vadd.f32 %v6797, %v7734
        %v7863 = vadd.f32 %v6895, %v7735
        %v7864 = vadd.f32 %v6993, %v7736
        %v7865 = vadd.f32 %v7091, %v7737
        %v7866 = vadd.f32 %v7189, %v7738
        %v7867 = vadd.f32 %v7287, %v7739
        %v7868 = vadd.f32 %v6603, %v7740
        %v7869 = vadd.f32 %v6701, %v7741
        %v7870 = vadd.f32 %v6799, %v7742
        %v7871 = vadd.f32 %v6897, %v7743
        %v7872 = vadd.f32 %v6995, %v7744
        %v7873 = vadd.f32 %v7093, %v7745
        %v7874 = vadd.f32 %v7191, %v7746
        %v7875 = vadd.f32 %v7289, %v7747
        %v7876 = vadd.f32 %v6606, %v7748
        %v7877 = vadd.f32 %v6704, %v7749
        %v7878 = vadd.f32 %v6802, %v7750
        %v7879 = vadd.f32 %v6900, %v7751
        %v7880 = vadd.f32 %v6998, %v7752
        %v7881 = vadd.f32 %v7096, %v7753
        %v7882 = vadd.f32 %v7194, %v7754
        %v7883 = vadd.f32 %v7292, %v7755
        %v7884 = vadd.f32 %v6608, %v7756
        %v7885 = vadd.f32 %v6706, %v7757
        %v7886 = vadd.f32 %v6804, %v7758
        %v7887 = vadd.f32 %v6902, %v7759
        %v7888 = vadd.f32 %v7000, %v7760
        %v7889 = vadd.f32 %v7098, %v7761
        %v7890 = vadd.f32 %v7196, %v7762
        %v7891 = vadd.f32 %v7294, %v7763
        %v7892 = vadd.f32 %v6611, %v7764
        %v7893 = vadd.f32 %v6709, %v7765
        %v7894 = vadd.f32 %v6807, %v7766
        %v7895 = vadd.f32 %v6905, %v7767
        %v7896 = vadd.f32 %v7003, %v7768
        %v7897 = vadd.f32 %v7101, %v7769
        %v7898 = vadd.f32 %v7199, %v7770
        %v7899 = vadd.f32 %v7297, %v7771
        %v7900 = vadd.f32 %v6613, %v7772
        %v7901 = vadd.f32 %v6711, %v7773
        %v7902 = vadd.f32 %v6809, %v7774
        %v7903 = vadd.f32 %v6907, %v7775
        %v7904 = vadd.f32 %v7005, %v7776
        %v7905 = vadd.f32 %v7103, %v7777
        %v7906 = vadd.f32 %v7201, %v7778
        %v7907 = vadd.f32 %v7299, %v7779
        %v7908 = vadd.f32 %v6616, %v7780
        %v7909 = vadd.f32 %v6714, %v7781
        %v7910 = vadd.f32 %v6812, %v7782
        %v7911 = vadd.f32 %v6910, %v7783
        %v7912 = vadd.f32 %v7008, %v7784
        %v7913 = vadd.f32 %v7106, %v7785
        %v7914 = vadd.f32 %v7204, %v7786
        %v7915 = vadd.f32 %v7302, %v7787
        %v7916 = vadd.f32 %v6618, %v7788
        %v7917 = vadd.f32 %v6716, %v7789
        %v7918 = vadd.f32 %v6814, %v7790
        %v7919 = vadd.f32 %v6912, %v7791
        %v7920 = vadd.f32 %v7010, %v7792
        %v7921 = vadd.f32 %v7108, %v7793
        %v7922 = vadd.f32 %v7206, %v7794
        %v7923 = vadd.f32 %v7304, %v7795
        %v7924 = vadd.f32 %v6621, %v7796
        %v7925 = vadd.f32 %v6719, %v7797
        %v7926 = vadd.f32 %v6817, %v7798
        %v7927 = vadd.f32 %v6915, %v7799
        %v7928 = vadd.f32 %v7013, %v7800
        %v7929 = vadd.f32 %v7111, %v7801
        %v7930 = vadd.f32 %v7209, %v7802
        %v7931 = vadd.f32 %v7307, %v7803
        %v7932 = vadd.f32 %v6623, %v7804
        %v7933 = vadd.f32 %v6721, %v7805
        %v7934 = vadd.f32 %v6819, %v7806
        %v7935 = vadd.f32 %v6917, %v7807
        %v7936 = vadd.f32 %v7015, %v7808
        %v7937 = vadd.f32 %v7113, %v7809
        %v7938 = vadd.f32 %v7211, %v7810
        %v7939 = vadd.f32 %v7309, %v7811
        %v7940 = vadd.f32 %v6626, %v7812
        %v7941 = vadd.f32 %v6724, %v7813
        %v7942 = vadd.f32 %v6822, %v7814
        %v7943 = vadd.f32 %v6920, %v7815
        %v7944 = vadd.f32 %v7018, %v7816
        %v7945 = vadd.f32 %v7116, %v7817
        %v7946 = vadd.f32 %v7214, %v7818
        %v7947 = vadd.f32 %v7312, %v7819
        %v7948 = vadd.f32 %v6628, %v7820
        %v7949 = vadd.f32 %v6726, %v7821
        %v7950 = vadd.f32 %v6824, %v7822
        %v7951 = vadd.f32 %v6922, %v7823
        %v7952 = vadd.f32 %v7020, %v7824
        %v7953 = vadd.f32 %v7118, %v7825
        %v7954 = vadd.f32 %v7216, %v7826
        %v7955 = vadd.f32 %v7314, %v7827
        %v7956 = vmul.f32 %v7828, 0.7978846
        %v7957 = vmul.f32 %v7829, 0.7978846
        %v7958 = vmul.f32 %v7830, 0.7978846
        %v7959 = vmul.f32 %v7831, 0.7978846
        %v7960 = vmul.f32 %v7832, 0.7978846
        %v7961 = vmul.f32 %v7833, 0.7978846
        %v7962 = vmul.f32 %v7834, 0.7978846
        %v7963 = vmul.f32 %v7835, 0.7978846
        %v7964 = vmul.f32 %v7836, 0.7978846
        %v7965 = vmul.f32 %v7837, 0.7978846
        %v7966 = vmul.f32 %v7838, 0.7978846
        %v7967 = vmul.f32 %v7839, 0.7978846
        %v7968 = vmul.f32 %v7840, 0.7978846
        %v7969 = vmul.f32 %v7841, 0.7978846
        %v7970 = vmul.f32 %v7842, 0.7978846
        %v7971 = vmul.f32 %v7843, 0.7978846
        %v7972 = vmul.f32 %v7844, 0.7978846
        %v7973 = vmul.f32 %v7845, 0.7978846
        %v7974 = vmul.f32 %v7846, 0.7978846
        %v7975 = vmul.f32 %v7847, 0.7978846
        %v7976 = vmul.f32 %v7848, 0.7978846
        %v7977 = vmul.f32 %v7849, 0.7978846
        %v7978 = vmul.f32 %v7850, 0.7978846
        %v7979 = vmul.f32 %v7851, 0.7978846
        %v7980 = vmul.f32 %v7852, 0.7978846
        %v7981 = vmul.f32 %v7853, 0.7978846
        %v7982 = vmul.f32 %v7854, 0.7978846
        %v7983 = vmul.f32 %v7855, 0.7978846
        %v7984 = vmul.f32 %v7856, 0.7978846
        %v7985 = vmul.f32 %v7857, 0.7978846
        %v7986 = vmul.f32 %v7858, 0.7978846
        %v7987 = vmul.f32 %v7859, 0.7978846
        %v7988 = vmul.f32 %v7860, 0.7978846
        %v7989 = vmul.f32 %v7861, 0.7978846
        %v7990 = vmul.f32 %v7862, 0.7978846
        %v7991 = vmul.f32 %v7863, 0.7978846
        %v7992 = vmul.f32 %v7864, 0.7978846
        %v7993 = vmul.f32 %v7865, 0.7978846
        %v7994 = vmul.f32 %v7866, 0.7978846
        %v7995 = vmul.f32 %v7867, 0.7978846
        %v7996 = vmul.f32 %v7868, 0.7978846
        %v7997 = vmul.f32 %v7869, 0.7978846
        %v7998 = vmul.f32 %v7870, 0.7978846
        %v7999 = vmul.f32 %v7871, 0.7978846
        %v8000 = vmul.f32 %v7872, 0.7978846
        %v8001 = vmul.f32 %v7873, 0.7978846
        %v8002 = vmul.f32 %v7874, 0.7978846
        %v8003 = vmul.f32 %v7875, 0.7978846
        %v8004 = vmul.f32 %v7876, 0.7978846
        %v8005 = vmul.f32 %v7877, 0.7978846
        %v8006 = vmul.f32 %v7878, 0.7978846
        %v8007 = vmul.f32 %v7879, 0.7978846
        %v8008 = vmul.f32 %v7880, 0.7978846
        %v8009 = vmul.f32 %v7881, 0.7978846
        %v8010 = vmul.f32 %v7882, 0.7978846
        %v8011 = vmul.f32 %v7883, 0.7978846
        %v8012 = vmul.f32 %v7884, 0.7978846
        %v8013 = vmul.f32 %v7885, 0.7978846
        %v8014 = vmul.f32 %v7886, 0.7978846
        %v8015 = vmul.f32 %v7887, 0.7978846
        %v8016 = vmul.f32 %v7888, 0.7978846
        %v8017 = vmul.f32 %v7889, 0.7978846
        %v8018 = vmul.f32 %v7890, 0.7978846
        %v8019 = vmul.f32 %v7891, 0.7978846
        %v8020 = vmul.f32 %v7892, 0.7978846
        %v8021 = vmul.f32 %v7893, 0.7978846
        %v8022 = vmul.f32 %v7894, 0.7978846
        %v8023 = vmul.f32 %v7895, 0.7978846
        %v8024 = vmul.f32 %v7896, 0.7978846
        %v8025 = vmul.f32 %v7897, 0.7978846
        %v8026 = vmul.f32 %v7898, 0.7978846
        %v8027 = vmul.f32 %v7899, 0.7978846
        %v8028 = vmul.f32 %v7900, 0.7978846
        %v8029 = vmul.f32 %v7901, 0.7978846
        %v8030 = vmul.f32 %v7902, 0.7978846
        %v8031 = vmul.f32 %v7903, 0.7978846
        %v8032 = vmul.f32 %v7904, 0.7978846
        %v8033 = vmul.f32 %v7905, 0.7978846
        %v8034 = vmul.f32 %v7906, 0.7978846
        %v8035 = vmul.f32 %v7907, 0.7978846
        %v8036 = vmul.f32 %v7908, 0.7978846
        %v8037 = vmul.f32 %v7909, 0.7978846
        %v8038 = vmul.f32 %v7910, 0.7978846
        %v8039 = vmul.f32 %v7911, 0.7978846
        %v8040 = vmul.f32 %v7912, 0.7978846
        %v8041 = vmul.f32 %v7913, 0.7978846
        %v8042 = vmul.f32 %v7914, 0.7978846
        %v8043 = vmul.f32 %v7915, 0.7978846
        %v8044 = vmul.f32 %v7916, 0.7978846
        %v8045 = vmul.f32 %v7917, 0.7978846
        %v8046 = vmul.f32 %v7918, 0.7978846
        %v8047 = vmul.f32 %v7919, 0.7978846
        %v8048 = vmul.f32 %v7920, 0.7978846
        %v8049 = vmul.f32 %v7921, 0.7978846
        %v8050 = vmul.f32 %v7922, 0.7978846
        %v8051 = vmul.f32 %v7923, 0.7978846
        %v8052 = vmul.f32 %v7924, 0.7978846
        %v8053 = vmul.f32 %v7925, 0.7978846
        %v8054 = vmul.f32 %v7926, 0.7978846
        %v8055 = vmul.f32 %v7927, 0.7978846
        %v8056 = vmul.f32 %v7928, 0.7978846
        %v8057 = vmul.f32 %v7929, 0.7978846
        %v8058 = vmul.f32 %v7930, 0.7978846
        %v8059 = vmul.f32 %v7931, 0.7978846
        %v8060 = vmul.f32 %v7932, 0.7978846
        %v8061 = vmul.f32 %v7933, 0.7978846
        %v8062 = vmul.f32 %v7934, 0.7978846
        %v8063 = vmul.f32 %v7935, 0.7978846
        %v8064 = vmul.f32 %v7936, 0.7978846
        %v8065 = vmul.f32 %v7937, 0.7978846
        %v8066 = vmul.f32 %v7938, 0.7978846
        %v8067 = vmul.f32 %v7939, 0.7978846
        %v8068 = vmul.f32 %v7940, 0.7978846
        %v8069 = vmul.f32 %v7941, 0.7978846
        %v8070 = vmul.f32 %v7942, 0.7978846
        %v8071 = vmul.f32 %v7943, 0.7978846
        %v8072 = vmul.f32 %v7944, 0.7978846
        %v8073 = vmul.f32 %v7945, 0.7978846
        %v8074 = vmul.f32 %v7946, 0.7978846
        %v8075 = vmul.f32 %v7947, 0.7978846
        %v8076 = vmul.f32 %v7948, 0.7978846
        %v8077 = vmul.f32 %v7949, 0.7978846
        %v8078 = vmul.f32 %v7950, 0.7978846
        %v8079 = vmul.f32 %v7951, 0.7978846
        %v8080 = vmul.f32 %v7952, 0.7978846
        %v8081 = vmul.f32 %v7953, 0.7978846
        %v8082 = vmul.f32 %v7954, 0.7978846
        %v8083 = vmul.f32 %v7955, 0.7978846
        %v8084 = vtanh.pop %v7956
        %v8085 = vtanh.pop %v7957
        %v8086 = vtanh.pop %v7958
        %v8087 = vtanh.pop %v7959
        %v8088 = vtanh.pop %v7960
        %v8089 = vtanh.pop %v7961
        %v8090 = vtanh.pop %v7962
        %v8091 = vtanh.pop %v7963
        %v8092 = vtanh.pop %v7964
        %v8093 = vtanh.pop %v7965
        %v8094 = vtanh.pop %v7966
        %v8095 = vtanh.pop %v7967
        %v8096 = vtanh.pop %v7968
        %v8097 = vtanh.pop %v7969
        %v8098 = vtanh.pop %v7970
        %v8099 = vtanh.pop %v7971
        %v8100 = vtanh.pop %v7972
        %v8101 = vtanh.pop %v7973
        %v8102 = vtanh.pop %v7974
        %v8103 = vtanh.pop %v7975
        %v8104 = vtanh.pop %v7976
        %v8105 = vtanh.pop %v7977
        %v8106 = vtanh.pop %v7978
        %v8107 = vtanh.pop %v7979
        %v8108 = vtanh.pop %v7980
        %v8109 = vtanh.pop %v7981
        %v8110 = vtanh.pop %v7982
        %v8111 = vtanh.pop %v7983
        %v8112 = vtanh.pop %v7984
        %v8113 = vtanh.pop %v7985
        %v8114 = vtanh.pop %v7986
        %v8115 = vtanh.pop %v7987
        %v8116 = vtanh.pop %v7988
        %v8117 = vtanh.pop %v7989
        %v8118 = vtanh.pop %v7990
        %v8119 = vtanh.pop %v7991
        %v8120 = vtanh.pop %v7992
        %v8121 = vtanh.pop %v7993
        %v8122 = vtanh.pop %v7994
        %v8123 = vtanh.pop %v7995
        %v8124 = vtanh.pop %v7996
        %v8125 = vtanh.pop %v7997
        %v8126 = vtanh.pop %v7998
        %v8127 = vtanh.pop %v7999
        %v8128 = vtanh.pop %v8000
        %v8129 = vtanh.pop %v8001
        %v8130 = vtanh.pop %v8002
        %v8131 = vtanh.pop %v8003
        %v8132 = vtanh.pop %v8004
        %v8133 = vtanh.pop %v8005
        %v8134 = vtanh.pop %v8006
        %v8135 = vtanh.pop %v8007
        %v8136 = vtanh.pop %v8008
        %v8137 = vtanh.pop %v8009
        %v8138 = vtanh.pop %v8010
        %v8139 = vtanh.pop %v8011
        %v8140 = vtanh.pop %v8012
        %v8141 = vtanh.pop %v8013
        %v8142 = vtanh.pop %v8014
        %v8143 = vtanh.pop %v8015
        %v8144 = vtanh.pop %v8016
        %v8145 = vtanh.pop %v8017
        %v8146 = vtanh.pop %v8018
        %v8147 = vtanh.pop %v8019
        %v8148 = vtanh.pop %v8020
        %v8149 = vtanh.pop %v8021
        %v8150 = vtanh.pop %v8022
        %v8151 = vtanh.pop %v8023
        %v8152 = vtanh.pop %v8024
        %v8153 = vtanh.pop %v8025
        %v8154 = vtanh.pop %v8026
        %v8155 = vtanh.pop %v8027
        %v8156 = vtanh.pop %v8028
        %v8157 = vtanh.pop %v8029
        %v8158 = vtanh.pop %v8030
        %v8159 = vtanh.pop %v8031
        %v8160 = vtanh.pop %v8032
        %v8161 = vtanh.pop %v8033
        %v8162 = vtanh.pop %v8034
        %v8163 = vtanh.pop %v8035
        %v8164 = vtanh.pop %v8036
        %v8165 = vtanh.pop %v8037
        %v8166 = vtanh.pop %v8038
        %v8167 = vtanh.pop %v8039
        %v8168 = vtanh.pop %v8040
        %v8169 = vtanh.pop %v8041
        %v8170 = vtanh.pop %v8042
        %v8171 = vtanh.pop %v8043
        %v8172 = vtanh.pop %v8044
        %v8173 = vtanh.pop %v8045
        %v8174 = vtanh.pop %v8046
        %v8175 = vtanh.pop %v8047
        %v8176 = vtanh.pop %v8048
        %v8177 = vtanh.pop %v8049
        %v8178 = vtanh.pop %v8050
        %v8179 = vtanh.pop %v8051
        %v8180 = vtanh.pop %v8052
        %v8181 = vtanh.pop %v8053
        %v8182 = vtanh.pop %v8054
        %v8183 = vtanh.pop %v8055
        %v8184 = vtanh.pop %v8056
        %v8185 = vtanh.pop %v8057
        %v8186 = vtanh.pop %v8058
        %v8187 = vtanh.pop %v8059
        %v8188 = vtanh.pop %v8060
        %v8189 = vtanh.pop %v8061
        %v8190 = vtanh.pop %v8062
        %v8191 = vtanh.pop %v8063
        %v8192 = vtanh.pop %v8064
        %v8193 = vtanh.pop %v8065
        %v8194 = vtanh.pop %v8066
        %v8195 = vtanh.pop %v8067
        %v8196 = vtanh.pop %v8068
        %v8197 = vtanh.pop %v8069
        %v8198 = vtanh.pop %v8070
        %v8199 = vtanh.pop %v8071
        %v8200 = vtanh.pop %v8072
        %v8201 = vtanh.pop %v8073
        %v8202 = vtanh.pop %v8074
        %v8203 = vtanh.pop %v8075
        %v8204 = vtanh.pop %v8076
        %v8205 = vtanh.pop %v8077
        %v8206 = vtanh.pop %v8078
        %v8207 = vtanh.pop %v8079
        %v8208 = vtanh.pop %v8080
        %v8209 = vtanh.pop %v8081
        %v8210 = vtanh.pop %v8082
        %v8211 = vtanh.pop %v8083
        %v8212 = vadd.f32 %v8084, 1.0
        %v8213 = vadd.f32 %v8085, 1.0
        %v8214 = vadd.f32 %v8086, 1.0
        %v8215 = vadd.f32 %v8087, 1.0
        %v8216 = vadd.f32 %v8088, 1.0
        %v8217 = vadd.f32 %v8089, 1.0
        %v8218 = vadd.f32 %v8090, 1.0
        %v8219 = vadd.f32 %v8091, 1.0
        %v8220 = vadd.f32 %v8092, 1.0
        %v8221 = vadd.f32 %v8093, 1.0
        %v8222 = vadd.f32 %v8094, 1.0
        %v8223 = vadd.f32 %v8095, 1.0
        %v8224 = vadd.f32 %v8096, 1.0
        %v8225 = vadd.f32 %v8097, 1.0
        %v8226 = vadd.f32 %v8098, 1.0
        %v8227 = vadd.f32 %v8099, 1.0
        %v8228 = vadd.f32 %v8100, 1.0
        %v8229 = vadd.f32 %v8101, 1.0
        %v8230 = vadd.f32 %v8102, 1.0
        %v8231 = vadd.f32 %v8103, 1.0
        %v8232 = vadd.f32 %v8104, 1.0
        %v8233 = vadd.f32 %v8105, 1.0
        %v8234 = vadd.f32 %v8106, 1.0
        %v8235 = vadd.f32 %v8107, 1.0
        %v8236 = vadd.f32 %v8108, 1.0
        %v8237 = vadd.f32 %v8109, 1.0
        %v8238 = vadd.f32 %v8110, 1.0
        %v8239 = vadd.f32 %v8111, 1.0
        %v8240 = vadd.f32 %v8112, 1.0
        %v8241 = vadd.f32 %v8113, 1.0
        %v8242 = vadd.f32 %v8114, 1.0
        %v8243 = vadd.f32 %v8115, 1.0
        %v8244 = vadd.f32 %v8116, 1.0
        %v8245 = vadd.f32 %v8117, 1.0
        %v8246 = vadd.f32 %v8118, 1.0
        %v8247 = vadd.f32 %v8119, 1.0
        %v8248 = vadd.f32 %v8120, 1.0
        %v8249 = vadd.f32 %v8121, 1.0
        %v8250 = vadd.f32 %v8122, 1.0
        %v8251 = vadd.f32 %v8123, 1.0
        %v8252 = vadd.f32 %v8124, 1.0
        %v8253 = vadd.f32 %v8125, 1.0
        %v8254 = vadd.f32 %v8126, 1.0
        %v8255 = vadd.f32 %v8127, 1.0
        %v8256 = vadd.f32 %v8128, 1.0
        %v8257 = vadd.f32 %v8129, 1.0
        %v8258 = vadd.f32 %v8130, 1.0
        %v8259 = vadd.f32 %v8131, 1.0
        %v8260 = vadd.f32 %v8132, 1.0
        %v8261 = vadd.f32 %v8133, 1.0
        %v8262 = vadd.f32 %v8134, 1.0
        %v8263 = vadd.f32 %v8135, 1.0
        %v8264 = vadd.f32 %v8136, 1.0
        %v8265 = vadd.f32 %v8137, 1.0
        %v8266 = vadd.f32 %v8138, 1.0
        %v8267 = vadd.f32 %v8139, 1.0
        %v8268 = vadd.f32 %v8140, 1.0
        %v8269 = vadd.f32 %v8141, 1.0
        %v8270 = vadd.f32 %v8142, 1.0
        %v8271 = vadd.f32 %v8143, 1.0
        %v8272 = vadd.f32 %v8144, 1.0
        %v8273 = vadd.f32 %v8145, 1.0
        %v8274 = vadd.f32 %v8146, 1.0
        %v8275 = vadd.f32 %v8147, 1.0
        %v8276 = vadd.f32 %v8148, 1.0
        %v8277 = vadd.f32 %v8149, 1.0
        %v8278 = vadd.f32 %v8150, 1.0
        %v8279 = vadd.f32 %v8151, 1.0
        %v8280 = vadd.f32 %v8152, 1.0
        %v8281 = vadd.f32 %v8153, 1.0
        %v8282 = vadd.f32 %v8154, 1.0
        %v8283 = vadd.f32 %v8155, 1.0
        %v8284 = vadd.f32 %v8156, 1.0
        %v8285 = vadd.f32 %v8157, 1.0
        %v8286 = vadd.f32 %v8158, 1.0
        %v8287 = vadd.f32 %v8159, 1.0
        %v8288 = vadd.f32 %v8160, 1.0
        %v8289 = vadd.f32 %v8161, 1.0
        %v8290 = vadd.f32 %v8162, 1.0
        %v8291 = vadd.f32 %v8163, 1.0
        %v8292 = vadd.f32 %v8164, 1.0
        %v8293 = vadd.f32 %v8165, 1.0
        %v8294 = vadd.f32 %v8166, 1.0
        %v8295 = vadd.f32 %v8167, 1.0
        %v8296 = vadd.f32 %v8168, 1.0
        %v8297 = vadd.f32 %v8169, 1.0
        %v8298 = vadd.f32 %v8170, 1.0
        %v8299 = vadd.f32 %v8171, 1.0
        %v8300 = vadd.f32 %v8172, 1.0
        %v8301 = vadd.f32 %v8173, 1.0
        %v8302 = vadd.f32 %v8174, 1.0
        %v8303 = vadd.f32 %v8175, 1.0
        %v8304 = vadd.f32 %v8176, 1.0
        %v8305 = vadd.f32 %v8177, 1.0
        %v8306 = vadd.f32 %v8178, 1.0
        %v8307 = vadd.f32 %v8179, 1.0
        %v8308 = vadd.f32 %v8180, 1.0
        %v8309 = vadd.f32 %v8181, 1.0
        %v8310 = vadd.f32 %v8182, 1.0
        %v8311 = vadd.f32 %v8183, 1.0
        %v8312 = vadd.f32 %v8184, 1.0
        %v8313 = vadd.f32 %v8185, 1.0
        %v8314 = vadd.f32 %v8186, 1.0
        %v8315 = vadd.f32 %v8187, 1.0
        %v8316 = vadd.f32 %v8188, 1.0
        %v8317 = vadd.f32 %v8189, 1.0
        %v8318 = vadd.f32 %v8190, 1.0
        %v8319 = vadd.f32 %v8191, 1.0
        %v8320 = vadd.f32 %v8192, 1.0
        %v8321 = vadd.f32 %v8193, 1.0
        %v8322 = vadd.f32 %v8194, 1.0
        %v8323 = vadd.f32 %v8195, 1.0
        %v8324 = vadd.f32 %v8196, 1.0
        %v8325 = vadd.f32 %v8197, 1.0
        %v8326 = vadd.f32 %v8198, 1.0
        %v8327 = vadd.f32 %v8199, 1.0
        %v8328 = vadd.f32 %v8200, 1.0
        %v8329 = vadd.f32 %v8201, 1.0
        %v8330 = vadd.f32 %v8202, 1.0
        %v8331 = vadd.f32 %v8203, 1.0
        %v8332 = vadd.f32 %v8204, 1.0
        %v8333 = vadd.f32 %v8205, 1.0
        %v8334 = vadd.f32 %v8206, 1.0
        %v8335 = vadd.f32 %v8207, 1.0
        %v8336 = vadd.f32 %v8208, 1.0
        %v8337 = vadd.f32 %v8209, 1.0
        %v8338 = vadd.f32 %v8210, 1.0
        %v8339 = vadd.f32 %v8211, 1.0
        %v8340 = vmul.f32 %v7316, %v8212
        %v8341 = vmul.f32 %v7317, %v8213
        %v8342 = vmul.f32 %v7318, %v8214
        %v8343 = vmul.f32 %v7319, %v8215
        %v8344 = vmul.f32 %v7320, %v8216
        %v8345 = vmul.f32 %v7321, %v8217
        %v8346 = vmul.f32 %v7322, %v8218
        %v8347 = vmul.f32 %v7323, %v8219
        %v8348 = vmul.f32 %v7324, %v8220
        %v8349 = vmul.f32 %v7325, %v8221
        %v8350 = vmul.f32 %v7326, %v8222
        %v8351 = vmul.f32 %v7327, %v8223
        %v8352 = vmul.f32 %v7328, %v8224
        %v8353 = vmul.f32 %v7329, %v8225
        %v8354 = vmul.f32 %v7330, %v8226
        %v8355 = vmul.f32 %v7331, %v8227
        %v8356 = vmul.f32 %v7332, %v8228
        %v8357 = vmul.f32 %v7333, %v8229
        %v8358 = vmul.f32 %v7334, %v8230
        %v8359 = vmul.f32 %v7335, %v8231
        %v8360 = vmul.f32 %v7336, %v8232
        %v8361 = vmul.f32 %v7337, %v8233
        %v8362 = vmul.f32 %v7338, %v8234
        %v8363 = vmul.f32 %v7339, %v8235
        %v8364 = vmul.f32 %v7340, %v8236
        %v8365 = vmul.f32 %v7341, %v8237
        %v8366 = vmul.f32 %v7342, %v8238
        %v8367 = vmul.f32 %v7343, %v8239
        %v8368 = vmul.f32 %v7344, %v8240
        %v8369 = vmul.f32 %v7345, %v8241
        %v8370 = vmul.f32 %v7346, %v8242
        %v8371 = vmul.f32 %v7347, %v8243
        %v8372 = vmul.f32 %v7348, %v8244
        %v8373 = vmul.f32 %v7349, %v8245
        %v8374 = vmul.f32 %v7350, %v8246
        %v8375 = vmul.f32 %v7351, %v8247
        %v8376 = vmul.f32 %v7352, %v8248
        %v8377 = vmul.f32 %v7353, %v8249
        %v8378 = vmul.f32 %v7354, %v8250
        %v8379 = vmul.f32 %v7355, %v8251
        %v8380 = vmul.f32 %v7356, %v8252
        %v8381 = vmul.f32 %v7357, %v8253
        %v8382 = vmul.f32 %v7358, %v8254
        %v8383 = vmul.f32 %v7359, %v8255
        %v8384 = vmul.f32 %v7360, %v8256
        %v8385 = vmul.f32 %v7361, %v8257
        %v8386 = vmul.f32 %v7362, %v8258
        %v8387 = vmul.f32 %v7363, %v8259
        %v8388 = vmul.f32 %v7364, %v8260
        %v8389 = vmul.f32 %v7365, %v8261
        %v8390 = vmul.f32 %v7366, %v8262
        %v8391 = vmul.f32 %v7367, %v8263
        %v8392 = vmul.f32 %v7368, %v8264
        %v8393 = vmul.f32 %v7369, %v8265
        %v8394 = vmul.f32 %v7370, %v8266
        %v8395 = vmul.f32 %v7371, %v8267
        %v8396 = vmul.f32 %v7372, %v8268
        %v8397 = vmul.f32 %v7373, %v8269
        %v8398 = vmul.f32 %v7374, %v8270
        %v8399 = vmul.f32 %v7375, %v8271
        %v8400 = vmul.f32 %v7376, %v8272
        %v8401 = vmul.f32 %v7377, %v8273
        %v8402 = vmul.f32 %v7378, %v8274
        %v8403 = vmul.f32 %v7379, %v8275
        %v8404 = vmul.f32 %v7380, %v8276
        %v8405 = vmul.f32 %v7381, %v8277
        %v8406 = vmul.f32 %v7382, %v8278
        %v8407 = vmul.f32 %v7383, %v8279
        %v8408 = vmul.f32 %v7384, %v8280
        %v8409 = vmul.f32 %v7385, %v8281
        %v8410 = vmul.f32 %v7386, %v8282
        %v8411 = vmul.f32 %v7387, %v8283
        %v8412 = vmul.f32 %v7388, %v8284
        %v8413 = vmul.f32 %v7389, %v8285
        %v8414 = vmul.f32 %v7390, %v8286
        %v8415 = vmul.f32 %v7391, %v8287
        %v8416 = vmul.f32 %v7392, %v8288
        %v8417 = vmul.f32 %v7393, %v8289
        %v8418 = vmul.f32 %v7394, %v8290
        %v8419 = vmul.f32 %v7395, %v8291
        %v8420 = vmul.f32 %v7396, %v8292
        %v8421 = vmul.f32 %v7397, %v8293
        %v8422 = vmul.f32 %v7398, %v8294
        %v8423 = vmul.f32 %v7399, %v8295
        %v8424 = vmul.f32 %v7400, %v8296
        %v8425 = vmul.f32 %v7401, %v8297
        %v8426 = vmul.f32 %v7402, %v8298
        %v8427 = vmul.f32 %v7403, %v8299
        %v8428 = vmul.f32 %v7404, %v8300
        %v8429 = vmul.f32 %v7405, %v8301
        %v8430 = vmul.f32 %v7406, %v8302
        %v8431 = vmul.f32 %v7407, %v8303
        %v8432 = vmul.f32 %v7408, %v8304
        %v8433 = vmul.f32 %v7409, %v8305
        %v8434 = vmul.f32 %v7410, %v8306
        %v8435 = vmul.f32 %v7411, %v8307
        %v8436 = vmul.f32 %v7412, %v8308
        %v8437 = vmul.f32 %v7413, %v8309
        %v8438 = vmul.f32 %v7414, %v8310
        %v8439 = vmul.f32 %v7415, %v8311
        %v8440 = vmul.f32 %v7416, %v8312
        %v8441 = vmul.f32 %v7417, %v8313
        %v8442 = vmul.f32 %v7418, %v8314
        %v8443 = vmul.f32 %v7419, %v8315
        %v8444 = vmul.f32 %v7420, %v8316
        %v8445 = vmul.f32 %v7421, %v8317
        %v8446 = vmul.f32 %v7422, %v8318
        %v8447 = vmul.f32 %v7423, %v8319
        %v8448 = vmul.f32 %v7424, %v8320
        %v8449 = vmul.f32 %v7425, %v8321
        %v8450 = vmul.f32 %v7426, %v8322
        %v8451 = vmul.f32 %v7427, %v8323
        %v8452 = vmul.f32 %v7428, %v8324
        %v8453 = vmul.f32 %v7429, %v8325
        %v8454 = vmul.f32 %v7430, %v8326
        %v8455 = vmul.f32 %v7431, %v8327
        %v8456 = vmul.f32 %v7432, %v8328
        %v8457 = vmul.f32 %v7433, %v8329
        %v8458 = vmul.f32 %v7434, %v8330
        %v8459 = vmul.f32 %v7435, %v8331
        %v8460 = vmul.f32 %v7436, %v8332
        %v8461 = vmul.f32 %v7437, %v8333
        %v8462 = vmul.f32 %v7438, %v8334
        %v8463 = vmul.f32 %v7439, %v8335
        %v8464 = vmul.f32 %v7440, %v8336
        %v8465 = vmul.f32 %v7441, %v8337
        %v8466 = vmul.f32 %v7442, %v8338
        %v8467 = vmul.f32 %v7443, %v8339
        %v8468 = vpack.c.bf16 %v8348, %v8340
        %v8469 = vpack.c.bf16 %v8349, %v8341
        %v8470 = vpack.c.bf16 %v8350, %v8342
        %v8471 = vpack.c.bf16 %v8351, %v8343
        %v8472 = vpack.c.bf16 %v8352, %v8344
        %v8473 = vpack.c.bf16 %v8353, %v8345
        %v8474 = vpack.c.bf16 %v8354, %v8346
        %v8475 = vpack.c.bf16 %v8355, %v8347
        %v8476 = vpack.c.bf16 %v8364, %v8356
        %v8477 = vpack.c.bf16 %v8365, %v8357
        %v8478 = vpack.c.bf16 %v8366, %v8358
        %v8479 = vpack.c.bf16 %v8367, %v8359
        %v8480 = vpack.c.bf16 %v8368, %v8360
        %v8481 = vpack.c.bf16 %v8369, %v8361
        %v8482 = vpack.c.bf16 %v8370, %v8362
        %v8483 = vpack.c.bf16 %v8371, %v8363
        %v8484 = vpack.c.bf16 %v8380, %v8372
        %v8485 = vpack.c.bf16 %v8381, %v8373
        %v8486 = vpack.c.bf16 %v8382, %v8374
        %v8487 = vpack.c.bf16 %v8383, %v8375
        %v8488 = vpack.c.bf16 %v8384, %v8376
        %v8489 = vpack.c.bf16 %v8385, %v8377
        %v8490 = vpack.c.bf16 %v8386, %v8378
        %v8491 = vpack.c.bf16 %v8387, %v8379
        %v8492 = vpack.c.bf16 %v8396, %v8388
        %v8493 = vpack.c.bf16 %v8397, %v8389
        %v8494 = vpack.c.bf16 %v8398, %v8390
        %v8495 = vpack.c.bf16 %v8399, %v8391
        %v8496 = vpack.c.bf16 %v8400, %v8392
        %v8497 = vpack.c.bf16 %v8401, %v8393
        %v8498 = vpack.c.bf16 %v8402, %v8394
        %v8499 = vpack.c.bf16 %v8403, %v8395
        %v8500 = vpack.c.bf16 %v8412, %v8404
        %v8501 = vpack.c.bf16 %v8413, %v8405
        %v8502 = vpack.c.bf16 %v8414, %v8406
        %v8503 = vpack.c.bf16 %v8415, %v8407
        %v8504 = vpack.c.bf16 %v8416, %v8408
        %v8505 = vpack.c.bf16 %v8417, %v8409
        %v8506 = vpack.c.bf16 %v8418, %v8410
        %v8507 = vpack.c.bf16 %v8419, %v8411
        %v8508 = vpack.c.bf16 %v8428, %v8420
        %v8509 = vpack.c.bf16 %v8429, %v8421
        %v8510 = vpack.c.bf16 %v8430, %v8422
        %v8511 = vpack.c.bf16 %v8431, %v8423
        %v8512 = vpack.c.bf16 %v8432, %v8424
        %v8513 = vpack.c.bf16 %v8433, %v8425
        %v8514 = vpack.c.bf16 %v8434, %v8426
        %v8515 = vpack.c.bf16 %v8435, %v8427
        %v8516 = vpack.c.bf16 %v8444, %v8436
        %v8517 = vpack.c.bf16 %v8445, %v8437
        %v8518 = vpack.c.bf16 %v8446, %v8438
        %v8519 = vpack.c.bf16 %v8447, %v8439
        %v8520 = vpack.c.bf16 %v8448, %v8440
        %v8521 = vpack.c.bf16 %v8449, %v8441
        %v8522 = vpack.c.bf16 %v8450, %v8442
        %v8523 = vpack.c.bf16 %v8451, %v8443
        %v8524 = vpack.c.bf16 %v8460, %v8452
        %v8525 = vpack.c.bf16 %v8461, %v8453
        %v8526 = vpack.c.bf16 %v8462, %v8454
        %v8527 = vpack.c.bf16 %v8463, %v8455
        %v8528 = vpack.c.bf16 %v8464, %v8456
        %v8529 = vpack.c.bf16 %v8465, %v8457
        %v8530 = vpack.c.bf16 %v8466, %v8458
        %v8531 = vpack.c.bf16 %v8467, %v8459
        %s8532 = smul.addr %s5741, 4
        %s8533 = scalar_lea.vmem [#allocation7], %s8532
        %v8534 = vld [vmem:[%s8533] sm:$0xff]
        %v8535 = vld [vmem:[%s8533 + $0x8] sm:$0xff]
        %v8536 = vld [vmem:[%s8533 + $0x10] sm:$0xff]
        %v8537 = vld [vmem:[%s8533 + $0x18] sm:$0xff]
        %v8538 = vld [vmem:[%s8533 + $0x20] sm:$0xff]
        %v8539 = vld [vmem:[%s8533 + $0x28] sm:$0xff]
        %v8540 = vld [vmem:[%s8533 + $0x30] sm:$0xff]
        %v8541 = vld [vmem:[%s8533 + $0x38] sm:$0xff]
        %v8542 = vld [vmem:[%s8533 + $0x40] sm:$0xff]
        %v8543 = vld [vmem:[%s8533 + $0x48] sm:$0xff]
        %v8544 = vld [vmem:[%s8533 + $0x50] sm:$0xff]
        %v8545 = vld [vmem:[%s8533 + $0x58] sm:$0xff]
        %v8546 = vld [vmem:[%s8533 + $0x60] sm:$0xff]
        %v8547 = vld [vmem:[%s8533 + $0x68] sm:$0xff]
        %v8548 = vld [vmem:[%s8533 + $0x70] sm:$0xff]
        %v8549 = vld [vmem:[%s8533 + $0x78] sm:$0xff]
        %v8550 = vld [vmem:[%s8533 + $0x80] sm:$0xff]
        %v8551 = vld [vmem:[%s8533 + $0x88] sm:$0xff]
        %v8552 = vld [vmem:[%s8533 + $0x90] sm:$0xff]
        %v8553 = vld [vmem:[%s8533 + $0x98] sm:$0xff]
        %v8554 = vld [vmem:[%s8533 + $0xa0] sm:$0xff]
        %v8555 = vld [vmem:[%s8533 + $0xa8] sm:$0xff]
        %v8556 = vld [vmem:[%s8533 + $0xb0] sm:$0xff]
        %v8557 = vld [vmem:[%s8533 + $0xb8] sm:$0xff]
        %v8558 = vld [vmem:[%s8533 + $0xc0] sm:$0xff]
        %v8559 = vld [vmem:[%s8533 + $0xc8] sm:$0xff]
        %v8560 = vld [vmem:[%s8533 + $0xd0] sm:$0xff]
        %v8561 = vld [vmem:[%s8533 + $0xd8] sm:$0xff]
        %v8562 = vld [vmem:[%s8533 + $0xe0] sm:$0xff]
        %v8563 = vld [vmem:[%s8533 + $0xe8] sm:$0xff]
        %v8564 = vld [vmem:[%s8533 + $0xf0] sm:$0xff]
        %v8565 = vld [vmem:[%s8533 + $0xf8] sm:$0xff]
        %v8566 = vld [vmem:[%s8533 + $0x100] sm:$0xff]
        %v8567 = vld [vmem:[%s8533 + $0x108] sm:$0xff]
        %v8568 = vld [vmem:[%s8533 + $0x110] sm:$0xff]
        %v8569 = vld [vmem:[%s8533 + $0x118] sm:$0xff]
        %v8570 = vld [vmem:[%s8533 + $0x120] sm:$0xff]
        %v8571 = vld [vmem:[%s8533 + $0x128] sm:$0xff]
        %v8572 = vld [vmem:[%s8533 + $0x130] sm:$0xff]
        %v8573 = vld [vmem:[%s8533 + $0x138] sm:$0xff]
        %v8574 = vld [vmem:[%s8533 + $0x140] sm:$0xff]
        %v8575 = vld [vmem:[%s8533 + $0x148] sm:$0xff]
        %v8576 = vld [vmem:[%s8533 + $0x150] sm:$0xff]
        %v8577 = vld [vmem:[%s8533 + $0x158] sm:$0xff]
        %v8578 = vld [vmem:[%s8533 + $0x160] sm:$0xff]
        %v8579 = vld [vmem:[%s8533 + $0x168] sm:$0xff]
        %v8580 = vld [vmem:[%s8533 + $0x170] sm:$0xff]
        %v8581 = vld [vmem:[%s8533 + $0x178] sm:$0xff]
        %v8582 = vld [vmem:[%s8533 + $0x180] sm:$0xff]
        %v8583 = vld [vmem:[%s8533 + $0x188] sm:$0xff]
        %v8584 = vld [vmem:[%s8533 + $0x190] sm:$0xff]
        %v8585 = vld [vmem:[%s8533 + $0x198] sm:$0xff]
        %v8586 = vld [vmem:[%s8533 + $0x1a0] sm:$0xff]
        %v8587 = vld [vmem:[%s8533 + $0x1a8] sm:$0xff]
        %v8588 = vld [vmem:[%s8533 + $0x1b0] sm:$0xff]
        %v8589 = vld [vmem:[%s8533 + $0x1b8] sm:$0xff]
        %v8590 = vld [vmem:[%s8533 + $0x1c0] sm:$0xff]
        %v8591 = vld [vmem:[%s8533 + $0x1c8] sm:$0xff]
        %v8592 = vld [vmem:[%s8533 + $0x1d0] sm:$0xff]
        %v8593 = vld [vmem:[%s8533 + $0x1d8] sm:$0xff]
        %v8594 = vld [vmem:[%s8533 + $0x1e0] sm:$0xff]
        %v8595 = vld [vmem:[%s8533 + $0x1e8] sm:$0xff]
        %v8596 = vld [vmem:[%s8533 + $0x1f0] sm:$0xff]
        %v8597 = vld [vmem:[%s8533 + $0x1f8] sm:$0xff]
        %v8598 = vld [vmem:[%s8533 + $0x200] sm:$0xff]
        %v8599 = vld [vmem:[%s8533 + $0x208] sm:$0xff]
        %v8600 = vld [vmem:[%s8533 + $0x210] sm:$0xff]
        %v8601 = vld [vmem:[%s8533 + $0x218] sm:$0xff]
        %v8602 = vld [vmem:[%s8533 + $0x220] sm:$0xff]
        %v8603 = vld [vmem:[%s8533 + $0x228] sm:$0xff]
        %v8604 = vld [vmem:[%s8533 + $0x230] sm:$0xff]
        %v8605 = vld [vmem:[%s8533 + $0x238] sm:$0xff]
        %v8606 = vld [vmem:[%s8533 + $0x240] sm:$0xff]
        %v8607 = vld [vmem:[%s8533 + $0x248] sm:$0xff]
        %v8608 = vld [vmem:[%s8533 + $0x250] sm:$0xff]
        %v8609 = vld [vmem:[%s8533 + $0x258] sm:$0xff]
        %v8610 = vld [vmem:[%s8533 + $0x260] sm:$0xff]
        %v8611 = vld [vmem:[%s8533 + $0x268] sm:$0xff]
        %v8612 = vld [vmem:[%s8533 + $0x270] sm:$0xff]
        %v8613 = vld [vmem:[%s8533 + $0x278] sm:$0xff]
        %v8614 = vld [vmem:[%s8533 + $0x280] sm:$0xff]
        %v8615 = vld [vmem:[%s8533 + $0x288] sm:$0xff]
        %v8616 = vld [vmem:[%s8533 + $0x290] sm:$0xff]
        %v8617 = vld [vmem:[%s8533 + $0x298] sm:$0xff]
        %v8618 = vld [vmem:[%s8533 + $0x2a0] sm:$0xff]
        %v8619 = vld [vmem:[%s8533 + $0x2a8] sm:$0xff]
        %v8620 = vld [vmem:[%s8533 + $0x2b0] sm:$0xff]
        %v8621 = vld [vmem:[%s8533 + $0x2b8] sm:$0xff]
        %v8622 = vld [vmem:[%s8533 + $0x2c0] sm:$0xff]
        %v8623 = vld [vmem:[%s8533 + $0x2c8] sm:$0xff]
        %v8624 = vld [vmem:[%s8533 + $0x2d0] sm:$0xff]
        %v8625 = vld [vmem:[%s8533 + $0x2d8] sm:$0xff]
        %v8626 = vld [vmem:[%s8533 + $0x2e0] sm:$0xff]
        %v8627 = vld [vmem:[%s8533 + $0x2e8] sm:$0xff]
        %v8628 = vld [vmem:[%s8533 + $0x2f0] sm:$0xff]
        %v8629 = vld [vmem:[%s8533 + $0x2f8] sm:$0xff]
        %v8630 = vld [vmem:[%s8533 + $0x300] sm:$0xff]
        %v8631 = vld [vmem:[%s8533 + $0x308] sm:$0xff]
        %v8632 = vld [vmem:[%s8533 + $0x310] sm:$0xff]
        %v8633 = vld [vmem:[%s8533 + $0x318] sm:$0xff]
        %v8634 = vld [vmem:[%s8533 + $0x320] sm:$0xff]
        %v8635 = vld [vmem:[%s8533 + $0x328] sm:$0xff]
        %v8636 = vld [vmem:[%s8533 + $0x330] sm:$0xff]
        %v8637 = vld [vmem:[%s8533 + $0x338] sm:$0xff]
        %v8638 = vld [vmem:[%s8533 + $0x340] sm:$0xff]
        %v8639 = vld [vmem:[%s8533 + $0x348] sm:$0xff]
        %v8640 = vld [vmem:[%s8533 + $0x350] sm:$0xff]
        %v8641 = vld [vmem:[%s8533 + $0x358] sm:$0xff]
        %v8642 = vld [vmem:[%s8533 + $0x360] sm:$0xff]
        %v8643 = vld [vmem:[%s8533 + $0x368] sm:$0xff]
        %v8644 = vld [vmem:[%s8533 + $0x370] sm:$0xff]
        %v8645 = vld [vmem:[%s8533 + $0x378] sm:$0xff]
        %v8646 = vld [vmem:[%s8533 + $0x380] sm:$0xff]
        %v8647 = vld [vmem:[%s8533 + $0x388] sm:$0xff]
        %v8648 = vld [vmem:[%s8533 + $0x390] sm:$0xff]
        %v8649 = vld [vmem:[%s8533 + $0x398] sm:$0xff]
        %v8650 = vld [vmem:[%s8533 + $0x3a0] sm:$0xff]
        %v8651 = vld [vmem:[%s8533 + $0x3a8] sm:$0xff]
        %v8652 = vld [vmem:[%s8533 + $0x3b0] sm:$0xff]
        %v8653 = vld [vmem:[%s8533 + $0x3b8] sm:$0xff]
        %v8654 = vld [vmem:[%s8533 + $0x3c0] sm:$0xff]
        %v8655 = vld [vmem:[%s8533 + $0x3c8] sm:$0xff]
        %v8656 = vld [vmem:[%s8533 + $0x3d0] sm:$0xff]
        %v8657 = vld [vmem:[%s8533 + $0x3d8] sm:$0xff]
        %v8658 = vld [vmem:[%s8533 + $0x3e0] sm:$0xff]
        %v8659 = vld [vmem:[%s8533 + $0x3e8] sm:$0xff]
        %v8660 = vld [vmem:[%s8533 + $0x3f0] sm:$0xff]
        %v8661 = vld [vmem:[%s8533 + $0x3f8] sm:$0xff]
        %s8662 = scalar_lea.vmem %s13, %s4764
        %v8663 = vld [vmem:[%s8662] sm:$0x3]
        %v8665 = vperm.slane %v8663, 0
        %v8666 = vperm.slane %v8663, 1
        %v8797 = vunpack.c.l.b16 %v8534
        %v8798 = vunpack.c.h.b16 %v8534
        %v8799 = vunpack.c.l.b16 %v8535
        %v8800 = vunpack.c.h.b16 %v8535
        %v8801 = vunpack.c.l.b16 %v8536
        %v8802 = vunpack.c.h.b16 %v8536
        %v8803 = vunpack.c.l.b16 %v8537
        %v8804 = vunpack.c.h.b16 %v8537
        %v8805 = vunpack.c.l.b16 %v8538
        %v8806 = vunpack.c.h.b16 %v8538
        %v8807 = vunpack.c.l.b16 %v8539
        %v8808 = vunpack.c.h.b16 %v8539
        %v8809 = vunpack.c.l.b16 %v8540
        %v8810 = vunpack.c.h.b16 %v8540
        %v8811 = vunpack.c.l.b16 %v8541
        %v8812 = vunpack.c.h.b16 %v8541
        %v8813 = vunpack.c.l.b16 %v8542
        %v8814 = vunpack.c.h.b16 %v8542
        %v8815 = vunpack.c.l.b16 %v8543
        %v8816 = vunpack.c.h.b16 %v8543
        %v8817 = vunpack.c.l.b16 %v8544
        %v8818 = vunpack.c.h.b16 %v8544
        %v8819 = vunpack.c.l.b16 %v8545
        %v8820 = vunpack.c.h.b16 %v8545
        %v8821 = vunpack.c.l.b16 %v8546
        %v8822 = vunpack.c.h.b16 %v8546
        %v8823 = vunpack.c.l.b16 %v8547
        %v8824 = vunpack.c.h.b16 %v8547
        %v8825 = vunpack.c.l.b16 %v8548
        %v8826 = vunpack.c.h.b16 %v8548
        %v8827 = vunpack.c.l.b16 %v8549
        %v8828 = vunpack.c.h.b16 %v8549
        %v8829 = vunpack.c.l.b16 %v8550
        %v8830 = vunpack.c.h.b16 %v8550
        %v8831 = vunpack.c.l.b16 %v8551
        %v8832 = vunpack.c.h.b16 %v8551
        %v8833 = vunpack.c.l.b16 %v8552
        %v8834 = vunpack.c.h.b16 %v8552
        %v8835 = vunpack.c.l.b16 %v8553
        %v8836 = vunpack.c.h.b16 %v8553
        %v8837 = vunpack.c.l.b16 %v8554
        %v8838 = vunpack.c.h.b16 %v8554
        %v8839 = vunpack.c.l.b16 %v8555
        %v8840 = vunpack.c.h.b16 %v8555
        %v8841 = vunpack.c.l.b16 %v8556
        %v8842 = vunpack.c.h.b16 %v8556
        %v8843 = vunpack.c.l.b16 %v8557
        %v8844 = vunpack.c.h.b16 %v8557
        %v8845 = vunpack.c.l.b16 %v8558
        %v8846 = vunpack.c.h.b16 %v8558
        %v8847 = vunpack.c.l.b16 %v8559
        %v8848 = vunpack.c.h.b16 %v8559
        %v8849 = vunpack.c.l.b16 %v8560
        %v8850 = vunpack.c.h.b16 %v8560
        %v8851 = vunpack.c.l.b16 %v8561
        %v8852 = vunpack.c.h.b16 %v8561
        %v8853 = vunpack.c.l.b16 %v8562
        %v8854 = vunpack.c.h.b16 %v8562
        %v8855 = vunpack.c.l.b16 %v8563
        %v8856 = vunpack.c.h.b16 %v8563
        %v8857 = vunpack.c.l.b16 %v8564
        %v8858 = vunpack.c.h.b16 %v8564
        %v8859 = vunpack.c.l.b16 %v8565
        %v8860 = vunpack.c.h.b16 %v8565
        %v8861 = vunpack.c.l.b16 %v8566
        %v8862 = vunpack.c.h.b16 %v8566
        %v8863 = vunpack.c.l.b16 %v8567
        %v8864 = vunpack.c.h.b16 %v8567
        %v8865 = vunpack.c.l.b16 %v8568
        %v8866 = vunpack.c.h.b16 %v8568
        %v8867 = vunpack.c.l.b16 %v8569
        %v8868 = vunpack.c.h.b16 %v8569
        %v8869 = vunpack.c.l.b16 %v8570
        %v8870 = vunpack.c.h.b16 %v8570
        %v8871 = vunpack.c.l.b16 %v8571
        %v8872 = vunpack.c.h.b16 %v8571
        %v8873 = vunpack.c.l.b16 %v8572
        %v8874 = vunpack.c.h.b16 %v8572
        %v8875 = vunpack.c.l.b16 %v8573
        %v8876 = vunpack.c.h.b16 %v8573
        %v8877 = vunpack.c.l.b16 %v8574
        %v8878 = vunpack.c.h.b16 %v8574
        %v8879 = vunpack.c.l.b16 %v8575
        %v8880 = vunpack.c.h.b16 %v8575
        %v8881 = vunpack.c.l.b16 %v8576
        %v8882 = vunpack.c.h.b16 %v8576
        %v8883 = vunpack.c.l.b16 %v8577
        %v8884 = vunpack.c.h.b16 %v8577
        %v8885 = vunpack.c.l.b16 %v8578
        %v8886 = vunpack.c.h.b16 %v8578
        %v8887 = vunpack.c.l.b16 %v8579
        %v8888 = vunpack.c.h.b16 %v8579
        %v8889 = vunpack.c.l.b16 %v8580
        %v8890 = vunpack.c.h.b16 %v8580
        %v8891 = vunpack.c.l.b16 %v8581
        %v8892 = vunpack.c.h.b16 %v8581
        %v8893 = vunpack.c.l.b16 %v8582
        %v8894 = vunpack.c.h.b16 %v8582
        %v8895 = vunpack.c.l.b16 %v8583
        %v8896 = vunpack.c.h.b16 %v8583
        %v8897 = vunpack.c.l.b16 %v8584
        %v8898 = vunpack.c.h.b16 %v8584
        %v8899 = vunpack.c.l.b16 %v8585
        %v8900 = vunpack.c.h.b16 %v8585
        %v8901 = vunpack.c.l.b16 %v8586
        %v8902 = vunpack.c.h.b16 %v8586
        %v8903 = vunpack.c.l.b16 %v8587
        %v8904 = vunpack.c.h.b16 %v8587
        %v8905 = vunpack.c.l.b16 %v8588
        %v8906 = vunpack.c.h.b16 %v8588
        %v8907 = vunpack.c.l.b16 %v8589
        %v8908 = vunpack.c.h.b16 %v8589
        %v8909 = vunpack.c.l.b16 %v8590
        %v8910 = vunpack.c.h.b16 %v8590
        %v8911 = vunpack.c.l.b16 %v8591
        %v8912 = vunpack.c.h.b16 %v8591
        %v8913 = vunpack.c.l.b16 %v8592
        %v8914 = vunpack.c.h.b16 %v8592
        %v8915 = vunpack.c.l.b16 %v8593
        %v8916 = vunpack.c.h.b16 %v8593
        %v8917 = vunpack.c.l.b16 %v8594
        %v8918 = vunpack.c.h.b16 %v8594
        %v8919 = vunpack.c.l.b16 %v8595
        %v8920 = vunpack.c.h.b16 %v8595
        %v8921 = vunpack.c.l.b16 %v8596
        %v8922 = vunpack.c.h.b16 %v8596
        %v8923 = vunpack.c.l.b16 %v8597
        %v8924 = vunpack.c.h.b16 %v8597
        %v8925 = vunpack.c.l.b16 %v8598
        %v8926 = vunpack.c.h.b16 %v8598
        %v8927 = vunpack.c.l.b16 %v8599
        %v8928 = vunpack.c.h.b16 %v8599
        %v8929 = vunpack.c.l.b16 %v8600
        %v8930 = vunpack.c.h.b16 %v8600
        %v8931 = vunpack.c.l.b16 %v8601
        %v8932 = vunpack.c.h.b16 %v8601
        %v8933 = vunpack.c.l.b16 %v8602
        %v8934 = vunpack.c.h.b16 %v8602
        %v8935 = vunpack.c.l.b16 %v8603
        %v8936 = vunpack.c.h.b16 %v8603
        %v8937 = vunpack.c.l.b16 %v8604
        %v8938 = vunpack.c.h.b16 %v8604
        %v8939 = vunpack.c.l.b16 %v8605
        %v8940 = vunpack.c.h.b16 %v8605
        %v8941 = vunpack.c.l.b16 %v8606
        %v8942 = vunpack.c.h.b16 %v8606
        %v8943 = vunpack.c.l.b16 %v8607
        %v8944 = vunpack.c.h.b16 %v8607
        %v8945 = vunpack.c.l.b16 %v8608
        %v8946 = vunpack.c.h.b16 %v8608
        %v8947 = vunpack.c.l.b16 %v8609
        %v8948 = vunpack.c.h.b16 %v8609
        %v8949 = vunpack.c.l.b16 %v8610
        %v8950 = vunpack.c.h.b16 %v8610
        %v8951 = vunpack.c.l.b16 %v8611
        %v8952 = vunpack.c.h.b16 %v8611
        %v8953 = vunpack.c.l.b16 %v8612
        %v8954 = vunpack.c.h.b16 %v8612
        %v8955 = vunpack.c.l.b16 %v8613
        %v8956 = vunpack.c.h.b16 %v8613
        %v8957 = vunpack.c.l.b16 %v8614
        %v8958 = vunpack.c.h.b16 %v8614
        %v8959 = vunpack.c.l.b16 %v8615
        %v8960 = vunpack.c.h.b16 %v8615
        %v8961 = vunpack.c.l.b16 %v8616
        %v8962 = vunpack.c.h.b16 %v8616
        %v8963 = vunpack.c.l.b16 %v8617
        %v8964 = vunpack.c.h.b16 %v8617
        %v8965 = vunpack.c.l.b16 %v8618
        %v8966 = vunpack.c.h.b16 %v8618
        %v8967 = vunpack.c.l.b16 %v8619
        %v8968 = vunpack.c.h.b16 %v8619
        %v8969 = vunpack.c.l.b16 %v8620
        %v8970 = vunpack.c.h.b16 %v8620
        %v8971 = vunpack.c.l.b16 %v8621
        %v8972 = vunpack.c.h.b16 %v8621
        %v8973 = vunpack.c.l.b16 %v8622
        %v8974 = vunpack.c.h.b16 %v8622
        %v8975 = vunpack.c.l.b16 %v8623
        %v8976 = vunpack.c.h.b16 %v8623
        %v8977 = vunpack.c.l.b16 %v8624
        %v8978 = vunpack.c.h.b16 %v8624
        %v8979 = vunpack.c.l.b16 %v8625
        %v8980 = vunpack.c.h.b16 %v8625
        %v8981 = vunpack.c.l.b16 %v8626
        %v8982 = vunpack.c.h.b16 %v8626
        %v8983 = vunpack.c.l.b16 %v8627
        %v8984 = vunpack.c.h.b16 %v8627
        %v8985 = vunpack.c.l.b16 %v8628
        %v8986 = vunpack.c.h.b16 %v8628
        %v8987 = vunpack.c.l.b16 %v8629
        %v8988 = vunpack.c.h.b16 %v8629
        %v8989 = vunpack.c.l.b16 %v8630
        %v8990 = vunpack.c.h.b16 %v8630
        %v8991 = vunpack.c.l.b16 %v8631
        %v8992 = vunpack.c.h.b16 %v8631
        %v8993 = vunpack.c.l.b16 %v8632
        %v8994 = vunpack.c.h.b16 %v8632
        %v8995 = vunpack.c.l.b16 %v8633
        %v8996 = vunpack.c.h.b16 %v8633
        %v8997 = vunpack.c.l.b16 %v8634
        %v8998 = vunpack.c.h.b16 %v8634
        %v8999 = vunpack.c.l.b16 %v8635
        %v9000 = vunpack.c.h.b16 %v8635
        %v9001 = vunpack.c.l.b16 %v8636
        %v9002 = vunpack.c.h.b16 %v8636
        %v9003 = vunpack.c.l.b16 %v8637
        %v9004 = vunpack.c.h.b16 %v8637
        %v9005 = vunpack.c.l.b16 %v8638
        %v9006 = vunpack.c.h.b16 %v8638
        %v9007 = vunpack.c.l.b16 %v8639
        %v9008 = vunpack.c.h.b16 %v8639
        %v9009 = vunpack.c.l.b16 %v8640
        %v9010 = vunpack.c.h.b16 %v8640
        %v9011 = vunpack.c.l.b16 %v8641
        %v9012 = vunpack.c.h.b16 %v8641
        %v9013 = vunpack.c.l.b16 %v8642
        %v9014 = vunpack.c.h.b16 %v8642
        %v9015 = vunpack.c.l.b16 %v8643
        %v9016 = vunpack.c.h.b16 %v8643
        %v9017 = vunpack.c.l.b16 %v8644
        %v9018 = vunpack.c.h.b16 %v8644
        %v9019 = vunpack.c.l.b16 %v8645
        %v9020 = vunpack.c.h.b16 %v8645
        %v9021 = vunpack.c.l.b16 %v8646
        %v9022 = vunpack.c.h.b16 %v8646
        %v9023 = vunpack.c.l.b16 %v8647
        %v9024 = vunpack.c.h.b16 %v8647
        %v9025 = vunpack.c.l.b16 %v8648
        %v9026 = vunpack.c.h.b16 %v8648
        %v9027 = vunpack.c.l.b16 %v8649
        %v9028 = vunpack.c.h.b16 %v8649
        %v9029 = vunpack.c.l.b16 %v8650
        %v9030 = vunpack.c.h.b16 %v8650
        %v9031 = vunpack.c.l.b16 %v8651
        %v9032 = vunpack.c.h.b16 %v8651
        %v9033 = vunpack.c.l.b16 %v8652
        %v9034 = vunpack.c.h.b16 %v8652
        %v9035 = vunpack.c.l.b16 %v8653
        %v9036 = vunpack.c.h.b16 %v8653
        %v9037 = vunpack.c.l.b16 %v8654
        %v9038 = vunpack.c.h.b16 %v8654
        %v9039 = vunpack.c.l.b16 %v8655
        %v9040 = vunpack.c.h.b16 %v8655
        %v9041 = vunpack.c.l.b16 %v8656
        %v9042 = vunpack.c.h.b16 %v8656
        %v9043 = vunpack.c.l.b16 %v8657
        %v9044 = vunpack.c.h.b16 %v8657
        %v9045 = vunpack.c.l.b16 %v8658
        %v9046 = vunpack.c.h.b16 %v8658
        %v9047 = vunpack.c.l.b16 %v8659
        %v9048 = vunpack.c.h.b16 %v8659
        %v9049 = vunpack.c.l.b16 %v8660
        %v9050 = vunpack.c.h.b16 %v8660
        %v9051 = vunpack.c.l.b16 %v8661
        %v9052 = vunpack.c.h.b16 %v8661
        %v9053 = vpack.c.b16 %v8799, %v8797
        %v9054 = vpack.c.b16 %v8800, %v8798
        %v9055 = vpack.c.b16 %v8803, %v8801
        %v9056 = vpack.c.b16 %v8804, %v8802
        %v9057 = vpack.c.b16 %v8807, %v8805
        %v9058 = vpack.c.b16 %v8808, %v8806
        %v9059 = vpack.c.b16 %v8811, %v8809
        %v9060 = vpack.c.b16 %v8812, %v8810
        %v9061 = vpack.c.b16 %v8815, %v8813
        %v9062 = vpack.c.b16 %v8816, %v8814
        %v9063 = vpack.c.b16 %v8819, %v8817
        %v9064 = vpack.c.b16 %v8820, %v8818
        %v9065 = vpack.c.b16 %v8823, %v8821
        %v9066 = vpack.c.b16 %v8824, %v8822
        %v9067 = vpack.c.b16 %v8827, %v8825
        %v9068 = vpack.c.b16 %v8828, %v8826
        %v9069 = vpack.c.b16 %v8831, %v8829
        %v9070 = vpack.c.b16 %v8832, %v8830
        %v9071 = vpack.c.b16 %v8835, %v8833
        %v9072 = vpack.c.b16 %v8836, %v8834
        %v9073 = vpack.c.b16 %v8839, %v8837
        %v9074 = vpack.c.b16 %v8840, %v8838
        %v9075 = vpack.c.b16 %v8843, %v8841
        %v9076 = vpack.c.b16 %v8844, %v8842
        %v9077 = vpack.c.b16 %v8847, %v8845
        %v9078 = vpack.c.b16 %v8848, %v8846
        %v9079 = vpack.c.b16 %v8851, %v8849
        %v9080 = vpack.c.b16 %v8852, %v8850
        %v9081 = vpack.c.b16 %v8855, %v8853
        %v9082 = vpack.c.b16 %v8856, %v8854
        %v9083 = vpack.c.b16 %v8859, %v8857
        %v9084 = vpack.c.b16 %v8860, %v8858
        %v9085 = vpack.c.b16 %v8863, %v8861
        %v9086 = vpack.c.b16 %v8864, %v8862
        %v9087 = vpack.c.b16 %v8867, %v8865
        %v9088 = vpack.c.b16 %v8868, %v8866
        %v9089 = vpack.c.b16 %v8871, %v8869
        %v9090 = vpack.c.b16 %v8872, %v8870
        %v9091 = vpack.c.b16 %v8875, %v8873
        %v9092 = vpack.c.b16 %v8876, %v8874
        %v9093 = vpack.c.b16 %v8879, %v8877
        %v9094 = vpack.c.b16 %v8880, %v8878
        %v9095 = vpack.c.b16 %v8883, %v8881
        %v9096 = vpack.c.b16 %v8884, %v8882
        %v9097 = vpack.c.b16 %v8887, %v8885
        %v9098 = vpack.c.b16 %v8888, %v8886
        %v9099 = vpack.c.b16 %v8891, %v8889
        %v9100 = vpack.c.b16 %v8892, %v8890
        %v9101 = vpack.c.b16 %v8895, %v8893
        %v9102 = vpack.c.b16 %v8896, %v8894
        %v9103 = vpack.c.b16 %v8899, %v8897
        %v9104 = vpack.c.b16 %v8900, %v8898
        %v9105 = vpack.c.b16 %v8903, %v8901
        %v9106 = vpack.c.b16 %v8904, %v8902
        %v9107 = vpack.c.b16 %v8907, %v8905
        %v9108 = vpack.c.b16 %v8908, %v8906
        %v9109 = vpack.c.b16 %v8911, %v8909
        %v9110 = vpack.c.b16 %v8912, %v8910
        %v9111 = vpack.c.b16 %v8915, %v8913
        %v9112 = vpack.c.b16 %v8916, %v8914
        %v9113 = vpack.c.b16 %v8919, %v8917
        %v9114 = vpack.c.b16 %v8920, %v8918
        %v9115 = vpack.c.b16 %v8923, %v8921
        %v9116 = vpack.c.b16 %v8924, %v8922
        %v9117 = vpack.c.b16 %v8927, %v8925
        %v9118 = vpack.c.b16 %v8928, %v8926
        %v9119 = vpack.c.b16 %v8931, %v8929
        %v9120 = vpack.c.b16 %v8932, %v8930
        %v9121 = vpack.c.b16 %v8935, %v8933
        %v9122 = vpack.c.b16 %v8936, %v8934
        %v9123 = vpack.c.b16 %v8939, %v8937
        %v9124 = vpack.c.b16 %v8940, %v8938
        %v9125 = vpack.c.b16 %v8943, %v8941
        %v9126 = vpack.c.b16 %v8944, %v8942
        %v9127 = vpack.c.b16 %v8947, %v8945
        %v9128 = vpack.c.b16 %v8948, %v8946
        %v9129 = vpack.c.b16 %v8951, %v8949
        %v9130 = vpack.c.b16 %v8952, %v8950
        %v9131 = vpack.c.b16 %v8955, %v8953
        %v9132 = vpack.c.b16 %v8956, %v8954
        %v9133 = vpack.c.b16 %v8959, %v8957
        %v9134 = vpack.c.b16 %v8960, %v8958
        %v9135 = vpack.c.b16 %v8963, %v8961
        %v9136 = vpack.c.b16 %v8964, %v8962
        %v9137 = vpack.c.b16 %v8967, %v8965
        %v9138 = vpack.c.b16 %v8968, %v8966
        %v9139 = vpack.c.b16 %v8971, %v8969
        %v9140 = vpack.c.b16 %v8972, %v8970
        %v9141 = vpack.c.b16 %v8975, %v8973
        %v9142 = vpack.c.b16 %v8976, %v8974
        %v9143 = vpack.c.b16 %v8979, %v8977
        %v9144 = vpack.c.b16 %v8980, %v8978
        %v9145 = vpack.c.b16 %v8983, %v8981
        %v9146 = vpack.c.b16 %v8984, %v8982
        %v9147 = vpack.c.b16 %v8987, %v8985
        %v9148 = vpack.c.b16 %v8988, %v8986
        %v9149 = vpack.c.b16 %v8991, %v8989
        %v9150 = vpack.c.b16 %v8992, %v8990
        %v9151 = vpack.c.b16 %v8995, %v8993
        %v9152 = vpack.c.b16 %v8996, %v8994
        %v9153 = vpack.c.b16 %v8999, %v8997
        %v9154 = vpack.c.b16 %v9000, %v8998
        %v9155 = vpack.c.b16 %v9003, %v9001
        %v9156 = vpack.c.b16 %v9004, %v9002
        %v9157 = vpack.c.b16 %v9007, %v9005
        %v9158 = vpack.c.b16 %v9008, %v9006
        %v9159 = vpack.c.b16 %v9011, %v9009
        %v9160 = vpack.c.b16 %v9012, %v9010
        %v9161 = vpack.c.b16 %v9015, %v9013
        %v9162 = vpack.c.b16 %v9016, %v9014
        %v9163 = vpack.c.b16 %v9019, %v9017
        %v9164 = vpack.c.b16 %v9020, %v9018
        %v9165 = vpack.c.b16 %v9023, %v9021
        %v9166 = vpack.c.b16 %v9024, %v9022
        %v9167 = vpack.c.b16 %v9027, %v9025
        %v9168 = vpack.c.b16 %v9028, %v9026
        %v9169 = vpack.c.b16 %v9031, %v9029
        %v9170 = vpack.c.b16 %v9032, %v9030
        %v9171 = vpack.c.b16 %v9035, %v9033
        %v9172 = vpack.c.b16 %v9036, %v9034
        %v9173 = vpack.c.b16 %v9039, %v9037
        %v9174 = vpack.c.b16 %v9040, %v9038
        %v9175 = vpack.c.b16 %v9043, %v9041
        %v9176 = vpack.c.b16 %v9044, %v9042
        %v9177 = vpack.c.b16 %v9047, %v9045
        %v9178 = vpack.c.b16 %v9048, %v9046
        %v9179 = vpack.c.b16 %v9051, %v9049
        %v9180 = vpack.c.b16 %v9052, %v9050
        %9309 = vmatpush.bf16.msra.mxu0 %v9067
        %9310 = vmatpush.bf16.msra.mxu0 %v9065
        %9311 = vmatpush.bf16.msra.mxu0 %v9063
        %9312 = vmatpush.bf16.msra.mxu0 %v9061
        %9313 = vmatpush.bf16.msra.mxu0 %v9059
        %9314 = vmatpush.bf16.msra.mxu0 %v9057
        %9315 = vmatpush.bf16.msra.mxu0 %v9055
        %9316 = vmatpush.bf16.msra.mxu0 %v9053
        %9317 = vmatmul.bf16.gmra.mxu0 %v8468
        %v9318 = vpop.f32.mrf.mxu0
        %v9319 = vadd.f32 %v8665, %v9318
        %v9320 = vpop.f32.mrf.mxu0
        %v9321 = vadd.f32 %v8665, %v9320
        %9322 = vmatmul.bf16.gmra.mxu0 %v8476
        %v9323 = vpop.f32.mrf.mxu0
        %v9324 = vadd.f32 %v8665, %v9323
        %v9325 = vpop.f32.mrf.mxu0
        %v9326 = vadd.f32 %v8665, %v9325
        %9327 = vmatmul.bf16.gmra.mxu0 %v8484
        %v9328 = vpop.f32.mrf.mxu0
        %v9329 = vadd.f32 %v8665, %v9328
        %v9330 = vpop.f32.mrf.mxu0
        %v9331 = vadd.f32 %v8665, %v9330
        %9332 = vmatmul.bf16.gmra.mxu0 %v8492
        %v9333 = vpop.f32.mrf.mxu0
        %v9334 = vadd.f32 %v8665, %v9333
        %v9335 = vpop.f32.mrf.mxu0
        %v9336 = vadd.f32 %v8665, %v9335
        %9337 = vmatmul.bf16.gmra.mxu0 %v8500
        %v9338 = vpop.f32.mrf.mxu0
        %v9339 = vadd.f32 %v8665, %v9338
        %v9340 = vpop.f32.mrf.mxu0
        %v9341 = vadd.f32 %v8665, %v9340
        %9342 = vmatmul.bf16.gmra.mxu0 %v8508
        %v9343 = vpop.f32.mrf.mxu0
        %v9344 = vadd.f32 %v8665, %v9343
        %v9345 = vpop.f32.mrf.mxu0
        %v9346 = vadd.f32 %v8665, %v9345
        %9347 = vmatmul.bf16.gmra.mxu0 %v8516
        %v9348 = vpop.f32.mrf.mxu0
        %v9349 = vadd.f32 %v8665, %v9348
        %v9350 = vpop.f32.mrf.mxu0
        %v9351 = vadd.f32 %v8665, %v9350
        %9352 = vmatmul.bf16.gmra.mxu0 %v8524
        %v9353 = vpop.f32.mrf.mxu0
        %v9354 = vadd.f32 %v8665, %v9353
        %v9355 = vpop.f32.mrf.mxu0
        %v9356 = vadd.f32 %v8665, %v9355
        %9357 = vdwg.mxu0
        %9358 = vmatpush.bf16.msra.mxu0 %v9083
        %9359 = vmatpush.bf16.msra.mxu0 %v9081
        %9360 = vmatpush.bf16.msra.mxu0 %v9079
        %9361 = vmatpush.bf16.msra.mxu0 %v9077
        %9362 = vmatpush.bf16.msra.mxu0 %v9075
        %9363 = vmatpush.bf16.msra.mxu0 %v9073
        %9364 = vmatpush.bf16.msra.mxu0 %v9071
        %9365 = vmatpush.bf16.msra.mxu0 %v9069
        %9366 = vmatmul.bf16.gmra.mxu0 %v8469
        %v9367 = vpop.f32.mrf.mxu0
        %v9368 = vadd.f32 %v9319, %v9367
        %v9369 = vpop.f32.mrf.mxu0
        %v9370 = vadd.f32 %v9321, %v9369
        %9371 = vmatmul.bf16.gmra.mxu0 %v8477
        %v9372 = vpop.f32.mrf.mxu0
        %v9373 = vadd.f32 %v9324, %v9372
        %v9374 = vpop.f32.mrf.mxu0
        %v9375 = vadd.f32 %v9326, %v9374
        %9376 = vmatmul.bf16.gmra.mxu0 %v8485
        %v9377 = vpop.f32.mrf.mxu0
        %v9378 = vadd.f32 %v9329, %v9377
        %v9379 = vpop.f32.mrf.mxu0
        %v9380 = vadd.f32 %v9331, %v9379
        %9381 = vmatmul.bf16.gmra.mxu0 %v8493
        %v9382 = vpop.f32.mrf.mxu0
        %v9383 = vadd.f32 %v9334, %v9382
        %v9384 = vpop.f32.mrf.mxu0
        %v9385 = vadd.f32 %v9336, %v9384
        %9386 = vmatmul.bf16.gmra.mxu0 %v8501
        %v9387 = vpop.f32.mrf.mxu0
        %v9388 = vadd.f32 %v9339, %v9387
        %v9389 = vpop.f32.mrf.mxu0
        %v9390 = vadd.f32 %v9341, %v9389
        %9391 = vmatmul.bf16.gmra.mxu0 %v8509
        %v9392 = vpop.f32.mrf.mxu0
        %v9393 = vadd.f32 %v9344, %v9392
        %v9394 = vpop.f32.mrf.mxu0
        %v9395 = vadd.f32 %v9346, %v9394
        %9396 = vmatmul.bf16.gmra.mxu0 %v8517
        %v9397 = vpop.f32.mrf.mxu0
        %v9398 = vadd.f32 %v9349, %v9397
        %v9399 = vpop.f32.mrf.mxu0
        %v9400 = vadd.f32 %v9351, %v9399
        %9401 = vmatmul.bf16.gmra.mxu0 %v8525
        %v9402 = vpop.f32.mrf.mxu0
        %v9403 = vadd.f32 %v9354, %v9402
        %v9404 = vpop.f32.mrf.mxu0
        %v9405 = vadd.f32 %v9356, %v9404
        %9406 = vdwg.mxu0
        %9407 = vmatpush.bf16.msra.mxu0 %v9099
        %9408 = vmatpush.bf16.msra.mxu0 %v9097
        %9409 = vmatpush.bf16.msra.mxu0 %v9095
        %9410 = vmatpush.bf16.msra.mxu0 %v9093
        %9411 = vmatpush.bf16.msra.mxu0 %v9091
        %9412 = vmatpush.bf16.msra.mxu0 %v9089
        %9413 = vmatpush.bf16.msra.mxu0 %v9087
        %9414 = vmatpush.bf16.msra.mxu0 %v9085
        %9415 = vmatmul.bf16.gmra.mxu0 %v8470
        %v9416 = vpop.f32.mrf.mxu0
        %v9417 = vadd.f32 %v9368, %v9416
        %v9418 = vpop.f32.mrf.mxu0
        %v9419 = vadd.f32 %v9370, %v9418
        %9420 = vmatmul.bf16.gmra.mxu0 %v8478
        %v9421 = vpop.f32.mrf.mxu0
        %v9422 = vadd.f32 %v9373, %v9421
        %v9423 = vpop.f32.mrf.mxu0
        %v9424 = vadd.f32 %v9375, %v9423
        %9425 = vmatmul.bf16.gmra.mxu0 %v8486
        %v9426 = vpop.f32.mrf.mxu0
        %v9427 = vadd.f32 %v9378, %v9426
        %v9428 = vpop.f32.mrf.mxu0
        %v9429 = vadd.f32 %v9380, %v9428
        %9430 = vmatmul.bf16.gmra.mxu0 %v8494
        %v9431 = vpop.f32.mrf.mxu0
        %v9432 = vadd.f32 %v9383, %v9431
        %v9433 = vpop.f32.mrf.mxu0
        %v9434 = vadd.f32 %v9385, %v9433
        %9435 = vmatmul.bf16.gmra.mxu0 %v8502
        %v9436 = vpop.f32.mrf.mxu0
        %v9437 = vadd.f32 %v9388, %v9436
        %v9438 = vpop.f32.mrf.mxu0
        %v9439 = vadd.f32 %v9390, %v9438
        %9440 = vmatmul.bf16.gmra.mxu0 %v8510
        %v9441 = vpop.f32.mrf.mxu0
        %v9442 = vadd.f32 %v9393, %v9441
        %v9443 = vpop.f32.mrf.mxu0
        %v9444 = vadd.f32 %v9395, %v9443
        %9445 = vmatmul.bf16.gmra.mxu0 %v8518
        %v9446 = vpop.f32.mrf.mxu0
        %v9447 = vadd.f32 %v9398, %v9446
        %v9448 = vpop.f32.mrf.mxu0
        %v9449 = vadd.f32 %v9400, %v9448
        %9450 = vmatmul.bf16.gmra.mxu0 %v8526
        %v9451 = vpop.f32.mrf.mxu0
        %v9452 = vadd.f32 %v9403, %v9451
        %v9453 = vpop.f32.mrf.mxu0
        %v9454 = vadd.f32 %v9405, %v9453
        %9455 = vdwg.mxu0
        %9456 = vmatpush.bf16.msra.mxu0 %v9115
        %9457 = vmatpush.bf16.msra.mxu0 %v9113
        %9458 = vmatpush.bf16.msra.mxu0 %v9111
        %9459 = vmatpush.bf16.msra.mxu0 %v9109
        %9460 = vmatpush.bf16.msra.mxu0 %v9107
        %9461 = vmatpush.bf16.msra.mxu0 %v9105
        %9462 = vmatpush.bf16.msra.mxu0 %v9103
        %9463 = vmatpush.bf16.msra.mxu0 %v9101
        %9464 = vmatmul.bf16.gmra.mxu0 %v8471
        %v9465 = vpop.f32.mrf.mxu0
        %v9466 = vadd.f32 %v9417, %v9465
        %v9467 = vpop.f32.mrf.mxu0
        %v9468 = vadd.f32 %v9419, %v9467
        %9469 = vmatmul.bf16.gmra.mxu0 %v8479
        %v9470 = vpop.f32.mrf.mxu0
        %v9471 = vadd.f32 %v9422, %v9470
        %v9472 = vpop.f32.mrf.mxu0
        %v9473 = vadd.f32 %v9424, %v9472
        %9474 = vmatmul.bf16.gmra.mxu0 %v8487
        %v9475 = vpop.f32.mrf.mxu0
        %v9476 = vadd.f32 %v9427, %v9475
        %v9477 = vpop.f32.mrf.mxu0
        %v9478 = vadd.f32 %v9429, %v9477
        %9479 = vmatmul.bf16.gmra.mxu0 %v8495
        %v9480 = vpop.f32.mrf.mxu0
        %v9481 = vadd.f32 %v9432, %v9480
        %v9482 = vpop.f32.mrf.mxu0
        %v9483 = vadd.f32 %v9434, %v9482
        %9484 = vmatmul.bf16.gmra.mxu0 %v8503
        %v9485 = vpop.f32.mrf.mxu0
        %v9486 = vadd.f32 %v9437, %v9485
        %v9487 = vpop.f32.mrf.mxu0
        %v9488 = vadd.f32 %v9439, %v9487
        %9489 = vmatmul.bf16.gmra.mxu0 %v8511
        %v9490 = vpop.f32.mrf.mxu0
        %v9491 = vadd.f32 %v9442, %v9490
        %v9492 = vpop.f32.mrf.mxu0
        %v9493 = vadd.f32 %v9444, %v9492
        %9494 = vmatmul.bf16.gmra.mxu0 %v8519
        %v9495 = vpop.f32.mrf.mxu0
        %v9496 = vadd.f32 %v9447, %v9495
        %v9497 = vpop.f32.mrf.mxu0
        %v9498 = vadd.f32 %v9449, %v9497
        %9499 = vmatmul.bf16.gmra.mxu0 %v8527
        %v9500 = vpop.f32.mrf.mxu0
        %v9501 = vadd.f32 %v9452, %v9500
        %v9502 = vpop.f32.mrf.mxu0
        %v9503 = vadd.f32 %v9454, %v9502
        %9504 = vdwg.mxu0
        %9505 = vmatpush.bf16.msra.mxu0 %v9131
        %9506 = vmatpush.bf16.msra.mxu0 %v9129
        %9507 = vmatpush.bf16.msra.mxu0 %v9127
        %9508 = vmatpush.bf16.msra.mxu0 %v9125
        %9509 = vmatpush.bf16.msra.mxu0 %v9123
        %9510 = vmatpush.bf16.msra.mxu0 %v9121
        %9511 = vmatpush.bf16.msra.mxu0 %v9119
        %9512 = vmatpush.bf16.msra.mxu0 %v9117
        %9513 = vmatmul.bf16.gmra.mxu0 %v8472
        %v9514 = vpop.f32.mrf.mxu0
        %v9515 = vadd.f32 %v9466, %v9514
        %v9516 = vpop.f32.mrf.mxu0
        %v9517 = vadd.f32 %v9468, %v9516
        %9518 = vmatmul.bf16.gmra.mxu0 %v8480
        %v9519 = vpop.f32.mrf.mxu0
        %v9520 = vadd.f32 %v9471, %v9519
        %v9521 = vpop.f32.mrf.mxu0
        %v9522 = vadd.f32 %v9473, %v9521
        %9523 = vmatmul.bf16.gmra.mxu0 %v8488
        %v9524 = vpop.f32.mrf.mxu0
        %v9525 = vadd.f32 %v9476, %v9524
        %v9526 = vpop.f32.mrf.mxu0
        %v9527 = vadd.f32 %v9478, %v9526
        %9528 = vmatmul.bf16.gmra.mxu0 %v8496
        %v9529 = vpop.f32.mrf.mxu0
        %v9530 = vadd.f32 %v9481, %v9529
        %v9531 = vpop.f32.mrf.mxu0
        %v9532 = vadd.f32 %v9483, %v9531
        %9533 = vmatmul.bf16.gmra.mxu0 %v8504
        %v9534 = vpop.f32.mrf.mxu0
        %v9535 = vadd.f32 %v9486, %v9534
        %v9536 = vpop.f32.mrf.mxu0
        %v9537 = vadd.f32 %v9488, %v9536
        %9538 = vmatmul.bf16.gmra.mxu0 %v8512
        %v9539 = vpop.f32.mrf.mxu0
        %v9540 = vadd.f32 %v9491, %v9539
        %v9541 = vpop.f32.mrf.mxu0
        %v9542 = vadd.f32 %v9493, %v9541
        %9543 = vmatmul.bf16.gmra.mxu0 %v8520
        %v9544 = vpop.f32.mrf.mxu0
        %v9545 = vadd.f32 %v9496, %v9544
        %v9546 = vpop.f32.mrf.mxu0
        %v9547 = vadd.f32 %v9498, %v9546
        %9548 = vmatmul.bf16.gmra.mxu0 %v8528
        %v9549 = vpop.f32.mrf.mxu0
        %v9550 = vadd.f32 %v9501, %v9549
        %v9551 = vpop.f32.mrf.mxu0
        %v9552 = vadd.f32 %v9503, %v9551
        %9553 = vdwg.mxu0
        %9554 = vmatpush.bf16.msra.mxu0 %v9147
        %9555 = vmatpush.bf16.msra.mxu0 %v9145
        %9556 = vmatpush.bf16.msra.mxu0 %v9143
        %9557 = vmatpush.bf16.msra.mxu0 %v9141
        %9558 = vmatpush.bf16.msra.mxu0 %v9139
        %9559 = vmatpush.bf16.msra.mxu0 %v9137
        %9560 = vmatpush.bf16.msra.mxu0 %v9135
        %9561 = vmatpush.bf16.msra.mxu0 %v9133
        %9562 = vmatmul.bf16.gmra.mxu0 %v8473
        %v9563 = vpop.f32.mrf.mxu0
        %v9564 = vadd.f32 %v9515, %v9563
        %v9565 = vpop.f32.mrf.mxu0
        %v9566 = vadd.f32 %v9517, %v9565
        %9567 = vmatmul.bf16.gmra.mxu0 %v8481
        %v9568 = vpop.f32.mrf.mxu0
        %v9569 = vadd.f32 %v9520, %v9568
        %v9570 = vpop.f32.mrf.mxu0
        %v9571 = vadd.f32 %v9522, %v9570
        %9572 = vmatmul.bf16.gmra.mxu0 %v8489
        %v9573 = vpop.f32.mrf.mxu0
        %v9574 = vadd.f32 %v9525, %v9573
        %v9575 = vpop.f32.mrf.mxu0
        %v9576 = vadd.f32 %v9527, %v9575
        %9577 = vmatmul.bf16.gmra.mxu0 %v8497
        %v9578 = vpop.f32.mrf.mxu0
        %v9579 = vadd.f32 %v9530, %v9578
        %v9580 = vpop.f32.mrf.mxu0
        %v9581 = vadd.f32 %v9532, %v9580
        %9582 = vmatmul.bf16.gmra.mxu0 %v8505
        %v9583 = vpop.f32.mrf.mxu0
        %v9584 = vadd.f32 %v9535, %v9583
        %v9585 = vpop.f32.mrf.mxu0
        %v9586 = vadd.f32 %v9537, %v9585
        %9587 = vmatmul.bf16.gmra.mxu0 %v8513
        %v9588 = vpop.f32.mrf.mxu0
        %v9589 = vadd.f32 %v9540, %v9588
        %v9590 = vpop.f32.mrf.mxu0
        %v9591 = vadd.f32 %v9542, %v9590
        %9592 = vmatmul.bf16.gmra.mxu0 %v8521
        %v9593 = vpop.f32.mrf.mxu0
        %v9594 = vadd.f32 %v9545, %v9593
        %v9595 = vpop.f32.mrf.mxu0
        %v9596 = vadd.f32 %v9547, %v9595
        %9597 = vmatmul.bf16.gmra.mxu0 %v8529
        %v9598 = vpop.f32.mrf.mxu0
        %v9599 = vadd.f32 %v9550, %v9598
        %v9600 = vpop.f32.mrf.mxu0
        %v9601 = vadd.f32 %v9552, %v9600
        %9602 = vdwg.mxu0
        %9603 = vmatpush.bf16.msra.mxu0 %v9163
        %9604 = vmatpush.bf16.msra.mxu0 %v9161
        %9605 = vmatpush.bf16.msra.mxu0 %v9159
        %9606 = vmatpush.bf16.msra.mxu0 %v9157
        %9607 = vmatpush.bf16.msra.mxu0 %v9155
        %9608 = vmatpush.bf16.msra.mxu0 %v9153
        %9609 = vmatpush.bf16.msra.mxu0 %v9151
        %9610 = vmatpush.bf16.msra.mxu0 %v9149
        %9611 = vmatmul.bf16.gmra.mxu0 %v8474
        %v9612 = vpop.f32.mrf.mxu0
        %v9613 = vadd.f32 %v9564, %v9612
        %v9614 = vpop.f32.mrf.mxu0
        %v9615 = vadd.f32 %v9566, %v9614
        %9616 = vmatmul.bf16.gmra.mxu0 %v8482
        %v9617 = vpop.f32.mrf.mxu0
        %v9618 = vadd.f32 %v9569, %v9617
        %v9619 = vpop.f32.mrf.mxu0
        %v9620 = vadd.f32 %v9571, %v9619
        %9621 = vmatmul.bf16.gmra.mxu0 %v8490
        %v9622 = vpop.f32.mrf.mxu0
        %v9623 = vadd.f32 %v9574, %v9622
        %v9624 = vpop.f32.mrf.mxu0
        %v9625 = vadd.f32 %v9576, %v9624
        %9626 = vmatmul.bf16.gmra.mxu0 %v8498
        %v9627 = vpop.f32.mrf.mxu0
        %v9628 = vadd.f32 %v9579, %v9627
        %v9629 = vpop.f32.mrf.mxu0
        %v9630 = vadd.f32 %v9581, %v9629
        %9631 = vmatmul.bf16.gmra.mxu0 %v8506
        %v9632 = vpop.f32.mrf.mxu0
        %v9633 = vadd.f32 %v9584, %v9632
        %v9634 = vpop.f32.mrf.mxu0
        %v9635 = vadd.f32 %v9586, %v9634
        %9636 = vmatmul.bf16.gmra.mxu0 %v8514
        %v9637 = vpop.f32.mrf.mxu0
        %v9638 = vadd.f32 %v9589, %v9637
        %v9639 = vpop.f32.mrf.mxu0
        %v9640 = vadd.f32 %v9591, %v9639
        %9641 = vmatmul.bf16.gmra.mxu0 %v8522
        %v9642 = vpop.f32.mrf.mxu0
        %v9643 = vadd.f32 %v9594, %v9642
        %v9644 = vpop.f32.mrf.mxu0
        %v9645 = vadd.f32 %v9596, %v9644
        %9646 = vmatmul.bf16.gmra.mxu0 %v8530
        %v9647 = vpop.f32.mrf.mxu0
        %v9648 = vadd.f32 %v9599, %v9647
        %v9649 = vpop.f32.mrf.mxu0
        %v9650 = vadd.f32 %v9601, %v9649
        %9651 = vdwg.mxu0
        %9652 = vmatpush.bf16.msra.mxu0 %v9179
        %9653 = vmatpush.bf16.msra.mxu0 %v9177
        %9654 = vmatpush.bf16.msra.mxu0 %v9175
        %9655 = vmatpush.bf16.msra.mxu0 %v9173
        %9656 = vmatpush.bf16.msra.mxu0 %v9171
        %9657 = vmatpush.bf16.msra.mxu0 %v9169
        %9658 = vmatpush.bf16.msra.mxu0 %v9167
        %9659 = vmatpush.bf16.msra.mxu0 %v9165
        %9660 = vmatmul.bf16.gmra.mxu0 %v8475
        %v9661 = vpop.f32.mrf.mxu0
        %v9662 = vadd.f32 %v9613, %v9661
        %v9663 = vpop.f32.mrf.mxu0
        %v9664 = vadd.f32 %v9615, %v9663
        %9665 = vmatmul.bf16.gmra.mxu0 %v8483
        %v9666 = vpop.f32.mrf.mxu0
        %v9667 = vadd.f32 %v9618, %v9666
        %v9668 = vpop.f32.mrf.mxu0
        %v9669 = vadd.f32 %v9620, %v9668
        %9670 = vmatmul.bf16.gmra.mxu0 %v8491
        %v9671 = vpop.f32.mrf.mxu0
        %v9672 = vadd.f32 %v9623, %v9671
        %v9673 = vpop.f32.mrf.mxu0
        %v9674 = vadd.f32 %v9625, %v9673
        %9675 = vmatmul.bf16.gmra.mxu0 %v8499
        %v9676 = vpop.f32.mrf.mxu0
        %v9677 = vadd.f32 %v9628, %v9676
        %v9678 = vpop.f32.mrf.mxu0
        %v9679 = vadd.f32 %v9630, %v9678
        %9680 = vmatmul.bf16.gmra.mxu0 %v8507
        %v9681 = vpop.f32.mrf.mxu0
        %v9682 = vadd.f32 %v9633, %v9681
        %v9683 = vpop.f32.mrf.mxu0
        %v9684 = vadd.f32 %v9635, %v9683
        %9685 = vmatmul.bf16.gmra.mxu0 %v8515
        %v9686 = vpop.f32.mrf.mxu0
        %v9687 = vadd.f32 %v9638, %v9686
        %v9688 = vpop.f32.mrf.mxu0
        %v9689 = vadd.f32 %v9640, %v9688
        %9690 = vmatmul.bf16.gmra.mxu0 %v8523
        %v9691 = vpop.f32.mrf.mxu0
        %v9692 = vadd.f32 %v9643, %v9691
        %v9693 = vpop.f32.mrf.mxu0
        %v9694 = vadd.f32 %v9645, %v9693
        %9695 = vmatmul.bf16.gmra.mxu0 %v8531
        %v9696 = vpop.f32.mrf.mxu0
        %v9697 = vadd.f32 %v9648, %v9696
        %v9698 = vpop.f32.mrf.mxu0
        %v9699 = vadd.f32 %v9650, %v9698
        %9700 = vdwg.mxu0
        %9701 = vmatpush.bf16.msra.mxu0 %v9068
        %9702 = vmatpush.bf16.msra.mxu0 %v9066
        %9703 = vmatpush.bf16.msra.mxu0 %v9064
        %9704 = vmatpush.bf16.msra.mxu0 %v9062
        %9705 = vmatpush.bf16.msra.mxu0 %v9060
        %9706 = vmatpush.bf16.msra.mxu0 %v9058
        %9707 = vmatpush.bf16.msra.mxu0 %v9056
        %9708 = vmatpush.bf16.msra.mxu0 %v9054
        %9709 = vmatmul.bf16.gmra.mxu0 %v8468
        %v9710 = vpop.f32.mrf.mxu0
        %v9711 = vadd.f32 %v8666, %v9710
        %v9712 = vpop.f32.mrf.mxu0
        %v9713 = vadd.f32 %v8666, %v9712
        %9714 = vmatmul.bf16.gmra.mxu0 %v8476
        %v9715 = vpop.f32.mrf.mxu0
        %v9716 = vadd.f32 %v8666, %v9715
        %v9717 = vpop.f32.mrf.mxu0
        %v9718 = vadd.f32 %v8666, %v9717
        %9719 = vmatmul.bf16.gmra.mxu0 %v8484
        %v9720 = vpop.f32.mrf.mxu0
        %v9721 = vadd.f32 %v8666, %v9720
        %v9722 = vpop.f32.mrf.mxu0
        %v9723 = vadd.f32 %v8666, %v9722
        %9724 = vmatmul.bf16.gmra.mxu0 %v8492
        %v9725 = vpop.f32.mrf.mxu0
        %v9726 = vadd.f32 %v8666, %v9725
        %v9727 = vpop.f32.mrf.mxu0
        %v9728 = vadd.f32 %v8666, %v9727
        %9729 = vmatmul.bf16.gmra.mxu0 %v8500
        %v9730 = vpop.f32.mrf.mxu0
        %v9731 = vadd.f32 %v8666, %v9730
        %v9732 = vpop.f32.mrf.mxu0
        %v9733 = vadd.f32 %v8666, %v9732
        %9734 = vmatmul.bf16.gmra.mxu0 %v8508
        %v9735 = vpop.f32.mrf.mxu0
        %v9736 = vadd.f32 %v8666, %v9735
        %v9737 = vpop.f32.mrf.mxu0
        %v9738 = vadd.f32 %v8666, %v9737
        %9739 = vmatmul.bf16.gmra.mxu0 %v8516
        %v9740 = vpop.f32.mrf.mxu0
        %v9741 = vadd.f32 %v8666, %v9740
        %v9742 = vpop.f32.mrf.mxu0
        %v9743 = vadd.f32 %v8666, %v9742
        %9744 = vmatmul.bf16.gmra.mxu0 %v8524
        %v9745 = vpop.f32.mrf.mxu0
        %v9746 = vadd.f32 %v8666, %v9745
        %v9747 = vpop.f32.mrf.mxu0
        %v9748 = vadd.f32 %v8666, %v9747
        %9749 = vdwg.mxu0
        %9750 = vmatpush.bf16.msra.mxu0 %v9084
        %9751 = vmatpush.bf16.msra.mxu0 %v9082
        %9752 = vmatpush.bf16.msra.mxu0 %v9080
        %9753 = vmatpush.bf16.msra.mxu0 %v9078
        %9754 = vmatpush.bf16.msra.mxu0 %v9076
        %9755 = vmatpush.bf16.msra.mxu0 %v9074
        %9756 = vmatpush.bf16.msra.mxu0 %v9072
        %9757 = vmatpush.bf16.msra.mxu0 %v9070
        %9758 = vmatmul.bf16.gmra.mxu0 %v8469
        %v9759 = vpop.f32.mrf.mxu0
        %v9760 = vadd.f32 %v9711, %v9759
        %v9761 = vpop.f32.mrf.mxu0
        %v9762 = vadd.f32 %v9713, %v9761
        %9763 = vmatmul.bf16.gmra.mxu0 %v8477
        %v9764 = vpop.f32.mrf.mxu0
        %v9765 = vadd.f32 %v9716, %v9764
        %v9766 = vpop.f32.mrf.mxu0
        %v9767 = vadd.f32 %v9718, %v9766
        %9768 = vmatmul.bf16.gmra.mxu0 %v8485
        %v9769 = vpop.f32.mrf.mxu0
        %v9770 = vadd.f32 %v9721, %v9769
        %v9771 = vpop.f32.mrf.mxu0
        %v9772 = vadd.f32 %v9723, %v9771
        %9773 = vmatmul.bf16.gmra.mxu0 %v8493
        %v9774 = vpop.f32.mrf.mxu0
        %v9775 = vadd.f32 %v9726, %v9774
        %v9776 = vpop.f32.mrf.mxu0
        %v9777 = vadd.f32 %v9728, %v9776
        %9778 = vmatmul.bf16.gmra.mxu0 %v8501
        %v9779 = vpop.f32.mrf.mxu0
        %v9780 = vadd.f32 %v9731, %v9779
        %v9781 = vpop.f32.mrf.mxu0
        %v9782 = vadd.f32 %v9733, %v9781
        %9783 = vmatmul.bf16.gmra.mxu0 %v8509
        %v9784 = vpop.f32.mrf.mxu0
        %v9785 = vadd.f32 %v9736, %v9784
        %v9786 = vpop.f32.mrf.mxu0
        %v9787 = vadd.f32 %v9738, %v9786
        %9788 = vmatmul.bf16.gmra.mxu0 %v8517
        %v9789 = vpop.f32.mrf.mxu0
        %v9790 = vadd.f32 %v9741, %v9789
        %v9791 = vpop.f32.mrf.mxu0
        %v9792 = vadd.f32 %v9743, %v9791
        %9793 = vmatmul.bf16.gmra.mxu0 %v8525
        %v9794 = vpop.f32.mrf.mxu0
        %v9795 = vadd.f32 %v9746, %v9794
        %v9796 = vpop.f32.mrf.mxu0
        %v9797 = vadd.f32 %v9748, %v9796
        %9798 = vdwg.mxu0
        %9799 = vmatpush.bf16.msra.mxu0 %v9100
        %9800 = vmatpush.bf16.msra.mxu0 %v9098
        %9801 = vmatpush.bf16.msra.mxu0 %v9096
        %9802 = vmatpush.bf16.msra.mxu0 %v9094
        %9803 = vmatpush.bf16.msra.mxu0 %v9092
        %9804 = vmatpush.bf16.msra.mxu0 %v9090
        %9805 = vmatpush.bf16.msra.mxu0 %v9088
        %9806 = vmatpush.bf16.msra.mxu0 %v9086
        %9807 = vmatmul.bf16.gmra.mxu0 %v8470
        %v9808 = vpop.f32.mrf.mxu0
        %v9809 = vadd.f32 %v9760, %v9808
        %v9810 = vpop.f32.mrf.mxu0
        %v9811 = vadd.f32 %v9762, %v9810
        %9812 = vmatmul.bf16.gmra.mxu0 %v8478
        %v9813 = vpop.f32.mrf.mxu0
        %v9814 = vadd.f32 %v9765, %v9813
        %v9815 = vpop.f32.mrf.mxu0
        %v9816 = vadd.f32 %v9767, %v9815
        %9817 = vmatmul.bf16.gmra.mxu0 %v8486
        %v9818 = vpop.f32.mrf.mxu0
        %v9819 = vadd.f32 %v9770, %v9818
        %v9820 = vpop.f32.mrf.mxu0
        %v9821 = vadd.f32 %v9772, %v9820
        %9822 = vmatmul.bf16.gmra.mxu0 %v8494
        %v9823 = vpop.f32.mrf.mxu0
        %v9824 = vadd.f32 %v9775, %v9823
        %v9825 = vpop.f32.mrf.mxu0
        %v9826 = vadd.f32 %v9777, %v9825
        %9827 = vmatmul.bf16.gmra.mxu0 %v8502
        %v9828 = vpop.f32.mrf.mxu0
        %v9829 = vadd.f32 %v9780, %v9828
        %v9830 = vpop.f32.mrf.mxu0
        %v9831 = vadd.f32 %v9782, %v9830
        %9832 = vmatmul.bf16.gmra.mxu0 %v8510
        %v9833 = vpop.f32.mrf.mxu0
        %v9834 = vadd.f32 %v9785, %v9833
        %v9835 = vpop.f32.mrf.mxu0
        %v9836 = vadd.f32 %v9787, %v9835
        %9837 = vmatmul.bf16.gmra.mxu0 %v8518
        %v9838 = vpop.f32.mrf.mxu0
        %v9839 = vadd.f32 %v9790, %v9838
        %v9840 = vpop.f32.mrf.mxu0
        %v9841 = vadd.f32 %v9792, %v9840
        %9842 = vmatmul.bf16.gmra.mxu0 %v8526
        %v9843 = vpop.f32.mrf.mxu0
        %v9844 = vadd.f32 %v9795, %v9843
        %v9845 = vpop.f32.mrf.mxu0
        %v9846 = vadd.f32 %v9797, %v9845
        %9847 = vdwg.mxu0
        %9848 = vmatpush.bf16.msra.mxu0 %v9116
        %9849 = vmatpush.bf16.msra.mxu0 %v9114
        %9850 = vmatpush.bf16.msra.mxu0 %v9112
        %9851 = vmatpush.bf16.msra.mxu0 %v9110
        %9852 = vmatpush.bf16.msra.mxu0 %v9108
        %9853 = vmatpush.bf16.msra.mxu0 %v9106
        %9854 = vmatpush.bf16.msra.mxu0 %v9104
        %9855 = vmatpush.bf16.msra.mxu0 %v9102
        %9856 = vmatmul.bf16.gmra.mxu0 %v8471
        %v9857 = vpop.f32.mrf.mxu0
        %v9858 = vadd.f32 %v9809, %v9857
        %v9859 = vpop.f32.mrf.mxu0
        %v9860 = vadd.f32 %v9811, %v9859
        %9861 = vmatmul.bf16.gmra.mxu0 %v8479
        %v9862 = vpop.f32.mrf.mxu0
        %v9863 = vadd.f32 %v9814, %v9862
        %v9864 = vpop.f32.mrf.mxu0
        %v9865 = vadd.f32 %v9816, %v9864
        %9866 = vmatmul.bf16.gmra.mxu0 %v8487
        %v9867 = vpop.f32.mrf.mxu0
        %v9868 = vadd.f32 %v9819, %v9867
        %v9869 = vpop.f32.mrf.mxu0
        %v9870 = vadd.f32 %v9821, %v9869
        %9871 = vmatmul.bf16.gmra.mxu0 %v8495
        %v9872 = vpop.f32.mrf.mxu0
        %v9873 = vadd.f32 %v9824, %v9872
        %v9874 = vpop.f32.mrf.mxu0
        %v9875 = vadd.f32 %v9826, %v9874
        %9876 = vmatmul.bf16.gmra.mxu0 %v8503
        %v9877 = vpop.f32.mrf.mxu0
        %v9878 = vadd.f32 %v9829, %v9877
        %v9879 = vpop.f32.mrf.mxu0
        %v9880 = vadd.f32 %v9831, %v9879
        %9881 = vmatmul.bf16.gmra.mxu0 %v8511
        %v9882 = vpop.f32.mrf.mxu0
        %v9883 = vadd.f32 %v9834, %v9882
        %v9884 = vpop.f32.mrf.mxu0
        %v9885 = vadd.f32 %v9836, %v9884
        %9886 = vmatmul.bf16.gmra.mxu0 %v8519
        %v9887 = vpop.f32.mrf.mxu0
        %v9888 = vadd.f32 %v9839, %v9887
        %v9889 = vpop.f32.mrf.mxu0
        %v9890 = vadd.f32 %v9841, %v9889
        %9891 = vmatmul.bf16.gmra.mxu0 %v8527
        %v9892 = vpop.f32.mrf.mxu0
        %v9893 = vadd.f32 %v9844, %v9892
        %v9894 = vpop.f32.mrf.mxu0
        %v9895 = vadd.f32 %v9846, %v9894
        %9896 = vdwg.mxu0
        %9897 = vmatpush.bf16.msra.mxu0 %v9132
        %9898 = vmatpush.bf16.msra.mxu0 %v9130
        %9899 = vmatpush.bf16.msra.mxu0 %v9128
        %9900 = vmatpush.bf16.msra.mxu0 %v9126
        %9901 = vmatpush.bf16.msra.mxu0 %v9124
        %9902 = vmatpush.bf16.msra.mxu0 %v9122
        %9903 = vmatpush.bf16.msra.mxu0 %v9120
        %9904 = vmatpush.bf16.msra.mxu0 %v9118
        %9905 = vmatmul.bf16.gmra.mxu0 %v8472
        %v9906 = vpop.f32.mrf.mxu0
        %v9907 = vadd.f32 %v9858, %v9906
        %v9908 = vpop.f32.mrf.mxu0
        %v9909 = vadd.f32 %v9860, %v9908
        %9910 = vmatmul.bf16.gmra.mxu0 %v8480
        %v9911 = vpop.f32.mrf.mxu0
        %v9912 = vadd.f32 %v9863, %v9911
        %v9913 = vpop.f32.mrf.mxu0
        %v9914 = vadd.f32 %v9865, %v9913
        %9915 = vmatmul.bf16.gmra.mxu0 %v8488
        %v9916 = vpop.f32.mrf.mxu0
        %v9917 = vadd.f32 %v9868, %v9916
        %v9918 = vpop.f32.mrf.mxu0
        %v9919 = vadd.f32 %v9870, %v9918
        %9920 = vmatmul.bf16.gmra.mxu0 %v8496
        %v9921 = vpop.f32.mrf.mxu0
        %v9922 = vadd.f32 %v9873, %v9921
        %v9923 = vpop.f32.mrf.mxu0
        %v9924 = vadd.f32 %v9875, %v9923
        %9925 = vmatmul.bf16.gmra.mxu0 %v8504
        %v9926 = vpop.f32.mrf.mxu0
        %v9927 = vadd.f32 %v9878, %v9926
        %v9928 = vpop.f32.mrf.mxu0
        %v9929 = vadd.f32 %v9880, %v9928
        %9930 = vmatmul.bf16.gmra.mxu0 %v8512
        %v9931 = vpop.f32.mrf.mxu0
        %v9932 = vadd.f32 %v9883, %v9931
        %v9933 = vpop.f32.mrf.mxu0
        %v9934 = vadd.f32 %v9885, %v9933
        %9935 = vmatmul.bf16.gmra.mxu0 %v8520
        %v9936 = vpop.f32.mrf.mxu0
        %v9937 = vadd.f32 %v9888, %v9936
        %v9938 = vpop.f32.mrf.mxu0
        %v9939 = vadd.f32 %v9890, %v9938
        %9940 = vmatmul.bf16.gmra.mxu0 %v8528
        %v9941 = vpop.f32.mrf.mxu0
        %v9942 = vadd.f32 %v9893, %v9941
        %v9943 = vpop.f32.mrf.mxu0
        %v9944 = vadd.f32 %v9895, %v9943
        %9945 = vdwg.mxu0
        %9946 = vmatpush.bf16.msra.mxu0 %v9148
        %9947 = vmatpush.bf16.msra.mxu0 %v9146
        %9948 = vmatpush.bf16.msra.mxu0 %v9144
        %9949 = vmatpush.bf16.msra.mxu0 %v9142
        %9950 = vmatpush.bf16.msra.mxu0 %v9140
        %9951 = vmatpush.bf16.msra.mxu0 %v9138
        %9952 = vmatpush.bf16.msra.mxu0 %v9136
        %9953 = vmatpush.bf16.msra.mxu0 %v9134
        %9954 = vmatmul.bf16.gmra.mxu0 %v8473
        %v9955 = vpop.f32.mrf.mxu0
        %v9956 = vadd.f32 %v9907, %v9955
        %v9957 = vpop.f32.mrf.mxu0
        %v9958 = vadd.f32 %v9909, %v9957
        %9959 = vmatmul.bf16.gmra.mxu0 %v8481
        %v9960 = vpop.f32.mrf.mxu0
        %v9961 = vadd.f32 %v9912, %v9960
        %v9962 = vpop.f32.mrf.mxu0
        %v9963 = vadd.f32 %v9914, %v9962
        %9964 = vmatmul.bf16.gmra.mxu0 %v8489
        %v9965 = vpop.f32.mrf.mxu0
        %v9966 = vadd.f32 %v9917, %v9965
        %v9967 = vpop.f32.mrf.mxu0
        %v9968 = vadd.f32 %v9919, %v9967
        %9969 = vmatmul.bf16.gmra.mxu0 %v8497
        %v9970 = vpop.f32.mrf.mxu0
        %v9971 = vadd.f32 %v9922, %v9970
        %v9972 = vpop.f32.mrf.mxu0
        %v9973 = vadd.f32 %v9924, %v9972
        %9974 = vmatmul.bf16.gmra.mxu0 %v8505
        %v9975 = vpop.f32.mrf.mxu0
        %v9976 = vadd.f32 %v9927, %v9975
        %v9977 = vpop.f32.mrf.mxu0
        %v9978 = vadd.f32 %v9929, %v9977
        %9979 = vmatmul.bf16.gmra.mxu0 %v8513
        %v9980 = vpop.f32.mrf.mxu0
        %v9981 = vadd.f32 %v9932, %v9980
        %v9982 = vpop.f32.mrf.mxu0
        %v9983 = vadd.f32 %v9934, %v9982
        %9984 = vmatmul.bf16.gmra.mxu0 %v8521
        %v9985 = vpop.f32.mrf.mxu0
        %v9986 = vadd.f32 %v9937, %v9985
        %v9987 = vpop.f32.mrf.mxu0
        %v9988 = vadd.f32 %v9939, %v9987
        %9989 = vmatmul.bf16.gmra.mxu0 %v8529
        %v9990 = vpop.f32.mrf.mxu0
        %v9991 = vadd.f32 %v9942, %v9990
        %v9992 = vpop.f32.mrf.mxu0
        %v9993 = vadd.f32 %v9944, %v9992
        %9994 = vdwg.mxu0
        %9995 = vmatpush.bf16.msra.mxu0 %v9164
        %9996 = vmatpush.bf16.msra.mxu0 %v9162
        %9997 = vmatpush.bf16.msra.mxu0 %v9160
        %9998 = vmatpush.bf16.msra.mxu0 %v9158
        %9999 = vmatpush.bf16.msra.mxu0 %v9156
        %10000 = vmatpush.bf16.msra.mxu0 %v9154
        %10001 = vmatpush.bf16.msra.mxu0 %v9152
        %10002 = vmatpush.bf16.msra.mxu0 %v9150
        %10003 = vmatmul.bf16.gmra.mxu0 %v8474
        %v10004 = vpop.f32.mrf.mxu0
        %v10005 = vadd.f32 %v9956, %v10004
        %v10006 = vpop.f32.mrf.mxu0
        %v10007 = vadd.f32 %v9958, %v10006
        %10008 = vmatmul.bf16.gmra.mxu0 %v8482
        %v10009 = vpop.f32.mrf.mxu0
        %v10010 = vadd.f32 %v9961, %v10009
        %v10011 = vpop.f32.mrf.mxu0
        %v10012 = vadd.f32 %v9963, %v10011
        %10013 = vmatmul.bf16.gmra.mxu0 %v8490
        %v10014 = vpop.f32.mrf.mxu0
        %v10015 = vadd.f32 %v9966, %v10014
        %v10016 = vpop.f32.mrf.mxu0
        %v10017 = vadd.f32 %v9968, %v10016
        %10018 = vmatmul.bf16.gmra.mxu0 %v8498
        %v10019 = vpop.f32.mrf.mxu0
        %v10020 = vadd.f32 %v9971, %v10019
        %v10021 = vpop.f32.mrf.mxu0
        %v10022 = vadd.f32 %v9973, %v10021
        %10023 = vmatmul.bf16.gmra.mxu0 %v8506
        %v10024 = vpop.f32.mrf.mxu0
        %v10025 = vadd.f32 %v9976, %v10024
        %v10026 = vpop.f32.mrf.mxu0
        %v10027 = vadd.f32 %v9978, %v10026
        %10028 = vmatmul.bf16.gmra.mxu0 %v8514
        %v10029 = vpop.f32.mrf.mxu0
        %v10030 = vadd.f32 %v9981, %v10029
        %v10031 = vpop.f32.mrf.mxu0
        %v10032 = vadd.f32 %v9983, %v10031
        %10033 = vmatmul.bf16.gmra.mxu0 %v8522
        %v10034 = vpop.f32.mrf.mxu0
        %v10035 = vadd.f32 %v9986, %v10034
        %v10036 = vpop.f32.mrf.mxu0
        %v10037 = vadd.f32 %v9988, %v10036
        %10038 = vmatmul.bf16.gmra.mxu0 %v8530
        %v10039 = vpop.f32.mrf.mxu0
        %v10040 = vadd.f32 %v9991, %v10039
        %v10041 = vpop.f32.mrf.mxu0
        %v10042 = vadd.f32 %v9993, %v10041
        %10043 = vdwg.mxu0
        %10044 = vmatpush.bf16.msra.mxu0 %v9180
        %10045 = vmatpush.bf16.msra.mxu0 %v9178
        %10046 = vmatpush.bf16.msra.mxu0 %v9176
        %10047 = vmatpush.bf16.msra.mxu0 %v9174
        %10048 = vmatpush.bf16.msra.mxu0 %v9172
        %10049 = vmatpush.bf16.msra.mxu0 %v9170
        %10050 = vmatpush.bf16.msra.mxu0 %v9168
        %10051 = vmatpush.bf16.msra.mxu0 %v9166
        %10052 = vmatmul.bf16.gmra.mxu0 %v8475
        %v10053 = vpop.f32.mrf.mxu0
        %v10054 = vadd.f32 %v10005, %v10053
        %v10055 = vpop.f32.mrf.mxu0
        %v10056 = vadd.f32 %v10007, %v10055
        %10057 = vmatmul.bf16.gmra.mxu0 %v8483
        %v10058 = vpop.f32.mrf.mxu0
        %v10059 = vadd.f32 %v10010, %v10058
        %v10060 = vpop.f32.mrf.mxu0
        %v10061 = vadd.f32 %v10012, %v10060
        %10062 = vmatmul.bf16.gmra.mxu0 %v8491
        %v10063 = vpop.f32.mrf.mxu0
        %v10064 = vadd.f32 %v10015, %v10063
        %v10065 = vpop.f32.mrf.mxu0
        %v10066 = vadd.f32 %v10017, %v10065
        %10067 = vmatmul.bf16.gmra.mxu0 %v8499
        %v10068 = vpop.f32.mrf.mxu0
        %v10069 = vadd.f32 %v10020, %v10068
        %v10070 = vpop.f32.mrf.mxu0
        %v10071 = vadd.f32 %v10022, %v10070
        %10072 = vmatmul.bf16.gmra.mxu0 %v8507
        %v10073 = vpop.f32.mrf.mxu0
        %v10074 = vadd.f32 %v10025, %v10073
        %v10075 = vpop.f32.mrf.mxu0
        %v10076 = vadd.f32 %v10027, %v10075
        %10077 = vmatmul.bf16.gmra.mxu0 %v8515
        %v10078 = vpop.f32.mrf.mxu0
        %v10079 = vadd.f32 %v10030, %v10078
        %v10080 = vpop.f32.mrf.mxu0
        %v10081 = vadd.f32 %v10032, %v10080
        %10082 = vmatmul.bf16.gmra.mxu0 %v8523
        %v10083 = vpop.f32.mrf.mxu0
        %v10084 = vadd.f32 %v10035, %v10083
        %v10085 = vpop.f32.mrf.mxu0
        %v10086 = vadd.f32 %v10037, %v10085
        %10087 = vmatmul.bf16.gmra.mxu0 %v8531
        %v10088 = vpop.f32.mrf.mxu0
        %v10089 = vadd.f32 %v10040, %v10088
        %v10090 = vpop.f32.mrf.mxu0
        %v10091 = vadd.f32 %v10042, %v10090
        %10092 = vdwg.mxu0
        %v10093 = vadd.f32 %v5693, %v9662
        %v10094 = vadd.f32 %v5694, %v10054
        %v10095 = vadd.f32 %v5695, %v9664
        %v10096 = vadd.f32 %v5696, %v10056
        %v10097 = vadd.f32 %v5697, %v9667
        %v10098 = vadd.f32 %v5698, %v10059
        %v10099 = vadd.f32 %v5699, %v9669
        %v10100 = vadd.f32 %v5700, %v10061
        %v10101 = vadd.f32 %v5701, %v9672
        %v10102 = vadd.f32 %v5702, %v10064
        %v10103 = vadd.f32 %v5703, %v9674
        %v10104 = vadd.f32 %v5704, %v10066
        %v10105 = vadd.f32 %v5705, %v9677
        %v10106 = vadd.f32 %v5706, %v10069
        %v10107 = vadd.f32 %v5707, %v9679
        %v10108 = vadd.f32 %v5708, %v10071
        %v10109 = vadd.f32 %v5709, %v9682
        %v10110 = vadd.f32 %v5710, %v10074
        %v10111 = vadd.f32 %v5711, %v9684
        %v10112 = vadd.f32 %v5712, %v10076
        %v10113 = vadd.f32 %v5713, %v9687
        %v10114 = vadd.f32 %v5714, %v10079
        %v10115 = vadd.f32 %v5715, %v9689
        %v10116 = vadd.f32 %v5716, %v10081
        %v10117 = vadd.f32 %v5717, %v9692
        %v10118 = vadd.f32 %v5718, %v10084
        %v10119 = vadd.f32 %v5719, %v9694
        %v10120 = vadd.f32 %v5720, %v10086
        %v10121 = vadd.f32 %v5721, %v9697
        %v10122 = vadd.f32 %v5722, %v10089
        %v10123 = vadd.f32 %v5723, %v9699
        %v10124 = vadd.f32 %v5724, %v10091
        %s10125 = scalar_lea.vmem %s14, %s4764
        %v10126 = vld [vmem:[%s10125] sm:$0x3]
        %s10127 = scalar_lea.vmem %s15, %s4764
        %v10128 = vld [vmem:[%s10127] sm:$0x3]
        %v10129 = vadd.f32 %v10093, %v10094
        %10130 = vadd.xlane.f32.xlu0 %v10129
        %v10131 = vpop.xlane.xlu0 %10130
        %v10132 = vadd.f32 %v10095, %v10096
        %10133 = vadd.xlane.f32.xlu0 %v10132
        %v10134 = vpop.xlane.xlu0 %10133
        %v10135 = vadd.f32 %v10097, %v10098
        %10136 = vadd.xlane.f32.xlu0 %v10135
        %v10137 = vpop.xlane.xlu0 %10136
        %v10138 = vadd.f32 %v10099, %v10100
        %10139 = vadd.xlane.f32.xlu0 %v10138
        %v10140 = vpop.xlane.xlu0 %10139
        %v10141 = vadd.f32 %v10101, %v10102
        %10142 = vadd.xlane.f32.xlu0 %v10141
        %v10143 = vpop.xlane.xlu0 %10142
        %v10144 = vadd.f32 %v10103, %v10104
        %10145 = vadd.xlane.f32.xlu0 %v10144
        %v10146 = vpop.xlane.xlu0 %10145
        %v10147 = vadd.f32 %v10105, %v10106
        %10148 = vadd.xlane.f32.xlu0 %v10147
        %v10149 = vpop.xlane.xlu0 %10148
        %v10150 = vadd.f32 %v10107, %v10108
        %10151 = vadd.xlane.f32.xlu0 %v10150
        %v10152 = vpop.xlane.xlu0 %10151
        %v10153 = vadd.f32 %v10109, %v10110
        %10154 = vadd.xlane.f32.xlu0 %v10153
        %v10155 = vpop.xlane.xlu0 %10154
        %v10156 = vadd.f32 %v10111, %v10112
        %10157 = vadd.xlane.f32.xlu0 %v10156
        %v10158 = vpop.xlane.xlu0 %10157
        %v10159 = vadd.f32 %v10113, %v10114
        %10160 = vadd.xlane.f32.xlu0 %v10159
        %v10161 = vpop.xlane.xlu0 %10160
        %v10162 = vadd.f32 %v10115, %v10116
        %10163 = vadd.xlane.f32.xlu0 %v10162
        %v10164 = vpop.xlane.xlu0 %10163
        %v10165 = vadd.f32 %v10117, %v10118
        %10166 = vadd.xlane.f32.xlu0 %v10165
        %v10167 = vpop.xlane.xlu0 %10166
        %v10168 = vadd.f32 %v10119, %v10120
        %10169 = vadd.xlane.f32.xlu0 %v10168
        %v10170 = vpop.xlane.xlu0 %10169
        %v10171 = vadd.f32 %v10121, %v10122
        %10172 = vadd.xlane.f32.xlu0 %v10171
        %v10173 = vpop.xlane.xlu0 %10172
        %v10174 = vadd.f32 %v10123, %v10124
        %10175 = vadd.xlane.f32.xlu0 %v10174
        %v10176 = vpop.xlane.xlu0 %10175
        %v10177 = vmul.f32 %v10131, %v5298
        %v10178 = vmul.f32 %v10134, %v5298
        %v10179 = vmul.f32 %v10137, %v5298
        %v10180 = vmul.f32 %v10140, %v5298
        %v10181 = vmul.f32 %v10143, %v5298
        %v10182 = vmul.f32 %v10146, %v5298
        %v10183 = vmul.f32 %v10149, %v5298
        %v10184 = vmul.f32 %v10152, %v5298
        %v10185 = vmul.f32 %v10155, %v5298
        %v10186 = vmul.f32 %v10158, %v5298
        %v10187 = vmul.f32 %v10161, %v5298
        %v10188 = vmul.f32 %v10164, %v5298
        %v10189 = vmul.f32 %v10167, %v5298
        %v10190 = vmul.f32 %v10170, %v5298
        %v10191 = vmul.f32 %v10173, %v5298
        %v10192 = vmul.f32 %v10176, %v5298
        %v10193 = vsub.f32 %v10093, %v10177
        %v10194 = vsub.f32 %v10094, %v10177
        %v10195 = vsub.f32 %v10095, %v10178
        %v10196 = vsub.f32 %v10096, %v10178
        %v10197 = vsub.f32 %v10097, %v10179
        %v10198 = vsub.f32 %v10098, %v10179
        %v10199 = vsub.f32 %v10099, %v10180
        %v10200 = vsub.f32 %v10100, %v10180
        %v10201 = vsub.f32 %v10101, %v10181
        %v10202 = vsub.f32 %v10102, %v10181
        %v10203 = vsub.f32 %v10103, %v10182
        %v10204 = vsub.f32 %v10104, %v10182
        %v10205 = vsub.f32 %v10105, %v10183
        %v10206 = vsub.f32 %v10106, %v10183
        %v10207 = vsub.f32 %v10107, %v10184
        %v10208 = vsub.f32 %v10108, %v10184
        %v10209 = vsub.f32 %v10109, %v10185
        %v10210 = vsub.f32 %v10110, %v10185
        %v10211 = vsub.f32 %v10111, %v10186
        %v10212 = vsub.f32 %v10112, %v10186
        %v10213 = vsub.f32 %v10113, %v10187
        %v10214 = vsub.f32 %v10114, %v10187
        %v10215 = vsub.f32 %v10115, %v10188
        %v10216 = vsub.f32 %v10116, %v10188
        %v10217 = vsub.f32 %v10117, %v10189
        %v10218 = vsub.f32 %v10118, %v10189
        %v10219 = vsub.f32 %v10119, %v10190
        %v10220 = vsub.f32 %v10120, %v10190
        %v10221 = vsub.f32 %v10121, %v10191
        %v10222 = vsub.f32 %v10122, %v10191
        %v10223 = vsub.f32 %v10123, %v10192
        %v10224 = vsub.f32 %v10124, %v10192
        %v10225 = vmul.f32 %v10193, %v10193
        %v10226 = vmul.f32 %v10194, %v10194
        %v10227 = vmul.f32 %v10195, %v10195
        %v10228 = vmul.f32 %v10196, %v10196
        %v10229 = vmul.f32 %v10197, %v10197
        %v10230 = vmul.f32 %v10198, %v10198
        %v10231 = vmul.f32 %v10199, %v10199
        %v10232 = vmul.f32 %v10200, %v10200
        %v10233 = vmul.f32 %v10201, %v10201
        %v10234 = vmul.f32 %v10202, %v10202
        %v10235 = vmul.f32 %v10203, %v10203
        %v10236 = vmul.f32 %v10204, %v10204
        %v10237 = vmul.f32 %v10205, %v10205
        %v10238 = vmul.f32 %v10206, %v10206
        %v10239 = vmul.f32 %v10207, %v10207
        %v10240 = vmul.f32 %v10208, %v10208
        %v10241 = vmul.f32 %v10209, %v10209
        %v10242 = vmul.f32 %v10210, %v10210
        %v10243 = vmul.f32 %v10211, %v10211
        %v10244 = vmul.f32 %v10212, %v10212
        %v10245 = vmul.f32 %v10213, %v10213
        %v10246 = vmul.f32 %v10214, %v10214
        %v10247 = vmul.f32 %v10215, %v10215
        %v10248 = vmul.f32 %v10216, %v10216
        %v10249 = vmul.f32 %v10217, %v10217
        %v10250 = vmul.f32 %v10218, %v10218
        %v10251 = vmul.f32 %v10219, %v10219
        %v10252 = vmul.f32 %v10220, %v10220
        %v10253 = vmul.f32 %v10221, %v10221
        %v10254 = vmul.f32 %v10222, %v10222
        %v10255 = vmul.f32 %v10223, %v10223
        %v10256 = vmul.f32 %v10224, %v10224
        %v10257 = vadd.f32 %v10225, %v10226
        %10258 = vadd.xlane.f32.xlu0 %v10257
        %v10259 = vpop.xlane.xlu0 %10258
        %v10260 = vadd.f32 %v10227, %v10228
        %10261 = vadd.xlane.f32.xlu0 %v10260
        %v10262 = vpop.xlane.xlu0 %10261
        %v10263 = vadd.f32 %v10229, %v10230
        %10264 = vadd.xlane.f32.xlu0 %v10263
        %v10265 = vpop.xlane.xlu0 %10264
        %v10266 = vadd.f32 %v10231, %v10232
        %10267 = vadd.xlane.f32.xlu0 %v10266
        %v10268 = vpop.xlane.xlu0 %10267
        %v10269 = vadd.f32 %v10233, %v10234
        %10270 = vadd.xlane.f32.xlu0 %v10269
        %v10271 = vpop.xlane.xlu0 %10270
        %v10272 = vadd.f32 %v10235, %v10236
        %10273 = vadd.xlane.f32.xlu0 %v10272
        %v10274 = vpop.xlane.xlu0 %10273
        %v10275 = vadd.f32 %v10237, %v10238
        %10276 = vadd.xlane.f32.xlu0 %v10275
        %v10277 = vpop.xlane.xlu0 %10276
        %v10278 = vadd.f32 %v10239, %v10240
        %10279 = vadd.xlane.f32.xlu0 %v10278
        %v10280 = vpop.xlane.xlu0 %10279
        %v10281 = vadd.f32 %v10241, %v10242
        %10282 = vadd.xlane.f32.xlu0 %v10281
        %v10283 = vpop.xlane.xlu0 %10282
        %v10284 = vadd.f32 %v10243, %v10244
        %10285 = vadd.xlane.f32.xlu0 %v10284
        %v10286 = vpop.xlane.xlu0 %10285
        %v10287 = vadd.f32 %v10245, %v10246
        %10288 = vadd.xlane.f32.xlu0 %v10287
        %v10289 = vpop.xlane.xlu0 %10288
        %v10290 = vadd.f32 %v10247, %v10248
        %10291 = vadd.xlane.f32.xlu0 %v10290
        %v10292 = vpop.xlane.xlu0 %10291
        %v10293 = vadd.f32 %v10249, %v10250
        %10294 = vadd.xlane.f32.xlu0 %v10293
        %v10295 = vpop.xlane.xlu0 %10294
        %v10296 = vadd.f32 %v10251, %v10252
        %10297 = vadd.xlane.f32.xlu0 %v10296
        %v10298 = vpop.xlane.xlu0 %10297
        %v10299 = vadd.f32 %v10253, %v10254
        %10300 = vadd.xlane.f32.xlu0 %v10299
        %v10301 = vpop.xlane.xlu0 %10300
        %v10302 = vadd.f32 %v10255, %v10256
        %10303 = vadd.xlane.f32.xlu0 %v10302
        %v10304 = vpop.xlane.xlu0 %10303
        %v10305 = vmul.f32 %v10259, %v5298
        %v10306 = vmul.f32 %v10262, %v5298
        %v10307 = vmul.f32 %v10265, %v5298
        %v10308 = vmul.f32 %v10268, %v5298
        %v10309 = vmul.f32 %v10271, %v5298
        %v10310 = vmul.f32 %v10274, %v5298
        %v10311 = vmul.f32 %v10277, %v5298
        %v10312 = vmul.f32 %v10280, %v5298
        %v10313 = vmul.f32 %v10283, %v5298
        %v10314 = vmul.f32 %v10286, %v5298
        %v10315 = vmul.f32 %v10289, %v5298
        %v10316 = vmul.f32 %v10292, %v5298
        %v10317 = vmul.f32 %v10295, %v5298
        %v10318 = vmul.f32 %v10298, %v5298
        %v10319 = vmul.f32 %v10301, %v5298
        %v10320 = vmul.f32 %v10304, %v5298
        %v10321 = vadd.f32 %v10305, 1e-12
        %v10322 = vadd.f32 %v10306, 1e-12
        %v10323 = vadd.f32 %v10307, 1e-12
        %v10324 = vadd.f32 %v10308, 1e-12
        %v10325 = vadd.f32 %v10309, 1e-12
        %v10326 = vadd.f32 %v10310, 1e-12
        %v10327 = vadd.f32 %v10311, 1e-12
        %v10328 = vadd.f32 %v10312, 1e-12
        %v10329 = vadd.f32 %v10313, 1e-12
        %v10330 = vadd.f32 %v10314, 1e-12
        %v10331 = vadd.f32 %v10315, 1e-12
        %v10332 = vadd.f32 %v10316, 1e-12
        %v10333 = vadd.f32 %v10317, 1e-12
        %v10334 = vadd.f32 %v10318, 1e-12
        %v10335 = vadd.f32 %v10319, 1e-12
        %v10336 = vadd.f32 %v10320, 1e-12
        %v10337 = vrsqrt.pop %v10321
        %v10338 = vmul.f32 %v10337, %v10321
        %v10339 = vmul.f32 %v10338, %v10337
        %v10340 = vmul.f32 0.5, %v10339
        %v10341 = vsub.f32 1.5, %v10340
        %v10342 = vmul.f32 %v10337, %v10341
        %vm10343 = vweird.f32 %v10321
        %vm10344 = vweird.f32 %v10337
        %vm10345 = vmor %vm10343, %vm10344
        %v10346 = vsel %vm10345, %v10337, %v10342
        %v10347 = vrsqrt.pop %v10322
        %v10348 = vmul.f32 %v10347, %v10322
        %v10349 = vmul.f32 %v10348, %v10347
        %v10350 = vmul.f32 0.5, %v10349
        %v10351 = vsub.f32 1.5, %v10350
        %v10352 = vmul.f32 %v10347, %v10351
        %vm10353 = vweird.f32 %v10322
        %vm10354 = vweird.f32 %v10347
        %vm10355 = vmor %vm10353, %vm10354
        %v10356 = vsel %vm10355, %v10347, %v10352
        %v10357 = vrsqrt.pop %v10323
        %v10358 = vmul.f32 %v10357, %v10323
        %v10359 = vmul.f32 %v10358, %v10357
        %v10360 = vmul.f32 0.5, %v10359
        %v10361 = vsub.f32 1.5, %v10360
        %v10362 = vmul.f32 %v10357, %v10361
        %vm10363 = vweird.f32 %v10323
        %vm10364 = vweird.f32 %v10357
        %vm10365 = vmor %vm10363, %vm10364
        %v10366 = vsel %vm10365, %v10357, %v10362
        %v10367 = vrsqrt.pop %v10324
        %v10368 = vmul.f32 %v10367, %v10324
        %v10369 = vmul.f32 %v10368, %v10367
        %v10370 = vmul.f32 0.5, %v10369
        %v10371 = vsub.f32 1.5, %v10370
        %v10372 = vmul.f32 %v10367, %v10371
        %vm10373 = vweird.f32 %v10324
        %vm10374 = vweird.f32 %v10367
        %vm10375 = vmor %vm10373, %vm10374
        %v10376 = vsel %vm10375, %v10367, %v10372
        %v10377 = vrsqrt.pop %v10325
        %v10378 = vmul.f32 %v10377, %v10325
        %v10379 = vmul.f32 %v10378, %v10377
        %v10380 = vmul.f32 0.5, %v10379
        %v10381 = vsub.f32 1.5, %v10380
        %v10382 = vmul.f32 %v10377, %v10381
        %vm10383 = vweird.f32 %v10325
        %vm10384 = vweird.f32 %v10377
        %vm10385 = vmor %vm10383, %vm10384
        %v10386 = vsel %vm10385, %v10377, %v10382
        %v10387 = vrsqrt.pop %v10326
        %v10388 = vmul.f32 %v10387, %v10326
        %v10389 = vmul.f32 %v10388, %v10387
        %v10390 = vmul.f32 0.5, %v10389
        %v10391 = vsub.f32 1.5, %v10390
        %v10392 = vmul.f32 %v10387, %v10391
        %vm10393 = vweird.f32 %v10326
        %vm10394 = vweird.f32 %v10387
        %vm10395 = vmor %vm10393, %vm10394
        %v10396 = vsel %vm10395, %v10387, %v10392
        %v10397 = vrsqrt.pop %v10327
        %v10398 = vmul.f32 %v10397, %v10327
        %v10399 = vmul.f32 %v10398, %v10397
        %v10400 = vmul.f32 0.5, %v10399
        %v10401 = vsub.f32 1.5, %v10400
        %v10402 = vmul.f32 %v10397, %v10401
        %vm10403 = vweird.f32 %v10327
        %vm10404 = vweird.f32 %v10397
        %vm10405 = vmor %vm10403, %vm10404
        %v10406 = vsel %vm10405, %v10397, %v10402
        %v10407 = vrsqrt.pop %v10328
        %v10408 = vmul.f32 %v10407, %v10328
        %v10409 = vmul.f32 %v10408, %v10407
        %v10410 = vmul.f32 0.5, %v10409
        %v10411 = vsub.f32 1.5, %v10410
        %v10412 = vmul.f32 %v10407, %v10411
        %vm10413 = vweird.f32 %v10328
        %vm10414 = vweird.f32 %v10407
        %vm10415 = vmor %vm10413, %vm10414
        %v10416 = vsel %vm10415, %v10407, %v10412
        %v10417 = vrsqrt.pop %v10329
        %v10418 = vmul.f32 %v10417, %v10329
        %v10419 = vmul.f32 %v10418, %v10417
        %v10420 = vmul.f32 0.5, %v10419
        %v10421 = vsub.f32 1.5, %v10420
        %v10422 = vmul.f32 %v10417, %v10421
        %vm10423 = vweird.f32 %v10329
        %vm10424 = vweird.f32 %v10417
        %vm10425 = vmor %vm10423, %vm10424
        %v10426 = vsel %vm10425, %v10417, %v10422
        %v10427 = vrsqrt.pop %v10330
        %v10428 = vmul.f32 %v10427, %v10330
        %v10429 = vmul.f32 %v10428, %v10427
        %v10430 = vmul.f32 0.5, %v10429
        %v10431 = vsub.f32 1.5, %v10430
        %v10432 = vmul.f32 %v10427, %v10431
        %vm10433 = vweird.f32 %v10330
        %vm10434 = vweird.f32 %v10427
        %vm10435 = vmor %vm10433, %vm10434
        %v10436 = vsel %vm10435, %v10427, %v10432
        %v10437 = vrsqrt.pop %v10331
        %v10438 = vmul.f32 %v10437, %v10331
        %v10439 = vmul.f32 %v10438, %v10437
        %v10440 = vmul.f32 0.5, %v10439
        %v10441 = vsub.f32 1.5, %v10440
        %v10442 = vmul.f32 %v10437, %v10441
        %vm10443 = vweird.f32 %v10331
        %vm10444 = vweird.f32 %v10437
        %vm10445 = vmor %vm10443, %vm10444
        %v10446 = vsel %vm10445, %v10437, %v10442
        %v10447 = vrsqrt.pop %v10332
        %v10448 = vmul.f32 %v10447, %v10332
        %v10449 = vmul.f32 %v10448, %v10447
        %v10450 = vmul.f32 0.5, %v10449
        %v10451 = vsub.f32 1.5, %v10450
        %v10452 = vmul.f32 %v10447, %v10451
        %vm10453 = vweird.f32 %v10332
        %vm10454 = vweird.f32 %v10447
        %vm10455 = vmor %vm10453, %vm10454
        %v10456 = vsel %vm10455, %v10447, %v10452
        %v10457 = vrsqrt.pop %v10333
        %v10458 = vmul.f32 %v10457, %v10333
        %v10459 = vmul.f32 %v10458, %v10457
        %v10460 = vmul.f32 0.5, %v10459
        %v10461 = vsub.f32 1.5, %v10460
        %v10462 = vmul.f32 %v10457, %v10461
        %vm10463 = vweird.f32 %v10333
        %vm10464 = vweird.f32 %v10457
        %vm10465 = vmor %vm10463, %vm10464
        %v10466 = vsel %vm10465, %v10457, %v10462
        %v10467 = vrsqrt.pop %v10334
        %v10468 = vmul.f32 %v10467, %v10334
        %v10469 = vmul.f32 %v10468, %v10467
        %v10470 = vmul.f32 0.5, %v10469
        %v10471 = vsub.f32 1.5, %v10470
        %v10472 = vmul.f32 %v10467, %v10471
        %vm10473 = vweird.f32 %v10334
        %vm10474 = vweird.f32 %v10467
        %vm10475 = vmor %vm10473, %vm10474
        %v10476 = vsel %vm10475, %v10467, %v10472
        %v10477 = vrsqrt.pop %v10335
        %v10478 = vmul.f32 %v10477, %v10335
        %v10479 = vmul.f32 %v10478, %v10477
        %v10480 = vmul.f32 0.5, %v10479
        %v10481 = vsub.f32 1.5, %v10480
        %v10482 = vmul.f32 %v10477, %v10481
        %vm10483 = vweird.f32 %v10335
        %vm10484 = vweird.f32 %v10477
        %vm10485 = vmor %vm10483, %vm10484
        %v10486 = vsel %vm10485, %v10477, %v10482
        %v10487 = vrsqrt.pop %v10336
        %v10488 = vmul.f32 %v10487, %v10336
        %v10489 = vmul.f32 %v10488, %v10487
        %v10490 = vmul.f32 0.5, %v10489
        %v10491 = vsub.f32 1.5, %v10490
        %v10492 = vmul.f32 %v10487, %v10491
        %vm10493 = vweird.f32 %v10336
        %vm10494 = vweird.f32 %v10487
        %vm10495 = vmor %vm10493, %vm10494
        %v10496 = vsel %vm10495, %v10487, %v10492
        %v10497 = vmul.f32 %v10193, %v10346
        %v10498 = vmul.f32 %v10194, %v10346
        %v10499 = vmul.f32 %v10195, %v10356
        %v10500 = vmul.f32 %v10196, %v10356
        %v10501 = vmul.f32 %v10197, %v10366
        %v10502 = vmul.f32 %v10198, %v10366
        %v10503 = vmul.f32 %v10199, %v10376
        %v10504 = vmul.f32 %v10200, %v10376
        %v10505 = vmul.f32 %v10201, %v10386
        %v10506 = vmul.f32 %v10202, %v10386
        %v10507 = vmul.f32 %v10203, %v10396
        %v10508 = vmul.f32 %v10204, %v10396
        %v10509 = vmul.f32 %v10205, %v10406
        %v10510 = vmul.f32 %v10206, %v10406
        %v10511 = vmul.f32 %v10207, %v10416
        %v10512 = vmul.f32 %v10208, %v10416
        %v10513 = vmul.f32 %v10209, %v10426
        %v10514 = vmul.f32 %v10210, %v10426
        %v10515 = vmul.f32 %v10211, %v10436
        %v10516 = vmul.f32 %v10212, %v10436
        %v10517 = vmul.f32 %v10213, %v10446
        %v10518 = vmul.f32 %v10214, %v10446
        %v10519 = vmul.f32 %v10215, %v10456
        %v10520 = vmul.f32 %v10216, %v10456
        %v10521 = vmul.f32 %v10217, %v10466
        %v10522 = vmul.f32 %v10218, %v10466
        %v10523 = vmul.f32 %v10219, %v10476
        %v10524 = vmul.f32 %v10220, %v10476
        %v10525 = vmul.f32 %v10221, %v10486
        %v10526 = vmul.f32 %v10222, %v10486
        %v10527 = vmul.f32 %v10223, %v10496
        %v10528 = vmul.f32 %v10224, %v10496
        %v10530 = vperm.slane %v10126, 0
        %v10531 = vperm.slane %v10126, 1
        %v10534 = vmul.f32 %v10497, %v10530
        %v10535 = vmul.f32 %v10498, %v10531
        %v10536 = vmul.f32 %v10499, %v10530
        %v10537 = vmul.f32 %v10500, %v10531
        %v10538 = vmul.f32 %v10501, %v10530
        %v10539 = vmul.f32 %v10502, %v10531
        %v10540 = vmul.f32 %v10503, %v10530
        %v10541 = vmul.f32 %v10504, %v10531
        %v10542 = vmul.f32 %v10505, %v10530
        %v10543 = vmul.f32 %v10506, %v10531
        %v10544 = vmul.f32 %v10507, %v10530
        %v10545 = vmul.f32 %v10508, %v10531
        %v10546 = vmul.f32 %v10509, %v10530
        %v10547 = vmul.f32 %v10510, %v10531
        %v10548 = vmul.f32 %v10511, %v10530
        %v10549 = vmul.f32 %v10512, %v10531
        %v10550 = vmul.f32 %v10513, %v10530
        %v10551 = vmul.f32 %v10514, %v10531
        %v10552 = vmul.f32 %v10515, %v10530
        %v10553 = vmul.f32 %v10516, %v10531
        %v10554 = vmul.f32 %v10517, %v10530
        %v10555 = vmul.f32 %v10518, %v10531
        %v10556 = vmul.f32 %v10519, %v10530
        %v10557 = vmul.f32 %v10520, %v10531
        %v10558 = vmul.f32 %v10521, %v10530
        %v10559 = vmul.f32 %v10522, %v10531
        %v10560 = vmul.f32 %v10523, %v10530
        %v10561 = vmul.f32 %v10524, %v10531
        %v10562 = vmul.f32 %v10525, %v10530
        %v10563 = vmul.f32 %v10526, %v10531
        %v10564 = vmul.f32 %v10527, %v10530
        %v10565 = vmul.f32 %v10528, %v10531
        %v10567 = vperm.slane %v10128, 0
        %v10568 = vperm.slane %v10128, 1
        %v10571 = vadd.f32 %v10534, %v10567
        %v10572 = vadd.f32 %v10535, %v10568
        %v10573 = vadd.f32 %v10536, %v10567
        %v10574 = vadd.f32 %v10537, %v10568
        %v10575 = vadd.f32 %v10538, %v10567
        %v10576 = vadd.f32 %v10539, %v10568
        %v10577 = vadd.f32 %v10540, %v10567
        %v10578 = vadd.f32 %v10541, %v10568
        %v10579 = vadd.f32 %v10542, %v10567
        %v10580 = vadd.f32 %v10543, %v10568
        %v10581 = vadd.f32 %v10544, %v10567
        %v10582 = vadd.f32 %v10545, %v10568
        %v10583 = vadd.f32 %v10546, %v10567
        %v10584 = vadd.f32 %v10547, %v10568
        %v10585 = vadd.f32 %v10548, %v10567
        %v10586 = vadd.f32 %v10549, %v10568
        %v10587 = vadd.f32 %v10550, %v10567
        %v10588 = vadd.f32 %v10551, %v10568
        %v10589 = vadd.f32 %v10552, %v10567
        %v10590 = vadd.f32 %v10553, %v10568
        %v10591 = vadd.f32 %v10554, %v10567
        %v10592 = vadd.f32 %v10555, %v10568
        %v10593 = vadd.f32 %v10556, %v10567
        %v10594 = vadd.f32 %v10557, %v10568
        %v10595 = vadd.f32 %v10558, %v10567
        %v10596 = vadd.f32 %v10559, %v10568
        %v10597 = vadd.f32 %v10560, %v10567
        %v10598 = vadd.f32 %v10561, %v10568
        %v10599 = vadd.f32 %v10562, %v10567
        %v10600 = vadd.f32 %v10563, %v10568
        %v10601 = vadd.f32 %v10564, %v10567
        %v10602 = vadd.f32 %v10565, %v10568
        %10603 = vst [vmem:[#allocation2] sm:$0xff] %v10571
        %10604 = vst [vmem:[#allocation2 + $0x8] sm:$0xff] %v10572
        %10605 = vst [vmem:[#allocation2 + $0x10] sm:$0xff] %v10573
        %10606 = vst [vmem:[#allocation2 + $0x18] sm:$0xff] %v10574
        %10607 = vst [vmem:[#allocation2 + $0x20] sm:$0xff] %v10575
        %10608 = vst [vmem:[#allocation2 + $0x28] sm:$0xff] %v10576
        %10609 = vst [vmem:[#allocation2 + $0x30] sm:$0xff] %v10577
        %10610 = vst [vmem:[#allocation2 + $0x38] sm:$0xff] %v10578
        %10611 = vst [vmem:[#allocation2 + $0x40] sm:$0xff] %v10579
        %10612 = vst [vmem:[#allocation2 + $0x48] sm:$0xff] %v10580
        %10613 = vst [vmem:[#allocation2 + $0x50] sm:$0xff] %v10581
        %10614 = vst [vmem:[#allocation2 + $0x58] sm:$0xff] %v10582
        %10615 = vst [vmem:[#allocation2 + $0x60] sm:$0xff] %v10583
        %10616 = vst [vmem:[#allocation2 + $0x68] sm:$0xff] %v10584
        %10617 = vst [vmem:[#allocation2 + $0x70] sm:$0xff] %v10585
        %10618 = vst [vmem:[#allocation2 + $0x78] sm:$0xff] %v10586
        %10619 = vst [vmem:[#allocation2 + $0x80] sm:$0xff] %v10587
        %10620 = vst [vmem:[#allocation2 + $0x88] sm:$0xff] %v10588
        %10621 = vst [vmem:[#allocation2 + $0x90] sm:$0xff] %v10589
        %10622 = vst [vmem:[#allocation2 + $0x98] sm:$0xff] %v10590
        %10623 = vst [vmem:[#allocation2 + $0xa0] sm:$0xff] %v10591
        %10624 = vst [vmem:[#allocation2 + $0xa8] sm:$0xff] %v10592
        %10625 = vst [vmem:[#allocation2 + $0xb0] sm:$0xff] %v10593
        %10626 = vst [vmem:[#allocation2 + $0xb8] sm:$0xff] %v10594
        %10627 = vst [vmem:[#allocation2 + $0xc0] sm:$0xff] %v10595
        %10628 = vst [vmem:[#allocation2 + $0xc8] sm:$0xff] %v10596
        %10629 = vst [vmem:[#allocation2 + $0xd0] sm:$0xff] %v10597
        %10630 = vst [vmem:[#allocation2 + $0xd8] sm:$0xff] %v10598
        %10631 = vst [vmem:[#allocation2 + $0xe0] sm:$0xff] %v10599
        %10632 = vst [vmem:[#allocation2 + $0xe8] sm:$0xff] %v10600
        %10633 = vst [vmem:[#allocation2 + $0xf0] sm:$0xff] %v10601
        %10634 = vst [vmem:[#allocation2 + $0xf8] sm:$0xff] %v10602
        %p10635 = scmp.eq.s32.totalorder %s34, 3
        // Predicated region
        $region97: #{geographical_attention_network.1} parent=83 // pred_check
          %p10636 = pneg %p10635
        $region98: #{geographical_attention_network.1} parent=83 // pred_check_branch
          %10638 = sbr.rel (%p10636) target = $region100
        $region99: #{geographical_attention_network.1} parent=83 // pred_region
          %v10639 = vadd.f32 %v10571, %v10573
          %v10640 = vadd.f32 %v10639, %v10575
          %v10641 = vadd.f32 %v10640, %v10577
          %v10642 = vadd.f32 %v10641, %v10579
          %v10643 = vadd.f32 %v10642, %v10581
          %v10644 = vadd.f32 %v10643, %v10583
          %v10645 = vadd.f32 %v10644, %v10585
          %v10646 = vadd.f32 %v10645, %v10587
          %v10647 = vadd.f32 %v10646, %v10589
          %v10648 = vadd.f32 %v10647, %v10591
          %v10649 = vadd.f32 %v10648, %v10593
          %v10650 = vadd.f32 %v10649, %v10595
          %v10651 = vadd.f32 %v10650, %v10597
          %v10652 = vadd.f32 %v10651, %v10599
          %v10653 = vadd.f32 %v10652, %v10601
          %v10654 = vrot.slane %v10653, 4
          %v10655 = vadd.f32 %v10653, %v10654
          %v10656 = vrot.slane %v10655, 2
          %v10657 = vadd.f32 %v10655, %v10656
          %v10658 = vrot.slane %v10657, 1
          %v10659 = vadd.f32 %v10657, %v10658
          %v10660 = vadd.f32 %v10572, %v10574
          %v10661 = vadd.f32 %v10660, %v10576
          %v10662 = vadd.f32 %v10661, %v10578
          %v10663 = vadd.f32 %v10662, %v10580
          %v10664 = vadd.f32 %v10663, %v10582
          %v10665 = vadd.f32 %v10664, %v10584
          %v10666 = vadd.f32 %v10665, %v10586
          %v10667 = vadd.f32 %v10666, %v10588
          %v10668 = vadd.f32 %v10667, %v10590
          %v10669 = vadd.f32 %v10668, %v10592
          %v10670 = vadd.f32 %v10669, %v10594
          %v10671 = vadd.f32 %v10670, %v10596
          %v10672 = vadd.f32 %v10671, %v10598
          %v10673 = vadd.f32 %v10672, %v10600
          %v10674 = vadd.f32 %v10673, %v10602
          %v10675 = vrot.slane %v10674, 4
          %v10676 = vadd.f32 %v10674, %v10675
          %v10677 = vrot.slane %v10676, 2
          %v10678 = vadd.f32 %v10676, %v10677
          %v10679 = vrot.slane %v10678, 1
          %v10680 = vadd.f32 %v10678, %v10679
          %v10681 = vrcp.pop 128.0
          %v10682 = vmul.f32 128.0, %v10681
          %v10683 = vsub.f32 1.0, %v10682
          %v10684 = vmul.f32 %v10681, %v10683
          %v10685 = vadd.f32 %v10681, %v10684
          %vm10686 = vweird.f32 %v10681
          %v10687 = vsel %vm10686, %v10681, %v10685
          %v10688 = vmul.f32 %v10659, %v10687
          %v10689 = vmul.f32 %v10680, %v10687
          %v10692 = vrot.slane %v10689, 7
          %vm10693 = vcmask 1040384
          %v10694 = vsel %vm10693, %v10688, %v10692
          %v10696 = vlaneseq
          %vm10697 = vcmp.ge.s32.totalorder %v10696, 0
          %vm10698 = vcmp.lt.s32.totalorder %v10696, 256
          %vm10699 = vmand %vm10697, %vm10698
          %10700 = vst.msk [vmem:[%s579] sm:$0x3] %vm10699, %v10694
        $region100: #{geographical_attention_network.1} parent=83 // pred_fallthru
          _
        %p10701 = scmp.lt.s32.totalorder %s33, 1
        %s10702 = scalar_select %p10701, %s33, 1
        %s10703 = smul.addr %s10702, 2
        %s10704 = scalar_lea.vmem %s16, %s10703
        // Predicated region
        $region101: #{geographical_attention_network.1} parent=83 // pred_check
          %p10705 = pneg %p405
        $region102: #{geographical_attention_network.1} parent=83 // pred_check_branch
          %10707 = sbr.rel (%p10705) target = $region104
        $region103: #{geographical_attention_network.1} parent=83 // pred_region
          _
        $region104: #{geographical_attention_network.1} parent=83 // pred_fallthru
          _
      $region84: #{geographical_attention_network.1} parent=5 // pred_fallthru
        _
      %p10708 = scmp.le.s32.totalorder 2, %s24
      // Predicated region
      $region105: #{geographical_attention_network.1} parent=5 // pred_check
        %p10709 = pneg %p10708
      $region106: #{geographical_attention_network.1} parent=5 // pred_check_branch
        %10711 = sbr.rel (%p10709) target = $region108
      $region107: #{geographical_attention_network.1} parent=5 // pred_region
        %s10712 = ssub.s32 %s24, 2
        // Predicated region
        $region109: #{geographical_attention_network.1} parent=107 // pred_check
          %p10713 = pneg %p411
        $region110: #{geographical_attention_network.1} parent=107 // pred_check_branch
          %10715 = sbr.rel (%p10713) target = $region112
        $region111: #{geographical_attention_network.1} parent=107 // pred_region
          %p10716 = scmp.lt.s32.totalorder %s35, 1
          %s10717 = scalar_select %p10716, %s35, 1
          %s10718 = smul.addr %s10717, 2
          %s10719 = scalar_lea.vmem %s16, %s10718
        $region112: #{geographical_attention_network.1} parent=107 // pred_fallthru
          _
      $region108: #{geographical_attention_network.1} parent=5 // pred_fallthru
        _
    $region6: #{geographical_attention_network.1} parent=1 // loop_footer
      %s28 = sadd.s32 1, %s24
    $region7: #{geographical_attention_network.1} parent=1 // loop_footer_branch
      %23 = sbr.rel target = $region3
    $region8: #{geographical_attention_network.1} parent=1 // loop_exit
      _
    %10720 = vsyncpa [#allocation6], 1
    %s10721 = scalar_lea.sflag [#allocation6], 1
    %10722 = vsyncpa %s10721, 1
    %10723 = vsyncpa [#allocation8], 1

</llo_original>
